<compile_context>
chip_gen: v6e
topology: v6e:2x2x1
jax: 0.10.0
libtpu: 0.0.40
codegen_flags: <defaults>
</compile_context>

<pallas_src>
import functools

import jax
import jax.numpy as jnp
from jax.experimental import pallas as pl
from jax.experimental.pallas import tpu as pltpu


def _round_up(v, m):
    return (v + m - 1) // m * m


def _layout(IB, H, W):
    """Flattened row-space layout for a block of IB images.

    r0 and the image stride S are multiples of W so that (row % W) == x for every
    data row, which lets the horizontal-wrap masks depend only on (row % W).
    """
    r0 = W * max(2, -(-8 // W))          # leading zero rows: >= W+1, multiple of W
    S = H * W + W                        # image stride = data rows + W gap rows
    M = (IB - 1) * S + H * W             # conv output rows (incl. junk gap rows)
    RP = _round_up(r0 + W + M - 1, 8)    # im2col patch rows
    RX = _round_up(RP + 2, 8)            # flattened activation rows
    RM = _round_up(RP + 1, 8)            # mask rows (slab2 reads mask shifted by 1)
    return r0, S, M, RP, RX, RM


def _pick_image_block(N, H, W, C):
    """Batch several images per grid step (per-step overhead >> per-image compute)."""
    budget = 12 << 20
    for ib in (16, 8, 4, 2, 1):
        if N % ib:
            continue
        _, _, _, RP, RX, RM = _layout(ib, H, W)
        vmem = (RX * C * 4                      # activation scratch (f32)
                + RP * 3 * C * 2                # patch scratch (bf16)
                + 2 * RM * C * 4                # mask (double-buffered)
                + 2 * 2 * ib * H * W * C * 4    # x in + out (double-buffered)
                + 2 * 2 * (2 * 3 * 3 * C * C * 2 + 2 * C * 4))  # weights + biases
        if vmem <= budget:
            return ib
    return 1


def _resblock_kernel(w1_ref, b1_ref, w2_ref, b2_ref, m_ref, x_ref, o_ref,
                     xpad_ref, patch_ref, *, IB, H, W, C, r0, S, M, RP, RX):
    """Conv3x3 -> ReLU -> Conv3x3 -> + identity for a block of IB images.

    w{1,2}_ref : (3, 3*C, C) bf16   per-kernel-row weight slabs w[ky].reshape(3C, C)
    b{1,2}_ref : (1, C)      f32
    m_ref      : (RM, C)     f32    0/1 column masks; row p kills dx=-1 when x==0,
                                    row p+1 kills dx=+1 when x==W-1
    x_ref      : (IB, H*W, C) f32   dense input block (identity + conv input)
    o_ref      : (IB, H*W, C) f32
    xpad_ref   : (RX, C)  f32       flattened activation (halo rows kept at zero);
                                    also serves as the in-place conv accumulator
    patch_ref  : (RP, 3C) bf16      kx-stacked im2col patch (reused by both convs)
    """
    HW = H * W

    def zero_rows(start, n):
        xpad_ref[pl.ds(start, n), :] = jnp.zeros((n, C), jnp.float32)

    def zero_gaps():
        for b in range(IB - 1):
            zero_rows(r0 + b * S + HW, W)

    def build_patch():
        # patch[p, kx*C:(kx+1)*C] = xpad[p + kx] (bf16); side slabs masked so the
        # horizontal wrap across image-row boundaries contributes zero.
        patch_ref[:, 0:C] = (
            xpad_ref[pl.ds(0, RP), :] * m_ref[pl.ds(0, RP), :]).astype(jnp.bfloat16)
        patch_ref[:, C:2 * C] = xpad_ref[pl.ds(1, RP), :].astype(jnp.bfloat16)
        patch_ref[:, 2 * C:3 * C] = (
            xpad_ref[pl.ds(2, RP), :] * m_ref[pl.ds(1, RP), :]).astype(jnp.bfloat16)

    def conv_inplace(w_ref, b_ref, relu):
        # out[r] = bias + sum_ky patch[r + (ky-1)*W - 1, :] @ w[ky]   (K = 3*C)
        # accumulated straight into xpad rows [r0, r0+M) (patch already holds a copy).
        xpad_ref[pl.ds(r0, M), :] = (
            jnp.dot(patch_ref[pl.ds(r0 - W - 1, M), :], w_ref[0],
                    preferred_element_type=jnp.float32) + b_ref[...])
        xpad_ref[pl.ds(r0, M), :] = xpad_ref[pl.ds(r0, M), :] + jnp.dot(
            patch_ref[pl.ds(r0 - 1, M), :], w_ref[1],
            preferred_element_type=jnp.float32)
        acc = xpad_ref[pl.ds(r0, M), :] + jnp.dot(
            patch_ref[pl.ds(r0 + W - 1, M), :], w_ref[2],
            preferred_element_type=jnp.float32)
        if relu:
            acc = jnp.maximum(acc, 0.0)
        xpad_ref[pl.ds(r0, M), :] = acc

    # ---- halo rows must be zero before every patch build (cheap: few rows) --------
    zero_rows(0, r0)
    zero_rows(r0 + M, RX - (r0 + M))
    zero_gaps()

    # ------------------------------- conv1 -----------------------------------------
    for b in range(IB):
        xpad_ref[pl.ds(r0 + b * S, HW), :] = x_ref[b, :, :]
    build_patch()
    conv_inplace(w1_ref, b1_ref, relu=True)

    # ------------------------------- conv2 -----------------------------------------
    zero_gaps()                      # conv1 wrote junk into the gap rows
    build_patch()
    conv_inplace(w2_ref, b2_ref, relu=False)

    # ----------------- residual add + write back only the data rows ----------------
    for b in range(IB):
        o_ref[b, :, :] = (xpad_ref[pl.ds(r0 + b * S, HW), :]
                          + x_ref[b, :, :]).astype(o_ref.dtype)


def residual_block_nobn(x_nhwc, w1, b1, w2, b2, *, image_block=None):
    """x_nhwc: (N, H, W, C) float32.  Weights HWIO (3, 3, C, C); biases (C,)."""
    N, H, W, C = x_nhwc.shape
    IB = _pick_image_block(N, H, W, C) if image_block is None else image_block
    assert N % IB == 0
    r0, S, M, RP, RX, RM = _layout(IB, H, W)

    # Weights: HWIO (3,3,C,C) -> per-kernel-row (3, 3C, C) slabs, bf16 for the MXU.
    w1r = w1.reshape(3, 3 * C, C).astype(jnp.bfloat16)
    w2r = w2.reshape(3, 3 * C, C).astype(jnp.bfloat16)
    b1r = b1.reshape(1, C).astype(jnp.float32)
    b2r = b2.reshape(1, C).astype(jnp.float32)

    # Column masks for the horizontal wrap: mask[p] = 0 iff (p % W) == W-1.
    # Used at offset 0 for the dx=-1 slab and offset +1 for the dx=+1 slab.
    p = jnp.arange(RM) % W
    mask = jnp.broadcast_to(
        (p != (W - 1)).astype(jnp.float32)[:, None], (RM, C))

    x_flat = x_nhwc.reshape(N, H * W, C)   # free reshape; single input DMA stream

    kernel = functools.partial(_resblock_kernel, IB=IB, H=H, W=W, C=C,
                               r0=r0, S=S, M=M, RP=RP, RX=RX)

    out = pl.pallas_call(
        kernel,
        out_shape=jax.ShapeDtypeStruct((N, H * W, C), x_nhwc.dtype),
        grid_spec=pltpu.PrefetchScalarGridSpec(
            num_scalar_prefetch=0,
            grid=(N // IB,),
            in_specs=[
                pl.BlockSpec((3, 3 * C, C), lambda n: (0, 0, 0)),   # w1
                pl.BlockSpec((1, C), lambda n: (0, 0)),             # b1
                pl.BlockSpec((3, 3 * C, C), lambda n: (0, 0, 0)),   # w2
                pl.BlockSpec((1, C), lambda n: (0, 0)),             # b2
                pl.BlockSpec((RM, C), lambda n: (0, 0)),            # column mask
                pl.BlockSpec((IB, H * W, C), lambda n: (n, 0, 0)),  # x
            ],
            out_specs=pl.BlockSpec((IB, H * W, C), lambda n: (n, 0, 0)),
            scratch_shapes=[
                pltpu.VMEM((RX, C), jnp.float32),        # flattened activation / acc
                pltpu.VMEM((RP, 3 * C), jnp.bfloat16),   # kx-stacked im2col patch
            ],
        ),
        compiler_params=pltpu.CompilerParams(
            # Every grid step is self-contained (halo rows re-zeroed each step),
            # so the image axis can be sharded across TensorCores on v7x.
            dimension_semantics=("parallel",),
            vmem_limit_bytes=32 * 1024 * 1024,
        ),
    )(w1r, b1r, w2r, b2r, mask, x_flat)
    return out.reshape(N, H, W, C)


def _reference(x_nhwc, w1, b1, w2, b2):
    """Pure-JAX f32 reference (same math as the PyTorch module, in NHWC)."""
    dn = jax.lax.conv_dimension_numbers(x_nhwc.shape, w1.shape,
                                        ("NHWC", "HWIO", "NHWC"))
    h = jax.lax.conv_general_dilated(x_nhwc, w1, (1, 1), "SAME",
                                     dimension_numbers=dn) + b1
    h = jnp.maximum(h, 0.0)
    h = jax.lax.conv_general_dilated(h, w2, (1, 1), "SAME",
                                     dimension_numbers=dn) + b2
    return x_nhwc + h


if __name__ == "__main__":
    # Module config: nf = 64 channels, 3x3 convs, stride 1, pad 1, bias=True.
    N, H, W, C = 2, 16, 16, 64
    key = jax.random.PRNGKey(0)
    kx, k1, k2 = jax.random.split(key, 3)

    # Deterministic synthetic init matching initialize_weights(..., scale=0.1):
    # kaiming_normal_(a=0, fan_in) -> std = sqrt(2 / (C*3*3)), then *0.1; bias = 0.
    std = (2.0 / (C * 3 * 3)) ** 0.5
    w1 = jax.random.normal(k1, (3, 3, C, C), jnp.float32) * std * 0.1
    w2 = jax.random.normal(k2, (3, 3, C, C), jnp.float32) * std * 0.1
    b1 = jnp.zeros((C,), jnp.float32)
    b2 = jnp.zeros((C,), jnp.float32)

    x = jax.random.normal(kx, (N, H, W, C), jnp.float32)

    out = residual_block_nobn(x, w1, b1, w2, b2)
    out = jax.block_until_ready(out)

    ref = _reference(x, w1, b1, w2, b2)
    assert out.shape == (N, H, W, C)
    # bf16 matmul operands (f32 accumulation) -> slightly looser tolerance than pure f32.
    assert jnp.allclose(out, ref, rtol=1e-2, atol=1e-2), "mismatch vs reference"

    print("KERNEL_OK")
</pallas_src>

<mosaic_0001>
module attributes {stable_mosaic.version = 11 : i64} {
  func.func @_resblock_kernel(%arg0: i32, %arg1: memref<3x192x64xbf16, #tpu.memory_space<vmem>>, %arg2: memref<1x64xf32, #tpu.memory_space<vmem>>, %arg3: memref<3x192x64xbf16, #tpu.memory_space<vmem>>, %arg4: memref<1x64xf32, #tpu.memory_space<vmem>>, %arg5: memref<584x64xf32, #tpu.memory_space<vmem>>, %arg6: memref<2x256x64xf32, #tpu.memory_space<vmem>>, %arg7: memref<2x256x64xf32, #tpu.memory_space<vmem>>, %arg8: memref<584x64xf32, #tpu.memory_space<vmem>>, %arg9: memref<576x192xbf16, #tpu.memory_space<vmem>>) attributes {dimension_semantics = [#tpu.dimension_semantics<parallel>], iteration_bounds = array<i64: 1>, scalar_prefetch = 0 : i64, scratch_operands = 2 : i64, tpu.core_type = #tpu.core_type<tc>, window_params = [{pipeline_mode = #tpu.pipeline_mode<synchronous>, transform_indices = @transform_0, window_bounds = array<i64: 3, 192, 64>}, {pipeline_mode = #tpu.pipeline_mode<synchronous>, transform_indices = @transform_1, window_bounds = array<i64: 1, 64>}, {pipeline_mode = #tpu.pipeline_mode<synchronous>, transform_indices = @transform_2, window_bounds = array<i64: 3, 192, 64>}, {pipeline_mode = #tpu.pipeline_mode<synchronous>, transform_indices = @transform_3, window_bounds = array<i64: 1, 64>}, {pipeline_mode = #tpu.pipeline_mode<synchronous>, transform_indices = @transform_4, window_bounds = array<i64: 584, 64>}, {transform_indices = @transform_5, window_bounds = array<i64: 2, 256, 64>}, {transform_indices = @transform_6, window_bounds = array<i64: 2, 256, 64>}]} {
    %cst = arith.constant 0.000000e+00 : f32
    %0 = vector.broadcast %cst : f32 to vector<32x64xf32>
    %c0 = arith.constant 0 : index
    %c0_0 = arith.constant 0 : index
    %1 = vector.load %arg8[%c0, %c0_0] : memref<584x64xf32, #tpu.memory_space<vmem>>, vector<32x64xf32>
    tpu.vector_store %arg8[%c0, %c0_0], %0 {strides = array<i32>} : memref<584x64xf32, #tpu.memory_space<vmem>>, vector<32x64xf32>,
    %cst_1 = arith.constant 0.000000e+00 : f32
    %2 = vector.broadcast %cst_1 : f32 to vector<24x64xf32>
    %c560 = arith.constant 560 : index
    %c0_2 = arith.constant 0 : index
    %3 = vector.load %arg8[%c560, %c0_2] : memref<584x64xf32, #tpu.memory_space<vmem>>, vector<24x64xf32>
    tpu.vector_store %arg8[%c560, %c0_2], %2 {strides = array<i32>} : memref<584x64xf32, #tpu.memory_space<vmem>>, vector<24x64xf32>,
    %cst_3 = arith.constant 0.000000e+00 : f32
    %4 = vector.broadcast %cst_3 : f32 to vector<16x64xf32>
    %c288 = arith.constant 288 : index
    %c0_4 = arith.constant 0 : index
    %5 = vector.load %arg8[%c288, %c0_4] : memref<584x64xf32, #tpu.memory_space<vmem>>, vector<16x64xf32>
    tpu.vector_store %arg8[%c288, %c0_4], %4 {strides = array<i32>} : memref<584x64xf32, #tpu.memory_space<vmem>>, vector<16x64xf32>,
    %c0_5 = arith.constant 0 : index
    %c0_6 = arith.constant 0 : index
    %c0_7 = arith.constant 0 : index
    %6 = vector.load %arg6[%c0_5, %c0_6, %c0_7] : memref<2x256x64xf32, #tpu.memory_space<vmem>>, vector<1x256x64xf32>
    %7 = vector.shape_cast %6 : vector<1x256x64xf32> to vector<256x64xf32>
    %c32 = arith.constant 32 : index
    %c0_8 = arith.constant 0 : index
    %8 = vector.load %arg8[%c32, %c0_8] : memref<584x64xf32, #tpu.memory_space<vmem>>, vector<256x64xf32>
    tpu.vector_store %arg8[%c32, %c0_8], %7 {strides = array<i32>} : memref<584x64xf32, #tpu.memory_space<vmem>>, vector<256x64xf32>,
    %c1 = arith.constant 1 : index
    %c0_9 = arith.constant 0 : index
    %c0_10 = arith.constant 0 : index
    %9 = vector.load %arg6[%c1, %c0_9, %c0_10] : memref<2x256x64xf32, #tpu.memory_space<vmem>>, vector<1x256x64xf32>
    %10 = vector.shape_cast %9 : vector<1x256x64xf32> to vector<256x64xf32>
    %c304 = arith.constant 304 : index
    %c0_11 = arith.constant 0 : index
    %11 = vector.load %arg8[%c304, %c0_11] : memref<584x64xf32, #tpu.memory_space<vmem>>, vector<256x64xf32>
    tpu.vector_store %arg8[%c304, %c0_11], %10 {strides = array<i32>} : memref<584x64xf32, #tpu.memory_space<vmem>>, vector<256x64xf32>,
    %c0_12 = arith.constant 0 : index
    %c0_13 = arith.constant 0 : index
    %12 = vector.load %arg8[%c0_12, %c0_13] : memref<584x64xf32, #tpu.memory_space<vmem>>, vector<576x64xf32>
    %c0_14 = arith.constant 0 : index
    %c0_15 = arith.constant 0 : index
    %13 = vector.load %arg5[%c0_14, %c0_15] : memref<584x64xf32, #tpu.memory_space<vmem>>, vector<576x64xf32>
    %14 = arith.mulf %12, %13 : vector<576x64xf32>
    %15 = arith.truncf %14 : vector<576x64xf32> to vector<576x64xbf16>
    %c0_16 = arith.constant 0 : index
    %c0_17 = arith.constant 0 : index
    %16 = vector.load %arg9[%c0_16, %c0_17] : memref<576x192xbf16, #tpu.memory_space<vmem>>, vector<576x64xbf16>
    tpu.vector_store %arg9[%c0_16, %c0_17], %15 {strides = array<i32>} : memref<576x192xbf16, #tpu.memory_space<vmem>>, vector<576x64xbf16>,
    %c1_18 = arith.constant 1 : index
    %c0_19 = arith.constant 0 : index
    %17 = vector.load %arg8[%c1_18, %c0_19] : memref<584x64xf32, #tpu.memory_space<vmem>>, vector<576x64xf32>
    %18 = arith.truncf %17 : vector<576x64xf32> to vector<576x64xbf16>
    %c0_20 = arith.constant 0 : index
    %c64 = arith.constant 64 : index
    %19 = vector.load %arg9[%c0_20, %c64] : memref<576x192xbf16, #tpu.memory_space<vmem>>, vector<576x64xbf16>
    tpu.vector_store %arg9[%c0_20, %c64], %18 {strides = array<i32>} : memref<576x192xbf16, #tpu.memory_space<vmem>>, vector<576x64xbf16>,
    %c2 = arith.constant 2 : index
    %c0_21 = arith.constant 0 : index
    %20 = vector.load %arg8[%c2, %c0_21] : memref<584x64xf32, #tpu.memory_space<vmem>>, vector<576x64xf32>
    %c1_22 = arith.constant 1 : index
    %c0_23 = arith.constant 0 : index
    %21 = vector.load %arg5[%c1_22, %c0_23] : memref<584x64xf32, #tpu.memory_space<vmem>>, vector<576x64xf32>
    %22 = arith.mulf %20, %21 : vector<576x64xf32>
    %23 = arith.truncf %22 : vector<576x64xf32> to vector<576x64xbf16>
    %c0_24 = arith.constant 0 : index
    %c128 = arith.constant 128 : index
    %24 = vector.load %arg9[%c0_24, %c128] : memref<576x192xbf16, #tpu.memory_space<vmem>>, vector<576x64xbf16>
    tpu.vector_store %arg9[%c0_24, %c128], %23 {strides = array<i32>} : memref<576x192xbf16, #tpu.memory_space<vmem>>, vector<576x64xbf16>,
    %c15 = arith.constant 15 : index
    %c0_25 = arith.constant 0 : index
    %25 = vector.load %arg9[%c15, %c0_25] : memref<576x192xbf16, #tpu.memory_space<vmem>>, vector<528x192xbf16>
    %c0_26 = arith.constant 0 : index
    %c0_27 = arith.constant 0 : index
    %c0_28 = arith.constant 0 : index
    %26 = vector.load %arg1[%c0_26, %c0_27, %c0_28] : memref<3x192x64xbf16, #tpu.memory_space<vmem>>, vector<1x192x64xbf16>
    %27 = vector.shape_cast %26 : vector<1x192x64xbf16> to vector<192x64xbf16>
    %cst_29 = arith.constant dense<0.000000e+00> : vector<528x64xf32>
    %28 = tpu.matmul %25, %27, %cst_29 {dimension_numbers = #tpu.dot_dimension_numbers<[1], [0], [0], [1], [0, 0, 1, 1], [], []>} : vector<528x192xbf16>, vector<192x64xbf16>, vector<528x64xf32> -> vector<528x64xf32>
    %c0_30 = arith.constant 0 : index
    %c0_31 = arith.constant 0 : index
    %29 = vector.load %arg2[%c0_30, %c0_31] : memref<1x64xf32, #tpu.memory_space<vmem>>, vector<1x64xf32>
    %30 = vector.broadcast %29 : vector<1x64xf32> to vector<528x64xf32>
    %31 = arith.addf %28, %30 : vector<528x64xf32>
    %c32_32 = arith.constant 32 : index
    %c0_33 = arith.constant 0 : index
    %32 = vector.load %arg8[%c32_32, %c0_33] : memref<584x64xf32, #tpu.memory_space<vmem>>, vector<528x64xf32>
    tpu.vector_store %arg8[%c32_32, %c0_33], %31 {strides = array<i32>} : memref<584x64xf32, #tpu.memory_space<vmem>>, vector<528x64xf32>,
    %c32_34 = arith.constant 32 : index
    %c0_35 = arith.constant 0 : index
    %33 = vector.load %arg8[%c32_34, %c0_35] : memref<584x64xf32, #tpu.memory_space<vmem>>, vector<528x64xf32>
    %c31 = arith.constant 31 : index
    %c0_36 = arith.constant 0 : index
    %34 = vector.load %arg9[%c31, %c0_36] : memref<576x192xbf16, #tpu.memory_space<vmem>>, vector<528x192xbf16>
    %c1_37 = arith.constant 1 : index
    %c0_38 = arith.constant 0 : index
    %c0_39 = arith.constant 0 : index
    %35 = vector.load %arg1[%c1_37, %c0_38, %c0_39] : memref<3x192x64xbf16, #tpu.memory_space<vmem>>, vector<1x192x64xbf16>
    %36 = vector.shape_cast %35 : vector<1x192x64xbf16> to vector<192x64xbf16>
    %cst_40 = arith.constant dense<0.000000e+00> : vector<528x64xf32>
    %37 = tpu.matmul %34, %36, %cst_40 {dimension_numbers = #tpu.dot_dimension_numbers<[1], [0], [0], [1], [0, 0, 1, 1], [], []>} : vector<528x192xbf16>, vector<192x64xbf16>, vector<528x64xf32> -> vector<528x64xf32>
    %38 = arith.addf %33, %37 : vector<528x64xf32>
    %c32_41 = arith.constant 32 : index
    %c0_42 = arith.constant 0 : index
    %39 = vector.load %arg8[%c32_41, %c0_42] : memref<584x64xf32, #tpu.memory_space<vmem>>, vector<528x64xf32>
    tpu.vector_store %arg8[%c32_41, %c0_42], %38 {strides = array<i32>} : memref<584x64xf32, #tpu.memory_space<vmem>>, vector<528x64xf32>,
    %c32_43 = arith.constant 32 : index
    %c0_44 = arith.constant 0 : index
    %40 = vector.load %arg8[%c32_43, %c0_44] : memref<584x64xf32, #tpu.memory_space<vmem>>, vector<528x64xf32>
    %c47 = arith.constant 47 : index
    %c0_45 = arith.constant 0 : index
    %41 = vector.load %arg9[%c47, %c0_45] : memref<576x192xbf16, #tpu.memory_space<vmem>>, vector<528x192xbf16>
    %c2_46 = arith.constant 2 : index
    %c0_47 = arith.constant 0 : index
    %c0_48 = arith.constant 0 : index
    %42 = vector.load %arg1[%c2_46, %c0_47, %c0_48] : memref<3x192x64xbf16, #tpu.memory_space<vmem>>, vector<1x192x64xbf16>
    %43 = vector.shape_cast %42 : vector<1x192x64xbf16> to vector<192x64xbf16>
    %cst_49 = arith.constant dense<0.000000e+00> : vector<528x64xf32>
    %44 = tpu.matmul %41, %43, %cst_49 {dimension_numbers = #tpu.dot_dimension_numbers<[1], [0], [0], [1], [0, 0, 1, 1], [], []>} : vector<528x192xbf16>, vector<192x64xbf16>, vector<528x64xf32> -> vector<528x64xf32>
    %45 = arith.addf %40, %44 : vector<528x64xf32>
    %cst_50 = arith.constant 0.000000e+00 : f32
    %46 = vector.broadcast %cst_50 : f32 to vector<528x64xf32>
    %47 = arith.maximumf %45, %46 : vector<528x64xf32>
    %c32_51 = arith.constant 32 : index
    %c0_52 = arith.constant 0 : index
    %48 = vector.load %arg8[%c32_51, %c0_52] : memref<584x64xf32, #tpu.memory_space<vmem>>, vector<528x64xf32>
    tpu.vector_store %arg8[%c32_51, %c0_52], %47 {strides = array<i32>} : memref<584x64xf32, #tpu.memory_space<vmem>>, vector<528x64xf32>,
    %cst_53 = arith.constant 0.000000e+00 : f32
    %49 = vector.broadcast %cst_53 : f32 to vector<16x64xf32>
    %c288_54 = arith.constant 288 : index
    %c0_55 = arith.constant 0 : index
    %50 = vector.load %arg8[%c288_54, %c0_55] : memref<584x64xf32, #tpu.memory_space<vmem>>, vector<16x64xf32>
    tpu.vector_store %arg8[%c288_54, %c0_55], %49 {strides = array<i32>} : memref<584x64xf32, #tpu.memory_space<vmem>>, vector<16x64xf32>,
    %c0_56 = arith.constant 0 : index
    %c0_57 = arith.constant 0 : index
    %51 = vector.load %arg8[%c0_56, %c0_57] : memref<584x64xf32, #tpu.memory_space<vmem>>, vector<576x64xf32>
    %c0_58 = arith.constant 0 : index
    %c0_59 = arith.constant 0 : index
    %52 = vector.load %arg5[%c0_58, %c0_59] : memref<584x64xf32, #tpu.memory_space<vmem>>, vector<576x64xf32>
    %53 = arith.mulf %51, %52 : vector<576x64xf32>
    %54 = arith.truncf %53 : vector<576x64xf32> to vector<576x64xbf16>
    %c0_60 = arith.constant 0 : index
    %c0_61 = arith.constant 0 : index
    %55 = vector.load %arg9[%c0_60, %c0_61] : memref<576x192xbf16, #tpu.memory_space<vmem>>, vector<576x64xbf16>
    tpu.vector_store %arg9[%c0_60, %c0_61], %54 {strides = array<i32>} : memref<576x192xbf16, #tpu.memory_space<vmem>>, vector<576x64xbf16>,
    %c1_62 = arith.constant 1 : index
    %c0_63 = arith.constant 0 : index
    %56 = vector.load %arg8[%c1_62, %c0_63] : memref<584x64xf32, #tpu.memory_space<vmem>>, vector<576x64xf32>
    %57 = arith.truncf %56 : vector<576x64xf32> to vector<576x64xbf16>
    %c0_64 = arith.constant 0 : index
    %c64_65 = arith.constant 64 : index
    %58 = vector.load %arg9[%c0_64, %c64_65] : memref<576x192xbf16, #tpu.memory_space<vmem>>, vector<576x64xbf16>
    tpu.vector_store %arg9[%c0_64, %c64_65], %57 {strides = array<i32>} : memref<576x192xbf16, #tpu.memory_space<vmem>>, vector<576x64xbf16>,
    %c2_66 = arith.constant 2 : index
    %c0_67 = arith.constant 0 : index
    %59 = vector.load %arg8[%c2_66, %c0_67] : memref<584x64xf32, #tpu.memory_space<vmem>>, vector<576x64xf32>
    %c1_68 = arith.constant 1 : index
    %c0_69 = arith.constant 0 : index
    %60 = vector.load %arg5[%c1_68, %c0_69] : memref<584x64xf32, #tpu.memory_space<vmem>>, vector<576x64xf32>
    %61 = arith.mulf %59, %60 : vector<576x64xf32>
    %62 = arith.truncf %61 : vector<576x64xf32> to vector<576x64xbf16>
    %c0_70 = arith.constant 0 : index
    %c128_71 = arith.constant 128 : index
    %63 = vector.load %arg9[%c0_70, %c128_71] : memref<576x192xbf16, #tpu.memory_space<vmem>>, vector<576x64xbf16>
    tpu.vector_store %arg9[%c0_70, %c128_71], %62 {strides = array<i32>} : memref<576x192xbf16, #tpu.memory_space<vmem>>, vector<576x64xbf16>,
    %c15_72 = arith.constant 15 : index
    %c0_73 = arith.constant 0 : index
    %64 = vector.load %arg9[%c15_72, %c0_73] : memref<576x192xbf16, #tpu.memory_space<vmem>>, vector<528x192xbf16>
    %c0_74 = arith.constant 0 : index
    %c0_75 = arith.constant 0 : index
    %c0_76 = arith.constant 0 : index
    %65 = vector.load %arg3[%c0_74, %c0_75, %c0_76] : memref<3x192x64xbf16, #tpu.memory_space<vmem>>, vector<1x192x64xbf16>
    %66 = vector.shape_cast %65 : vector<1x192x64xbf16> to vector<192x64xbf16>
    %cst_77 = arith.constant dense<0.000000e+00> : vector<528x64xf32>
    %67 = tpu.matmul %64, %66, %cst_77 {dimension_numbers = #tpu.dot_dimension_numbers<[1], [0], [0], [1], [0, 0, 1, 1], [], []>} : vector<528x192xbf16>, vector<192x64xbf16>, vector<528x64xf32> -> vector<528x64xf32>
    %c0_78 = arith.constant 0 : index
    %c0_79 = arith.constant 0 : index
    %68 = vector.load %arg4[%c0_78, %c0_79] : memref<1x64xf32, #tpu.memory_space<vmem>>, vector<1x64xf32>
    %69 = vector.broadcast %68 : vector<1x64xf32> to vector<528x64xf32>
    %70 = arith.addf %67, %69 : vector<528x64xf32>
    %c32_80 = arith.constant 32 : index
    %c0_81 = arith.constant 0 : index
    %71 = vector.load %arg8[%c32_80, %c0_81] : memref<584x64xf32, #tpu.memory_space<vmem>>, vector<528x64xf32>
    tpu.vector_store %arg8[%c32_80, %c0_81], %70 {strides = array<i32>} : memref<584x64xf32, #tpu.memory_space<vmem>>, vector<528x64xf32>,
    %c32_82 = arith.constant 32 : index
    %c0_83 = arith.constant 0 : index
    %72 = vector.load %arg8[%c32_82, %c0_83] : memref<584x64xf32, #tpu.memory_space<vmem>>, vector<528x64xf32>
    %c31_84 = arith.constant 31 : index
    %c0_85 = arith.constant 0 : index
    %73 = vector.load %arg9[%c31_84, %c0_85] : memref<576x192xbf16, #tpu.memory_space<vmem>>, vector<528x192xbf16>
    %c1_86 = arith.constant 1 : index
    %c0_87 = arith.constant 0 : index
    %c0_88 = arith.constant 0 : index
    %74 = vector.load %arg3[%c1_86, %c0_87, %c0_88] : memref<3x192x64xbf16, #tpu.memory_space<vmem>>, vector<1x192x64xbf16>
    %75 = vector.shape_cast %74 : vector<1x192x64xbf16> to vector<192x64xbf16>
    %cst_89 = arith.constant dense<0.000000e+00> : vector<528x64xf32>
    %76 = tpu.matmul %73, %75, %cst_89 {dimension_numbers = #tpu.dot_dimension_numbers<[1], [0], [0], [1], [0, 0, 1, 1], [], []>} : vector<528x192xbf16>, vector<192x64xbf16>, vector<528x64xf32> -> vector<528x64xf32>
    %77 = arith.addf %72, %76 : vector<528x64xf32>
    %c32_90 = arith.constant 32 : index
    %c0_91 = arith.constant 0 : index
    %78 = vector.load %arg8[%c32_90, %c0_91] : memref<584x64xf32, #tpu.memory_space<vmem>>, vector<528x64xf32>
    tpu.vector_store %arg8[%c32_90, %c0_91], %77 {strides = array<i32>} : memref<584x64xf32, #tpu.memory_space<vmem>>, vector<528x64xf32>,
    %c32_92 = arith.constant 32 : index
    %c0_93 = arith.constant 0 : index
    %79 = vector.load %arg8[%c32_92, %c0_93] : memref<584x64xf32, #tpu.memory_space<vmem>>, vector<528x64xf32>
    %c47_94 = arith.constant 47 : index
    %c0_95 = arith.constant 0 : index
    %80 = vector.load %arg9[%c47_94, %c0_95] : memref<576x192xbf16, #tpu.memory_space<vmem>>, vector<528x192xbf16>
    %c2_96 = arith.constant 2 : index
    %c0_97 = arith.constant 0 : index
    %c0_98 = arith.constant 0 : index
    %81 = vector.load %arg3[%c2_96, %c0_97, %c0_98] : memref<3x192x64xbf16, #tpu.memory_space<vmem>>, vector<1x192x64xbf16>
    %82 = vector.shape_cast %81 : vector<1x192x64xbf16> to vector<192x64xbf16>
    %cst_99 = arith.constant dense<0.000000e+00> : vector<528x64xf32>
    %83 = tpu.matmul %80, %82, %cst_99 {dimension_numbers = #tpu.dot_dimension_numbers<[1], [0], [0], [1], [0, 0, 1, 1], [], []>} : vector<528x192xbf16>, vector<192x64xbf16>, vector<528x64xf32> -> vector<528x64xf32>
    %84 = arith.addf %79, %83 : vector<528x64xf32>
    %c32_100 = arith.constant 32 : index
    %c0_101 = arith.constant 0 : index
    %85 = vector.load %arg8[%c32_100, %c0_101] : memref<584x64xf32, #tpu.memory_space<vmem>>, vector<528x64xf32>
    tpu.vector_store %arg8[%c32_100, %c0_101], %84 {strides = array<i32>} : memref<584x64xf32, #tpu.memory_space<vmem>>, vector<528x64xf32>,
    %c32_102 = arith.constant 32 : index
    %c0_103 = arith.constant 0 : index
    %86 = vector.load %arg8[%c32_102, %c0_103] : memref<584x64xf32, #tpu.memory_space<vmem>>, vector<256x64xf32>
    %c0_104 = arith.constant 0 : index
    %c0_105 = arith.constant 0 : index
    %c0_106 = arith.constant 0 : index
    %87 = vector.load %arg6[%c0_104, %c0_105, %c0_106] : memref<2x256x64xf32, #tpu.memory_space<vmem>>, vector<1x256x64xf32>
    %88 = vector.shape_cast %87 : vector<1x256x64xf32> to vector<256x64xf32>
    %89 = arith.addf %86, %88 : vector<256x64xf32>
    %c0_107 = arith.constant 0 : index
    %c0_108 = arith.constant 0 : index
    %c0_109 = arith.constant 0 : index
    %90 = vector.load %arg7[%c0_107, %c0_108, %c0_109] : memref<2x256x64xf32, #tpu.memory_space<vmem>>, vector<1x256x64xf32>
    %91 = vector.shape_cast %90 : vector<1x256x64xf32> to vector<256x64xf32>
    %92 = vector.shape_cast %89 : vector<256x64xf32> to vector<1x256x64xf32>
    tpu.vector_store %arg7[%c0_107, %c0_108, %c0_109], %92 {strides = array<i32>} : memref<2x256x64xf32, #tpu.memory_space<vmem>>, vector<1x256x64xf32>,
    %c304_110 = arith.constant 304 : index
    %c0_111 = arith.constant 0 : index
    %93 = vector.load %arg8[%c304_110, %c0_111] : memref<584x64xf32, #tpu.memory_space<vmem>>, vector<256x64xf32>
    %c1_112 = arith.constant 1 : index
    %c0_113 = arith.constant 0 : index
    %c0_114 = arith.constant 0 : index
    %94 = vector.load %arg6[%c1_112, %c0_113, %c0_114] : memref<2x256x64xf32, #tpu.memory_space<vmem>>, vector<1x256x64xf32>
    %95 = vector.shape_cast %94 : vector<1x256x64xf32> to vector<256x64xf32>
    %96 = arith.addf %93, %95 : vector<256x64xf32>
    %c1_115 = arith.constant 1 : index
    %c0_116 = arith.constant 0 : index
    %c0_117 = arith.constant 0 : index
    %97 = vector.load %arg7[%c1_115, %c0_116, %c0_117] : memref<2x256x64xf32, #tpu.memory_space<vmem>>, vector<1x256x64xf32>
    %98 = vector.shape_cast %97 : vector<1x256x64xf32> to vector<256x64xf32>
    %99 = vector.shape_cast %96 : vector<256x64xf32> to vector<1x256x64xf32>
    tpu.vector_store %arg7[%c1_115, %c0_116, %c0_117], %99 {strides = array<i32>} : memref<2x256x64xf32, #tpu.memory_space<vmem>>, vector<1x256x64xf32>,
    return
  }
  func.func @transform_0(%arg0: i32) -> (i32, i32, i32) {
    %c0_i32 = arith.constant 0 : i32
    %c0_i32_0 = arith.constant 0 : i32
    %c0_i32_1 = arith.constant 0 : i32
    %c0_i32_2 = arith.constant 0 : i32
    return %c0_i32, %c0_i32_0, %c0_i32_1 : i32, i32, i32
  }
  func.func @transform_1(%arg0: i32) -> (i32, i32) {
    %c0_i32 = arith.constant 0 : i32
    %c0_i32_0 = arith.constant 0 : i32
    %c0_i32_1 = arith.constant 0 : i32
    return %c0_i32, %c0_i32_0 : i32, i32
  }
  func.func @transform_2(%arg0: i32) -> (i32, i32, i32) {
    %c0_i32 = arith.constant 0 : i32
    %c0_i32_0 = arith.constant 0 : i32
    %c0_i32_1 = arith.constant 0 : i32
    %c0_i32_2 = arith.constant 0 : i32
    return %c0_i32, %c0_i32_0, %c0_i32_1 : i32, i32, i32
  }
  func.func @transform_3(%arg0: i32) -> (i32, i32) {
    %c0_i32 = arith.constant 0 : i32
    %c0_i32_0 = arith.constant 0 : i32
    %c0_i32_1 = arith.constant 0 : i32
    return %c0_i32, %c0_i32_0 : i32, i32
  }
  func.func @transform_4(%arg0: i32) -> (i32, i32) {
    %c0_i32 = arith.constant 0 : i32
    %c0_i32_0 = arith.constant 0 : i32
    %c0_i32_1 = arith.constant 0 : i32
    return %c0_i32, %c0_i32_0 : i32, i32
  }
  func.func @transform_5(%arg0: i32) -> (i32, i32, i32) {
    %c0_i32 = arith.constant 0 : i32
    %c0_i32_0 = arith.constant 0 : i32
    %c0_i32_1 = arith.constant 0 : i32
    return %arg0, %c0_i32, %c0_i32_0 : i32, i32, i32
  }
  func.func @transform_6(%arg0: i32) -> (i32, i32, i32) {
    %c0_i32 = arith.constant 0 : i32
    %c0_i32_0 = arith.constant 0 : i32
    %c0_i32_1 = arith.constant 0 : i32
    return %arg0, %c0_i32, %c0_i32_0 : i32, i32, i32
  }
}

</mosaic_0001>

<llo_original>
// kernel: tpu_custom_call.1
$region0: #{tpu_custom_call.1}
  #allocation0 [shape = 'u32[]', space=smem, size = 0x4, offset = 0x4, fixed_abs, tag = 'smem constant byte address 0x4 - core index']
  #allocation1 [shape = 'u32[144,128]{1,0:T(1,128)}', space=vmem, size = 0x12000, scoped, tag = 'internal scratch']
  #allocation2 [shape = 'f32[584,64]{1,0:T(8,128)}', space=vmem, size = 0x49000, scoped, tag = 'scratch operand']
  #allocation3 [shape = 'bf16[576,192]{1,0:T(8,128)(2,1)}', space=vmem, size = 0x48000, scoped, tag = 'scratch operand']
  %s0 = inlined_call_operand.vmem [shape: bf16[3,192,64], index: 0, kind: input, shape index: {}]
  %s1 = inlined_call_operand.vmem [shape: f32[1,64], index: 1, kind: input, shape index: {}]
  %s2 = inlined_call_operand.vmem [shape: bf16[3,192,64], index: 2, kind: input, shape index: {}]
  %s3 = inlined_call_operand.vmem [shape: f32[1,64], index: 3, kind: input, shape index: {}]
  %s4 = inlined_call_operand.vmem [shape: f32[584,64], index: 4, kind: input, shape index: {}]
  %s5 = inlined_call_operand.vmem [shape: f32[2,256,64], index: 5, kind: input, shape index: {}]
  %s6 = inlined_call_operand.vmem [shape: f32[2,256,64], index: 6, kind: output, shape index: {}]
  %s7 = sld [smem:[#allocation0]]
  $region34: #{tpu_custom_call.1} parent=0
    _
  %s9 = ssub.s32 1, %s7
  %s10 = scalar_select 0, %s9, %s7
  // Predicated region
  $region2: #{tpu_custom_call.1} parent=0 // pred_check
    _
  $region3: #{tpu_custom_call.1} parent=0 // pred_check_branch
    %12 = sbr.rel (0) target = $region5
  $region4: #{tpu_custom_call.1} parent=0 // pred_region
    _
  $region5: #{tpu_custom_call.1} parent=0 // pred_fallthru
    _
  // Predicated region
  $region6: #{tpu_custom_call.1} parent=0 // pred_check
    _
  $region7: #{tpu_custom_call.1} parent=0 // pred_check_branch
    %14 = sbr.rel (0) target = $region9
  $region8: #{tpu_custom_call.1} parent=0 // pred_region
    _
  $region9: #{tpu_custom_call.1} parent=0 // pred_fallthru
    _
  // Predicated region
  $region10: #{tpu_custom_call.1} parent=0 // pred_check
    _
  $region11: #{tpu_custom_call.1} parent=0 // pred_check_branch
    %16 = sbr.rel (0) target = $region13
  $region12: #{tpu_custom_call.1} parent=0 // pred_region
    _
  $region13: #{tpu_custom_call.1} parent=0 // pred_fallthru
    _
  // Predicated region
  $region14: #{tpu_custom_call.1} parent=0 // pred_check
    _
  $region15: #{tpu_custom_call.1} parent=0 // pred_check_branch
    %18 = sbr.rel (0) target = $region17
  $region16: #{tpu_custom_call.1} parent=0 // pred_region
    _
  $region17: #{tpu_custom_call.1} parent=0 // pred_fallthru
    _
  // Predicated region
  $region18: #{tpu_custom_call.1} parent=0 // pred_check
    _
  $region19: #{tpu_custom_call.1} parent=0 // pred_check_branch
    %20 = sbr.rel (0) target = $region21
  $region20: #{tpu_custom_call.1} parent=0 // pred_region
    _
  $region21: #{tpu_custom_call.1} parent=0 // pred_fallthru
    _
  // Predicated region
  $region22: #{tpu_custom_call.1} parent=0 // pred_check
    _
  $region23: #{tpu_custom_call.1} parent=0 // pred_check_branch
    %22 = sbr.rel (0) target = $region25
  $region24: #{tpu_custom_call.1} parent=0 // pred_region
    _
  $region25: #{tpu_custom_call.1} parent=0 // pred_fallthru
    _
  %vm24 = vcmask 523264
  %25 = vst.msk [vmem:[#allocation2] sm:$0xff] %vm24, 0.0
  %26 = vst.msk [vmem:[#allocation2 + $0x8] sm:$0xff] %vm24, 0.0
  %27 = vst.msk [vmem:[#allocation2 + $0x10] sm:$0xff] %vm24, 0.0
  %28 = vst.msk [vmem:[#allocation2 + $0x18] sm:$0xff] %vm24, 0.0
  %29 = vst.msk [vmem:[#allocation2 + $0x230] sm:$0xff] %vm24, 0.0
  %30 = vst.msk [vmem:[#allocation2 + $0x238] sm:$0xff] %vm24, 0.0
  %31 = vst.msk [vmem:[#allocation2 + $0x240] sm:$0xff] %vm24, 0.0
  %32 = vst.msk [vmem:[#allocation2 + $0x120] sm:$0xff] %vm24, 0.0
  %33 = vst.msk [vmem:[#allocation2 + $0x128] sm:$0xff] %vm24, 0.0
  %v34 = vld [vmem:[%s5] sm:$0xff]
  %v35 = vld [vmem:[%s5 + $0x8] sm:$0xff]
  %v36 = vld [vmem:[%s5 + $0x10] sm:$0xff]
  %v37 = vld [vmem:[%s5 + $0x18] sm:$0xff]
  %v38 = vld [vmem:[%s5 + $0x20] sm:$0xff]
  %v39 = vld [vmem:[%s5 + $0x28] sm:$0xff]
  %v40 = vld [vmem:[%s5 + $0x30] sm:$0xff]
  %v41 = vld [vmem:[%s5 + $0x38] sm:$0xff]
  %v42 = vld [vmem:[%s5 + $0x40] sm:$0xff]
  %v43 = vld [vmem:[%s5 + $0x48] sm:$0xff]
  %v44 = vld [vmem:[%s5 + $0x50] sm:$0xff]
  %v45 = vld [vmem:[%s5 + $0x58] sm:$0xff]
  %v46 = vld [vmem:[%s5 + $0x60] sm:$0xff]
  %v47 = vld [vmem:[%s5 + $0x68] sm:$0xff]
  %v48 = vld [vmem:[%s5 + $0x70] sm:$0xff]
  %v49 = vld [vmem:[%s5 + $0x78] sm:$0xff]
  %v50 = vld [vmem:[%s5 + $0x80] sm:$0xff]
  %v51 = vld [vmem:[%s5 + $0x88] sm:$0xff]
  %v52 = vld [vmem:[%s5 + $0x90] sm:$0xff]
  %v53 = vld [vmem:[%s5 + $0x98] sm:$0xff]
  %v54 = vld [vmem:[%s5 + $0xa0] sm:$0xff]
  %v55 = vld [vmem:[%s5 + $0xa8] sm:$0xff]
  %v56 = vld [vmem:[%s5 + $0xb0] sm:$0xff]
  %v57 = vld [vmem:[%s5 + $0xb8] sm:$0xff]
  %v58 = vld [vmem:[%s5 + $0xc0] sm:$0xff]
  %v59 = vld [vmem:[%s5 + $0xc8] sm:$0xff]
  %v60 = vld [vmem:[%s5 + $0xd0] sm:$0xff]
  %v61 = vld [vmem:[%s5 + $0xd8] sm:$0xff]
  %v62 = vld [vmem:[%s5 + $0xe0] sm:$0xff]
  %v63 = vld [vmem:[%s5 + $0xe8] sm:$0xff]
  %v64 = vld [vmem:[%s5 + $0xf0] sm:$0xff]
  %v65 = vld [vmem:[%s5 + $0xf8] sm:$0xff]
  %66 = vst.msk [vmem:[#allocation2 + $0x20] sm:$0xff] %vm24, %v34
  %67 = vst.msk [vmem:[#allocation2 + $0x28] sm:$0xff] %vm24, %v35
  %68 = vst.msk [vmem:[#allocation2 + $0x30] sm:$0xff] %vm24, %v36
  %69 = vst.msk [vmem:[#allocation2 + $0x38] sm:$0xff] %vm24, %v37
  %70 = vst.msk [vmem:[#allocation2 + $0x40] sm:$0xff] %vm24, %v38
  %71 = vst.msk [vmem:[#allocation2 + $0x48] sm:$0xff] %vm24, %v39
  %72 = vst.msk [vmem:[#allocation2 + $0x50] sm:$0xff] %vm24, %v40
  %73 = vst.msk [vmem:[#allocation2 + $0x58] sm:$0xff] %vm24, %v41
  %74 = vst.msk [vmem:[#allocation2 + $0x60] sm:$0xff] %vm24, %v42
  %75 = vst.msk [vmem:[#allocation2 + $0x68] sm:$0xff] %vm24, %v43
  %76 = vst.msk [vmem:[#allocation2 + $0x70] sm:$0xff] %vm24, %v44
  %77 = vst.msk [vmem:[#allocation2 + $0x78] sm:$0xff] %vm24, %v45
  %78 = vst.msk [vmem:[#allocation2 + $0x80] sm:$0xff] %vm24, %v46
  %79 = vst.msk [vmem:[#allocation2 + $0x88] sm:$0xff] %vm24, %v47
  %80 = vst.msk [vmem:[#allocation2 + $0x90] sm:$0xff] %vm24, %v48
  %81 = vst.msk [vmem:[#allocation2 + $0x98] sm:$0xff] %vm24, %v49
  %82 = vst.msk [vmem:[#allocation2 + $0xa0] sm:$0xff] %vm24, %v50
  %83 = vst.msk [vmem:[#allocation2 + $0xa8] sm:$0xff] %vm24, %v51
  %84 = vst.msk [vmem:[#allocation2 + $0xb0] sm:$0xff] %vm24, %v52
  %85 = vst.msk [vmem:[#allocation2 + $0xb8] sm:$0xff] %vm24, %v53
  %86 = vst.msk [vmem:[#allocation2 + $0xc0] sm:$0xff] %vm24, %v54
  %87 = vst.msk [vmem:[#allocation2 + $0xc8] sm:$0xff] %vm24, %v55
  %88 = vst.msk [vmem:[#allocation2 + $0xd0] sm:$0xff] %vm24, %v56
  %89 = vst.msk [vmem:[#allocation2 + $0xd8] sm:$0xff] %vm24, %v57
  %90 = vst.msk [vmem:[#allocation2 + $0xe0] sm:$0xff] %vm24, %v58
  %91 = vst.msk [vmem:[#allocation2 + $0xe8] sm:$0xff] %vm24, %v59
  %92 = vst.msk [vmem:[#allocation2 + $0xf0] sm:$0xff] %vm24, %v60
  %93 = vst.msk [vmem:[#allocation2 + $0xf8] sm:$0xff] %vm24, %v61
  %94 = vst.msk [vmem:[#allocation2 + $0x100] sm:$0xff] %vm24, %v62
  %95 = vst.msk [vmem:[#allocation2 + $0x108] sm:$0xff] %vm24, %v63
  %96 = vst.msk [vmem:[#allocation2 + $0x110] sm:$0xff] %vm24, %v64
  %97 = vst.msk [vmem:[#allocation2 + $0x118] sm:$0xff] %vm24, %v65
  %s98 = scalar_lea.vmem %s5, 256
  %v99 = vld [vmem:[%s98] sm:$0xff]
  %v100 = vld [vmem:[%s98 + $0x8] sm:$0xff]
  %v101 = vld [vmem:[%s98 + $0x10] sm:$0xff]
  %v102 = vld [vmem:[%s98 + $0x18] sm:$0xff]
  %v103 = vld [vmem:[%s98 + $0x20] sm:$0xff]
  %v104 = vld [vmem:[%s98 + $0x28] sm:$0xff]
  %v105 = vld [vmem:[%s98 + $0x30] sm:$0xff]
  %v106 = vld [vmem:[%s98 + $0x38] sm:$0xff]
  %v107 = vld [vmem:[%s98 + $0x40] sm:$0xff]
  %v108 = vld [vmem:[%s98 + $0x48] sm:$0xff]
  %v109 = vld [vmem:[%s98 + $0x50] sm:$0xff]
  %v110 = vld [vmem:[%s98 + $0x58] sm:$0xff]
  %v111 = vld [vmem:[%s98 + $0x60] sm:$0xff]
  %v112 = vld [vmem:[%s98 + $0x68] sm:$0xff]
  %v113 = vld [vmem:[%s98 + $0x70] sm:$0xff]
  %v114 = vld [vmem:[%s98 + $0x78] sm:$0xff]
  %v115 = vld [vmem:[%s98 + $0x80] sm:$0xff]
  %v116 = vld [vmem:[%s98 + $0x88] sm:$0xff]
  %v117 = vld [vmem:[%s98 + $0x90] sm:$0xff]
  %v118 = vld [vmem:[%s98 + $0x98] sm:$0xff]
  %v119 = vld [vmem:[%s98 + $0xa0] sm:$0xff]
  %v120 = vld [vmem:[%s98 + $0xa8] sm:$0xff]
  %v121 = vld [vmem:[%s98 + $0xb0] sm:$0xff]
  %v122 = vld [vmem:[%s98 + $0xb8] sm:$0xff]
  %v123 = vld [vmem:[%s98 + $0xc0] sm:$0xff]
  %v124 = vld [vmem:[%s98 + $0xc8] sm:$0xff]
  %v125 = vld [vmem:[%s98 + $0xd0] sm:$0xff]
  %v126 = vld [vmem:[%s98 + $0xd8] sm:$0xff]
  %v127 = vld [vmem:[%s98 + $0xe0] sm:$0xff]
  %v128 = vld [vmem:[%s98 + $0xe8] sm:$0xff]
  %v129 = vld [vmem:[%s98 + $0xf0] sm:$0xff]
  %v130 = vld [vmem:[%s98 + $0xf8] sm:$0xff]
  %131 = vst.msk [vmem:[#allocation2 + $0x130] sm:$0xff] %vm24, %v99
  %132 = vst.msk [vmem:[#allocation2 + $0x138] sm:$0xff] %vm24, %v100
  %133 = vst.msk [vmem:[#allocation2 + $0x140] sm:$0xff] %vm24, %v101
  %134 = vst.msk [vmem:[#allocation2 + $0x148] sm:$0xff] %vm24, %v102
  %135 = vst.msk [vmem:[#allocation2 + $0x150] sm:$0xff] %vm24, %v103
  %136 = vst.msk [vmem:[#allocation2 + $0x158] sm:$0xff] %vm24, %v104
  %137 = vst.msk [vmem:[#allocation2 + $0x160] sm:$0xff] %vm24, %v105
  %138 = vst.msk [vmem:[#allocation2 + $0x168] sm:$0xff] %vm24, %v106
  %139 = vst.msk [vmem:[#allocation2 + $0x170] sm:$0xff] %vm24, %v107
  %140 = vst.msk [vmem:[#allocation2 + $0x178] sm:$0xff] %vm24, %v108
  %141 = vst.msk [vmem:[#allocation2 + $0x180] sm:$0xff] %vm24, %v109
  %142 = vst.msk [vmem:[#allocation2 + $0x188] sm:$0xff] %vm24, %v110
  %143 = vst.msk [vmem:[#allocation2 + $0x190] sm:$0xff] %vm24, %v111
  %144 = vst.msk [vmem:[#allocation2 + $0x198] sm:$0xff] %vm24, %v112
  %145 = vst.msk [vmem:[#allocation2 + $0x1a0] sm:$0xff] %vm24, %v113
  %146 = vst.msk [vmem:[#allocation2 + $0x1a8] sm:$0xff] %vm24, %v114
  %147 = vst.msk [vmem:[#allocation2 + $0x1b0] sm:$0xff] %vm24, %v115
  %148 = vst.msk [vmem:[#allocation2 + $0x1b8] sm:$0xff] %vm24, %v116
  %149 = vst.msk [vmem:[#allocation2 + $0x1c0] sm:$0xff] %vm24, %v117
  %150 = vst.msk [vmem:[#allocation2 + $0x1c8] sm:$0xff] %vm24, %v118
  %151 = vst.msk [vmem:[#allocation2 + $0x1d0] sm:$0xff] %vm24, %v119
  %152 = vst.msk [vmem:[#allocation2 + $0x1d8] sm:$0xff] %vm24, %v120
  %153 = vst.msk [vmem:[#allocation2 + $0x1e0] sm:$0xff] %vm24, %v121
  %154 = vst.msk [vmem:[#allocation2 + $0x1e8] sm:$0xff] %vm24, %v122
  %155 = vst.msk [vmem:[#allocation2 + $0x1f0] sm:$0xff] %vm24, %v123
  %156 = vst.msk [vmem:[#allocation2 + $0x1f8] sm:$0xff] %vm24, %v124
  %157 = vst.msk [vmem:[#allocation2 + $0x200] sm:$0xff] %vm24, %v125
  %158 = vst.msk [vmem:[#allocation2 + $0x208] sm:$0xff] %vm24, %v126
  %159 = vst.msk [vmem:[#allocation2 + $0x210] sm:$0xff] %vm24, %v127
  %160 = vst.msk [vmem:[#allocation2 + $0x218] sm:$0xff] %vm24, %v128
  %161 = vst.msk [vmem:[#allocation2 + $0x220] sm:$0xff] %vm24, %v129
  %162 = vst.msk [vmem:[#allocation2 + $0x228] sm:$0xff] %vm24, %v130
  %v163 = vld [vmem:[#allocation2] sm:$0xff]
  %v164 = vld [vmem:[#allocation2 + $0x8] sm:$0xff]
  %v165 = vld [vmem:[#allocation2 + $0x10] sm:$0xff]
  %v166 = vld [vmem:[#allocation2 + $0x18] sm:$0xff]
  %v167 = vld [vmem:[#allocation2 + $0x20] sm:$0xff]
  %v168 = vld [vmem:[#allocation2 + $0x28] sm:$0xff]
  %v169 = vld [vmem:[#allocation2 + $0x30] sm:$0xff]
  %v170 = vld [vmem:[#allocation2 + $0x38] sm:$0xff]
  %v171 = vld [vmem:[#allocation2 + $0x40] sm:$0xff]
  %v172 = vld [vmem:[#allocation2 + $0x48] sm:$0xff]
  %v173 = vld [vmem:[#allocation2 + $0x50] sm:$0xff]
  %v174 = vld [vmem:[#allocation2 + $0x58] sm:$0xff]
  %v175 = vld [vmem:[#allocation2 + $0x60] sm:$0xff]
  %v176 = vld [vmem:[#allocation2 + $0x68] sm:$0xff]
  %v177 = vld [vmem:[#allocation2 + $0x70] sm:$0xff]
  %v178 = vld [vmem:[#allocation2 + $0x78] sm:$0xff]
  %v179 = vld [vmem:[#allocation2 + $0x80] sm:$0xff]
  %v180 = vld [vmem:[#allocation2 + $0x88] sm:$0xff]
  %v181 = vld [vmem:[#allocation2 + $0x90] sm:$0xff]
  %v182 = vld [vmem:[#allocation2 + $0x98] sm:$0xff]
  %v183 = vld [vmem:[#allocation2 + $0xa0] sm:$0xff]
  %v184 = vld [vmem:[#allocation2 + $0xa8] sm:$0xff]
  %v185 = vld [vmem:[#allocation2 + $0xb0] sm:$0xff]
  %v186 = vld [vmem:[#allocation2 + $0xb8] sm:$0xff]
  %v187 = vld [vmem:[#allocation2 + $0xc0] sm:$0xff]
  %v188 = vld [vmem:[#allocation2 + $0xc8] sm:$0xff]
  %v189 = vld [vmem:[#allocation2 + $0xd0] sm:$0xff]
  %v190 = vld [vmem:[#allocation2 + $0xd8] sm:$0xff]
  %v191 = vld [vmem:[#allocation2 + $0xe0] sm:$0xff]
  %v192 = vld [vmem:[#allocation2 + $0xe8] sm:$0xff]
  %v193 = vld [vmem:[#allocation2 + $0xf0] sm:$0xff]
  %v194 = vld [vmem:[#allocation2 + $0xf8] sm:$0xff]
  %v195 = vld [vmem:[#allocation2 + $0x100] sm:$0xff]
  %v196 = vld [vmem:[#allocation2 + $0x108] sm:$0xff]
  %v197 = vld [vmem:[#allocation2 + $0x110] sm:$0xff]
  %v198 = vld [vmem:[#allocation2 + $0x118] sm:$0xff]
  %v199 = vld [vmem:[#allocation2 + $0x120] sm:$0xff]
  %v200 = vld [vmem:[#allocation2 + $0x128] sm:$0xff]
  %v201 = vld [vmem:[#allocation2 + $0x130] sm:$0xff]
  %v202 = vld [vmem:[#allocation2 + $0x138] sm:$0xff]
  %v203 = vld [vmem:[#allocation2 + $0x140] sm:$0xff]
  %v204 = vld [vmem:[#allocation2 + $0x148] sm:$0xff]
  %v205 = vld [vmem:[#allocation2 + $0x150] sm:$0xff]
  %v206 = vld [vmem:[#allocation2 + $0x158] sm:$0xff]
  %v207 = vld [vmem:[#allocation2 + $0x160] sm:$0xff]
  %v208 = vld [vmem:[#allocation2 + $0x168] sm:$0xff]
  %v209 = vld [vmem:[#allocation2 + $0x170] sm:$0xff]
  %v210 = vld [vmem:[#allocation2 + $0x178] sm:$0xff]
  %v211 = vld [vmem:[#allocation2 + $0x180] sm:$0xff]
  %v212 = vld [vmem:[#allocation2 + $0x188] sm:$0xff]
  %v213 = vld [vmem:[#allocation2 + $0x190] sm:$0xff]
  %v214 = vld [vmem:[#allocation2 + $0x198] sm:$0xff]
  %v215 = vld [vmem:[#allocation2 + $0x1a0] sm:$0xff]
  %v216 = vld [vmem:[#allocation2 + $0x1a8] sm:$0xff]
  %v217 = vld [vmem:[#allocation2 + $0x1b0] sm:$0xff]
  %v218 = vld [vmem:[#allocation2 + $0x1b8] sm:$0xff]
  %v219 = vld [vmem:[#allocation2 + $0x1c0] sm:$0xff]
  %v220 = vld [vmem:[#allocation2 + $0x1c8] sm:$0xff]
  %v221 = vld [vmem:[#allocation2 + $0x1d0] sm:$0xff]
  %v222 = vld [vmem:[#allocation2 + $0x1d8] sm:$0xff]
  %v223 = vld [vmem:[#allocation2 + $0x1e0] sm:$0xff]
  %v224 = vld [vmem:[#allocation2 + $0x1e8] sm:$0xff]
  %v225 = vld [vmem:[#allocation2 + $0x1f0] sm:$0xff]
  %v226 = vld [vmem:[#allocation2 + $0x1f8] sm:$0xff]
  %v227 = vld [vmem:[#allocation2 + $0x200] sm:$0xff]
  %v228 = vld [vmem:[#allocation2 + $0x208] sm:$0xff]
  %v229 = vld [vmem:[#allocation2 + $0x210] sm:$0xff]
  %v230 = vld [vmem:[#allocation2 + $0x218] sm:$0xff]
  %v231 = vld [vmem:[#allocation2 + $0x220] sm:$0xff]
  %v232 = vld [vmem:[#allocation2 + $0x228] sm:$0xff]
  %v233 = vld [vmem:[#allocation2 + $0x230] sm:$0xff]
  %v234 = vld [vmem:[#allocation2 + $0x238] sm:$0xff]
  %v235 = vld [vmem:[%s4] sm:$0xff]
  %v236 = vld [vmem:[%s4 + $0x8] sm:$0xff]
  %v237 = vld [vmem:[%s4 + $0x10] sm:$0xff]
  %v238 = vld [vmem:[%s4 + $0x18] sm:$0xff]
  %v239 = vld [vmem:[%s4 + $0x20] sm:$0xff]
  %v240 = vld [vmem:[%s4 + $0x28] sm:$0xff]
  %v241 = vld [vmem:[%s4 + $0x30] sm:$0xff]
  %v242 = vld [vmem:[%s4 + $0x38] sm:$0xff]
  %v243 = vld [vmem:[%s4 + $0x40] sm:$0xff]
  %v244 = vld [vmem:[%s4 + $0x48] sm:$0xff]
  %v245 = vld [vmem:[%s4 + $0x50] sm:$0xff]
  %v246 = vld [vmem:[%s4 + $0x58] sm:$0xff]
  %v247 = vld [vmem:[%s4 + $0x60] sm:$0xff]
  %v248 = vld [vmem:[%s4 + $0x68] sm:$0xff]
  %v249 = vld [vmem:[%s4 + $0x70] sm:$0xff]
  %v250 = vld [vmem:[%s4 + $0x78] sm:$0xff]
  %v251 = vld [vmem:[%s4 + $0x80] sm:$0xff]
  %v252 = vld [vmem:[%s4 + $0x88] sm:$0xff]
  %v253 = vld [vmem:[%s4 + $0x90] sm:$0xff]
  %v254 = vld [vmem:[%s4 + $0x98] sm:$0xff]
  %v255 = vld [vmem:[%s4 + $0xa0] sm:$0xff]
  %v256 = vld [vmem:[%s4 + $0xa8] sm:$0xff]
  %v257 = vld [vmem:[%s4 + $0xb0] sm:$0xff]
  %v258 = vld [vmem:[%s4 + $0xb8] sm:$0xff]
  %v259 = vld [vmem:[%s4 + $0xc0] sm:$0xff]
  %v260 = vld [vmem:[%s4 + $0xc8] sm:$0xff]
  %v261 = vld [vmem:[%s4 + $0xd0] sm:$0xff]
  %v262 = vld [vmem:[%s4 + $0xd8] sm:$0xff]
  %v263 = vld [vmem:[%s4 + $0xe0] sm:$0xff]
  %v264 = vld [vmem:[%s4 + $0xe8] sm:$0xff]
  %v265 = vld [vmem:[%s4 + $0xf0] sm:$0xff]
  %v266 = vld [vmem:[%s4 + $0xf8] sm:$0xff]
  %v267 = vld [vmem:[%s4 + $0x100] sm:$0xff]
  %v268 = vld [vmem:[%s4 + $0x108] sm:$0xff]
  %v269 = vld [vmem:[%s4 + $0x110] sm:$0xff]
  %v270 = vld [vmem:[%s4 + $0x118] sm:$0xff]
  %v271 = vld [vmem:[%s4 + $0x120] sm:$0xff]
  %v272 = vld [vmem:[%s4 + $0x128] sm:$0xff]
  %v273 = vld [vmem:[%s4 + $0x130] sm:$0xff]
  %v274 = vld [vmem:[%s4 + $0x138] sm:$0xff]
  %v275 = vld [vmem:[%s4 + $0x140] sm:$0xff]
  %v276 = vld [vmem:[%s4 + $0x148] sm:$0xff]
  %v277 = vld [vmem:[%s4 + $0x150] sm:$0xff]
  %v278 = vld [vmem:[%s4 + $0x158] sm:$0xff]
  %v279 = vld [vmem:[%s4 + $0x160] sm:$0xff]
  %v280 = vld [vmem:[%s4 + $0x168] sm:$0xff]
  %v281 = vld [vmem:[%s4 + $0x170] sm:$0xff]
  %v282 = vld [vmem:[%s4 + $0x178] sm:$0xff]
  %v283 = vld [vmem:[%s4 + $0x180] sm:$0xff]
  %v284 = vld [vmem:[%s4 + $0x188] sm:$0xff]
  %v285 = vld [vmem:[%s4 + $0x190] sm:$0xff]
  %v286 = vld [vmem:[%s4 + $0x198] sm:$0xff]
  %v287 = vld [vmem:[%s4 + $0x1a0] sm:$0xff]
  %v288 = vld [vmem:[%s4 + $0x1a8] sm:$0xff]
  %v289 = vld [vmem:[%s4 + $0x1b0] sm:$0xff]
  %v290 = vld [vmem:[%s4 + $0x1b8] sm:$0xff]
  %v291 = vld [vmem:[%s4 + $0x1c0] sm:$0xff]
  %v292 = vld [vmem:[%s4 + $0x1c8] sm:$0xff]
  %v293 = vld [vmem:[%s4 + $0x1d0] sm:$0xff]
  %v294 = vld [vmem:[%s4 + $0x1d8] sm:$0xff]
  %v295 = vld [vmem:[%s4 + $0x1e0] sm:$0xff]
  %v296 = vld [vmem:[%s4 + $0x1e8] sm:$0xff]
  %v297 = vld [vmem:[%s4 + $0x1f0] sm:$0xff]
  %v298 = vld [vmem:[%s4 + $0x1f8] sm:$0xff]
  %v299 = vld [vmem:[%s4 + $0x200] sm:$0xff]
  %v300 = vld [vmem:[%s4 + $0x208] sm:$0xff]
  %v301 = vld [vmem:[%s4 + $0x210] sm:$0xff]
  %v302 = vld [vmem:[%s4 + $0x218] sm:$0xff]
  %v303 = vld [vmem:[%s4 + $0x220] sm:$0xff]
  %v304 = vld [vmem:[%s4 + $0x228] sm:$0xff]
  %v305 = vld [vmem:[%s4 + $0x230] sm:$0xff]
  %v306 = vld [vmem:[%s4 + $0x238] sm:$0xff]
  %v307 = vmul.f32 %v163, %v235
  %v308 = vmul.f32 %v164, %v236
  %v309 = vmul.f32 %v165, %v237
  %v310 = vmul.f32 %v166, %v238
  %v311 = vmul.f32 %v167, %v239
  %v312 = vmul.f32 %v168, %v240
  %v313 = vmul.f32 %v169, %v241
  %v314 = vmul.f32 %v170, %v242
  %v315 = vmul.f32 %v171, %v243
  %v316 = vmul.f32 %v172, %v244
  %v317 = vmul.f32 %v173, %v245
  %v318 = vmul.f32 %v174, %v246
  %v319 = vmul.f32 %v175, %v247
  %v320 = vmul.f32 %v176, %v248
  %v321 = vmul.f32 %v177, %v249
  %v322 = vmul.f32 %v178, %v250
  %v323 = vmul.f32 %v179, %v251
  %v324 = vmul.f32 %v180, %v252
  %v325 = vmul.f32 %v181, %v253
  %v326 = vmul.f32 %v182, %v254
  %v327 = vmul.f32 %v183, %v255
  %v328 = vmul.f32 %v184, %v256
  %v329 = vmul.f32 %v185, %v257
  %v330 = vmul.f32 %v186, %v258
  %v331 = vmul.f32 %v187, %v259
  %v332 = vmul.f32 %v188, %v260
  %v333 = vmul.f32 %v189, %v261
  %v334 = vmul.f32 %v190, %v262
  %v335 = vmul.f32 %v191, %v263
  %v336 = vmul.f32 %v192, %v264
  %v337 = vmul.f32 %v193, %v265
  %v338 = vmul.f32 %v194, %v266
  %v339 = vmul.f32 %v195, %v267
  %v340 = vmul.f32 %v196, %v268
  %v341 = vmul.f32 %v197, %v269
  %v342 = vmul.f32 %v198, %v270
  %v343 = vmul.f32 %v199, %v271
  %v344 = vmul.f32 %v200, %v272
  %v345 = vmul.f32 %v201, %v273
  %v346 = vmul.f32 %v202, %v274
  %v347 = vmul.f32 %v203, %v275
  %v348 = vmul.f32 %v204, %v276
  %v349 = vmul.f32 %v205, %v277
  %v350 = vmul.f32 %v206, %v278
  %v351 = vmul.f32 %v207, %v279
  %v352 = vmul.f32 %v208, %v280
  %v353 = vmul.f32 %v209, %v281
  %v354 = vmul.f32 %v210, %v282
  %v355 = vmul.f32 %v211, %v283
  %v356 = vmul.f32 %v212, %v284
  %v357 = vmul.f32 %v213, %v285
  %v358 = vmul.f32 %v214, %v286
  %v359 = vmul.f32 %v215, %v287
  %v360 = vmul.f32 %v216, %v288
  %v361 = vmul.f32 %v217, %v289
  %v362 = vmul.f32 %v218, %v290
  %v363 = vmul.f32 %v219, %v291
  %v364 = vmul.f32 %v220, %v292
  %v365 = vmul.f32 %v221, %v293
  %v366 = vmul.f32 %v222, %v294
  %v367 = vmul.f32 %v223, %v295
  %v368 = vmul.f32 %v224, %v296
  %v369 = vmul.f32 %v225, %v297
  %v370 = vmul.f32 %v226, %v298
  %v371 = vmul.f32 %v227, %v299
  %v372 = vmul.f32 %v228, %v300
  %v373 = vmul.f32 %v229, %v301
  %v374 = vmul.f32 %v230, %v302
  %v375 = vmul.f32 %v231, %v303
  %v376 = vmul.f32 %v232, %v304
  %v377 = vmul.f32 %v233, %v305
  %v378 = vmul.f32 %v234, %v306
  %v379 = vpack.c.bf16 %v308, %v307
  %v380 = vpack.c.bf16 %v310, %v309
  %v381 = vpack.c.bf16 %v312, %v311
  %v382 = vpack.c.bf16 %v314, %v313
  %v383 = vpack.c.bf16 %v316, %v315
  %v384 = vpack.c.bf16 %v318, %v317
  %v385 = vpack.c.bf16 %v320, %v319
  %v386 = vpack.c.bf16 %v322, %v321
  %v387 = vpack.c.bf16 %v324, %v323
  %v388 = vpack.c.bf16 %v326, %v325
  %v389 = vpack.c.bf16 %v328, %v327
  %v390 = vpack.c.bf16 %v330, %v329
  %v391 = vpack.c.bf16 %v332, %v331
  %v392 = vpack.c.bf16 %v334, %v333
  %v393 = vpack.c.bf16 %v336, %v335
  %v394 = vpack.c.bf16 %v338, %v337
  %v395 = vpack.c.bf16 %v340, %v339
  %v396 = vpack.c.bf16 %v342, %v341
  %v397 = vpack.c.bf16 %v344, %v343
  %v398 = vpack.c.bf16 %v346, %v345
  %v399 = vpack.c.bf16 %v348, %v347
  %v400 = vpack.c.bf16 %v350, %v349
  %v401 = vpack.c.bf16 %v352, %v351
  %v402 = vpack.c.bf16 %v354, %v353
  %v403 = vpack.c.bf16 %v356, %v355
  %v404 = vpack.c.bf16 %v358, %v357
  %v405 = vpack.c.bf16 %v360, %v359
  %v406 = vpack.c.bf16 %v362, %v361
  %v407 = vpack.c.bf16 %v364, %v363
  %v408 = vpack.c.bf16 %v366, %v365
  %v409 = vpack.c.bf16 %v368, %v367
  %v410 = vpack.c.bf16 %v370, %v369
  %v411 = vpack.c.bf16 %v372, %v371
  %v412 = vpack.c.bf16 %v374, %v373
  %v413 = vpack.c.bf16 %v376, %v375
  %v414 = vpack.c.bf16 %v378, %v377
  %v451 = vunpack.c.l.b16 %v379
  %v452 = vunpack.c.h.b16 %v379
  %v453 = vunpack.c.l.b16 %v380
  %v454 = vunpack.c.h.b16 %v380
  %v455 = vunpack.c.l.b16 %v381
  %v456 = vunpack.c.h.b16 %v381
  %v457 = vunpack.c.l.b16 %v382
  %v458 = vunpack.c.h.b16 %v382
  %v459 = vunpack.c.l.b16 %v383
  %v460 = vunpack.c.h.b16 %v383
  %v461 = vunpack.c.l.b16 %v384
  %v462 = vunpack.c.h.b16 %v384
  %v463 = vunpack.c.l.b16 %v385
  %v464 = vunpack.c.h.b16 %v385
  %v465 = vunpack.c.l.b16 %v386
  %v466 = vunpack.c.h.b16 %v386
  %v467 = vunpack.c.l.b16 %v387
  %v468 = vunpack.c.h.b16 %v387
  %v469 = vunpack.c.l.b16 %v388
  %v470 = vunpack.c.h.b16 %v388
  %v471 = vunpack.c.l.b16 %v389
  %v472 = vunpack.c.h.b16 %v389
  %v473 = vunpack.c.l.b16 %v390
  %v474 = vunpack.c.h.b16 %v390
  %v475 = vunpack.c.l.b16 %v391
  %v476 = vunpack.c.h.b16 %v391
  %v477 = vunpack.c.l.b16 %v392
  %v478 = vunpack.c.h.b16 %v392
  %v479 = vunpack.c.l.b16 %v393
  %v480 = vunpack.c.h.b16 %v393
  %v481 = vunpack.c.l.b16 %v394
  %v482 = vunpack.c.h.b16 %v394
  %v483 = vunpack.c.l.b16 %v395
  %v484 = vunpack.c.h.b16 %v395
  %v485 = vunpack.c.l.b16 %v396
  %v486 = vunpack.c.h.b16 %v396
  %v487 = vunpack.c.l.b16 %v397
  %v488 = vunpack.c.h.b16 %v397
  %v489 = vunpack.c.l.b16 %v398
  %v490 = vunpack.c.h.b16 %v398
  %v491 = vunpack.c.l.b16 %v399
  %v492 = vunpack.c.h.b16 %v399
  %v493 = vunpack.c.l.b16 %v400
  %v494 = vunpack.c.h.b16 %v400
  %v495 = vunpack.c.l.b16 %v401
  %v496 = vunpack.c.h.b16 %v401
  %v497 = vunpack.c.l.b16 %v402
  %v498 = vunpack.c.h.b16 %v402
  %v499 = vunpack.c.l.b16 %v403
  %v500 = vunpack.c.h.b16 %v403
  %v501 = vunpack.c.l.b16 %v404
  %v502 = vunpack.c.h.b16 %v404
  %v503 = vunpack.c.l.b16 %v405
  %v504 = vunpack.c.h.b16 %v405
  %v505 = vunpack.c.l.b16 %v406
  %v506 = vunpack.c.h.b16 %v406
  %v507 = vunpack.c.l.b16 %v407
  %v508 = vunpack.c.h.b16 %v407
  %v509 = vunpack.c.l.b16 %v408
  %v510 = vunpack.c.h.b16 %v408
  %v511 = vunpack.c.l.b16 %v409
  %v512 = vunpack.c.h.b16 %v409
  %v513 = vunpack.c.l.b16 %v410
  %v514 = vunpack.c.h.b16 %v410
  %v515 = vunpack.c.l.b16 %v411
  %v516 = vunpack.c.h.b16 %v411
  %v517 = vunpack.c.l.b16 %v412
  %v518 = vunpack.c.h.b16 %v412
  %v519 = vunpack.c.l.b16 %v413
  %v520 = vunpack.c.h.b16 %v413
  %v521 = vunpack.c.l.b16 %v414
  %v522 = vunpack.c.h.b16 %v414
  %v523 = vpack.c.b16 %v451, %v451
  %v524 = vpack.c.b16 %v452, %v452
  %v525 = vpack.c.b16 %v453, %v453
  %v526 = vpack.c.b16 %v454, %v454
  %v527 = vpack.c.b16 %v455, %v455
  %v528 = vpack.c.b16 %v456, %v456
  %v529 = vpack.c.b16 %v457, %v457
  %v530 = vpack.c.b16 %v458, %v458
  %v531 = vpack.c.b16 %v459, %v459
  %v532 = vpack.c.b16 %v460, %v460
  %v533 = vpack.c.b16 %v461, %v461
  %v534 = vpack.c.b16 %v462, %v462
  %v535 = vpack.c.b16 %v463, %v463
  %v536 = vpack.c.b16 %v464, %v464
  %v537 = vpack.c.b16 %v465, %v465
  %v538 = vpack.c.b16 %v466, %v466
  %v539 = vpack.c.b16 %v467, %v467
  %v540 = vpack.c.b16 %v468, %v468
  %v541 = vpack.c.b16 %v469, %v469
  %v542 = vpack.c.b16 %v470, %v470
  %v543 = vpack.c.b16 %v471, %v471
  %v544 = vpack.c.b16 %v472, %v472
  %v545 = vpack.c.b16 %v473, %v473
  %v546 = vpack.c.b16 %v474, %v474
  %v547 = vpack.c.b16 %v475, %v475
  %v548 = vpack.c.b16 %v476, %v476
  %v549 = vpack.c.b16 %v477, %v477
  %v550 = vpack.c.b16 %v478, %v478
  %v551 = vpack.c.b16 %v479, %v479
  %v552 = vpack.c.b16 %v480, %v480
  %v553 = vpack.c.b16 %v481, %v481
  %v554 = vpack.c.b16 %v482, %v482
  %v555 = vpack.c.b16 %v483, %v483
  %v556 = vpack.c.b16 %v484, %v484
  %v557 = vpack.c.b16 %v485, %v485
  %v558 = vpack.c.b16 %v486, %v486
  %v559 = vpack.c.b16 %v487, %v487
  %v560 = vpack.c.b16 %v488, %v488
  %v561 = vpack.c.b16 %v489, %v489
  %v562 = vpack.c.b16 %v490, %v490
  %v563 = vpack.c.b16 %v491, %v491
  %v564 = vpack.c.b16 %v492, %v492
  %v565 = vpack.c.b16 %v493, %v493
  %v566 = vpack.c.b16 %v494, %v494
  %v567 = vpack.c.b16 %v495, %v495
  %v568 = vpack.c.b16 %v496, %v496
  %v569 = vpack.c.b16 %v497, %v497
  %v570 = vpack.c.b16 %v498, %v498
  %v571 = vpack.c.b16 %v499, %v499
  %v572 = vpack.c.b16 %v500, %v500
  %v573 = vpack.c.b16 %v501, %v501
  %v574 = vpack.c.b16 %v502, %v502
  %v575 = vpack.c.b16 %v503, %v503
  %v576 = vpack.c.b16 %v504, %v504
  %v577 = vpack.c.b16 %v505, %v505
  %v578 = vpack.c.b16 %v506, %v506
  %v579 = vpack.c.b16 %v507, %v507
  %v580 = vpack.c.b16 %v508, %v508
  %v581 = vpack.c.b16 %v509, %v509
  %v582 = vpack.c.b16 %v510, %v510
  %v583 = vpack.c.b16 %v511, %v511
  %v584 = vpack.c.b16 %v512, %v512
  %v585 = vpack.c.b16 %v513, %v513
  %v586 = vpack.c.b16 %v514, %v514
  %v587 = vpack.c.b16 %v515, %v515
  %v588 = vpack.c.b16 %v516, %v516
  %v589 = vpack.c.b16 %v517, %v517
  %v590 = vpack.c.b16 %v518, %v518
  %v591 = vpack.c.b16 %v519, %v519
  %v592 = vpack.c.b16 %v520, %v520
  %v593 = vpack.c.b16 %v521, %v521
  %v594 = vpack.c.b16 %v522, %v522
  %vm667 = vcmask 519168
  %668 = vst.msk [vmem:[#allocation3] sm:$0xf] %vm667, %v523
  %669 = vst.msk [vmem:[#allocation3 + $0x8] sm:$0xf] %vm667, %v524
  %670 = vst.msk [vmem:[#allocation3 + $0x10] sm:$0xf] %vm667, %v525
  %671 = vst.msk [vmem:[#allocation3 + $0x18] sm:$0xf] %vm667, %v526
  %672 = vst.msk [vmem:[#allocation3 + $0x20] sm:$0xf] %vm667, %v527
  %673 = vst.msk [vmem:[#allocation3 + $0x28] sm:$0xf] %vm667, %v528
  %674 = vst.msk [vmem:[#allocation3 + $0x30] sm:$0xf] %vm667, %v529
  %675 = vst.msk [vmem:[#allocation3 + $0x38] sm:$0xf] %vm667, %v530
  %676 = vst.msk [vmem:[#allocation3 + $0x40] sm:$0xf] %vm667, %v531
  %677 = vst.msk [vmem:[#allocation3 + $0x48] sm:$0xf] %vm667, %v532
  %678 = vst.msk [vmem:[#allocation3 + $0x50] sm:$0xf] %vm667, %v533
  %679 = vst.msk [vmem:[#allocation3 + $0x58] sm:$0xf] %vm667, %v534
  %680 = vst.msk [vmem:[#allocation3 + $0x60] sm:$0xf] %vm667, %v535
  %681 = vst.msk [vmem:[#allocation3 + $0x68] sm:$0xf] %vm667, %v536
  %682 = vst.msk [vmem:[#allocation3 + $0x70] sm:$0xf] %vm667, %v537
  %683 = vst.msk [vmem:[#allocation3 + $0x78] sm:$0xf] %vm667, %v538
  %684 = vst.msk [vmem:[#allocation3 + $0x80] sm:$0xf] %vm667, %v539
  %685 = vst.msk [vmem:[#allocation3 + $0x88] sm:$0xf] %vm667, %v540
  %686 = vst.msk [vmem:[#allocation3 + $0x90] sm:$0xf] %vm667, %v541
  %687 = vst.msk [vmem:[#allocation3 + $0x98] sm:$0xf] %vm667, %v542
  %688 = vst.msk [vmem:[#allocation3 + $0xa0] sm:$0xf] %vm667, %v543
  %689 = vst.msk [vmem:[#allocation3 + $0xa8] sm:$0xf] %vm667, %v544
  %690 = vst.msk [vmem:[#allocation3 + $0xb0] sm:$0xf] %vm667, %v545
  %691 = vst.msk [vmem:[#allocation3 + $0xb8] sm:$0xf] %vm667, %v546
  %692 = vst.msk [vmem:[#allocation3 + $0xc0] sm:$0xf] %vm667, %v547
  %693 = vst.msk [vmem:[#allocation3 + $0xc8] sm:$0xf] %vm667, %v548
  %694 = vst.msk [vmem:[#allocation3 + $0xd0] sm:$0xf] %vm667, %v549
  %695 = vst.msk [vmem:[#allocation3 + $0xd8] sm:$0xf] %vm667, %v550
  %696 = vst.msk [vmem:[#allocation3 + $0xe0] sm:$0xf] %vm667, %v551
  %697 = vst.msk [vmem:[#allocation3 + $0xe8] sm:$0xf] %vm667, %v552
  %698 = vst.msk [vmem:[#allocation3 + $0xf0] sm:$0xf] %vm667, %v553
  %699 = vst.msk [vmem:[#allocation3 + $0xf8] sm:$0xf] %vm667, %v554
  %700 = vst.msk [vmem:[#allocation3 + $0x100] sm:$0xf] %vm667, %v555
  %701 = vst.msk [vmem:[#allocation3 + $0x108] sm:$0xf] %vm667, %v556
  %702 = vst.msk [vmem:[#allocation3 + $0x110] sm:$0xf] %vm667, %v557
  %703 = vst.msk [vmem:[#allocation3 + $0x118] sm:$0xf] %vm667, %v558
  %704 = vst.msk [vmem:[#allocation3 + $0x120] sm:$0xf] %vm667, %v559
  %705 = vst.msk [vmem:[#allocation3 + $0x128] sm:$0xf] %vm667, %v560
  %706 = vst.msk [vmem:[#allocation3 + $0x130] sm:$0xf] %vm667, %v561
  %707 = vst.msk [vmem:[#allocation3 + $0x138] sm:$0xf] %vm667, %v562
  %708 = vst.msk [vmem:[#allocation3 + $0x140] sm:$0xf] %vm667, %v563
  %709 = vst.msk [vmem:[#allocation3 + $0x148] sm:$0xf] %vm667, %v564
  %710 = vst.msk [vmem:[#allocation3 + $0x150] sm:$0xf] %vm667, %v565
  %711 = vst.msk [vmem:[#allocation3 + $0x158] sm:$0xf] %vm667, %v566
  %712 = vst.msk [vmem:[#allocation3 + $0x160] sm:$0xf] %vm667, %v567
  %713 = vst.msk [vmem:[#allocation3 + $0x168] sm:$0xf] %vm667, %v568
  %714 = vst.msk [vmem:[#allocation3 + $0x170] sm:$0xf] %vm667, %v569
  %715 = vst.msk [vmem:[#allocation3 + $0x178] sm:$0xf] %vm667, %v570
  %716 = vst.msk [vmem:[#allocation3 + $0x180] sm:$0xf] %vm667, %v571
  %717 = vst.msk [vmem:[#allocation3 + $0x188] sm:$0xf] %vm667, %v572
  %718 = vst.msk [vmem:[#allocation3 + $0x190] sm:$0xf] %vm667, %v573
  %719 = vst.msk [vmem:[#allocation3 + $0x198] sm:$0xf] %vm667, %v574
  %720 = vst.msk [vmem:[#allocation3 + $0x1a0] sm:$0xf] %vm667, %v575
  %721 = vst.msk [vmem:[#allocation3 + $0x1a8] sm:$0xf] %vm667, %v576
  %722 = vst.msk [vmem:[#allocation3 + $0x1b0] sm:$0xf] %vm667, %v577
  %723 = vst.msk [vmem:[#allocation3 + $0x1b8] sm:$0xf] %vm667, %v578
  %724 = vst.msk [vmem:[#allocation3 + $0x1c0] sm:$0xf] %vm667, %v579
  %725 = vst.msk [vmem:[#allocation3 + $0x1c8] sm:$0xf] %vm667, %v580
  %726 = vst.msk [vmem:[#allocation3 + $0x1d0] sm:$0xf] %vm667, %v581
  %727 = vst.msk [vmem:[#allocation3 + $0x1d8] sm:$0xf] %vm667, %v582
  %728 = vst.msk [vmem:[#allocation3 + $0x1e0] sm:$0xf] %vm667, %v583
  %729 = vst.msk [vmem:[#allocation3 + $0x1e8] sm:$0xf] %vm667, %v584
  %730 = vst.msk [vmem:[#allocation3 + $0x1f0] sm:$0xf] %vm667, %v585
  %731 = vst.msk [vmem:[#allocation3 + $0x1f8] sm:$0xf] %vm667, %v586
  %732 = vst.msk [vmem:[#allocation3 + $0x200] sm:$0xf] %vm667, %v587
  %733 = vst.msk [vmem:[#allocation3 + $0x208] sm:$0xf] %vm667, %v588
  %734 = vst.msk [vmem:[#allocation3 + $0x210] sm:$0xf] %vm667, %v589
  %735 = vst.msk [vmem:[#allocation3 + $0x218] sm:$0xf] %vm667, %v590
  %736 = vst.msk [vmem:[#allocation3 + $0x220] sm:$0xf] %vm667, %v591
  %737 = vst.msk [vmem:[#allocation3 + $0x228] sm:$0xf] %vm667, %v592
  %738 = vst.msk [vmem:[#allocation3 + $0x230] sm:$0xf] %vm667, %v593
  %739 = vst.msk [vmem:[#allocation3 + $0x238] sm:$0xf] %vm667, %v594
  %v740 = vld [vmem:[#allocation2 + $0x1] sm:$0xff]
  %v741 = vld [vmem:[#allocation2 + $0x9] sm:$0xff]
  %v742 = vld [vmem:[#allocation2 + $0x11] sm:$0xff]
  %v743 = vld [vmem:[#allocation2 + $0x19] sm:$0xff]
  %v744 = vld [vmem:[#allocation2 + $0x21] sm:$0xff]
  %v745 = vld [vmem:[#allocation2 + $0x29] sm:$0xff]
  %v746 = vld [vmem:[#allocation2 + $0x31] sm:$0xff]
  %v747 = vld [vmem:[#allocation2 + $0x39] sm:$0xff]
  %v748 = vld [vmem:[#allocation2 + $0x41] sm:$0xff]
  %v749 = vld [vmem:[#allocation2 + $0x49] sm:$0xff]
  %v750 = vld [vmem:[#allocation2 + $0x51] sm:$0xff]
  %v751 = vld [vmem:[#allocation2 + $0x59] sm:$0xff]
  %v752 = vld [vmem:[#allocation2 + $0x61] sm:$0xff]
  %v753 = vld [vmem:[#allocation2 + $0x69] sm:$0xff]
  %v754 = vld [vmem:[#allocation2 + $0x71] sm:$0xff]
  %v755 = vld [vmem:[#allocation2 + $0x79] sm:$0xff]
  %v756 = vld [vmem:[#allocation2 + $0x81] sm:$0xff]
  %v757 = vld [vmem:[#allocation2 + $0x89] sm:$0xff]
  %v758 = vld [vmem:[#allocation2 + $0x91] sm:$0xff]
  %v759 = vld [vmem:[#allocation2 + $0x99] sm:$0xff]
  %v760 = vld [vmem:[#allocation2 + $0xa1] sm:$0xff]
  %v761 = vld [vmem:[#allocation2 + $0xa9] sm:$0xff]
  %v762 = vld [vmem:[#allocation2 + $0xb1] sm:$0xff]
  %v763 = vld [vmem:[#allocation2 + $0xb9] sm:$0xff]
  %v764 = vld [vmem:[#allocation2 + $0xc1] sm:$0xff]
  %v765 = vld [vmem:[#allocation2 + $0xc9] sm:$0xff]
  %v766 = vld [vmem:[#allocation2 + $0xd1] sm:$0xff]
  %v767 = vld [vmem:[#allocation2 + $0xd9] sm:$0xff]
  %v768 = vld [vmem:[#allocation2 + $0xe1] sm:$0xff]
  %v769 = vld [vmem:[#allocation2 + $0xe9] sm:$0xff]
  %v770 = vld [vmem:[#allocation2 + $0xf1] sm:$0xff]
  %v771 = vld [vmem:[#allocation2 + $0xf9] sm:$0xff]
  %v772 = vld [vmem:[#allocation2 + $0x101] sm:$0xff]
  %v773 = vld [vmem:[#allocation2 + $0x109] sm:$0xff]
  %v774 = vld [vmem:[#allocation2 + $0x111] sm:$0xff]
  %v775 = vld [vmem:[#allocation2 + $0x119] sm:$0xff]
  %v776 = vld [vmem:[#allocation2 + $0x121] sm:$0xff]
  %v777 = vld [vmem:[#allocation2 + $0x129] sm:$0xff]
  %v778 = vld [vmem:[#allocation2 + $0x131] sm:$0xff]
  %v779 = vld [vmem:[#allocation2 + $0x139] sm:$0xff]
  %v780 = vld [vmem:[#allocation2 + $0x141] sm:$0xff]
  %v781 = vld [vmem:[#allocation2 + $0x149] sm:$0xff]
  %v782 = vld [vmem:[#allocation2 + $0x151] sm:$0xff]
  %v783 = vld [vmem:[#allocation2 + $0x159] sm:$0xff]
  %v784 = vld [vmem:[#allocation2 + $0x161] sm:$0xff]
  %v785 = vld [vmem:[#allocation2 + $0x169] sm:$0xff]
  %v786 = vld [vmem:[#allocation2 + $0x171] sm:$0xff]
  %v787 = vld [vmem:[#allocation2 + $0x179] sm:$0xff]
  %v788 = vld [vmem:[#allocation2 + $0x181] sm:$0xff]
  %v789 = vld [vmem:[#allocation2 + $0x189] sm:$0xff]
  %v790 = vld [vmem:[#allocation2 + $0x191] sm:$0xff]
  %v791 = vld [vmem:[#allocation2 + $0x199] sm:$0xff]
  %v792 = vld [vmem:[#allocation2 + $0x1a1] sm:$0xff]
  %v793 = vld [vmem:[#allocation2 + $0x1a9] sm:$0xff]
  %v794 = vld [vmem:[#allocation2 + $0x1b1] sm:$0xff]
  %v795 = vld [vmem:[#allocation2 + $0x1b9] sm:$0xff]
  %v796 = vld [vmem:[#allocation2 + $0x1c1] sm:$0xff]
  %v797 = vld [vmem:[#allocation2 + $0x1c9] sm:$0xff]
  %v798 = vld [vmem:[#allocation2 + $0x1d1] sm:$0xff]
  %v799 = vld [vmem:[#allocation2 + $0x1d9] sm:$0xff]
  %v800 = vld [vmem:[#allocation2 + $0x1e1] sm:$0xff]
  %v801 = vld [vmem:[#allocation2 + $0x1e9] sm:$0xff]
  %v802 = vld [vmem:[#allocation2 + $0x1f1] sm:$0xff]
  %v803 = vld [vmem:[#allocation2 + $0x1f9] sm:$0xff]
  %v804 = vld [vmem:[#allocation2 + $0x201] sm:$0xff]
  %v805 = vld [vmem:[#allocation2 + $0x209] sm:$0xff]
  %v806 = vld [vmem:[#allocation2 + $0x211] sm:$0xff]
  %v807 = vld [vmem:[#allocation2 + $0x219] sm:$0xff]
  %v808 = vld [vmem:[#allocation2 + $0x221] sm:$0xff]
  %v809 = vld [vmem:[#allocation2 + $0x229] sm:$0xff]
  %v810 = vld [vmem:[#allocation2 + $0x231] sm:$0xff]
  %v811 = vld [vmem:[#allocation2 + $0x239] sm:$0xff]
  %v812 = vpack.c.bf16 %v741, %v740
  %v813 = vpack.c.bf16 %v743, %v742
  %v814 = vpack.c.bf16 %v745, %v744
  %v815 = vpack.c.bf16 %v747, %v746
  %v816 = vpack.c.bf16 %v749, %v748
  %v817 = vpack.c.bf16 %v751, %v750
  %v818 = vpack.c.bf16 %v753, %v752
  %v819 = vpack.c.bf16 %v755, %v754
  %v820 = vpack.c.bf16 %v757, %v756
  %v821 = vpack.c.bf16 %v759, %v758
  %v822 = vpack.c.bf16 %v761, %v760
  %v823 = vpack.c.bf16 %v763, %v762
  %v824 = vpack.c.bf16 %v765, %v764
  %v825 = vpack.c.bf16 %v767, %v766
  %v826 = vpack.c.bf16 %v769, %v768
  %v827 = vpack.c.bf16 %v771, %v770
  %v828 = vpack.c.bf16 %v773, %v772
  %v829 = vpack.c.bf16 %v775, %v774
  %v830 = vpack.c.bf16 %v777, %v776
  %v831 = vpack.c.bf16 %v779, %v778
  %v832 = vpack.c.bf16 %v781, %v780
  %v833 = vpack.c.bf16 %v783, %v782
  %v834 = vpack.c.bf16 %v785, %v784
  %v835 = vpack.c.bf16 %v787, %v786
  %v836 = vpack.c.bf16 %v789, %v788
  %v837 = vpack.c.bf16 %v791, %v790
  %v838 = vpack.c.bf16 %v793, %v792
  %v839 = vpack.c.bf16 %v795, %v794
  %v840 = vpack.c.bf16 %v797, %v796
  %v841 = vpack.c.bf16 %v799, %v798
  %v842 = vpack.c.bf16 %v801, %v800
  %v843 = vpack.c.bf16 %v803, %v802
  %v844 = vpack.c.bf16 %v805, %v804
  %v845 = vpack.c.bf16 %v807, %v806
  %v846 = vpack.c.bf16 %v809, %v808
  %v847 = vpack.c.bf16 %v811, %v810
  %v884 = vunpack.c.l.b16 %v812
  %v885 = vunpack.c.h.b16 %v812
  %v886 = vunpack.c.l.b16 %v813
  %v887 = vunpack.c.h.b16 %v813
  %v888 = vunpack.c.l.b16 %v814
  %v889 = vunpack.c.h.b16 %v814
  %v890 = vunpack.c.l.b16 %v815
  %v891 = vunpack.c.h.b16 %v815
  %v892 = vunpack.c.l.b16 %v816
  %v893 = vunpack.c.h.b16 %v816
  %v894 = vunpack.c.l.b16 %v817
  %v895 = vunpack.c.h.b16 %v817
  %v896 = vunpack.c.l.b16 %v818
  %v897 = vunpack.c.h.b16 %v818
  %v898 = vunpack.c.l.b16 %v819
  %v899 = vunpack.c.h.b16 %v819
  %v900 = vunpack.c.l.b16 %v820
  %v901 = vunpack.c.h.b16 %v820
  %v902 = vunpack.c.l.b16 %v821
  %v903 = vunpack.c.h.b16 %v821
  %v904 = vunpack.c.l.b16 %v822
  %v905 = vunpack.c.h.b16 %v822
  %v906 = vunpack.c.l.b16 %v823
  %v907 = vunpack.c.h.b16 %v823
  %v908 = vunpack.c.l.b16 %v824
  %v909 = vunpack.c.h.b16 %v824
  %v910 = vunpack.c.l.b16 %v825
  %v911 = vunpack.c.h.b16 %v825
  %v912 = vunpack.c.l.b16 %v826
  %v913 = vunpack.c.h.b16 %v826
  %v914 = vunpack.c.l.b16 %v827
  %v915 = vunpack.c.h.b16 %v827
  %v916 = vunpack.c.l.b16 %v828
  %v917 = vunpack.c.h.b16 %v828
  %v918 = vunpack.c.l.b16 %v829
  %v919 = vunpack.c.h.b16 %v829
  %v920 = vunpack.c.l.b16 %v830
  %v921 = vunpack.c.h.b16 %v830
  %v922 = vunpack.c.l.b16 %v831
  %v923 = vunpack.c.h.b16 %v831
  %v924 = vunpack.c.l.b16 %v832
  %v925 = vunpack.c.h.b16 %v832
  %v926 = vunpack.c.l.b16 %v833
  %v927 = vunpack.c.h.b16 %v833
  %v928 = vunpack.c.l.b16 %v834
  %v929 = vunpack.c.h.b16 %v834
  %v930 = vunpack.c.l.b16 %v835
  %v931 = vunpack.c.h.b16 %v835
  %v932 = vunpack.c.l.b16 %v836
  %v933 = vunpack.c.h.b16 %v836
  %v934 = vunpack.c.l.b16 %v837
  %v935 = vunpack.c.h.b16 %v837
  %v936 = vunpack.c.l.b16 %v838
  %v937 = vunpack.c.h.b16 %v838
  %v938 = vunpack.c.l.b16 %v839
  %v939 = vunpack.c.h.b16 %v839
  %v940 = vunpack.c.l.b16 %v840
  %v941 = vunpack.c.h.b16 %v840
  %v942 = vunpack.c.l.b16 %v841
  %v943 = vunpack.c.h.b16 %v841
  %v944 = vunpack.c.l.b16 %v842
  %v945 = vunpack.c.h.b16 %v842
  %v946 = vunpack.c.l.b16 %v843
  %v947 = vunpack.c.h.b16 %v843
  %v948 = vunpack.c.l.b16 %v844
  %v949 = vunpack.c.h.b16 %v844
  %v950 = vunpack.c.l.b16 %v845
  %v951 = vunpack.c.h.b16 %v845
  %v952 = vunpack.c.l.b16 %v846
  %v953 = vunpack.c.h.b16 %v846
  %v954 = vunpack.c.l.b16 %v847
  %v955 = vunpack.c.h.b16 %v847
  %v956 = vpack.c.b16 %v884, %v884
  %v957 = vpack.c.b16 %v885, %v885
  %v958 = vpack.c.b16 %v886, %v886
  %v959 = vpack.c.b16 %v887, %v887
  %v960 = vpack.c.b16 %v888, %v888
  %v961 = vpack.c.b16 %v889, %v889
  %v962 = vpack.c.b16 %v890, %v890
  %v963 = vpack.c.b16 %v891, %v891
  %v964 = vpack.c.b16 %v892, %v892
  %v965 = vpack.c.b16 %v893, %v893
  %v966 = vpack.c.b16 %v894, %v894
  %v967 = vpack.c.b16 %v895, %v895
  %v968 = vpack.c.b16 %v896, %v896
  %v969 = vpack.c.b16 %v897, %v897
  %v970 = vpack.c.b16 %v898, %v898
  %v971 = vpack.c.b16 %v899, %v899
  %v972 = vpack.c.b16 %v900, %v900
  %v973 = vpack.c.b16 %v901, %v901
  %v974 = vpack.c.b16 %v902, %v902
  %v975 = vpack.c.b16 %v903, %v903
  %v976 = vpack.c.b16 %v904, %v904
  %v977 = vpack.c.b16 %v905, %v905
  %v978 = vpack.c.b16 %v906, %v906
  %v979 = vpack.c.b16 %v907, %v907
  %v980 = vpack.c.b16 %v908, %v908
  %v981 = vpack.c.b16 %v909, %v909
  %v982 = vpack.c.b16 %v910, %v910
  %v983 = vpack.c.b16 %v911, %v911
  %v984 = vpack.c.b16 %v912, %v912
  %v985 = vpack.c.b16 %v913, %v913
  %v986 = vpack.c.b16 %v914, %v914
  %v987 = vpack.c.b16 %v915, %v915
  %v988 = vpack.c.b16 %v916, %v916
  %v989 = vpack.c.b16 %v917, %v917
  %v990 = vpack.c.b16 %v918, %v918
  %v991 = vpack.c.b16 %v919, %v919
  %v992 = vpack.c.b16 %v920, %v920
  %v993 = vpack.c.b16 %v921, %v921
  %v994 = vpack.c.b16 %v922, %v922
  %v995 = vpack.c.b16 %v923, %v923
  %v996 = vpack.c.b16 %v924, %v924
  %v997 = vpack.c.b16 %v925, %v925
  %v998 = vpack.c.b16 %v926, %v926
  %v999 = vpack.c.b16 %v927, %v927
  %v1000 = vpack.c.b16 %v928, %v928
  %v1001 = vpack.c.b16 %v929, %v929
  %v1002 = vpack.c.b16 %v930, %v930
  %v1003 = vpack.c.b16 %v931, %v931
  %v1004 = vpack.c.b16 %v932, %v932
  %v1005 = vpack.c.b16 %v933, %v933
  %v1006 = vpack.c.b16 %v934, %v934
  %v1007 = vpack.c.b16 %v935, %v935
  %v1008 = vpack.c.b16 %v936, %v936
  %v1009 = vpack.c.b16 %v937, %v937
  %v1010 = vpack.c.b16 %v938, %v938
  %v1011 = vpack.c.b16 %v939, %v939
  %v1012 = vpack.c.b16 %v940, %v940
  %v1013 = vpack.c.b16 %v941, %v941
  %v1014 = vpack.c.b16 %v942, %v942
  %v1015 = vpack.c.b16 %v943, %v943
  %v1016 = vpack.c.b16 %v944, %v944
  %v1017 = vpack.c.b16 %v945, %v945
  %v1018 = vpack.c.b16 %v946, %v946
  %v1019 = vpack.c.b16 %v947, %v947
  %v1020 = vpack.c.b16 %v948, %v948
  %v1021 = vpack.c.b16 %v949, %v949
  %v1022 = vpack.c.b16 %v950, %v950
  %v1023 = vpack.c.b16 %v951, %v951
  %v1024 = vpack.c.b16 %v952, %v952
  %v1025 = vpack.c.b16 %v953, %v953
  %v1026 = vpack.c.b16 %v954, %v954
  %v1027 = vpack.c.b16 %v955, %v955
  %1028 = vrot.lane.b32.xlu0 %v956, 64
  %v1029 = vpop.permute.xlu0 %1028
  %1030 = vrot.lane.b32.xlu0 %v957, 64
  %v1031 = vpop.permute.xlu0 %1030
  %1032 = vrot.lane.b32.xlu0 %v958, 64
  %v1033 = vpop.permute.xlu0 %1032
  %1034 = vrot.lane.b32.xlu0 %v959, 64
  %v1035 = vpop.permute.xlu0 %1034
  %1036 = vrot.lane.b32.xlu0 %v960, 64
  %v1037 = vpop.permute.xlu0 %1036
  %1038 = vrot.lane.b32.xlu0 %v961, 64
  %v1039 = vpop.permute.xlu0 %1038
  %1040 = vrot.lane.b32.xlu0 %v962, 64
  %v1041 = vpop.permute.xlu0 %1040
  %1042 = vrot.lane.b32.xlu0 %v963, 64
  %v1043 = vpop.permute.xlu0 %1042
  %1044 = vrot.lane.b32.xlu0 %v964, 64
  %v1045 = vpop.permute.xlu0 %1044
  %1046 = vrot.lane.b32.xlu0 %v965, 64
  %v1047 = vpop.permute.xlu0 %1046
  %1048 = vrot.lane.b32.xlu0 %v966, 64
  %v1049 = vpop.permute.xlu0 %1048
  %1050 = vrot.lane.b32.xlu0 %v967, 64
  %v1051 = vpop.permute.xlu0 %1050
  %1052 = vrot.lane.b32.xlu0 %v968, 64
  %v1053 = vpop.permute.xlu0 %1052
  %1054 = vrot.lane.b32.xlu0 %v969, 64
  %v1055 = vpop.permute.xlu0 %1054
  %1056 = vrot.lane.b32.xlu0 %v970, 64
  %v1057 = vpop.permute.xlu0 %1056
  %1058 = vrot.lane.b32.xlu0 %v971, 64
  %v1059 = vpop.permute.xlu0 %1058
  %1060 = vrot.lane.b32.xlu0 %v972, 64
  %v1061 = vpop.permute.xlu0 %1060
  %1062 = vrot.lane.b32.xlu0 %v973, 64
  %v1063 = vpop.permute.xlu0 %1062
  %1064 = vrot.lane.b32.xlu0 %v974, 64
  %v1065 = vpop.permute.xlu0 %1064
  %1066 = vrot.lane.b32.xlu0 %v975, 64
  %v1067 = vpop.permute.xlu0 %1066
  %1068 = vrot.lane.b32.xlu0 %v976, 64
  %v1069 = vpop.permute.xlu0 %1068
  %1070 = vrot.lane.b32.xlu0 %v977, 64
  %v1071 = vpop.permute.xlu0 %1070
  %1072 = vrot.lane.b32.xlu0 %v978, 64
  %v1073 = vpop.permute.xlu0 %1072
  %1074 = vrot.lane.b32.xlu0 %v979, 64
  %v1075 = vpop.permute.xlu0 %1074
  %1076 = vrot.lane.b32.xlu0 %v980, 64
  %v1077 = vpop.permute.xlu0 %1076
  %1078 = vrot.lane.b32.xlu0 %v981, 64
  %v1079 = vpop.permute.xlu0 %1078
  %1080 = vrot.lane.b32.xlu0 %v982, 64
  %v1081 = vpop.permute.xlu0 %1080
  %1082 = vrot.lane.b32.xlu0 %v983, 64
  %v1083 = vpop.permute.xlu0 %1082
  %1084 = vrot.lane.b32.xlu0 %v984, 64
  %v1085 = vpop.permute.xlu0 %1084
  %1086 = vrot.lane.b32.xlu0 %v985, 64
  %v1087 = vpop.permute.xlu0 %1086
  %1088 = vrot.lane.b32.xlu0 %v986, 64
  %v1089 = vpop.permute.xlu0 %1088
  %1090 = vrot.lane.b32.xlu0 %v987, 64
  %v1091 = vpop.permute.xlu0 %1090
  %1092 = vrot.lane.b32.xlu0 %v988, 64
  %v1093 = vpop.permute.xlu0 %1092
  %1094 = vrot.lane.b32.xlu0 %v989, 64
  %v1095 = vpop.permute.xlu0 %1094
  %1096 = vrot.lane.b32.xlu0 %v990, 64
  %v1097 = vpop.permute.xlu0 %1096
  %1098 = vrot.lane.b32.xlu0 %v991, 64
  %v1099 = vpop.permute.xlu0 %1098
  %1100 = vrot.lane.b32.xlu0 %v992, 64
  %v1101 = vpop.permute.xlu0 %1100
  %1102 = vrot.lane.b32.xlu0 %v993, 64
  %v1103 = vpop.permute.xlu0 %1102
  %1104 = vrot.lane.b32.xlu0 %v994, 64
  %v1105 = vpop.permute.xlu0 %1104
  %1106 = vrot.lane.b32.xlu0 %v995, 64
  %v1107 = vpop.permute.xlu0 %1106
  %1108 = vrot.lane.b32.xlu0 %v996, 64
  %v1109 = vpop.permute.xlu0 %1108
  %1110 = vrot.lane.b32.xlu0 %v997, 64
  %v1111 = vpop.permute.xlu0 %1110
  %1112 = vrot.lane.b32.xlu0 %v998, 64
  %v1113 = vpop.permute.xlu0 %1112
  %1114 = vrot.lane.b32.xlu0 %v999, 64
  %v1115 = vpop.permute.xlu0 %1114
  %1116 = vrot.lane.b32.xlu0 %v1000, 64
  %v1117 = vpop.permute.xlu0 %1116
  %1118 = vrot.lane.b32.xlu0 %v1001, 64
  %v1119 = vpop.permute.xlu0 %1118
  %1120 = vrot.lane.b32.xlu0 %v1002, 64
  %v1121 = vpop.permute.xlu0 %1120
  %1122 = vrot.lane.b32.xlu0 %v1003, 64
  %v1123 = vpop.permute.xlu0 %1122
  %1124 = vrot.lane.b32.xlu0 %v1004, 64
  %v1125 = vpop.permute.xlu0 %1124
  %1126 = vrot.lane.b32.xlu0 %v1005, 64
  %v1127 = vpop.permute.xlu0 %1126
  %1128 = vrot.lane.b32.xlu0 %v1006, 64
  %v1129 = vpop.permute.xlu0 %1128
  %1130 = vrot.lane.b32.xlu0 %v1007, 64
  %v1131 = vpop.permute.xlu0 %1130
  %1132 = vrot.lane.b32.xlu0 %v1008, 64
  %v1133 = vpop.permute.xlu0 %1132
  %1134 = vrot.lane.b32.xlu0 %v1009, 64
  %v1135 = vpop.permute.xlu0 %1134
  %1136 = vrot.lane.b32.xlu0 %v1010, 64
  %v1137 = vpop.permute.xlu0 %1136
  %1138 = vrot.lane.b32.xlu0 %v1011, 64
  %v1139 = vpop.permute.xlu0 %1138
  %1140 = vrot.lane.b32.xlu0 %v1012, 64
  %v1141 = vpop.permute.xlu0 %1140
  %1142 = vrot.lane.b32.xlu0 %v1013, 64
  %v1143 = vpop.permute.xlu0 %1142
  %1144 = vrot.lane.b32.xlu0 %v1014, 64
  %v1145 = vpop.permute.xlu0 %1144
  %1146 = vrot.lane.b32.xlu0 %v1015, 64
  %v1147 = vpop.permute.xlu0 %1146
  %1148 = vrot.lane.b32.xlu0 %v1016, 64
  %v1149 = vpop.permute.xlu0 %1148
  %1150 = vrot.lane.b32.xlu0 %v1017, 64
  %v1151 = vpop.permute.xlu0 %1150
  %1152 = vrot.lane.b32.xlu0 %v1018, 64
  %v1153 = vpop.permute.xlu0 %1152
  %1154 = vrot.lane.b32.xlu0 %v1019, 64
  %v1155 = vpop.permute.xlu0 %1154
  %1156 = vrot.lane.b32.xlu0 %v1020, 64
  %v1157 = vpop.permute.xlu0 %1156
  %1158 = vrot.lane.b32.xlu0 %v1021, 64
  %v1159 = vpop.permute.xlu0 %1158
  %1160 = vrot.lane.b32.xlu0 %v1022, 64
  %v1161 = vpop.permute.xlu0 %1160
  %1162 = vrot.lane.b32.xlu0 %v1023, 64
  %v1163 = vpop.permute.xlu0 %1162
  %1164 = vrot.lane.b32.xlu0 %v1024, 64
  %v1165 = vpop.permute.xlu0 %1164
  %1166 = vrot.lane.b32.xlu0 %v1025, 64
  %v1167 = vpop.permute.xlu0 %1166
  %1168 = vrot.lane.b32.xlu0 %v1026, 64
  %v1169 = vpop.permute.xlu0 %1168
  %1170 = vrot.lane.b32.xlu0 %v1027, 64
  %v1171 = vpop.permute.xlu0 %1170
  %vm1244 = vcmask 1043968
  %1245 = vst.msk [vmem:[#allocation3] sm:$0xf] %vm1244, %v1029
  %1246 = vst.msk [vmem:[#allocation3 + $0x8] sm:$0xf] %vm1244, %v1031
  %1247 = vst.msk [vmem:[#allocation3 + $0x10] sm:$0xf] %vm1244, %v1033
  %1248 = vst.msk [vmem:[#allocation3 + $0x18] sm:$0xf] %vm1244, %v1035
  %1249 = vst.msk [vmem:[#allocation3 + $0x20] sm:$0xf] %vm1244, %v1037
  %1250 = vst.msk [vmem:[#allocation3 + $0x28] sm:$0xf] %vm1244, %v1039
  %1251 = vst.msk [vmem:[#allocation3 + $0x30] sm:$0xf] %vm1244, %v1041
  %1252 = vst.msk [vmem:[#allocation3 + $0x38] sm:$0xf] %vm1244, %v1043
  %1253 = vst.msk [vmem:[#allocation3 + $0x40] sm:$0xf] %vm1244, %v1045
  %1254 = vst.msk [vmem:[#allocation3 + $0x48] sm:$0xf] %vm1244, %v1047
  %1255 = vst.msk [vmem:[#allocation3 + $0x50] sm:$0xf] %vm1244, %v1049
  %1256 = vst.msk [vmem:[#allocation3 + $0x58] sm:$0xf] %vm1244, %v1051
  %1257 = vst.msk [vmem:[#allocation3 + $0x60] sm:$0xf] %vm1244, %v1053
  %1258 = vst.msk [vmem:[#allocation3 + $0x68] sm:$0xf] %vm1244, %v1055
  %1259 = vst.msk [vmem:[#allocation3 + $0x70] sm:$0xf] %vm1244, %v1057
  %1260 = vst.msk [vmem:[#allocation3 + $0x78] sm:$0xf] %vm1244, %v1059
  %1261 = vst.msk [vmem:[#allocation3 + $0x80] sm:$0xf] %vm1244, %v1061
  %1262 = vst.msk [vmem:[#allocation3 + $0x88] sm:$0xf] %vm1244, %v1063
  %1263 = vst.msk [vmem:[#allocation3 + $0x90] sm:$0xf] %vm1244, %v1065
  %1264 = vst.msk [vmem:[#allocation3 + $0x98] sm:$0xf] %vm1244, %v1067
  %1265 = vst.msk [vmem:[#allocation3 + $0xa0] sm:$0xf] %vm1244, %v1069
  %1266 = vst.msk [vmem:[#allocation3 + $0xa8] sm:$0xf] %vm1244, %v1071
  %1267 = vst.msk [vmem:[#allocation3 + $0xb0] sm:$0xf] %vm1244, %v1073
  %1268 = vst.msk [vmem:[#allocation3 + $0xb8] sm:$0xf] %vm1244, %v1075
  %1269 = vst.msk [vmem:[#allocation3 + $0xc0] sm:$0xf] %vm1244, %v1077
  %1270 = vst.msk [vmem:[#allocation3 + $0xc8] sm:$0xf] %vm1244, %v1079
  %1271 = vst.msk [vmem:[#allocation3 + $0xd0] sm:$0xf] %vm1244, %v1081
  %1272 = vst.msk [vmem:[#allocation3 + $0xd8] sm:$0xf] %vm1244, %v1083
  %1273 = vst.msk [vmem:[#allocation3 + $0xe0] sm:$0xf] %vm1244, %v1085
  %1274 = vst.msk [vmem:[#allocation3 + $0xe8] sm:$0xf] %vm1244, %v1087
  %1275 = vst.msk [vmem:[#allocation3 + $0xf0] sm:$0xf] %vm1244, %v1089
  %1276 = vst.msk [vmem:[#allocation3 + $0xf8] sm:$0xf] %vm1244, %v1091
  %1277 = vst.msk [vmem:[#allocation3 + $0x100] sm:$0xf] %vm1244, %v1093
  %1278 = vst.msk [vmem:[#allocation3 + $0x108] sm:$0xf] %vm1244, %v1095
  %1279 = vst.msk [vmem:[#allocation3 + $0x110] sm:$0xf] %vm1244, %v1097
  %1280 = vst.msk [vmem:[#allocation3 + $0x118] sm:$0xf] %vm1244, %v1099
  %1281 = vst.msk [vmem:[#allocation3 + $0x120] sm:$0xf] %vm1244, %v1101
  %1282 = vst.msk [vmem:[#allocation3 + $0x128] sm:$0xf] %vm1244, %v1103
  %1283 = vst.msk [vmem:[#allocation3 + $0x130] sm:$0xf] %vm1244, %v1105
  %1284 = vst.msk [vmem:[#allocation3 + $0x138] sm:$0xf] %vm1244, %v1107
  %1285 = vst.msk [vmem:[#allocation3 + $0x140] sm:$0xf] %vm1244, %v1109
  %1286 = vst.msk [vmem:[#allocation3 + $0x148] sm:$0xf] %vm1244, %v1111
  %1287 = vst.msk [vmem:[#allocation3 + $0x150] sm:$0xf] %vm1244, %v1113
  %1288 = vst.msk [vmem:[#allocation3 + $0x158] sm:$0xf] %vm1244, %v1115
  %1289 = vst.msk [vmem:[#allocation3 + $0x160] sm:$0xf] %vm1244, %v1117
  %1290 = vst.msk [vmem:[#allocation3 + $0x168] sm:$0xf] %vm1244, %v1119
  %1291 = vst.msk [vmem:[#allocation3 + $0x170] sm:$0xf] %vm1244, %v1121
  %1292 = vst.msk [vmem:[#allocation3 + $0x178] sm:$0xf] %vm1244, %v1123
  %1293 = vst.msk [vmem:[#allocation3 + $0x180] sm:$0xf] %vm1244, %v1125
  %1294 = vst.msk [vmem:[#allocation3 + $0x188] sm:$0xf] %vm1244, %v1127
  %1295 = vst.msk [vmem:[#allocation3 + $0x190] sm:$0xf] %vm1244, %v1129
  %1296 = vst.msk [vmem:[#allocation3 + $0x198] sm:$0xf] %vm1244, %v1131
  %1297 = vst.msk [vmem:[#allocation3 + $0x1a0] sm:$0xf] %vm1244, %v1133
  %1298 = vst.msk [vmem:[#allocation3 + $0x1a8] sm:$0xf] %vm1244, %v1135
  %1299 = vst.msk [vmem:[#allocation3 + $0x1b0] sm:$0xf] %vm1244, %v1137
  %1300 = vst.msk [vmem:[#allocation3 + $0x1b8] sm:$0xf] %vm1244, %v1139
  %1301 = vst.msk [vmem:[#allocation3 + $0x1c0] sm:$0xf] %vm1244, %v1141
  %1302 = vst.msk [vmem:[#allocation3 + $0x1c8] sm:$0xf] %vm1244, %v1143
  %1303 = vst.msk [vmem:[#allocation3 + $0x1d0] sm:$0xf] %vm1244, %v1145
  %1304 = vst.msk [vmem:[#allocation3 + $0x1d8] sm:$0xf] %vm1244, %v1147
  %1305 = vst.msk [vmem:[#allocation3 + $0x1e0] sm:$0xf] %vm1244, %v1149
  %1306 = vst.msk [vmem:[#allocation3 + $0x1e8] sm:$0xf] %vm1244, %v1151
  %1307 = vst.msk [vmem:[#allocation3 + $0x1f0] sm:$0xf] %vm1244, %v1153
  %1308 = vst.msk [vmem:[#allocation3 + $0x1f8] sm:$0xf] %vm1244, %v1155
  %1309 = vst.msk [vmem:[#allocation3 + $0x200] sm:$0xf] %vm1244, %v1157
  %1310 = vst.msk [vmem:[#allocation3 + $0x208] sm:$0xf] %vm1244, %v1159
  %1311 = vst.msk [vmem:[#allocation3 + $0x210] sm:$0xf] %vm1244, %v1161
  %1312 = vst.msk [vmem:[#allocation3 + $0x218] sm:$0xf] %vm1244, %v1163
  %1313 = vst.msk [vmem:[#allocation3 + $0x220] sm:$0xf] %vm1244, %v1165
  %1314 = vst.msk [vmem:[#allocation3 + $0x228] sm:$0xf] %vm1244, %v1167
  %1315 = vst.msk [vmem:[#allocation3 + $0x230] sm:$0xf] %vm1244, %v1169
  %1316 = vst.msk [vmem:[#allocation3 + $0x238] sm:$0xf] %vm1244, %v1171
  %v1317 = vld [vmem:[#allocation2 + $0x2] sm:$0xff]
  %v1318 = vld [vmem:[#allocation2 + $0xa] sm:$0xff]
  %v1319 = vld [vmem:[#allocation2 + $0x12] sm:$0xff]
  %v1320 = vld [vmem:[#allocation2 + $0x1a] sm:$0xff]
  %v1321 = vld [vmem:[#allocation2 + $0x22] sm:$0xff]
  %v1322 = vld [vmem:[#allocation2 + $0x2a] sm:$0xff]
  %v1323 = vld [vmem:[#allocation2 + $0x32] sm:$0xff]
  %v1324 = vld [vmem:[#allocation2 + $0x3a] sm:$0xff]
  %v1325 = vld [vmem:[#allocation2 + $0x42] sm:$0xff]
  %v1326 = vld [vmem:[#allocation2 + $0x4a] sm:$0xff]
  %v1327 = vld [vmem:[#allocation2 + $0x52] sm:$0xff]
  %v1328 = vld [vmem:[#allocation2 + $0x5a] sm:$0xff]
  %v1329 = vld [vmem:[#allocation2 + $0x62] sm:$0xff]
  %v1330 = vld [vmem:[#allocation2 + $0x6a] sm:$0xff]
  %v1331 = vld [vmem:[#allocation2 + $0x72] sm:$0xff]
  %v1332 = vld [vmem:[#allocation2 + $0x7a] sm:$0xff]
  %v1333 = vld [vmem:[#allocation2 + $0x82] sm:$0xff]
  %v1334 = vld [vmem:[#allocation2 + $0x8a] sm:$0xff]
  %v1335 = vld [vmem:[#allocation2 + $0x92] sm:$0xff]
  %v1336 = vld [vmem:[#allocation2 + $0x9a] sm:$0xff]
  %v1337 = vld [vmem:[#allocation2 + $0xa2] sm:$0xff]
  %v1338 = vld [vmem:[#allocation2 + $0xaa] sm:$0xff]
  %v1339 = vld [vmem:[#allocation2 + $0xb2] sm:$0xff]
  %v1340 = vld [vmem:[#allocation2 + $0xba] sm:$0xff]
  %v1341 = vld [vmem:[#allocation2 + $0xc2] sm:$0xff]
  %v1342 = vld [vmem:[#allocation2 + $0xca] sm:$0xff]
  %v1343 = vld [vmem:[#allocation2 + $0xd2] sm:$0xff]
  %v1344 = vld [vmem:[#allocation2 + $0xda] sm:$0xff]
  %v1345 = vld [vmem:[#allocation2 + $0xe2] sm:$0xff]
  %v1346 = vld [vmem:[#allocation2 + $0xea] sm:$0xff]
  %v1347 = vld [vmem:[#allocation2 + $0xf2] sm:$0xff]
  %v1348 = vld [vmem:[#allocation2 + $0xfa] sm:$0xff]
  %v1349 = vld [vmem:[#allocation2 + $0x102] sm:$0xff]
  %v1350 = vld [vmem:[#allocation2 + $0x10a] sm:$0xff]
  %v1351 = vld [vmem:[#allocation2 + $0x112] sm:$0xff]
  %v1352 = vld [vmem:[#allocation2 + $0x11a] sm:$0xff]
  %v1353 = vld [vmem:[#allocation2 + $0x122] sm:$0xff]
  %v1354 = vld [vmem:[#allocation2 + $0x12a] sm:$0xff]
  %v1355 = vld [vmem:[#allocation2 + $0x132] sm:$0xff]
  %v1356 = vld [vmem:[#allocation2 + $0x13a] sm:$0xff]
  %v1357 = vld [vmem:[#allocation2 + $0x142] sm:$0xff]
  %v1358 = vld [vmem:[#allocation2 + $0x14a] sm:$0xff]
  %v1359 = vld [vmem:[#allocation2 + $0x152] sm:$0xff]
  %v1360 = vld [vmem:[#allocation2 + $0x15a] sm:$0xff]
  %v1361 = vld [vmem:[#allocation2 + $0x162] sm:$0xff]
  %v1362 = vld [vmem:[#allocation2 + $0x16a] sm:$0xff]
  %v1363 = vld [vmem:[#allocation2 + $0x172] sm:$0xff]
  %v1364 = vld [vmem:[#allocation2 + $0x17a] sm:$0xff]
  %v1365 = vld [vmem:[#allocation2 + $0x182] sm:$0xff]
  %v1366 = vld [vmem:[#allocation2 + $0x18a] sm:$0xff]
  %v1367 = vld [vmem:[#allocation2 + $0x192] sm:$0xff]
  %v1368 = vld [vmem:[#allocation2 + $0x19a] sm:$0xff]
  %v1369 = vld [vmem:[#allocation2 + $0x1a2] sm:$0xff]
  %v1370 = vld [vmem:[#allocation2 + $0x1aa] sm:$0xff]
  %v1371 = vld [vmem:[#allocation2 + $0x1b2] sm:$0xff]
  %v1372 = vld [vmem:[#allocation2 + $0x1ba] sm:$0xff]
  %v1373 = vld [vmem:[#allocation2 + $0x1c2] sm:$0xff]
  %v1374 = vld [vmem:[#allocation2 + $0x1ca] sm:$0xff]
  %v1375 = vld [vmem:[#allocation2 + $0x1d2] sm:$0xff]
  %v1376 = vld [vmem:[#allocation2 + $0x1da] sm:$0xff]
  %v1377 = vld [vmem:[#allocation2 + $0x1e2] sm:$0xff]
  %v1378 = vld [vmem:[#allocation2 + $0x1ea] sm:$0xff]
  %v1379 = vld [vmem:[#allocation2 + $0x1f2] sm:$0xff]
  %v1380 = vld [vmem:[#allocation2 + $0x1fa] sm:$0xff]
  %v1381 = vld [vmem:[#allocation2 + $0x202] sm:$0xff]
  %v1382 = vld [vmem:[#allocation2 + $0x20a] sm:$0xff]
  %v1383 = vld [vmem:[#allocation2 + $0x212] sm:$0xff]
  %v1384 = vld [vmem:[#allocation2 + $0x21a] sm:$0xff]
  %v1385 = vld [vmem:[#allocation2 + $0x222] sm:$0xff]
  %v1386 = vld [vmem:[#allocation2 + $0x22a] sm:$0xff]
  %v1387 = vld [vmem:[#allocation2 + $0x232] sm:$0xff]
  %v1388 = vld [vmem:[#allocation2 + $0x23a] sm:$0xff]
  %v1389 = vld [vmem:[%s4 + $0x1] sm:$0xff]
  %v1390 = vld [vmem:[%s4 + $0x9] sm:$0xff]
  %v1391 = vld [vmem:[%s4 + $0x11] sm:$0xff]
  %v1392 = vld [vmem:[%s4 + $0x19] sm:$0xff]
  %v1393 = vld [vmem:[%s4 + $0x21] sm:$0xff]
  %v1394 = vld [vmem:[%s4 + $0x29] sm:$0xff]
  %v1395 = vld [vmem:[%s4 + $0x31] sm:$0xff]
  %v1396 = vld [vmem:[%s4 + $0x39] sm:$0xff]
  %v1397 = vld [vmem:[%s4 + $0x41] sm:$0xff]
  %v1398 = vld [vmem:[%s4 + $0x49] sm:$0xff]
  %v1399 = vld [vmem:[%s4 + $0x51] sm:$0xff]
  %v1400 = vld [vmem:[%s4 + $0x59] sm:$0xff]
  %v1401 = vld [vmem:[%s4 + $0x61] sm:$0xff]
  %v1402 = vld [vmem:[%s4 + $0x69] sm:$0xff]
  %v1403 = vld [vmem:[%s4 + $0x71] sm:$0xff]
  %v1404 = vld [vmem:[%s4 + $0x79] sm:$0xff]
  %v1405 = vld [vmem:[%s4 + $0x81] sm:$0xff]
  %v1406 = vld [vmem:[%s4 + $0x89] sm:$0xff]
  %v1407 = vld [vmem:[%s4 + $0x91] sm:$0xff]
  %v1408 = vld [vmem:[%s4 + $0x99] sm:$0xff]
  %v1409 = vld [vmem:[%s4 + $0xa1] sm:$0xff]
  %v1410 = vld [vmem:[%s4 + $0xa9] sm:$0xff]
  %v1411 = vld [vmem:[%s4 + $0xb1] sm:$0xff]
  %v1412 = vld [vmem:[%s4 + $0xb9] sm:$0xff]
  %v1413 = vld [vmem:[%s4 + $0xc1] sm:$0xff]
  %v1414 = vld [vmem:[%s4 + $0xc9] sm:$0xff]
  %v1415 = vld [vmem:[%s4 + $0xd1] sm:$0xff]
  %v1416 = vld [vmem:[%s4 + $0xd9] sm:$0xff]
  %v1417 = vld [vmem:[%s4 + $0xe1] sm:$0xff]
  %v1418 = vld [vmem:[%s4 + $0xe9] sm:$0xff]
  %v1419 = vld [vmem:[%s4 + $0xf1] sm:$0xff]
  %v1420 = vld [vmem:[%s4 + $0xf9] sm:$0xff]
  %v1421 = vld [vmem:[%s4 + $0x101] sm:$0xff]
  %v1422 = vld [vmem:[%s4 + $0x109] sm:$0xff]
  %v1423 = vld [vmem:[%s4 + $0x111] sm:$0xff]
  %v1424 = vld [vmem:[%s4 + $0x119] sm:$0xff]
  %v1425 = vld [vmem:[%s4 + $0x121] sm:$0xff]
  %v1426 = vld [vmem:[%s4 + $0x129] sm:$0xff]
  %v1427 = vld [vmem:[%s4 + $0x131] sm:$0xff]
  %v1428 = vld [vmem:[%s4 + $0x139] sm:$0xff]
  %v1429 = vld [vmem:[%s4 + $0x141] sm:$0xff]
  %v1430 = vld [vmem:[%s4 + $0x149] sm:$0xff]
  %v1431 = vld [vmem:[%s4 + $0x151] sm:$0xff]
  %v1432 = vld [vmem:[%s4 + $0x159] sm:$0xff]
  %v1433 = vld [vmem:[%s4 + $0x161] sm:$0xff]
  %v1434 = vld [vmem:[%s4 + $0x169] sm:$0xff]
  %v1435 = vld [vmem:[%s4 + $0x171] sm:$0xff]
  %v1436 = vld [vmem:[%s4 + $0x179] sm:$0xff]
  %v1437 = vld [vmem:[%s4 + $0x181] sm:$0xff]
  %v1438 = vld [vmem:[%s4 + $0x189] sm:$0xff]
  %v1439 = vld [vmem:[%s4 + $0x191] sm:$0xff]
  %v1440 = vld [vmem:[%s4 + $0x199] sm:$0xff]
  %v1441 = vld [vmem:[%s4 + $0x1a1] sm:$0xff]
  %v1442 = vld [vmem:[%s4 + $0x1a9] sm:$0xff]
  %v1443 = vld [vmem:[%s4 + $0x1b1] sm:$0xff]
  %v1444 = vld [vmem:[%s4 + $0x1b9] sm:$0xff]
  %v1445 = vld [vmem:[%s4 + $0x1c1] sm:$0xff]
  %v1446 = vld [vmem:[%s4 + $0x1c9] sm:$0xff]
  %v1447 = vld [vmem:[%s4 + $0x1d1] sm:$0xff]
  %v1448 = vld [vmem:[%s4 + $0x1d9] sm:$0xff]
  %v1449 = vld [vmem:[%s4 + $0x1e1] sm:$0xff]
  %v1450 = vld [vmem:[%s4 + $0x1e9] sm:$0xff]
  %v1451 = vld [vmem:[%s4 + $0x1f1] sm:$0xff]
  %v1452 = vld [vmem:[%s4 + $0x1f9] sm:$0xff]
  %v1453 = vld [vmem:[%s4 + $0x201] sm:$0xff]
  %v1454 = vld [vmem:[%s4 + $0x209] sm:$0xff]
  %v1455 = vld [vmem:[%s4 + $0x211] sm:$0xff]
  %v1456 = vld [vmem:[%s4 + $0x219] sm:$0xff]
  %v1457 = vld [vmem:[%s4 + $0x221] sm:$0xff]
  %v1458 = vld [vmem:[%s4 + $0x229] sm:$0xff]
  %v1459 = vld [vmem:[%s4 + $0x231] sm:$0xff]
  %v1460 = vld [vmem:[%s4 + $0x239] sm:$0xff]
  %v1461 = vmul.f32 %v1317, %v1389
  %v1462 = vmul.f32 %v1318, %v1390
  %v1463 = vmul.f32 %v1319, %v1391
  %v1464 = vmul.f32 %v1320, %v1392
  %v1465 = vmul.f32 %v1321, %v1393
  %v1466 = vmul.f32 %v1322, %v1394
  %v1467 = vmul.f32 %v1323, %v1395
  %v1468 = vmul.f32 %v1324, %v1396
  %v1469 = vmul.f32 %v1325, %v1397
  %v1470 = vmul.f32 %v1326, %v1398
  %v1471 = vmul.f32 %v1327, %v1399
  %v1472 = vmul.f32 %v1328, %v1400
  %v1473 = vmul.f32 %v1329, %v1401
  %v1474 = vmul.f32 %v1330, %v1402
  %v1475 = vmul.f32 %v1331, %v1403
  %v1476 = vmul.f32 %v1332, %v1404
  %v1477 = vmul.f32 %v1333, %v1405
  %v1478 = vmul.f32 %v1334, %v1406
  %v1479 = vmul.f32 %v1335, %v1407
  %v1480 = vmul.f32 %v1336, %v1408
  %v1481 = vmul.f32 %v1337, %v1409
  %v1482 = vmul.f32 %v1338, %v1410
  %v1483 = vmul.f32 %v1339, %v1411
  %v1484 = vmul.f32 %v1340, %v1412
  %v1485 = vmul.f32 %v1341, %v1413
  %v1486 = vmul.f32 %v1342, %v1414
  %v1487 = vmul.f32 %v1343, %v1415
  %v1488 = vmul.f32 %v1344, %v1416
  %v1489 = vmul.f32 %v1345, %v1417
  %v1490 = vmul.f32 %v1346, %v1418
  %v1491 = vmul.f32 %v1347, %v1419
  %v1492 = vmul.f32 %v1348, %v1420
  %v1493 = vmul.f32 %v1349, %v1421
  %v1494 = vmul.f32 %v1350, %v1422
  %v1495 = vmul.f32 %v1351, %v1423
  %v1496 = vmul.f32 %v1352, %v1424
  %v1497 = vmul.f32 %v1353, %v1425
  %v1498 = vmul.f32 %v1354, %v1426
  %v1499 = vmul.f32 %v1355, %v1427
  %v1500 = vmul.f32 %v1356, %v1428
  %v1501 = vmul.f32 %v1357, %v1429
  %v1502 = vmul.f32 %v1358, %v1430
  %v1503 = vmul.f32 %v1359, %v1431
  %v1504 = vmul.f32 %v1360, %v1432
  %v1505 = vmul.f32 %v1361, %v1433
  %v1506 = vmul.f32 %v1362, %v1434
  %v1507 = vmul.f32 %v1363, %v1435
  %v1508 = vmul.f32 %v1364, %v1436
  %v1509 = vmul.f32 %v1365, %v1437
  %v1510 = vmul.f32 %v1366, %v1438
  %v1511 = vmul.f32 %v1367, %v1439
  %v1512 = vmul.f32 %v1368, %v1440
  %v1513 = vmul.f32 %v1369, %v1441
  %v1514 = vmul.f32 %v1370, %v1442
  %v1515 = vmul.f32 %v1371, %v1443
  %v1516 = vmul.f32 %v1372, %v1444
  %v1517 = vmul.f32 %v1373, %v1445
  %v1518 = vmul.f32 %v1374, %v1446
  %v1519 = vmul.f32 %v1375, %v1447
  %v1520 = vmul.f32 %v1376, %v1448
  %v1521 = vmul.f32 %v1377, %v1449
  %v1522 = vmul.f32 %v1378, %v1450
  %v1523 = vmul.f32 %v1379, %v1451
  %v1524 = vmul.f32 %v1380, %v1452
  %v1525 = vmul.f32 %v1381, %v1453
  %v1526 = vmul.f32 %v1382, %v1454
  %v1527 = vmul.f32 %v1383, %v1455
  %v1528 = vmul.f32 %v1384, %v1456
  %v1529 = vmul.f32 %v1385, %v1457
  %v1530 = vmul.f32 %v1386, %v1458
  %v1531 = vmul.f32 %v1387, %v1459
  %v1532 = vmul.f32 %v1388, %v1460
  %v1533 = vpack.c.bf16 %v1462, %v1461
  %v1534 = vpack.c.bf16 %v1464, %v1463
  %v1535 = vpack.c.bf16 %v1466, %v1465
  %v1536 = vpack.c.bf16 %v1468, %v1467
  %v1537 = vpack.c.bf16 %v1470, %v1469
  %v1538 = vpack.c.bf16 %v1472, %v1471
  %v1539 = vpack.c.bf16 %v1474, %v1473
  %v1540 = vpack.c.bf16 %v1476, %v1475
  %v1541 = vpack.c.bf16 %v1478, %v1477
  %v1542 = vpack.c.bf16 %v1480, %v1479
  %v1543 = vpack.c.bf16 %v1482, %v1481
  %v1544 = vpack.c.bf16 %v1484, %v1483
  %v1545 = vpack.c.bf16 %v1486, %v1485
  %v1546 = vpack.c.bf16 %v1488, %v1487
  %v1547 = vpack.c.bf16 %v1490, %v1489
  %v1548 = vpack.c.bf16 %v1492, %v1491
  %v1549 = vpack.c.bf16 %v1494, %v1493
  %v1550 = vpack.c.bf16 %v1496, %v1495
  %v1551 = vpack.c.bf16 %v1498, %v1497
  %v1552 = vpack.c.bf16 %v1500, %v1499
  %v1553 = vpack.c.bf16 %v1502, %v1501
  %v1554 = vpack.c.bf16 %v1504, %v1503
  %v1555 = vpack.c.bf16 %v1506, %v1505
  %v1556 = vpack.c.bf16 %v1508, %v1507
  %v1557 = vpack.c.bf16 %v1510, %v1509
  %v1558 = vpack.c.bf16 %v1512, %v1511
  %v1559 = vpack.c.bf16 %v1514, %v1513
  %v1560 = vpack.c.bf16 %v1516, %v1515
  %v1561 = vpack.c.bf16 %v1518, %v1517
  %v1562 = vpack.c.bf16 %v1520, %v1519
  %v1563 = vpack.c.bf16 %v1522, %v1521
  %v1564 = vpack.c.bf16 %v1524, %v1523
  %v1565 = vpack.c.bf16 %v1526, %v1525
  %v1566 = vpack.c.bf16 %v1528, %v1527
  %v1567 = vpack.c.bf16 %v1530, %v1529
  %v1568 = vpack.c.bf16 %v1532, %v1531
  %v1605 = vunpack.c.l.b16 %v1533
  %v1606 = vunpack.c.h.b16 %v1533
  %v1607 = vunpack.c.l.b16 %v1534
  %v1608 = vunpack.c.h.b16 %v1534
  %v1609 = vunpack.c.l.b16 %v1535
  %v1610 = vunpack.c.h.b16 %v1535
  %v1611 = vunpack.c.l.b16 %v1536
  %v1612 = vunpack.c.h.b16 %v1536
  %v1613 = vunpack.c.l.b16 %v1537
  %v1614 = vunpack.c.h.b16 %v1537
  %v1615 = vunpack.c.l.b16 %v1538
  %v1616 = vunpack.c.h.b16 %v1538
  %v1617 = vunpack.c.l.b16 %v1539
  %v1618 = vunpack.c.h.b16 %v1539
  %v1619 = vunpack.c.l.b16 %v1540
  %v1620 = vunpack.c.h.b16 %v1540
  %v1621 = vunpack.c.l.b16 %v1541
  %v1622 = vunpack.c.h.b16 %v1541
  %v1623 = vunpack.c.l.b16 %v1542
  %v1624 = vunpack.c.h.b16 %v1542
  %v1625 = vunpack.c.l.b16 %v1543
  %v1626 = vunpack.c.h.b16 %v1543
  %v1627 = vunpack.c.l.b16 %v1544
  %v1628 = vunpack.c.h.b16 %v1544
  %v1629 = vunpack.c.l.b16 %v1545
  %v1630 = vunpack.c.h.b16 %v1545
  %v1631 = vunpack.c.l.b16 %v1546
  %v1632 = vunpack.c.h.b16 %v1546
  %v1633 = vunpack.c.l.b16 %v1547
  %v1634 = vunpack.c.h.b16 %v1547
  %v1635 = vunpack.c.l.b16 %v1548
  %v1636 = vunpack.c.h.b16 %v1548
  %v1637 = vunpack.c.l.b16 %v1549
  %v1638 = vunpack.c.h.b16 %v1549
  %v1639 = vunpack.c.l.b16 %v1550
  %v1640 = vunpack.c.h.b16 %v1550
  %v1641 = vunpack.c.l.b16 %v1551
  %v1642 = vunpack.c.h.b16 %v1551
  %v1643 = vunpack.c.l.b16 %v1552
  %v1644 = vunpack.c.h.b16 %v1552
  %v1645 = vunpack.c.l.b16 %v1553
  %v1646 = vunpack.c.h.b16 %v1553
  %v1647 = vunpack.c.l.b16 %v1554
  %v1648 = vunpack.c.h.b16 %v1554
  %v1649 = vunpack.c.l.b16 %v1555
  %v1650 = vunpack.c.h.b16 %v1555
  %v1651 = vunpack.c.l.b16 %v1556
  %v1652 = vunpack.c.h.b16 %v1556
  %v1653 = vunpack.c.l.b16 %v1557
  %v1654 = vunpack.c.h.b16 %v1557
  %v1655 = vunpack.c.l.b16 %v1558
  %v1656 = vunpack.c.h.b16 %v1558
  %v1657 = vunpack.c.l.b16 %v1559
  %v1658 = vunpack.c.h.b16 %v1559
  %v1659 = vunpack.c.l.b16 %v1560
  %v1660 = vunpack.c.h.b16 %v1560
  %v1661 = vunpack.c.l.b16 %v1561
  %v1662 = vunpack.c.h.b16 %v1561
  %v1663 = vunpack.c.l.b16 %v1562
  %v1664 = vunpack.c.h.b16 %v1562
  %v1665 = vunpack.c.l.b16 %v1563
  %v1666 = vunpack.c.h.b16 %v1563
  %v1667 = vunpack.c.l.b16 %v1564
  %v1668 = vunpack.c.h.b16 %v1564
  %v1669 = vunpack.c.l.b16 %v1565
  %v1670 = vunpack.c.h.b16 %v1565
  %v1671 = vunpack.c.l.b16 %v1566
  %v1672 = vunpack.c.h.b16 %v1566
  %v1673 = vunpack.c.l.b16 %v1567
  %v1674 = vunpack.c.h.b16 %v1567
  %v1675 = vunpack.c.l.b16 %v1568
  %v1676 = vunpack.c.h.b16 %v1568
  %v1677 = vpack.c.b16 %v1605, %v1605
  %v1678 = vpack.c.b16 %v1606, %v1606
  %v1679 = vpack.c.b16 %v1607, %v1607
  %v1680 = vpack.c.b16 %v1608, %v1608
  %v1681 = vpack.c.b16 %v1609, %v1609
  %v1682 = vpack.c.b16 %v1610, %v1610
  %v1683 = vpack.c.b16 %v1611, %v1611
  %v1684 = vpack.c.b16 %v1612, %v1612
  %v1685 = vpack.c.b16 %v1613, %v1613
  %v1686 = vpack.c.b16 %v1614, %v1614
  %v1687 = vpack.c.b16 %v1615, %v1615
  %v1688 = vpack.c.b16 %v1616, %v1616
  %v1689 = vpack.c.b16 %v1617, %v1617
  %v1690 = vpack.c.b16 %v1618, %v1618
  %v1691 = vpack.c.b16 %v1619, %v1619
  %v1692 = vpack.c.b16 %v1620, %v1620
  %v1693 = vpack.c.b16 %v1621, %v1621
  %v1694 = vpack.c.b16 %v1622, %v1622
  %v1695 = vpack.c.b16 %v1623, %v1623
  %v1696 = vpack.c.b16 %v1624, %v1624
  %v1697 = vpack.c.b16 %v1625, %v1625
  %v1698 = vpack.c.b16 %v1626, %v1626
  %v1699 = vpack.c.b16 %v1627, %v1627
  %v1700 = vpack.c.b16 %v1628, %v1628
  %v1701 = vpack.c.b16 %v1629, %v1629
  %v1702 = vpack.c.b16 %v1630, %v1630
  %v1703 = vpack.c.b16 %v1631, %v1631
  %v1704 = vpack.c.b16 %v1632, %v1632
  %v1705 = vpack.c.b16 %v1633, %v1633
  %v1706 = vpack.c.b16 %v1634, %v1634
  %v1707 = vpack.c.b16 %v1635, %v1635
  %v1708 = vpack.c.b16 %v1636, %v1636
  %v1709 = vpack.c.b16 %v1637, %v1637
  %v1710 = vpack.c.b16 %v1638, %v1638
  %v1711 = vpack.c.b16 %v1639, %v1639
  %v1712 = vpack.c.b16 %v1640, %v1640
  %v1713 = vpack.c.b16 %v1641, %v1641
  %v1714 = vpack.c.b16 %v1642, %v1642
  %v1715 = vpack.c.b16 %v1643, %v1643
  %v1716 = vpack.c.b16 %v1644, %v1644
  %v1717 = vpack.c.b16 %v1645, %v1645
  %v1718 = vpack.c.b16 %v1646, %v1646
  %v1719 = vpack.c.b16 %v1647, %v1647
  %v1720 = vpack.c.b16 %v1648, %v1648
  %v1721 = vpack.c.b16 %v1649, %v1649
  %v1722 = vpack.c.b16 %v1650, %v1650
  %v1723 = vpack.c.b16 %v1651, %v1651
  %v1724 = vpack.c.b16 %v1652, %v1652
  %v1725 = vpack.c.b16 %v1653, %v1653
  %v1726 = vpack.c.b16 %v1654, %v1654
  %v1727 = vpack.c.b16 %v1655, %v1655
  %v1728 = vpack.c.b16 %v1656, %v1656
  %v1729 = vpack.c.b16 %v1657, %v1657
  %v1730 = vpack.c.b16 %v1658, %v1658
  %v1731 = vpack.c.b16 %v1659, %v1659
  %v1732 = vpack.c.b16 %v1660, %v1660
  %v1733 = vpack.c.b16 %v1661, %v1661
  %v1734 = vpack.c.b16 %v1662, %v1662
  %v1735 = vpack.c.b16 %v1663, %v1663
  %v1736 = vpack.c.b16 %v1664, %v1664
  %v1737 = vpack.c.b16 %v1665, %v1665
  %v1738 = vpack.c.b16 %v1666, %v1666
  %v1739 = vpack.c.b16 %v1667, %v1667
  %v1740 = vpack.c.b16 %v1668, %v1668
  %v1741 = vpack.c.b16 %v1669, %v1669
  %v1742 = vpack.c.b16 %v1670, %v1670
  %v1743 = vpack.c.b16 %v1671, %v1671
  %v1744 = vpack.c.b16 %v1672, %v1672
  %v1745 = vpack.c.b16 %v1673, %v1673
  %v1746 = vpack.c.b16 %v1674, %v1674
  %v1747 = vpack.c.b16 %v1675, %v1675
  %v1748 = vpack.c.b16 %v1676, %v1676
  %1821 = vst.msk [vmem:[#allocation3 + $0x4] sm:$0xf] %vm667, %v1677
  %1822 = vst.msk [vmem:[#allocation3 + $0xc] sm:$0xf] %vm667, %v1678
  %1823 = vst.msk [vmem:[#allocation3 + $0x14] sm:$0xf] %vm667, %v1679
  %1824 = vst.msk [vmem:[#allocation3 + $0x1c] sm:$0xf] %vm667, %v1680
  %1825 = vst.msk [vmem:[#allocation3 + $0x24] sm:$0xf] %vm667, %v1681
  %1826 = vst.msk [vmem:[#allocation3 + $0x2c] sm:$0xf] %vm667, %v1682
  %1827 = vst.msk [vmem:[#allocation3 + $0x34] sm:$0xf] %vm667, %v1683
  %1828 = vst.msk [vmem:[#allocation3 + $0x3c] sm:$0xf] %vm667, %v1684
  %1829 = vst.msk [vmem:[#allocation3 + $0x44] sm:$0xf] %vm667, %v1685
  %1830 = vst.msk [vmem:[#allocation3 + $0x4c] sm:$0xf] %vm667, %v1686
  %1831 = vst.msk [vmem:[#allocation3 + $0x54] sm:$0xf] %vm667, %v1687
  %1832 = vst.msk [vmem:[#allocation3 + $0x5c] sm:$0xf] %vm667, %v1688
  %1833 = vst.msk [vmem:[#allocation3 + $0x64] sm:$0xf] %vm667, %v1689
  %1834 = vst.msk [vmem:[#allocation3 + $0x6c] sm:$0xf] %vm667, %v1690
  %1835 = vst.msk [vmem:[#allocation3 + $0x74] sm:$0xf] %vm667, %v1691
  %1836 = vst.msk [vmem:[#allocation3 + $0x7c] sm:$0xf] %vm667, %v1692
  %1837 = vst.msk [vmem:[#allocation3 + $0x84] sm:$0xf] %vm667, %v1693
  %1838 = vst.msk [vmem:[#allocation3 + $0x8c] sm:$0xf] %vm667, %v1694
  %1839 = vst.msk [vmem:[#allocation3 + $0x94] sm:$0xf] %vm667, %v1695
  %1840 = vst.msk [vmem:[#allocation3 + $0x9c] sm:$0xf] %vm667, %v1696
  %1841 = vst.msk [vmem:[#allocation3 + $0xa4] sm:$0xf] %vm667, %v1697
  %1842 = vst.msk [vmem:[#allocation3 + $0xac] sm:$0xf] %vm667, %v1698
  %1843 = vst.msk [vmem:[#allocation3 + $0xb4] sm:$0xf] %vm667, %v1699
  %1844 = vst.msk [vmem:[#allocation3 + $0xbc] sm:$0xf] %vm667, %v1700
  %1845 = vst.msk [vmem:[#allocation3 + $0xc4] sm:$0xf] %vm667, %v1701
  %1846 = vst.msk [vmem:[#allocation3 + $0xcc] sm:$0xf] %vm667, %v1702
  %1847 = vst.msk [vmem:[#allocation3 + $0xd4] sm:$0xf] %vm667, %v1703
  %1848 = vst.msk [vmem:[#allocation3 + $0xdc] sm:$0xf] %vm667, %v1704
  %1849 = vst.msk [vmem:[#allocation3 + $0xe4] sm:$0xf] %vm667, %v1705
  %1850 = vst.msk [vmem:[#allocation3 + $0xec] sm:$0xf] %vm667, %v1706
  %1851 = vst.msk [vmem:[#allocation3 + $0xf4] sm:$0xf] %vm667, %v1707
  %1852 = vst.msk [vmem:[#allocation3 + $0xfc] sm:$0xf] %vm667, %v1708
  %1853 = vst.msk [vmem:[#allocation3 + $0x104] sm:$0xf] %vm667, %v1709
  %1854 = vst.msk [vmem:[#allocation3 + $0x10c] sm:$0xf] %vm667, %v1710
  %1855 = vst.msk [vmem:[#allocation3 + $0x114] sm:$0xf] %vm667, %v1711
  %1856 = vst.msk [vmem:[#allocation3 + $0x11c] sm:$0xf] %vm667, %v1712
  %1857 = vst.msk [vmem:[#allocation3 + $0x124] sm:$0xf] %vm667, %v1713
  %1858 = vst.msk [vmem:[#allocation3 + $0x12c] sm:$0xf] %vm667, %v1714
  %1859 = vst.msk [vmem:[#allocation3 + $0x134] sm:$0xf] %vm667, %v1715
  %1860 = vst.msk [vmem:[#allocation3 + $0x13c] sm:$0xf] %vm667, %v1716
  %1861 = vst.msk [vmem:[#allocation3 + $0x144] sm:$0xf] %vm667, %v1717
  %1862 = vst.msk [vmem:[#allocation3 + $0x14c] sm:$0xf] %vm667, %v1718
  %1863 = vst.msk [vmem:[#allocation3 + $0x154] sm:$0xf] %vm667, %v1719
  %1864 = vst.msk [vmem:[#allocation3 + $0x15c] sm:$0xf] %vm667, %v1720
  %1865 = vst.msk [vmem:[#allocation3 + $0x164] sm:$0xf] %vm667, %v1721
  %1866 = vst.msk [vmem:[#allocation3 + $0x16c] sm:$0xf] %vm667, %v1722
  %1867 = vst.msk [vmem:[#allocation3 + $0x174] sm:$0xf] %vm667, %v1723
  %1868 = vst.msk [vmem:[#allocation3 + $0x17c] sm:$0xf] %vm667, %v1724
  %1869 = vst.msk [vmem:[#allocation3 + $0x184] sm:$0xf] %vm667, %v1725
  %1870 = vst.msk [vmem:[#allocation3 + $0x18c] sm:$0xf] %vm667, %v1726
  %1871 = vst.msk [vmem:[#allocation3 + $0x194] sm:$0xf] %vm667, %v1727
  %1872 = vst.msk [vmem:[#allocation3 + $0x19c] sm:$0xf] %vm667, %v1728
  %1873 = vst.msk [vmem:[#allocation3 + $0x1a4] sm:$0xf] %vm667, %v1729
  %1874 = vst.msk [vmem:[#allocation3 + $0x1ac] sm:$0xf] %vm667, %v1730
  %1875 = vst.msk [vmem:[#allocation3 + $0x1b4] sm:$0xf] %vm667, %v1731
  %1876 = vst.msk [vmem:[#allocation3 + $0x1bc] sm:$0xf] %vm667, %v1732
  %1877 = vst.msk [vmem:[#allocation3 + $0x1c4] sm:$0xf] %vm667, %v1733
  %1878 = vst.msk [vmem:[#allocation3 + $0x1cc] sm:$0xf] %vm667, %v1734
  %1879 = vst.msk [vmem:[#allocation3 + $0x1d4] sm:$0xf] %vm667, %v1735
  %1880 = vst.msk [vmem:[#allocation3 + $0x1dc] sm:$0xf] %vm667, %v1736
  %1881 = vst.msk [vmem:[#allocation3 + $0x1e4] sm:$0xf] %vm667, %v1737
  %1882 = vst.msk [vmem:[#allocation3 + $0x1ec] sm:$0xf] %vm667, %v1738
  %1883 = vst.msk [vmem:[#allocation3 + $0x1f4] sm:$0xf] %vm667, %v1739
  %1884 = vst.msk [vmem:[#allocation3 + $0x1fc] sm:$0xf] %vm667, %v1740
  %1885 = vst.msk [vmem:[#allocation3 + $0x204] sm:$0xf] %vm667, %v1741
  %1886 = vst.msk [vmem:[#allocation3 + $0x20c] sm:$0xf] %vm667, %v1742
  %1887 = vst.msk [vmem:[#allocation3 + $0x214] sm:$0xf] %vm667, %v1743
  %1888 = vst.msk [vmem:[#allocation3 + $0x21c] sm:$0xf] %vm667, %v1744
  %1889 = vst.msk [vmem:[#allocation3 + $0x224] sm:$0xf] %vm667, %v1745
  %1890 = vst.msk [vmem:[#allocation3 + $0x22c] sm:$0xf] %vm667, %v1746
  %1891 = vst.msk [vmem:[#allocation3 + $0x234] sm:$0xf] %vm667, %v1747
  %1892 = vst.msk [vmem:[#allocation3 + $0x23c] sm:$0xf] %vm667, %v1748
  %v1893 = vld [vmem:[#allocation3 + $0x8] sm:$0x88]
  %v1894 = vld [vmem:[#allocation3 + $0x10] sm:$0xff]
  %v1895 = vld [vmem:[#allocation3 + $0x18] sm:$0xff]
  %v1896 = vld [vmem:[#allocation3 + $0x20] sm:$0xff]
  %v1897 = vld [vmem:[#allocation3 + $0x28] sm:$0xff]
  %v1898 = vld [vmem:[#allocation3 + $0x30] sm:$0xff]
  %v1899 = vld [vmem:[#allocation3 + $0x38] sm:$0xff]
  %v1900 = vld [vmem:[#allocation3 + $0x40] sm:$0xff]
  %v1901 = vld [vmem:[#allocation3 + $0x48] sm:$0xff]
  %v1902 = vld [vmem:[#allocation3 + $0x50] sm:$0xff]
  %v1903 = vld [vmem:[#allocation3 + $0x58] sm:$0xff]
  %v1904 = vld [vmem:[#allocation3 + $0x60] sm:$0xff]
  %v1905 = vld [vmem:[#allocation3 + $0x68] sm:$0xff]
  %v1906 = vld [vmem:[#allocation3 + $0x70] sm:$0xff]
  %v1907 = vld [vmem:[#allocation3 + $0x78] sm:$0xff]
  %v1908 = vld [vmem:[#allocation3 + $0x80] sm:$0xff]
  %v1909 = vld [vmem:[#allocation3 + $0x88] sm:$0xff]
  %v1910 = vld [vmem:[#allocation3 + $0x90] sm:$0xff]
  %v1911 = vld [vmem:[#allocation3 + $0x98] sm:$0xff]
  %v1912 = vld [vmem:[#allocation3 + $0xa0] sm:$0xff]
  %v1913 = vld [vmem:[#allocation3 + $0xa8] sm:$0xff]
  %v1914 = vld [vmem:[#allocation3 + $0xb0] sm:$0xff]
  %v1915 = vld [vmem:[#allocation3 + $0xb8] sm:$0xff]
  %v1916 = vld [vmem:[#allocation3 + $0xc0] sm:$0xff]
  %v1917 = vld [vmem:[#allocation3 + $0xc8] sm:$0xff]
  %v1918 = vld [vmem:[#allocation3 + $0xd0] sm:$0xff]
  %v1919 = vld [vmem:[#allocation3 + $0xd8] sm:$0xff]
  %v1920 = vld [vmem:[#allocation3 + $0xe0] sm:$0xff]
  %v1921 = vld [vmem:[#allocation3 + $0xe8] sm:$0xff]
  %v1922 = vld [vmem:[#allocation3 + $0xf0] sm:$0xff]
  %v1923 = vld [vmem:[#allocation3 + $0xf8] sm:$0xff]
  %v1924 = vld [vmem:[#allocation3 + $0x100] sm:$0xff]
  %v1925 = vld [vmem:[#allocation3 + $0x108] sm:$0xff]
  %v1926 = vld [vmem:[#allocation3 + $0x110] sm:$0xff]
  %v1927 = vld [vmem:[#allocation3 + $0x118] sm:$0xff]
  %v1928 = vld [vmem:[#allocation3 + $0x120] sm:$0xff]
  %v1929 = vld [vmem:[#allocation3 + $0x128] sm:$0xff]
  %v1930 = vld [vmem:[#allocation3 + $0x130] sm:$0xff]
  %v1931 = vld [vmem:[#allocation3 + $0x138] sm:$0xff]
  %v1932 = vld [vmem:[#allocation3 + $0x140] sm:$0xff]
  %v1933 = vld [vmem:[#allocation3 + $0x148] sm:$0xff]
  %v1934 = vld [vmem:[#allocation3 + $0x150] sm:$0xff]
  %v1935 = vld [vmem:[#allocation3 + $0x158] sm:$0xff]
  %v1936 = vld [vmem:[#allocation3 + $0x160] sm:$0xff]
  %v1937 = vld [vmem:[#allocation3 + $0x168] sm:$0xff]
  %v1938 = vld [vmem:[#allocation3 + $0x170] sm:$0xff]
  %v1939 = vld [vmem:[#allocation3 + $0x178] sm:$0xff]
  %v1940 = vld [vmem:[#allocation3 + $0x180] sm:$0xff]
  %v1941 = vld [vmem:[#allocation3 + $0x188] sm:$0xff]
  %v1942 = vld [vmem:[#allocation3 + $0x190] sm:$0xff]
  %v1943 = vld [vmem:[#allocation3 + $0x198] sm:$0xff]
  %v1944 = vld [vmem:[#allocation3 + $0x1a0] sm:$0xff]
  %v1945 = vld [vmem:[#allocation3 + $0x1a8] sm:$0xff]
  %v1946 = vld [vmem:[#allocation3 + $0x1b0] sm:$0xff]
  %v1947 = vld [vmem:[#allocation3 + $0x1b8] sm:$0xff]
  %v1948 = vld [vmem:[#allocation3 + $0x1c0] sm:$0xff]
  %v1949 = vld [vmem:[#allocation3 + $0x1c8] sm:$0xff]
  %v1950 = vld [vmem:[#allocation3 + $0x1d0] sm:$0xff]
  %v1951 = vld [vmem:[#allocation3 + $0x1d8] sm:$0xff]
  %v1952 = vld [vmem:[#allocation3 + $0x1e0] sm:$0xff]
  %v1953 = vld [vmem:[#allocation3 + $0x1e8] sm:$0xff]
  %v1954 = vld [vmem:[#allocation3 + $0x1f0] sm:$0xff]
  %v1955 = vld [vmem:[#allocation3 + $0x1f8] sm:$0xff]
  %v1956 = vld [vmem:[#allocation3 + $0x200] sm:$0xff]
  %v1957 = vld [vmem:[#allocation3 + $0x208] sm:$0xff]
  %v1958 = vld [vmem:[#allocation3 + $0x210] sm:$0xff]
  %v1959 = vld [vmem:[#allocation3 + $0x218] sm:$0xff]
  %v1960 = vld [vmem:[%s0] sm:$0xf]
  %v1961 = vld [vmem:[%s0 + $0x4] sm:$0xf]
  %v1962 = vld [vmem:[%s0 + $0x8] sm:$0xf]
  %v1963 = vld [vmem:[%s0 + $0xc] sm:$0xf]
  %v1964 = vld [vmem:[%s0 + $0x10] sm:$0xf]
  %v1965 = vld [vmem:[%s0 + $0x14] sm:$0xf]
  %v1966 = vld [vmem:[%s0 + $0x18] sm:$0xf]
  %v1967 = vld [vmem:[%s0 + $0x1c] sm:$0xf]
  %v1968 = vld [vmem:[%s0 + $0x20] sm:$0xf]
  %v1969 = vld [vmem:[%s0 + $0x24] sm:$0xf]
  %v1970 = vld [vmem:[%s0 + $0x28] sm:$0xf]
  %v1971 = vld [vmem:[%s0 + $0x2c] sm:$0xf]
  %v1972 = vld [vmem:[%s0 + $0x30] sm:$0xf]
  %v1973 = vld [vmem:[%s0 + $0x34] sm:$0xf]
  %v1974 = vld [vmem:[%s0 + $0x38] sm:$0xf]
  %v1975 = vld [vmem:[%s0 + $0x3c] sm:$0xf]
  %v1976 = vld [vmem:[%s0 + $0x40] sm:$0xf]
  %v1977 = vld [vmem:[%s0 + $0x44] sm:$0xf]
  %v1978 = vld [vmem:[%s0 + $0x48] sm:$0xf]
  %v1979 = vld [vmem:[%s0 + $0x4c] sm:$0xf]
  %v1980 = vld [vmem:[%s0 + $0x50] sm:$0xf]
  %v1981 = vld [vmem:[%s0 + $0x54] sm:$0xf]
  %v1982 = vld [vmem:[%s0 + $0x58] sm:$0xf]
  %v1983 = vld [vmem:[%s0 + $0x5c] sm:$0xf]
  %v1984 = vld [vmem:[%s1] sm:$0x1]
  %v1986 = vlaneseq
  %v1987 = vshrl.u32 %v1986, 7
  %v1988 = vsub.s32 0, %v1987
  %v1989 = vrot.slane %v1984, %v1988
  %v2058 = vunpack.c.l.b16 %v1893
  %v2059 = vunpack.c.h.b16 %v1893
  %v2060 = vunpack.c.l.b16 %v1894
  %v2061 = vunpack.c.h.b16 %v1894
  %v2062 = vunpack.c.l.b16 %v1895
  %v2063 = vunpack.c.h.b16 %v1895
  %v2064 = vunpack.c.l.b16 %v1896
  %v2065 = vunpack.c.h.b16 %v1896
  %v2066 = vunpack.c.l.b16 %v1897
  %v2067 = vunpack.c.h.b16 %v1897
  %v2068 = vunpack.c.l.b16 %v1898
  %v2069 = vunpack.c.h.b16 %v1898
  %v2070 = vunpack.c.l.b16 %v1899
  %v2071 = vunpack.c.h.b16 %v1899
  %v2072 = vunpack.c.l.b16 %v1900
  %v2073 = vunpack.c.h.b16 %v1900
  %v2074 = vunpack.c.l.b16 %v1901
  %v2075 = vunpack.c.h.b16 %v1901
  %v2076 = vunpack.c.l.b16 %v1902
  %v2077 = vunpack.c.h.b16 %v1902
  %v2078 = vunpack.c.l.b16 %v1903
  %v2079 = vunpack.c.h.b16 %v1903
  %v2080 = vunpack.c.l.b16 %v1904
  %v2081 = vunpack.c.h.b16 %v1904
  %v2082 = vunpack.c.l.b16 %v1905
  %v2083 = vunpack.c.h.b16 %v1905
  %v2084 = vunpack.c.l.b16 %v1906
  %v2085 = vunpack.c.h.b16 %v1906
  %v2086 = vunpack.c.l.b16 %v1907
  %v2087 = vunpack.c.h.b16 %v1907
  %v2088 = vunpack.c.l.b16 %v1908
  %v2089 = vunpack.c.h.b16 %v1908
  %v2090 = vunpack.c.l.b16 %v1909
  %v2091 = vunpack.c.h.b16 %v1909
  %v2092 = vunpack.c.l.b16 %v1910
  %v2093 = vunpack.c.h.b16 %v1910
  %v2094 = vunpack.c.l.b16 %v1911
  %v2095 = vunpack.c.h.b16 %v1911
  %v2096 = vunpack.c.l.b16 %v1912
  %v2097 = vunpack.c.h.b16 %v1912
  %v2098 = vunpack.c.l.b16 %v1913
  %v2099 = vunpack.c.h.b16 %v1913
  %v2100 = vunpack.c.l.b16 %v1914
  %v2101 = vunpack.c.h.b16 %v1914
  %v2102 = vunpack.c.l.b16 %v1915
  %v2103 = vunpack.c.h.b16 %v1915
  %v2104 = vunpack.c.l.b16 %v1916
  %v2105 = vunpack.c.h.b16 %v1916
  %v2106 = vunpack.c.l.b16 %v1917
  %v2107 = vunpack.c.h.b16 %v1917
  %v2108 = vunpack.c.l.b16 %v1918
  %v2109 = vunpack.c.h.b16 %v1918
  %v2110 = vunpack.c.l.b16 %v1919
  %v2111 = vunpack.c.h.b16 %v1919
  %v2112 = vunpack.c.l.b16 %v1920
  %v2113 = vunpack.c.h.b16 %v1920
  %v2114 = vunpack.c.l.b16 %v1921
  %v2115 = vunpack.c.h.b16 %v1921
  %v2116 = vunpack.c.l.b16 %v1922
  %v2117 = vunpack.c.h.b16 %v1922
  %v2118 = vunpack.c.l.b16 %v1923
  %v2119 = vunpack.c.h.b16 %v1923
  %v2120 = vunpack.c.l.b16 %v1924
  %v2121 = vunpack.c.h.b16 %v1924
  %v2122 = vunpack.c.l.b16 %v1925
  %v2123 = vunpack.c.h.b16 %v1925
  %v2124 = vunpack.c.l.b16 %v1926
  %v2125 = vunpack.c.h.b16 %v1926
  %v2126 = vunpack.c.l.b16 %v1927
  %v2127 = vunpack.c.h.b16 %v1927
  %v2128 = vunpack.c.l.b16 %v1928
  %v2129 = vunpack.c.h.b16 %v1928
  %v2130 = vunpack.c.l.b16 %v1929
  %v2131 = vunpack.c.h.b16 %v1929
  %v2132 = vunpack.c.l.b16 %v1930
  %v2133 = vunpack.c.h.b16 %v1930
  %v2134 = vunpack.c.l.b16 %v1931
  %v2135 = vunpack.c.h.b16 %v1931
  %v2136 = vunpack.c.l.b16 %v1932
  %v2137 = vunpack.c.h.b16 %v1932
  %v2138 = vunpack.c.l.b16 %v1933
  %v2139 = vunpack.c.h.b16 %v1933
  %v2140 = vunpack.c.l.b16 %v1934
  %v2141 = vunpack.c.h.b16 %v1934
  %v2142 = vunpack.c.l.b16 %v1935
  %v2143 = vunpack.c.h.b16 %v1935
  %v2144 = vunpack.c.l.b16 %v1936
  %v2145 = vunpack.c.h.b16 %v1936
  %v2146 = vunpack.c.l.b16 %v1937
  %v2147 = vunpack.c.h.b16 %v1937
  %v2148 = vunpack.c.l.b16 %v1938
  %v2149 = vunpack.c.h.b16 %v1938
  %v2150 = vunpack.c.l.b16 %v1939
  %v2151 = vunpack.c.h.b16 %v1939
  %v2152 = vunpack.c.l.b16 %v1940
  %v2153 = vunpack.c.h.b16 %v1940
  %v2154 = vunpack.c.l.b16 %v1941
  %v2155 = vunpack.c.h.b16 %v1941
  %v2156 = vunpack.c.l.b16 %v1942
  %v2157 = vunpack.c.h.b16 %v1942
  %v2158 = vunpack.c.l.b16 %v1943
  %v2159 = vunpack.c.h.b16 %v1943
  %v2160 = vunpack.c.l.b16 %v1944
  %v2161 = vunpack.c.h.b16 %v1944
  %v2162 = vunpack.c.l.b16 %v1945
  %v2163 = vunpack.c.h.b16 %v1945
  %v2164 = vunpack.c.l.b16 %v1946
  %v2165 = vunpack.c.h.b16 %v1946
  %v2166 = vunpack.c.l.b16 %v1947
  %v2167 = vunpack.c.h.b16 %v1947
  %v2168 = vunpack.c.l.b16 %v1948
  %v2169 = vunpack.c.h.b16 %v1948
  %v2170 = vunpack.c.l.b16 %v1949
  %v2171 = vunpack.c.h.b16 %v1949
  %v2172 = vunpack.c.l.b16 %v1950
  %v2173 = vunpack.c.h.b16 %v1950
  %v2174 = vunpack.c.l.b16 %v1951
  %v2175 = vunpack.c.h.b16 %v1951
  %v2176 = vunpack.c.l.b16 %v1952
  %v2177 = vunpack.c.h.b16 %v1952
  %v2178 = vunpack.c.l.b16 %v1953
  %v2179 = vunpack.c.h.b16 %v1953
  %v2180 = vunpack.c.l.b16 %v1954
  %v2181 = vunpack.c.h.b16 %v1954
  %v2182 = vunpack.c.l.b16 %v1955
  %v2183 = vunpack.c.h.b16 %v1955
  %v2184 = vunpack.c.l.b16 %v1956
  %v2185 = vunpack.c.h.b16 %v1956
  %v2186 = vunpack.c.l.b16 %v1957
  %v2187 = vunpack.c.h.b16 %v1957
  %v2188 = vunpack.c.l.b16 %v1958
  %v2189 = vunpack.c.h.b16 %v1958
  %v2190 = vunpack.c.l.b16 %v1959
  %v2191 = vunpack.c.h.b16 %v1959
  %v2192 = vpack.c.b16 %v2060, %v2058
  %v2193 = vpack.c.b16 %v2061, %v2059
  %v2194 = vpack.c.b16 %v2064, %v2062
  %v2195 = vpack.c.b16 %v2065, %v2063
  %v2196 = vpack.c.b16 %v2068, %v2066
  %v2197 = vpack.c.b16 %v2069, %v2067
  %v2198 = vpack.c.b16 %v2072, %v2070
  %v2199 = vpack.c.b16 %v2073, %v2071
  %v2200 = vpack.c.b16 %v2076, %v2074
  %v2201 = vpack.c.b16 %v2077, %v2075
  %v2202 = vpack.c.b16 %v2080, %v2078
  %v2203 = vpack.c.b16 %v2081, %v2079
  %v2204 = vpack.c.b16 %v2084, %v2082
  %v2205 = vpack.c.b16 %v2085, %v2083
  %v2206 = vpack.c.b16 %v2088, %v2086
  %v2207 = vpack.c.b16 %v2089, %v2087
  %v2208 = vpack.c.b16 %v2092, %v2090
  %v2209 = vpack.c.b16 %v2093, %v2091
  %v2210 = vpack.c.b16 %v2096, %v2094
  %v2211 = vpack.c.b16 %v2097, %v2095
  %v2212 = vpack.c.b16 %v2100, %v2098
  %v2213 = vpack.c.b16 %v2101, %v2099
  %v2214 = vpack.c.b16 %v2104, %v2102
  %v2215 = vpack.c.b16 %v2105, %v2103
  %v2216 = vpack.c.b16 %v2108, %v2106
  %v2217 = vpack.c.b16 %v2109, %v2107
  %v2218 = vpack.c.b16 %v2112, %v2110
  %v2219 = vpack.c.b16 %v2113, %v2111
  %v2220 = vpack.c.b16 %v2116, %v2114
  %v2221 = vpack.c.b16 %v2117, %v2115
  %v2222 = vpack.c.b16 %v2120, %v2118
  %v2223 = vpack.c.b16 %v2121, %v2119
  %v2224 = vpack.c.b16 %v2124, %v2122
  %v2225 = vpack.c.b16 %v2125, %v2123
  %v2226 = vpack.c.b16 %v2128, %v2126
  %v2227 = vpack.c.b16 %v2129, %v2127
  %v2228 = vpack.c.b16 %v2132, %v2130
  %v2229 = vpack.c.b16 %v2133, %v2131
  %v2230 = vpack.c.b16 %v2136, %v2134
  %v2231 = vpack.c.b16 %v2137, %v2135
  %v2232 = vpack.c.b16 %v2140, %v2138
  %v2233 = vpack.c.b16 %v2141, %v2139
  %v2234 = vpack.c.b16 %v2144, %v2142
  %v2235 = vpack.c.b16 %v2145, %v2143
  %v2236 = vpack.c.b16 %v2148, %v2146
  %v2237 = vpack.c.b16 %v2149, %v2147
  %v2238 = vpack.c.b16 %v2152, %v2150
  %v2239 = vpack.c.b16 %v2153, %v2151
  %v2240 = vpack.c.b16 %v2156, %v2154
  %v2241 = vpack.c.b16 %v2157, %v2155
  %v2242 = vpack.c.b16 %v2160, %v2158
  %v2243 = vpack.c.b16 %v2161, %v2159
  %v2244 = vpack.c.b16 %v2164, %v2162
  %v2245 = vpack.c.b16 %v2165, %v2163
  %v2246 = vpack.c.b16 %v2168, %v2166
  %v2247 = vpack.c.b16 %v2169, %v2167
  %v2248 = vpack.c.b16 %v2172, %v2170
  %v2249 = vpack.c.b16 %v2173, %v2171
  %v2250 = vpack.c.b16 %v2176, %v2174
  %v2251 = vpack.c.b16 %v2177, %v2175
  %v2252 = vpack.c.b16 %v2180, %v2178
  %v2253 = vpack.c.b16 %v2181, %v2179
  %v2254 = vpack.c.b16 %v2184, %v2182
  %v2255 = vpack.c.b16 %v2185, %v2183
  %v2256 = vpack.c.b16 %v2188, %v2186
  %v2257 = vpack.c.b16 %v2189, %v2187
  %v2258 = vpack.c.b16 %v2190, %v2190
  %v2259 = vpack.c.b16 %v2191, %v2191
  %vm2260 = vsmask.f32 4352
  %v2262 = vshrl.u32 %v2192, 16
  %v2264 = vrot.slane %v2262, 3
  %v2265 = vshll.u32 %v2192, 16
  %v2267 = vrot.slane %v2265, 4
  %v2268 = vor.u32 %v2264, %v2267
  %v2270 = vshrl.u32 %v2194, 16
  %v2272 = vrot.slane %v2270, 3
  %v2273 = vshll.u32 %v2194, 16
  %v2275 = vrot.slane %v2273, 4
  %v2276 = vor.u32 %v2272, %v2275
  %v2277 = vsel %vm2260, %v2268, %v2276
  %v2279 = vshrl.u32 %v2193, 16
  %v2281 = vrot.slane %v2279, 3
  %v2282 = vshll.u32 %v2193, 16
  %v2284 = vrot.slane %v2282, 4
  %v2285 = vor.u32 %v2281, %v2284
  %v2287 = vshrl.u32 %v2195, 16
  %v2289 = vrot.slane %v2287, 3
  %v2290 = vshll.u32 %v2195, 16
  %v2292 = vrot.slane %v2290, 4
  %v2293 = vor.u32 %v2289, %v2292
  %v2294 = vsel %vm2260, %v2285, %v2293
  %v2296 = vshrl.u32 %v2196, 16
  %v2298 = vrot.slane %v2296, 3
  %v2299 = vshll.u32 %v2196, 16
  %v2301 = vrot.slane %v2299, 4
  %v2302 = vor.u32 %v2298, %v2301
  %v2303 = vsel %vm2260, %v2276, %v2302
  %v2305 = vshrl.u32 %v2197, 16
  %v2307 = vrot.slane %v2305, 3
  %v2308 = vshll.u32 %v2197, 16
  %v2310 = vrot.slane %v2308, 4
  %v2311 = vor.u32 %v2307, %v2310
  %v2312 = vsel %vm2260, %v2293, %v2311
  %v2314 = vshrl.u32 %v2198, 16
  %v2316 = vrot.slane %v2314, 3
  %v2317 = vshll.u32 %v2198, 16
  %v2319 = vrot.slane %v2317, 4
  %v2320 = vor.u32 %v2316, %v2319
  %v2321 = vsel %vm2260, %v2302, %v2320
  %v2323 = vshrl.u32 %v2199, 16
  %v2325 = vrot.slane %v2323, 3
  %v2326 = vshll.u32 %v2199, 16
  %v2328 = vrot.slane %v2326, 4
  %v2329 = vor.u32 %v2325, %v2328
  %v2330 = vsel %vm2260, %v2311, %v2329
  %v2332 = vshrl.u32 %v2200, 16
  %v2334 = vrot.slane %v2332, 3
  %v2335 = vshll.u32 %v2200, 16
  %v2337 = vrot.slane %v2335, 4
  %v2338 = vor.u32 %v2334, %v2337
  %v2339 = vsel %vm2260, %v2320, %v2338
  %v2341 = vshrl.u32 %v2201, 16
  %v2343 = vrot.slane %v2341, 3
  %v2344 = vshll.u32 %v2201, 16
  %v2346 = vrot.slane %v2344, 4
  %v2347 = vor.u32 %v2343, %v2346
  %v2348 = vsel %vm2260, %v2329, %v2347
  %v2350 = vshrl.u32 %v2202, 16
  %v2352 = vrot.slane %v2350, 3
  %v2353 = vshll.u32 %v2202, 16
  %v2355 = vrot.slane %v2353, 4
  %v2356 = vor.u32 %v2352, %v2355
  %v2357 = vsel %vm2260, %v2338, %v2356
  %v2359 = vshrl.u32 %v2203, 16
  %v2361 = vrot.slane %v2359, 3
  %v2362 = vshll.u32 %v2203, 16
  %v2364 = vrot.slane %v2362, 4
  %v2365 = vor.u32 %v2361, %v2364
  %v2366 = vsel %vm2260, %v2347, %v2365
  %v2368 = vshrl.u32 %v2204, 16
  %v2370 = vrot.slane %v2368, 3
  %v2371 = vshll.u32 %v2204, 16
  %v2373 = vrot.slane %v2371, 4
  %v2374 = vor.u32 %v2370, %v2373
  %v2375 = vsel %vm2260, %v2356, %v2374
  %v2377 = vshrl.u32 %v2205, 16
  %v2379 = vrot.slane %v2377, 3
  %v2380 = vshll.u32 %v2205, 16
  %v2382 = vrot.slane %v2380, 4
  %v2383 = vor.u32 %v2379, %v2382
  %v2384 = vsel %vm2260, %v2365, %v2383
  %v2386 = vshrl.u32 %v2206, 16
  %v2388 = vrot.slane %v2386, 3
  %v2389 = vshll.u32 %v2206, 16
  %v2391 = vrot.slane %v2389, 4
  %v2392 = vor.u32 %v2388, %v2391
  %v2393 = vsel %vm2260, %v2374, %v2392
  %v2395 = vshrl.u32 %v2207, 16
  %v2397 = vrot.slane %v2395, 3
  %v2398 = vshll.u32 %v2207, 16
  %v2400 = vrot.slane %v2398, 4
  %v2401 = vor.u32 %v2397, %v2400
  %v2402 = vsel %vm2260, %v2383, %v2401
  %v2404 = vshrl.u32 %v2208, 16
  %v2406 = vrot.slane %v2404, 3
  %v2407 = vshll.u32 %v2208, 16
  %v2409 = vrot.slane %v2407, 4
  %v2410 = vor.u32 %v2406, %v2409
  %v2411 = vsel %vm2260, %v2392, %v2410
  %v2413 = vshrl.u32 %v2209, 16
  %v2415 = vrot.slane %v2413, 3
  %v2416 = vshll.u32 %v2209, 16
  %v2418 = vrot.slane %v2416, 4
  %v2419 = vor.u32 %v2415, %v2418
  %v2420 = vsel %vm2260, %v2401, %v2419
  %v2422 = vshrl.u32 %v2210, 16
  %v2424 = vrot.slane %v2422, 3
  %v2425 = vshll.u32 %v2210, 16
  %v2427 = vrot.slane %v2425, 4
  %v2428 = vor.u32 %v2424, %v2427
  %v2429 = vsel %vm2260, %v2410, %v2428
  %v2431 = vshrl.u32 %v2211, 16
  %v2433 = vrot.slane %v2431, 3
  %v2434 = vshll.u32 %v2211, 16
  %v2436 = vrot.slane %v2434, 4
  %v2437 = vor.u32 %v2433, %v2436
  %v2438 = vsel %vm2260, %v2419, %v2437
  %v2440 = vshrl.u32 %v2212, 16
  %v2442 = vrot.slane %v2440, 3
  %v2443 = vshll.u32 %v2212, 16
  %v2445 = vrot.slane %v2443, 4
  %v2446 = vor.u32 %v2442, %v2445
  %v2447 = vsel %vm2260, %v2428, %v2446
  %v2449 = vshrl.u32 %v2213, 16
  %v2451 = vrot.slane %v2449, 3
  %v2452 = vshll.u32 %v2213, 16
  %v2454 = vrot.slane %v2452, 4
  %v2455 = vor.u32 %v2451, %v2454
  %v2456 = vsel %vm2260, %v2437, %v2455
  %v2458 = vshrl.u32 %v2214, 16
  %v2460 = vrot.slane %v2458, 3
  %v2461 = vshll.u32 %v2214, 16
  %v2463 = vrot.slane %v2461, 4
  %v2464 = vor.u32 %v2460, %v2463
  %v2465 = vsel %vm2260, %v2446, %v2464
  %v2467 = vshrl.u32 %v2215, 16
  %v2469 = vrot.slane %v2467, 3
  %v2470 = vshll.u32 %v2215, 16
  %v2472 = vrot.slane %v2470, 4
  %v2473 = vor.u32 %v2469, %v2472
  %v2474 = vsel %vm2260, %v2455, %v2473
  %v2476 = vshrl.u32 %v2216, 16
  %v2478 = vrot.slane %v2476, 3
  %v2479 = vshll.u32 %v2216, 16
  %v2481 = vrot.slane %v2479, 4
  %v2482 = vor.u32 %v2478, %v2481
  %v2483 = vsel %vm2260, %v2464, %v2482
  %v2485 = vshrl.u32 %v2217, 16
  %v2487 = vrot.slane %v2485, 3
  %v2488 = vshll.u32 %v2217, 16
  %v2490 = vrot.slane %v2488, 4
  %v2491 = vor.u32 %v2487, %v2490
  %v2492 = vsel %vm2260, %v2473, %v2491
  %v2494 = vshrl.u32 %v2218, 16
  %v2496 = vrot.slane %v2494, 3
  %v2497 = vshll.u32 %v2218, 16
  %v2499 = vrot.slane %v2497, 4
  %v2500 = vor.u32 %v2496, %v2499
  %v2501 = vsel %vm2260, %v2482, %v2500
  %v2503 = vshrl.u32 %v2219, 16
  %v2505 = vrot.slane %v2503, 3
  %v2506 = vshll.u32 %v2219, 16
  %v2508 = vrot.slane %v2506, 4
  %v2509 = vor.u32 %v2505, %v2508
  %v2510 = vsel %vm2260, %v2491, %v2509
  %v2512 = vshrl.u32 %v2220, 16
  %v2514 = vrot.slane %v2512, 3
  %v2515 = vshll.u32 %v2220, 16
  %v2517 = vrot.slane %v2515, 4
  %v2518 = vor.u32 %v2514, %v2517
  %v2519 = vsel %vm2260, %v2500, %v2518
  %v2521 = vshrl.u32 %v2221, 16
  %v2523 = vrot.slane %v2521, 3
  %v2524 = vshll.u32 %v2221, 16
  %v2526 = vrot.slane %v2524, 4
  %v2527 = vor.u32 %v2523, %v2526
  %v2528 = vsel %vm2260, %v2509, %v2527
  %v2530 = vshrl.u32 %v2222, 16
  %v2532 = vrot.slane %v2530, 3
  %v2533 = vshll.u32 %v2222, 16
  %v2535 = vrot.slane %v2533, 4
  %v2536 = vor.u32 %v2532, %v2535
  %v2537 = vsel %vm2260, %v2518, %v2536
  %v2539 = vshrl.u32 %v2223, 16
  %v2541 = vrot.slane %v2539, 3
  %v2542 = vshll.u32 %v2223, 16
  %v2544 = vrot.slane %v2542, 4
  %v2545 = vor.u32 %v2541, %v2544
  %v2546 = vsel %vm2260, %v2527, %v2545
  %v2548 = vshrl.u32 %v2224, 16
  %v2550 = vrot.slane %v2548, 3
  %v2551 = vshll.u32 %v2224, 16
  %v2553 = vrot.slane %v2551, 4
  %v2554 = vor.u32 %v2550, %v2553
  %v2555 = vsel %vm2260, %v2536, %v2554
  %v2557 = vshrl.u32 %v2225, 16
  %v2559 = vrot.slane %v2557, 3
  %v2560 = vshll.u32 %v2225, 16
  %v2562 = vrot.slane %v2560, 4
  %v2563 = vor.u32 %v2559, %v2562
  %v2564 = vsel %vm2260, %v2545, %v2563
  %v2566 = vshrl.u32 %v2226, 16
  %v2568 = vrot.slane %v2566, 3
  %v2569 = vshll.u32 %v2226, 16
  %v2571 = vrot.slane %v2569, 4
  %v2572 = vor.u32 %v2568, %v2571
  %v2573 = vsel %vm2260, %v2554, %v2572
  %v2575 = vshrl.u32 %v2227, 16
  %v2577 = vrot.slane %v2575, 3
  %v2578 = vshll.u32 %v2227, 16
  %v2580 = vrot.slane %v2578, 4
  %v2581 = vor.u32 %v2577, %v2580
  %v2582 = vsel %vm2260, %v2563, %v2581
  %v2584 = vshrl.u32 %v2228, 16
  %v2586 = vrot.slane %v2584, 3
  %v2587 = vshll.u32 %v2228, 16
  %v2589 = vrot.slane %v2587, 4
  %v2590 = vor.u32 %v2586, %v2589
  %v2591 = vsel %vm2260, %v2572, %v2590
  %v2593 = vshrl.u32 %v2229, 16
  %v2595 = vrot.slane %v2593, 3
  %v2596 = vshll.u32 %v2229, 16
  %v2598 = vrot.slane %v2596, 4
  %v2599 = vor.u32 %v2595, %v2598
  %v2600 = vsel %vm2260, %v2581, %v2599
  %v2602 = vshrl.u32 %v2230, 16
  %v2604 = vrot.slane %v2602, 3
  %v2605 = vshll.u32 %v2230, 16
  %v2607 = vrot.slane %v2605, 4
  %v2608 = vor.u32 %v2604, %v2607
  %v2609 = vsel %vm2260, %v2590, %v2608
  %v2611 = vshrl.u32 %v2231, 16
  %v2613 = vrot.slane %v2611, 3
  %v2614 = vshll.u32 %v2231, 16
  %v2616 = vrot.slane %v2614, 4
  %v2617 = vor.u32 %v2613, %v2616
  %v2618 = vsel %vm2260, %v2599, %v2617
  %v2620 = vshrl.u32 %v2232, 16
  %v2622 = vrot.slane %v2620, 3
  %v2623 = vshll.u32 %v2232, 16
  %v2625 = vrot.slane %v2623, 4
  %v2626 = vor.u32 %v2622, %v2625
  %v2627 = vsel %vm2260, %v2608, %v2626
  %v2629 = vshrl.u32 %v2233, 16
  %v2631 = vrot.slane %v2629, 3
  %v2632 = vshll.u32 %v2233, 16
  %v2634 = vrot.slane %v2632, 4
  %v2635 = vor.u32 %v2631, %v2634
  %v2636 = vsel %vm2260, %v2617, %v2635
  %v2638 = vshrl.u32 %v2234, 16
  %v2640 = vrot.slane %v2638, 3
  %v2641 = vshll.u32 %v2234, 16
  %v2643 = vrot.slane %v2641, 4
  %v2644 = vor.u32 %v2640, %v2643
  %v2645 = vsel %vm2260, %v2626, %v2644
  %v2647 = vshrl.u32 %v2235, 16
  %v2649 = vrot.slane %v2647, 3
  %v2650 = vshll.u32 %v2235, 16
  %v2652 = vrot.slane %v2650, 4
  %v2653 = vor.u32 %v2649, %v2652
  %v2654 = vsel %vm2260, %v2635, %v2653
  %v2656 = vshrl.u32 %v2236, 16
  %v2658 = vrot.slane %v2656, 3
  %v2659 = vshll.u32 %v2236, 16
  %v2661 = vrot.slane %v2659, 4
  %v2662 = vor.u32 %v2658, %v2661
  %v2663 = vsel %vm2260, %v2644, %v2662
  %v2665 = vshrl.u32 %v2237, 16
  %v2667 = vrot.slane %v2665, 3
  %v2668 = vshll.u32 %v2237, 16
  %v2670 = vrot.slane %v2668, 4
  %v2671 = vor.u32 %v2667, %v2670
  %v2672 = vsel %vm2260, %v2653, %v2671
  %v2674 = vshrl.u32 %v2238, 16
  %v2676 = vrot.slane %v2674, 3
  %v2677 = vshll.u32 %v2238, 16
  %v2679 = vrot.slane %v2677, 4
  %v2680 = vor.u32 %v2676, %v2679
  %v2681 = vsel %vm2260, %v2662, %v2680
  %v2683 = vshrl.u32 %v2239, 16
  %v2685 = vrot.slane %v2683, 3
  %v2686 = vshll.u32 %v2239, 16
  %v2688 = vrot.slane %v2686, 4
  %v2689 = vor.u32 %v2685, %v2688
  %v2690 = vsel %vm2260, %v2671, %v2689
  %v2692 = vshrl.u32 %v2240, 16
  %v2694 = vrot.slane %v2692, 3
  %v2695 = vshll.u32 %v2240, 16
  %v2697 = vrot.slane %v2695, 4
  %v2698 = vor.u32 %v2694, %v2697
  %v2699 = vsel %vm2260, %v2680, %v2698
  %v2701 = vshrl.u32 %v2241, 16
  %v2703 = vrot.slane %v2701, 3
  %v2704 = vshll.u32 %v2241, 16
  %v2706 = vrot.slane %v2704, 4
  %v2707 = vor.u32 %v2703, %v2706
  %v2708 = vsel %vm2260, %v2689, %v2707
  %v2710 = vshrl.u32 %v2242, 16
  %v2712 = vrot.slane %v2710, 3
  %v2713 = vshll.u32 %v2242, 16
  %v2715 = vrot.slane %v2713, 4
  %v2716 = vor.u32 %v2712, %v2715
  %v2717 = vsel %vm2260, %v2698, %v2716
  %v2719 = vshrl.u32 %v2243, 16
  %v2721 = vrot.slane %v2719, 3
  %v2722 = vshll.u32 %v2243, 16
  %v2724 = vrot.slane %v2722, 4
  %v2725 = vor.u32 %v2721, %v2724
  %v2726 = vsel %vm2260, %v2707, %v2725
  %v2728 = vshrl.u32 %v2244, 16
  %v2730 = vrot.slane %v2728, 3
  %v2731 = vshll.u32 %v2244, 16
  %v2733 = vrot.slane %v2731, 4
  %v2734 = vor.u32 %v2730, %v2733
  %v2735 = vsel %vm2260, %v2716, %v2734
  %v2737 = vshrl.u32 %v2245, 16
  %v2739 = vrot.slane %v2737, 3
  %v2740 = vshll.u32 %v2245, 16
  %v2742 = vrot.slane %v2740, 4
  %v2743 = vor.u32 %v2739, %v2742
  %v2744 = vsel %vm2260, %v2725, %v2743
  %v2746 = vshrl.u32 %v2246, 16
  %v2748 = vrot.slane %v2746, 3
  %v2749 = vshll.u32 %v2246, 16
  %v2751 = vrot.slane %v2749, 4
  %v2752 = vor.u32 %v2748, %v2751
  %v2753 = vsel %vm2260, %v2734, %v2752
  %v2755 = vshrl.u32 %v2247, 16
  %v2757 = vrot.slane %v2755, 3
  %v2758 = vshll.u32 %v2247, 16
  %v2760 = vrot.slane %v2758, 4
  %v2761 = vor.u32 %v2757, %v2760
  %v2762 = vsel %vm2260, %v2743, %v2761
  %v2764 = vshrl.u32 %v2248, 16
  %v2766 = vrot.slane %v2764, 3
  %v2767 = vshll.u32 %v2248, 16
  %v2769 = vrot.slane %v2767, 4
  %v2770 = vor.u32 %v2766, %v2769
  %v2771 = vsel %vm2260, %v2752, %v2770
  %v2773 = vshrl.u32 %v2249, 16
  %v2775 = vrot.slane %v2773, 3
  %v2776 = vshll.u32 %v2249, 16
  %v2778 = vrot.slane %v2776, 4
  %v2779 = vor.u32 %v2775, %v2778
  %v2780 = vsel %vm2260, %v2761, %v2779
  %v2782 = vshrl.u32 %v2250, 16
  %v2784 = vrot.slane %v2782, 3
  %v2785 = vshll.u32 %v2250, 16
  %v2787 = vrot.slane %v2785, 4
  %v2788 = vor.u32 %v2784, %v2787
  %v2789 = vsel %vm2260, %v2770, %v2788
  %v2791 = vshrl.u32 %v2251, 16
  %v2793 = vrot.slane %v2791, 3
  %v2794 = vshll.u32 %v2251, 16
  %v2796 = vrot.slane %v2794, 4
  %v2797 = vor.u32 %v2793, %v2796
  %v2798 = vsel %vm2260, %v2779, %v2797
  %v2800 = vshrl.u32 %v2252, 16
  %v2802 = vrot.slane %v2800, 3
  %v2803 = vshll.u32 %v2252, 16
  %v2805 = vrot.slane %v2803, 4
  %v2806 = vor.u32 %v2802, %v2805
  %v2807 = vsel %vm2260, %v2788, %v2806
  %v2809 = vshrl.u32 %v2253, 16
  %v2811 = vrot.slane %v2809, 3
  %v2812 = vshll.u32 %v2253, 16
  %v2814 = vrot.slane %v2812, 4
  %v2815 = vor.u32 %v2811, %v2814
  %v2816 = vsel %vm2260, %v2797, %v2815
  %v2818 = vshrl.u32 %v2254, 16
  %v2820 = vrot.slane %v2818, 3
  %v2821 = vshll.u32 %v2254, 16
  %v2823 = vrot.slane %v2821, 4
  %v2824 = vor.u32 %v2820, %v2823
  %v2825 = vsel %vm2260, %v2806, %v2824
  %v2827 = vshrl.u32 %v2255, 16
  %v2829 = vrot.slane %v2827, 3
  %v2830 = vshll.u32 %v2255, 16
  %v2832 = vrot.slane %v2830, 4
  %v2833 = vor.u32 %v2829, %v2832
  %v2834 = vsel %vm2260, %v2815, %v2833
  %v2836 = vshrl.u32 %v2256, 16
  %v2838 = vrot.slane %v2836, 3
  %v2839 = vshll.u32 %v2256, 16
  %v2841 = vrot.slane %v2839, 4
  %v2842 = vor.u32 %v2838, %v2841
  %v2843 = vsel %vm2260, %v2824, %v2842
  %v2845 = vshrl.u32 %v2257, 16
  %v2847 = vrot.slane %v2845, 3
  %v2848 = vshll.u32 %v2257, 16
  %v2850 = vrot.slane %v2848, 4
  %v2851 = vor.u32 %v2847, %v2850
  %v2852 = vsel %vm2260, %v2833, %v2851
  %v2854 = vshrl.u32 %v2258, 16
  %v2856 = vrot.slane %v2854, 3
  %v2857 = vshll.u32 %v2258, 16
  %v2859 = vrot.slane %v2857, 4
  %v2860 = vor.u32 %v2856, %v2859
  %v2861 = vsel %vm2260, %v2842, %v2860
  %v2863 = vshrl.u32 %v2259, 16
  %v2865 = vrot.slane %v2863, 3
  %v2866 = vshll.u32 %v2259, 16
  %v2868 = vrot.slane %v2866, 4
  %v2869 = vor.u32 %v2865, %v2868
  %v2870 = vsel %vm2260, %v2851, %v2869
  %v2928 = vunpack.c.l.b16 %v1960
  %v2929 = vunpack.c.l.b16 %v1961
  %v2930 = vunpack.c.l.b16 %v1962
  %v2931 = vunpack.c.l.b16 %v1963
  %v2932 = vunpack.c.l.b16 %v1964
  %v2933 = vunpack.c.l.b16 %v1965
  %v2934 = vunpack.c.l.b16 %v1966
  %v2935 = vunpack.c.l.b16 %v1967
  %v2936 = vunpack.c.l.b16 %v1968
  %v2937 = vunpack.c.l.b16 %v1969
  %v2938 = vunpack.c.l.b16 %v1970
  %v2939 = vunpack.c.l.b16 %v1971
  %v2940 = vunpack.c.l.b16 %v1972
  %v2941 = vunpack.c.l.b16 %v1973
  %v2942 = vunpack.c.l.b16 %v1974
  %v2943 = vunpack.c.l.b16 %v1975
  %v2944 = vunpack.c.l.b16 %v1976
  %v2945 = vunpack.c.l.b16 %v1977
  %v2946 = vunpack.c.l.b16 %v1978
  %v2947 = vunpack.c.l.b16 %v1979
  %v2948 = vunpack.c.l.b16 %v1980
  %v2949 = vunpack.c.l.b16 %v1981
  %v2950 = vunpack.c.l.b16 %v1982
  %v2951 = vunpack.c.l.b16 %v1983
  %v2952 = vpack.c.b16 %v2929, %v2928
  %v2953 = vpack.c.b16 %v2931, %v2930
  %v2954 = vpack.c.b16 %v2933, %v2932
  %v2955 = vpack.c.b16 %v2935, %v2934
  %v2956 = vpack.c.b16 %v2937, %v2936
  %v2957 = vpack.c.b16 %v2939, %v2938
  %v2958 = vpack.c.b16 %v2941, %v2940
  %v2959 = vpack.c.b16 %v2943, %v2942
  %v2960 = vpack.c.b16 %v2945, %v2944
  %v2961 = vpack.c.b16 %v2947, %v2946
  %v2962 = vpack.c.b16 %v2949, %v2948
  %v2963 = vpack.c.b16 %v2951, %v2950
  %v2977 = vsel %vm24, %v2294, 0
  %v2980 = vsel %vm24, %v2312, 0
  %v2983 = vsel %vm24, %v2330, 0
  %v2986 = vsel %vm24, %v2348, 0
  %v2989 = vsel %vm24, %v2366, 0
  %v2992 = vsel %vm24, %v2384, 0
  %v2995 = vsel %vm24, %v2402, 0
  %v2998 = vsel %vm24, %v2420, 0
  %v3001 = vsel %vm24, %v2438, 0
  %v3004 = vsel %vm24, %v2456, 0
  %v3007 = vsel %vm24, %v2474, 0
  %v3010 = vsel %vm24, %v2492, 0
  %v3013 = vsel %vm24, %v2510, 0
  %v3016 = vsel %vm24, %v2528, 0
  %v3019 = vsel %vm24, %v2546, 0
  %v3022 = vsel %vm24, %v2564, 0
  %v3025 = vsel %vm24, %v2582, 0
  %v3028 = vsel %vm24, %v2600, 0
  %v3031 = vsel %vm24, %v2618, 0
  %v3034 = vsel %vm24, %v2636, 0
  %v3037 = vsel %vm24, %v2654, 0
  %v3040 = vsel %vm24, %v2672, 0
  %v3043 = vsel %vm24, %v2690, 0
  %v3046 = vsel %vm24, %v2708, 0
  %v3049 = vsel %vm24, %v2726, 0
  %v3052 = vsel %vm24, %v2744, 0
  %v3055 = vsel %vm24, %v2762, 0
  %v3058 = vsel %vm24, %v2780, 0
  %v3061 = vsel %vm24, %v2798, 0
  %v3064 = vsel %vm24, %v2816, 0
  %v3067 = vsel %vm24, %v2834, 0
  %v3070 = vsel %vm24, %v2852, 0
  %v3073 = vsel %vm24, %v2870, 0
  %3075 = vmatprep.subr.bf16.mxu0 0
  %3076 = vmatpush1.bf16.msra.mxu0 %v2959
  %3077 = vmatprep.subr.bf16.mxu0 0
  %3078 = vmatpush1.bf16.msra.mxu0 %v2958
  %3079 = vmatprep.subr.bf16.mxu0 0
  %3080 = vmatpush1.bf16.msra.mxu0 %v2957
  %3081 = vmatprep.subr.bf16.mxu0 0
  %3082 = vmatpush1.bf16.msra.mxu0 %v2956
  %3083 = vmatprep.subr.bf16.mxu0 0
  %3084 = vmatpush1.bf16.msra.mxu0 %v2955
  %3085 = vmatprep.subr.bf16.mxu0 0
  %3086 = vmatpush1.bf16.msra.mxu0 %v2954
  %3087 = vmatprep.subr.bf16.mxu0 0
  %3088 = vmatpush1.bf16.msra.mxu0 %v2953
  %3089 = vmatprep.subr.bf16.mxu0 0
  %3090 = vmatpush1.bf16.msra.mxu0 %v2952
  %3091 = vmatprep.subr.bf16.mxu0 0
  %3092 = vmatpush2.bf16.msra.mxu0 0
  %3093 = vmatprep.subr.bf16.mxu0 0
  %3094 = vmatpush2.bf16.msra.mxu0 0
  %3095 = vmatprep.subr.bf16.mxu0 0
  %3096 = vmatpush2.bf16.msra.mxu0 0
  %3097 = vmatprep.subr.bf16.mxu0 0
  %3098 = vmatpush2.bf16.msra.mxu0 0
  %3099 = vmatprep.subr.bf16.mxu0 0
  %3100 = vmatpush2.bf16.msra.mxu0 %v2963
  %3101 = vmatprep.subr.bf16.mxu0 0
  %3102 = vmatpush2.bf16.msra.mxu0 %v2962
  %3103 = vmatprep.subr.bf16.mxu0 0
  %3104 = vmatpush2.bf16.msra.mxu0 %v2961
  %3105 = vmatprep.subr.bf16.mxu0 0
  %3106 = vmatpush2.bf16.msra.mxu0 %v2960
  %3107 = vmatprep.mubr.bf16.mxu0 %v2977
  %3108 = vmatmul.mubr.bf16.gmra.mxu0 %v2277
  %v3109 = vpop.f32.mrf.mxu0
  %v3110 = vadd.f32 %v1989, %v3109
  %v3111 = vpop.f32.mrf.mxu0
  %v3112 = vpop.f32.mrf.mxu0
  %v3113 = vadd.f32 %v1989, %v3112
  %v3114 = vpop.f32.mrf.mxu0
  %3115 = vmatprep.mubr.bf16.mxu0 %v2980
  %3116 = vmatmul.mubr.bf16.gmra.mxu0 %v2303
  %v3117 = vpop.f32.mrf.mxu0
  %v3118 = vadd.f32 %v1989, %v3117
  %v3119 = vpop.f32.mrf.mxu0
  %v3120 = vpop.f32.mrf.mxu0
  %v3121 = vadd.f32 %v1989, %v3120
  %v3122 = vpop.f32.mrf.mxu0
  %3123 = vmatprep.mubr.bf16.mxu0 %v2983
  %3124 = vmatmul.mubr.bf16.gmra.mxu0 %v2321
  %v3125 = vpop.f32.mrf.mxu0
  %v3126 = vadd.f32 %v1989, %v3125
  %v3127 = vpop.f32.mrf.mxu0
  %v3128 = vpop.f32.mrf.mxu0
  %v3129 = vadd.f32 %v1989, %v3128
  %v3130 = vpop.f32.mrf.mxu0
  %3131 = vmatprep.mubr.bf16.mxu0 %v2986
  %3132 = vmatmul.mubr.bf16.gmra.mxu0 %v2339
  %v3133 = vpop.f32.mrf.mxu0
  %v3134 = vadd.f32 %v1989, %v3133
  %v3135 = vpop.f32.mrf.mxu0
  %v3136 = vpop.f32.mrf.mxu0
  %v3137 = vadd.f32 %v1989, %v3136
  %v3138 = vpop.f32.mrf.mxu0
  %3139 = vmatprep.mubr.bf16.mxu0 %v2989
  %3140 = vmatmul.mubr.bf16.gmra.mxu0 %v2357
  %v3141 = vpop.f32.mrf.mxu0
  %v3142 = vadd.f32 %v1989, %v3141
  %v3143 = vpop.f32.mrf.mxu0
  %v3144 = vpop.f32.mrf.mxu0
  %v3145 = vadd.f32 %v1989, %v3144
  %v3146 = vpop.f32.mrf.mxu0
  %3147 = vmatprep.mubr.bf16.mxu0 %v2992
  %3148 = vmatmul.mubr.bf16.gmra.mxu0 %v2375
  %v3149 = vpop.f32.mrf.mxu0
  %v3150 = vadd.f32 %v1989, %v3149
  %v3151 = vpop.f32.mrf.mxu0
  %v3152 = vpop.f32.mrf.mxu0
  %v3153 = vadd.f32 %v1989, %v3152
  %v3154 = vpop.f32.mrf.mxu0
  %3155 = vmatprep.mubr.bf16.mxu0 %v2995
  %3156 = vmatmul.mubr.bf16.gmra.mxu0 %v2393
  %v3157 = vpop.f32.mrf.mxu0
  %v3158 = vadd.f32 %v1989, %v3157
  %v3159 = vpop.f32.mrf.mxu0
  %v3160 = vpop.f32.mrf.mxu0
  %v3161 = vadd.f32 %v1989, %v3160
  %v3162 = vpop.f32.mrf.mxu0
  %3163 = vmatprep.mubr.bf16.mxu0 %v2998
  %3164 = vmatmul.mubr.bf16.gmra.mxu0 %v2411
  %v3165 = vpop.f32.mrf.mxu0
  %v3166 = vadd.f32 %v1989, %v3165
  %v3167 = vpop.f32.mrf.mxu0
  %v3168 = vpop.f32.mrf.mxu0
  %v3169 = vadd.f32 %v1989, %v3168
  %v3170 = vpop.f32.mrf.mxu0
  %3171 = vmatprep.mubr.bf16.mxu0 %v3001
  %3172 = vmatmul.mubr.bf16.gmra.mxu0 %v2429
  %v3173 = vpop.f32.mrf.mxu0
  %v3174 = vadd.f32 %v1989, %v3173
  %v3175 = vpop.f32.mrf.mxu0
  %v3176 = vpop.f32.mrf.mxu0
  %v3177 = vadd.f32 %v1989, %v3176
  %v3178 = vpop.f32.mrf.mxu0
  %3179 = vmatprep.mubr.bf16.mxu0 %v3004
  %3180 = vmatmul.mubr.bf16.gmra.mxu0 %v2447
  %v3181 = vpop.f32.mrf.mxu0
  %v3182 = vadd.f32 %v1989, %v3181
  %v3183 = vpop.f32.mrf.mxu0
  %v3184 = vpop.f32.mrf.mxu0
  %v3185 = vadd.f32 %v1989, %v3184
  %v3186 = vpop.f32.mrf.mxu0
  %3187 = vmatprep.mubr.bf16.mxu0 %v3007
  %3188 = vmatmul.mubr.bf16.gmra.mxu0 %v2465
  %v3189 = vpop.f32.mrf.mxu0
  %v3190 = vadd.f32 %v1989, %v3189
  %v3191 = vpop.f32.mrf.mxu0
  %v3192 = vpop.f32.mrf.mxu0
  %v3193 = vadd.f32 %v1989, %v3192
  %v3194 = vpop.f32.mrf.mxu0
  %3195 = vmatprep.mubr.bf16.mxu0 %v3010
  %3196 = vmatmul.mubr.bf16.gmra.mxu0 %v2483
  %v3197 = vpop.f32.mrf.mxu0
  %v3198 = vadd.f32 %v1989, %v3197
  %v3199 = vpop.f32.mrf.mxu0
  %v3200 = vpop.f32.mrf.mxu0
  %v3201 = vadd.f32 %v1989, %v3200
  %v3202 = vpop.f32.mrf.mxu0
  %3203 = vmatprep.mubr.bf16.mxu0 %v3013
  %3204 = vmatmul.mubr.bf16.gmra.mxu0 %v2501
  %v3205 = vpop.f32.mrf.mxu0
  %v3206 = vadd.f32 %v1989, %v3205
  %v3207 = vpop.f32.mrf.mxu0
  %v3208 = vpop.f32.mrf.mxu0
  %v3209 = vadd.f32 %v1989, %v3208
  %v3210 = vpop.f32.mrf.mxu0
  %3211 = vmatprep.mubr.bf16.mxu0 %v3016
  %3212 = vmatmul.mubr.bf16.gmra.mxu0 %v2519
  %v3213 = vpop.f32.mrf.mxu0
  %v3214 = vadd.f32 %v1989, %v3213
  %v3215 = vpop.f32.mrf.mxu0
  %v3216 = vpop.f32.mrf.mxu0
  %v3217 = vadd.f32 %v1989, %v3216
  %v3218 = vpop.f32.mrf.mxu0
  %3219 = vmatprep.mubr.bf16.mxu0 %v3019
  %3220 = vmatmul.mubr.bf16.gmra.mxu0 %v2537
  %v3221 = vpop.f32.mrf.mxu0
  %v3222 = vadd.f32 %v1989, %v3221
  %v3223 = vpop.f32.mrf.mxu0
  %v3224 = vpop.f32.mrf.mxu0
  %v3225 = vadd.f32 %v1989, %v3224
  %v3226 = vpop.f32.mrf.mxu0
  %3227 = vmatprep.mubr.bf16.mxu0 %v3022
  %3228 = vmatmul.mubr.bf16.gmra.mxu0 %v2555
  %v3229 = vpop.f32.mrf.mxu0
  %v3230 = vadd.f32 %v1989, %v3229
  %v3231 = vpop.f32.mrf.mxu0
  %v3232 = vpop.f32.mrf.mxu0
  %v3233 = vadd.f32 %v1989, %v3232
  %v3234 = vpop.f32.mrf.mxu0
  %3235 = vmatprep.mubr.bf16.mxu0 %v3025
  %3236 = vmatmul.mubr.bf16.gmra.mxu0 %v2573
  %v3237 = vpop.f32.mrf.mxu0
  %v3238 = vadd.f32 %v1989, %v3237
  %v3239 = vpop.f32.mrf.mxu0
  %v3240 = vpop.f32.mrf.mxu0
  %v3241 = vadd.f32 %v1989, %v3240
  %v3242 = vpop.f32.mrf.mxu0
  %3243 = vmatprep.mubr.bf16.mxu0 %v3028
  %3244 = vmatmul.mubr.bf16.gmra.mxu0 %v2591
  %v3245 = vpop.f32.mrf.mxu0
  %v3246 = vadd.f32 %v1989, %v3245
  %v3247 = vpop.f32.mrf.mxu0
  %v3248 = vpop.f32.mrf.mxu0
  %v3249 = vadd.f32 %v1989, %v3248
  %v3250 = vpop.f32.mrf.mxu0
  %3251 = vmatprep.mubr.bf16.mxu0 %v3031
  %3252 = vmatmul.mubr.bf16.gmra.mxu0 %v2609
  %v3253 = vpop.f32.mrf.mxu0
  %v3254 = vadd.f32 %v1989, %v3253
  %v3255 = vpop.f32.mrf.mxu0
  %v3256 = vpop.f32.mrf.mxu0
  %v3257 = vadd.f32 %v1989, %v3256
  %v3258 = vpop.f32.mrf.mxu0
  %3259 = vmatprep.mubr.bf16.mxu0 %v3034
  %3260 = vmatmul.mubr.bf16.gmra.mxu0 %v2627
  %v3261 = vpop.f32.mrf.mxu0
  %v3262 = vadd.f32 %v1989, %v3261
  %v3263 = vpop.f32.mrf.mxu0
  %v3264 = vpop.f32.mrf.mxu0
  %v3265 = vadd.f32 %v1989, %v3264
  %v3266 = vpop.f32.mrf.mxu0
  %3267 = vmatprep.mubr.bf16.mxu0 %v3037
  %3268 = vmatmul.mubr.bf16.gmra.mxu0 %v2645
  %v3269 = vpop.f32.mrf.mxu0
  %v3270 = vadd.f32 %v1989, %v3269
  %v3271 = vpop.f32.mrf.mxu0
  %v3272 = vpop.f32.mrf.mxu0
  %v3273 = vadd.f32 %v1989, %v3272
  %v3274 = vpop.f32.mrf.mxu0
  %3275 = vmatprep.mubr.bf16.mxu0 %v3040
  %3276 = vmatmul.mubr.bf16.gmra.mxu0 %v2663
  %v3277 = vpop.f32.mrf.mxu0
  %v3278 = vadd.f32 %v1989, %v3277
  %v3279 = vpop.f32.mrf.mxu0
  %v3280 = vpop.f32.mrf.mxu0
  %v3281 = vadd.f32 %v1989, %v3280
  %v3282 = vpop.f32.mrf.mxu0
  %3283 = vmatprep.mubr.bf16.mxu0 %v3043
  %3284 = vmatmul.mubr.bf16.gmra.mxu0 %v2681
  %v3285 = vpop.f32.mrf.mxu0
  %v3286 = vadd.f32 %v1989, %v3285
  %v3287 = vpop.f32.mrf.mxu0
  %v3288 = vpop.f32.mrf.mxu0
  %v3289 = vadd.f32 %v1989, %v3288
  %v3290 = vpop.f32.mrf.mxu0
  %3291 = vmatprep.mubr.bf16.mxu0 %v3046
  %3292 = vmatmul.mubr.bf16.gmra.mxu0 %v2699
  %v3293 = vpop.f32.mrf.mxu0
  %v3294 = vadd.f32 %v1989, %v3293
  %v3295 = vpop.f32.mrf.mxu0
  %v3296 = vpop.f32.mrf.mxu0
  %v3297 = vadd.f32 %v1989, %v3296
  %v3298 = vpop.f32.mrf.mxu0
  %3299 = vmatprep.mubr.bf16.mxu0 %v3049
  %3300 = vmatmul.mubr.bf16.gmra.mxu0 %v2717
  %v3301 = vpop.f32.mrf.mxu0
  %v3302 = vadd.f32 %v1989, %v3301
  %v3303 = vpop.f32.mrf.mxu0
  %v3304 = vpop.f32.mrf.mxu0
  %v3305 = vadd.f32 %v1989, %v3304
  %v3306 = vpop.f32.mrf.mxu0
  %3307 = vmatprep.mubr.bf16.mxu0 %v3052
  %3308 = vmatmul.mubr.bf16.gmra.mxu0 %v2735
  %v3309 = vpop.f32.mrf.mxu0
  %v3310 = vadd.f32 %v1989, %v3309
  %v3311 = vpop.f32.mrf.mxu0
  %v3312 = vpop.f32.mrf.mxu0
  %v3313 = vadd.f32 %v1989, %v3312
  %v3314 = vpop.f32.mrf.mxu0
  %3315 = vmatprep.mubr.bf16.mxu0 %v3055
  %3316 = vmatmul.mubr.bf16.gmra.mxu0 %v2753
  %v3317 = vpop.f32.mrf.mxu0
  %v3318 = vadd.f32 %v1989, %v3317
  %v3319 = vpop.f32.mrf.mxu0
  %v3320 = vpop.f32.mrf.mxu0
  %v3321 = vadd.f32 %v1989, %v3320
  %v3322 = vpop.f32.mrf.mxu0
  %3323 = vmatprep.mubr.bf16.mxu0 %v3058
  %3324 = vmatmul.mubr.bf16.gmra.mxu0 %v2771
  %v3325 = vpop.f32.mrf.mxu0
  %v3326 = vadd.f32 %v1989, %v3325
  %v3327 = vpop.f32.mrf.mxu0
  %v3328 = vpop.f32.mrf.mxu0
  %v3329 = vadd.f32 %v1989, %v3328
  %v3330 = vpop.f32.mrf.mxu0
  %3331 = vmatprep.mubr.bf16.mxu0 %v3061
  %3332 = vmatmul.mubr.bf16.gmra.mxu0 %v2789
  %v3333 = vpop.f32.mrf.mxu0
  %v3334 = vadd.f32 %v1989, %v3333
  %v3335 = vpop.f32.mrf.mxu0
  %v3336 = vpop.f32.mrf.mxu0
  %v3337 = vadd.f32 %v1989, %v3336
  %v3338 = vpop.f32.mrf.mxu0
  %3339 = vmatprep.mubr.bf16.mxu0 %v3064
  %3340 = vmatmul.mubr.bf16.gmra.mxu0 %v2807
  %v3341 = vpop.f32.mrf.mxu0
  %v3342 = vadd.f32 %v1989, %v3341
  %v3343 = vpop.f32.mrf.mxu0
  %v3344 = vpop.f32.mrf.mxu0
  %v3345 = vadd.f32 %v1989, %v3344
  %v3346 = vpop.f32.mrf.mxu0
  %3347 = vmatprep.mubr.bf16.mxu0 %v3067
  %3348 = vmatmul.mubr.bf16.gmra.mxu0 %v2825
  %v3349 = vpop.f32.mrf.mxu0
  %v3350 = vadd.f32 %v1989, %v3349
  %v3351 = vpop.f32.mrf.mxu0
  %v3352 = vpop.f32.mrf.mxu0
  %v3353 = vadd.f32 %v1989, %v3352
  %v3354 = vpop.f32.mrf.mxu0
  %3355 = vmatprep.mubr.bf16.mxu0 %v3070
  %3356 = vmatmul.mubr.bf16.gmra.mxu0 %v2843
  %v3357 = vpop.f32.mrf.mxu0
  %v3358 = vadd.f32 %v1989, %v3357
  %v3359 = vpop.f32.mrf.mxu0
  %v3360 = vpop.f32.mrf.mxu0
  %v3361 = vadd.f32 %v1989, %v3360
  %v3362 = vpop.f32.mrf.mxu0
  %3363 = vmatprep.mubr.bf16.mxu0 %v3073
  %3364 = vmatmul.mubr.bf16.gmra.mxu0 %v2861
  %v3365 = vpop.f32.mrf.mxu0
  %v3366 = vadd.f32 %v1989, %v3365
  %v3367 = vpop.f32.mrf.mxu0
  %v3368 = vpop.f32.mrf.mxu0
  %v3369 = vadd.f32 %v1989, %v3368
  %v3370 = vpop.f32.mrf.mxu0
  %3371 = vdwg.mxu0
  %3372 = vst.msk [vmem:[#allocation2 + $0x20] sm:$0xff] %vm24, %v3110
  %3373 = vst.msk [vmem:[#allocation2 + $0x28] sm:$0xff] %vm24, %v3113
  %3374 = vst.msk [vmem:[#allocation2 + $0x30] sm:$0xff] %vm24, %v3118
  %3375 = vst.msk [vmem:[#allocation2 + $0x38] sm:$0xff] %vm24, %v3121
  %3376 = vst.msk [vmem:[#allocation2 + $0x40] sm:$0xff] %vm24, %v3126
  %3377 = vst.msk [vmem:[#allocation2 + $0x48] sm:$0xff] %vm24, %v3129
  %3378 = vst.msk [vmem:[#allocation2 + $0x50] sm:$0xff] %vm24, %v3134
  %3379 = vst.msk [vmem:[#allocation2 + $0x58] sm:$0xff] %vm24, %v3137
  %3380 = vst.msk [vmem:[#allocation2 + $0x60] sm:$0xff] %vm24, %v3142
  %3381 = vst.msk [vmem:[#allocation2 + $0x68] sm:$0xff] %vm24, %v3145
  %3382 = vst.msk [vmem:[#allocation2 + $0x70] sm:$0xff] %vm24, %v3150
  %3383 = vst.msk [vmem:[#allocation2 + $0x78] sm:$0xff] %vm24, %v3153
  %3384 = vst.msk [vmem:[#allocation2 + $0x80] sm:$0xff] %vm24, %v3158
  %3385 = vst.msk [vmem:[#allocation2 + $0x88] sm:$0xff] %vm24, %v3161
  %3386 = vst.msk [vmem:[#allocation2 + $0x90] sm:$0xff] %vm24, %v3166
  %3387 = vst.msk [vmem:[#allocation2 + $0x98] sm:$0xff] %vm24, %v3169
  %3388 = vst.msk [vmem:[#allocation2 + $0xa0] sm:$0xff] %vm24, %v3174
  %3389 = vst.msk [vmem:[#allocation2 + $0xa8] sm:$0xff] %vm24, %v3177
  %3390 = vst.msk [vmem:[#allocation2 + $0xb0] sm:$0xff] %vm24, %v3182
  %3391 = vst.msk [vmem:[#allocation2 + $0xb8] sm:$0xff] %vm24, %v3185
  %3392 = vst.msk [vmem:[#allocation2 + $0xc0] sm:$0xff] %vm24, %v3190
  %3393 = vst.msk [vmem:[#allocation2 + $0xc8] sm:$0xff] %vm24, %v3193
  %3394 = vst.msk [vmem:[#allocation2 + $0xd0] sm:$0xff] %vm24, %v3198
  %3395 = vst.msk [vmem:[#allocation2 + $0xd8] sm:$0xff] %vm24, %v3201
  %3396 = vst.msk [vmem:[#allocation2 + $0xe0] sm:$0xff] %vm24, %v3206
  %3397 = vst.msk [vmem:[#allocation2 + $0xe8] sm:$0xff] %vm24, %v3209
  %3398 = vst.msk [vmem:[#allocation2 + $0xf0] sm:$0xff] %vm24, %v3214
  %3399 = vst.msk [vmem:[#allocation2 + $0xf8] sm:$0xff] %vm24, %v3217
  %3400 = vst.msk [vmem:[#allocation2 + $0x100] sm:$0xff] %vm24, %v3222
  %3401 = vst.msk [vmem:[#allocation2 + $0x108] sm:$0xff] %vm24, %v3225
  %3402 = vst.msk [vmem:[#allocation2 + $0x110] sm:$0xff] %vm24, %v3230
  %3403 = vst.msk [vmem:[#allocation2 + $0x118] sm:$0xff] %vm24, %v3233
  %3404 = vst.msk [vmem:[#allocation2 + $0x120] sm:$0xff] %vm24, %v3238
  %3405 = vst.msk [vmem:[#allocation2 + $0x128] sm:$0xff] %vm24, %v3241
  %3406 = vst.msk [vmem:[#allocation2 + $0x130] sm:$0xff] %vm24, %v3246
  %3407 = vst.msk [vmem:[#allocation2 + $0x138] sm:$0xff] %vm24, %v3249
  %3408 = vst.msk [vmem:[#allocation2 + $0x140] sm:$0xff] %vm24, %v3254
  %3409 = vst.msk [vmem:[#allocation2 + $0x148] sm:$0xff] %vm24, %v3257
  %3410 = vst.msk [vmem:[#allocation2 + $0x150] sm:$0xff] %vm24, %v3262
  %3411 = vst.msk [vmem:[#allocation2 + $0x158] sm:$0xff] %vm24, %v3265
  %3412 = vst.msk [vmem:[#allocation2 + $0x160] sm:$0xff] %vm24, %v3270
  %3413 = vst.msk [vmem:[#allocation2 + $0x168] sm:$0xff] %vm24, %v3273
  %3414 = vst.msk [vmem:[#allocation2 + $0x170] sm:$0xff] %vm24, %v3278
  %3415 = vst.msk [vmem:[#allocation2 + $0x178] sm:$0xff] %vm24, %v3281
  %3416 = vst.msk [vmem:[#allocation2 + $0x180] sm:$0xff] %vm24, %v3286
  %3417 = vst.msk [vmem:[#allocation2 + $0x188] sm:$0xff] %vm24, %v3289
  %3418 = vst.msk [vmem:[#allocation2 + $0x190] sm:$0xff] %vm24, %v3294
  %3419 = vst.msk [vmem:[#allocation2 + $0x198] sm:$0xff] %vm24, %v3297
  %3420 = vst.msk [vmem:[#allocation2 + $0x1a0] sm:$0xff] %vm24, %v3302
  %3421 = vst.msk [vmem:[#allocation2 + $0x1a8] sm:$0xff] %vm24, %v3305
  %3422 = vst.msk [vmem:[#allocation2 + $0x1b0] sm:$0xff] %vm24, %v3310
  %3423 = vst.msk [vmem:[#allocation2 + $0x1b8] sm:$0xff] %vm24, %v3313
  %3424 = vst.msk [vmem:[#allocation2 + $0x1c0] sm:$0xff] %vm24, %v3318
  %3425 = vst.msk [vmem:[#allocation2 + $0x1c8] sm:$0xff] %vm24, %v3321
  %3426 = vst.msk [vmem:[#allocation2 + $0x1d0] sm:$0xff] %vm24, %v3326
  %3427 = vst.msk [vmem:[#allocation2 + $0x1d8] sm:$0xff] %vm24, %v3329
  %3428 = vst.msk [vmem:[#allocation2 + $0x1e0] sm:$0xff] %vm24, %v3334
  %3429 = vst.msk [vmem:[#allocation2 + $0x1e8] sm:$0xff] %vm24, %v3337
  %3430 = vst.msk [vmem:[#allocation2 + $0x1f0] sm:$0xff] %vm24, %v3342
  %3431 = vst.msk [vmem:[#allocation2 + $0x1f8] sm:$0xff] %vm24, %v3345
  %3432 = vst.msk [vmem:[#allocation2 + $0x200] sm:$0xff] %vm24, %v3350
  %3433 = vst.msk [vmem:[#allocation2 + $0x208] sm:$0xff] %vm24, %v3353
  %3434 = vst.msk [vmem:[#allocation2 + $0x210] sm:$0xff] %vm24, %v3358
  %3435 = vst.msk [vmem:[#allocation2 + $0x218] sm:$0xff] %vm24, %v3361
  %3436 = vst.msk [vmem:[#allocation2 + $0x220] sm:$0xff] %vm24, %v3366
  %3437 = vst.msk [vmem:[#allocation2 + $0x228] sm:$0xff] %vm24, %v3369
  %v3438 = vld [vmem:[#allocation2 + $0x20] sm:$0xff]
  %v3439 = vld [vmem:[#allocation2 + $0x28] sm:$0xff]
  %v3440 = vld [vmem:[#allocation2 + $0x30] sm:$0xff]
  %v3441 = vld [vmem:[#allocation2 + $0x38] sm:$0xff]
  %v3442 = vld [vmem:[#allocation2 + $0x40] sm:$0xff]
  %v3443 = vld [vmem:[#allocation2 + $0x48] sm:$0xff]
  %v3444 = vld [vmem:[#allocation2 + $0x50] sm:$0xff]
  %v3445 = vld [vmem:[#allocation2 + $0x58] sm:$0xff]
  %v3446 = vld [vmem:[#allocation2 + $0x60] sm:$0xff]
  %v3447 = vld [vmem:[#allocation2 + $0x68] sm:$0xff]
  %v3448 = vld [vmem:[#allocation2 + $0x70] sm:$0xff]
  %v3449 = vld [vmem:[#allocation2 + $0x78] sm:$0xff]
  %v3450 = vld [vmem:[#allocation2 + $0x80] sm:$0xff]
  %v3451 = vld [vmem:[#allocation2 + $0x88] sm:$0xff]
  %v3452 = vld [vmem:[#allocation2 + $0x90] sm:$0xff]
  %v3453 = vld [vmem:[#allocation2 + $0x98] sm:$0xff]
  %v3454 = vld [vmem:[#allocation2 + $0xa0] sm:$0xff]
  %v3455 = vld [vmem:[#allocation2 + $0xa8] sm:$0xff]
  %v3456 = vld [vmem:[#allocation2 + $0xb0] sm:$0xff]
  %v3457 = vld [vmem:[#allocation2 + $0xb8] sm:$0xff]
  %v3458 = vld [vmem:[#allocation2 + $0xc0] sm:$0xff]
  %v3459 = vld [vmem:[#allocation2 + $0xc8] sm:$0xff]
  %v3460 = vld [vmem:[#allocation2 + $0xd0] sm:$0xff]
  %v3461 = vld [vmem:[#allocation2 + $0xd8] sm:$0xff]
  %v3462 = vld [vmem:[#allocation2 + $0xe0] sm:$0xff]
  %v3463 = vld [vmem:[#allocation2 + $0xe8] sm:$0xff]
  %v3464 = vld [vmem:[#allocation2 + $0xf0] sm:$0xff]
  %v3465 = vld [vmem:[#allocation2 + $0xf8] sm:$0xff]
  %v3466 = vld [vmem:[#allocation2 + $0x100] sm:$0xff]
  %v3467 = vld [vmem:[#allocation2 + $0x108] sm:$0xff]
  %v3468 = vld [vmem:[#allocation2 + $0x110] sm:$0xff]
  %v3469 = vld [vmem:[#allocation2 + $0x118] sm:$0xff]
  %v3470 = vld [vmem:[#allocation2 + $0x120] sm:$0xff]
  %v3471 = vld [vmem:[#allocation2 + $0x128] sm:$0xff]
  %v3472 = vld [vmem:[#allocation2 + $0x130] sm:$0xff]
  %v3473 = vld [vmem:[#allocation2 + $0x138] sm:$0xff]
  %v3474 = vld [vmem:[#allocation2 + $0x140] sm:$0xff]
  %v3475 = vld [vmem:[#allocation2 + $0x148] sm:$0xff]
  %v3476 = vld [vmem:[#allocation2 + $0x150] sm:$0xff]
  %v3477 = vld [vmem:[#allocation2 + $0x158] sm:$0xff]
  %v3478 = vld [vmem:[#allocation2 + $0x160] sm:$0xff]
  %v3479 = vld [vmem:[#allocation2 + $0x168] sm:$0xff]
  %v3480 = vld [vmem:[#allocation2 + $0x170] sm:$0xff]
  %v3481 = vld [vmem:[#allocation2 + $0x178] sm:$0xff]
  %v3482 = vld [vmem:[#allocation2 + $0x180] sm:$0xff]
  %v3483 = vld [vmem:[#allocation2 + $0x188] sm:$0xff]
  %v3484 = vld [vmem:[#allocation2 + $0x190] sm:$0xff]
  %v3485 = vld [vmem:[#allocation2 + $0x198] sm:$0xff]
  %v3486 = vld [vmem:[#allocation2 + $0x1a0] sm:$0xff]
  %v3487 = vld [vmem:[#allocation2 + $0x1a8] sm:$0xff]
  %v3488 = vld [vmem:[#allocation2 + $0x1b0] sm:$0xff]
  %v3489 = vld [vmem:[#allocation2 + $0x1b8] sm:$0xff]
  %v3490 = vld [vmem:[#allocation2 + $0x1c0] sm:$0xff]
  %v3491 = vld [vmem:[#allocation2 + $0x1c8] sm:$0xff]
  %v3492 = vld [vmem:[#allocation2 + $0x1d0] sm:$0xff]
  %v3493 = vld [vmem:[#allocation2 + $0x1d8] sm:$0xff]
  %v3494 = vld [vmem:[#allocation2 + $0x1e0] sm:$0xff]
  %v3495 = vld [vmem:[#allocation2 + $0x1e8] sm:$0xff]
  %v3496 = vld [vmem:[#allocation2 + $0x1f0] sm:$0xff]
  %v3497 = vld [vmem:[#allocation2 + $0x1f8] sm:$0xff]
  %v3498 = vld [vmem:[#allocation2 + $0x200] sm:$0xff]
  %v3499 = vld [vmem:[#allocation2 + $0x208] sm:$0xff]
  %v3500 = vld [vmem:[#allocation2 + $0x210] sm:$0xff]
  %v3501 = vld [vmem:[#allocation2 + $0x218] sm:$0xff]
  %v3502 = vld [vmem:[#allocation2 + $0x220] sm:$0xff]
  %v3503 = vld [vmem:[#allocation2 + $0x228] sm:$0xff]
  %v3504 = vld [vmem:[#allocation3 + $0x18] sm:$0x88]
  %v3505 = vld [vmem:[#allocation3 + $0x20] sm:$0xff]
  %v3506 = vld [vmem:[#allocation3 + $0x28] sm:$0xff]
  %v3507 = vld [vmem:[#allocation3 + $0x30] sm:$0xff]
  %v3508 = vld [vmem:[#allocation3 + $0x38] sm:$0xff]
  %v3509 = vld [vmem:[#allocation3 + $0x40] sm:$0xff]
  %v3510 = vld [vmem:[#allocation3 + $0x48] sm:$0xff]
  %v3511 = vld [vmem:[#allocation3 + $0x50] sm:$0xff]
  %v3512 = vld [vmem:[#allocation3 + $0x58] sm:$0xff]
  %v3513 = vld [vmem:[#allocation3 + $0x60] sm:$0xff]
  %v3514 = vld [vmem:[#allocation3 + $0x68] sm:$0xff]
  %v3515 = vld [vmem:[#allocation3 + $0x70] sm:$0xff]
  %v3516 = vld [vmem:[#allocation3 + $0x78] sm:$0xff]
  %v3517 = vld [vmem:[#allocation3 + $0x80] sm:$0xff]
  %v3518 = vld [vmem:[#allocation3 + $0x88] sm:$0xff]
  %v3519 = vld [vmem:[#allocation3 + $0x90] sm:$0xff]
  %v3520 = vld [vmem:[#allocation3 + $0x98] sm:$0xff]
  %v3521 = vld [vmem:[#allocation3 + $0xa0] sm:$0xff]
  %v3522 = vld [vmem:[#allocation3 + $0xa8] sm:$0xff]
  %v3523 = vld [vmem:[#allocation3 + $0xb0] sm:$0xff]
  %v3524 = vld [vmem:[#allocation3 + $0xb8] sm:$0xff]
  %v3525 = vld [vmem:[#allocation3 + $0xc0] sm:$0xff]
  %v3526 = vld [vmem:[#allocation3 + $0xc8] sm:$0xff]
  %v3527 = vld [vmem:[#allocation3 + $0xd0] sm:$0xff]
  %v3528 = vld [vmem:[#allocation3 + $0xd8] sm:$0xff]
  %v3529 = vld [vmem:[#allocation3 + $0xe0] sm:$0xff]
  %v3530 = vld [vmem:[#allocation3 + $0xe8] sm:$0xff]
  %v3531 = vld [vmem:[#allocation3 + $0xf0] sm:$0xff]
  %v3532 = vld [vmem:[#allocation3 + $0xf8] sm:$0xff]
  %v3533 = vld [vmem:[#allocation3 + $0x100] sm:$0xff]
  %v3534 = vld [vmem:[#allocation3 + $0x108] sm:$0xff]
  %v3535 = vld [vmem:[#allocation3 + $0x110] sm:$0xff]
  %v3536 = vld [vmem:[#allocation3 + $0x118] sm:$0xff]
  %v3537 = vld [vmem:[#allocation3 + $0x120] sm:$0xff]
  %v3538 = vld [vmem:[#allocation3 + $0x128] sm:$0xff]
  %v3539 = vld [vmem:[#allocation3 + $0x130] sm:$0xff]
  %v3540 = vld [vmem:[#allocation3 + $0x138] sm:$0xff]
  %v3541 = vld [vmem:[#allocation3 + $0x140] sm:$0xff]
  %v3542 = vld [vmem:[#allocation3 + $0x148] sm:$0xff]
  %v3543 = vld [vmem:[#allocation3 + $0x150] sm:$0xff]
  %v3544 = vld [vmem:[#allocation3 + $0x158] sm:$0xff]
  %v3545 = vld [vmem:[#allocation3 + $0x160] sm:$0xff]
  %v3546 = vld [vmem:[#allocation3 + $0x168] sm:$0xff]
  %v3547 = vld [vmem:[#allocation3 + $0x170] sm:$0xff]
  %v3548 = vld [vmem:[#allocation3 + $0x178] sm:$0xff]
  %v3549 = vld [vmem:[#allocation3 + $0x180] sm:$0xff]
  %v3550 = vld [vmem:[#allocation3 + $0x188] sm:$0xff]
  %v3551 = vld [vmem:[#allocation3 + $0x190] sm:$0xff]
  %v3552 = vld [vmem:[#allocation3 + $0x198] sm:$0xff]
  %v3553 = vld [vmem:[#allocation3 + $0x1a0] sm:$0xff]
  %v3554 = vld [vmem:[#allocation3 + $0x1a8] sm:$0xff]
  %v3555 = vld [vmem:[#allocation3 + $0x1b0] sm:$0xff]
  %v3556 = vld [vmem:[#allocation3 + $0x1b8] sm:$0xff]
  %v3557 = vld [vmem:[#allocation3 + $0x1c0] sm:$0xff]
  %v3558 = vld [vmem:[#allocation3 + $0x1c8] sm:$0xff]
  %v3559 = vld [vmem:[#allocation3 + $0x1d0] sm:$0xff]
  %v3560 = vld [vmem:[#allocation3 + $0x1d8] sm:$0xff]
  %v3561 = vld [vmem:[#allocation3 + $0x1e0] sm:$0xff]
  %v3562 = vld [vmem:[#allocation3 + $0x1e8] sm:$0xff]
  %v3563 = vld [vmem:[#allocation3 + $0x1f0] sm:$0xff]
  %v3564 = vld [vmem:[#allocation3 + $0x1f8] sm:$0xff]
  %v3565 = vld [vmem:[#allocation3 + $0x200] sm:$0xff]
  %v3566 = vld [vmem:[#allocation3 + $0x208] sm:$0xff]
  %v3567 = vld [vmem:[#allocation3 + $0x210] sm:$0xff]
  %v3568 = vld [vmem:[#allocation3 + $0x218] sm:$0xff]
  %v3569 = vld [vmem:[#allocation3 + $0x220] sm:$0xff]
  %v3570 = vld [vmem:[#allocation3 + $0x228] sm:$0xff]
  %s3571 = scalar_lea.vmem %s0, 96
  %v3572 = vld [vmem:[%s3571] sm:$0xf]
  %v3573 = vld [vmem:[%s3571 + $0x4] sm:$0xf]
  %v3574 = vld [vmem:[%s3571 + $0x8] sm:$0xf]
  %v3575 = vld [vmem:[%s3571 + $0xc] sm:$0xf]
  %v3576 = vld [vmem:[%s3571 + $0x10] sm:$0xf]
  %v3577 = vld [vmem:[%s3571 + $0x14] sm:$0xf]
  %v3578 = vld [vmem:[%s3571 + $0x18] sm:$0xf]
  %v3579 = vld [vmem:[%s3571 + $0x1c] sm:$0xf]
  %v3580 = vld [vmem:[%s3571 + $0x20] sm:$0xf]
  %v3581 = vld [vmem:[%s3571 + $0x24] sm:$0xf]
  %v3582 = vld [vmem:[%s3571 + $0x28] sm:$0xf]
  %v3583 = vld [vmem:[%s3571 + $0x2c] sm:$0xf]
  %v3584 = vld [vmem:[%s3571 + $0x30] sm:$0xf]
  %v3585 = vld [vmem:[%s3571 + $0x34] sm:$0xf]
  %v3586 = vld [vmem:[%s3571 + $0x38] sm:$0xf]
  %v3587 = vld [vmem:[%s3571 + $0x3c] sm:$0xf]
  %v3588 = vld [vmem:[%s3571 + $0x40] sm:$0xf]
  %v3589 = vld [vmem:[%s3571 + $0x44] sm:$0xf]
  %v3590 = vld [vmem:[%s3571 + $0x48] sm:$0xf]
  %v3591 = vld [vmem:[%s3571 + $0x4c] sm:$0xf]
  %v3592 = vld [vmem:[%s3571 + $0x50] sm:$0xf]
  %v3593 = vld [vmem:[%s3571 + $0x54] sm:$0xf]
  %v3594 = vld [vmem:[%s3571 + $0x58] sm:$0xf]
  %v3595 = vld [vmem:[%s3571 + $0x5c] sm:$0xf]
  %v3663 = vunpack.c.l.b16 %v3504
  %v3664 = vunpack.c.h.b16 %v3504
  %v3665 = vunpack.c.l.b16 %v3505
  %v3666 = vunpack.c.h.b16 %v3505
  %v3667 = vunpack.c.l.b16 %v3506
  %v3668 = vunpack.c.h.b16 %v3506
  %v3669 = vunpack.c.l.b16 %v3507
  %v3670 = vunpack.c.h.b16 %v3507
  %v3671 = vunpack.c.l.b16 %v3508
  %v3672 = vunpack.c.h.b16 %v3508
  %v3673 = vunpack.c.l.b16 %v3509
  %v3674 = vunpack.c.h.b16 %v3509
  %v3675 = vunpack.c.l.b16 %v3510
  %v3676 = vunpack.c.h.b16 %v3510
  %v3677 = vunpack.c.l.b16 %v3511
  %v3678 = vunpack.c.h.b16 %v3511
  %v3679 = vunpack.c.l.b16 %v3512
  %v3680 = vunpack.c.h.b16 %v3512
  %v3681 = vunpack.c.l.b16 %v3513
  %v3682 = vunpack.c.h.b16 %v3513
  %v3683 = vunpack.c.l.b16 %v3514
  %v3684 = vunpack.c.h.b16 %v3514
  %v3685 = vunpack.c.l.b16 %v3515
  %v3686 = vunpack.c.h.b16 %v3515
  %v3687 = vunpack.c.l.b16 %v3516
  %v3688 = vunpack.c.h.b16 %v3516
  %v3689 = vunpack.c.l.b16 %v3517
  %v3690 = vunpack.c.h.b16 %v3517
  %v3691 = vunpack.c.l.b16 %v3518
  %v3692 = vunpack.c.h.b16 %v3518
  %v3693 = vunpack.c.l.b16 %v3519
  %v3694 = vunpack.c.h.b16 %v3519
  %v3695 = vunpack.c.l.b16 %v3520
  %v3696 = vunpack.c.h.b16 %v3520
  %v3697 = vunpack.c.l.b16 %v3521
  %v3698 = vunpack.c.h.b16 %v3521
  %v3699 = vunpack.c.l.b16 %v3522
  %v3700 = vunpack.c.h.b16 %v3522
  %v3701 = vunpack.c.l.b16 %v3523
  %v3702 = vunpack.c.h.b16 %v3523
  %v3703 = vunpack.c.l.b16 %v3524
  %v3704 = vunpack.c.h.b16 %v3524
  %v3705 = vunpack.c.l.b16 %v3525
  %v3706 = vunpack.c.h.b16 %v3525
  %v3707 = vunpack.c.l.b16 %v3526
  %v3708 = vunpack.c.h.b16 %v3526
  %v3709 = vunpack.c.l.b16 %v3527
  %v3710 = vunpack.c.h.b16 %v3527
  %v3711 = vunpack.c.l.b16 %v3528
  %v3712 = vunpack.c.h.b16 %v3528
  %v3713 = vunpack.c.l.b16 %v3529
  %v3714 = vunpack.c.h.b16 %v3529
  %v3715 = vunpack.c.l.b16 %v3530
  %v3716 = vunpack.c.h.b16 %v3530
  %v3717 = vunpack.c.l.b16 %v3531
  %v3718 = vunpack.c.h.b16 %v3531
  %v3719 = vunpack.c.l.b16 %v3532
  %v3720 = vunpack.c.h.b16 %v3532
  %v3721 = vunpack.c.l.b16 %v3533
  %v3722 = vunpack.c.h.b16 %v3533
  %v3723 = vunpack.c.l.b16 %v3534
  %v3724 = vunpack.c.h.b16 %v3534
  %v3725 = vunpack.c.l.b16 %v3535
  %v3726 = vunpack.c.h.b16 %v3535
  %v3727 = vunpack.c.l.b16 %v3536
  %v3728 = vunpack.c.h.b16 %v3536
  %v3729 = vunpack.c.l.b16 %v3537
  %v3730 = vunpack.c.h.b16 %v3537
  %v3731 = vunpack.c.l.b16 %v3538
  %v3732 = vunpack.c.h.b16 %v3538
  %v3733 = vunpack.c.l.b16 %v3539
  %v3734 = vunpack.c.h.b16 %v3539
  %v3735 = vunpack.c.l.b16 %v3540
  %v3736 = vunpack.c.h.b16 %v3540
  %v3737 = vunpack.c.l.b16 %v3541
  %v3738 = vunpack.c.h.b16 %v3541
  %v3739 = vunpack.c.l.b16 %v3542
  %v3740 = vunpack.c.h.b16 %v3542
  %v3741 = vunpack.c.l.b16 %v3543
  %v3742 = vunpack.c.h.b16 %v3543
  %v3743 = vunpack.c.l.b16 %v3544
  %v3744 = vunpack.c.h.b16 %v3544
  %v3745 = vunpack.c.l.b16 %v3545
  %v3746 = vunpack.c.h.b16 %v3545
  %v3747 = vunpack.c.l.b16 %v3546
  %v3748 = vunpack.c.h.b16 %v3546
  %v3749 = vunpack.c.l.b16 %v3547
  %v3750 = vunpack.c.h.b16 %v3547
  %v3751 = vunpack.c.l.b16 %v3548
  %v3752 = vunpack.c.h.b16 %v3548
  %v3753 = vunpack.c.l.b16 %v3549
  %v3754 = vunpack.c.h.b16 %v3549
  %v3755 = vunpack.c.l.b16 %v3550
  %v3756 = vunpack.c.h.b16 %v3550
  %v3757 = vunpack.c.l.b16 %v3551
  %v3758 = vunpack.c.h.b16 %v3551
  %v3759 = vunpack.c.l.b16 %v3552
  %v3760 = vunpack.c.h.b16 %v3552
  %v3761 = vunpack.c.l.b16 %v3553
  %v3762 = vunpack.c.h.b16 %v3553
  %v3763 = vunpack.c.l.b16 %v3554
  %v3764 = vunpack.c.h.b16 %v3554
  %v3765 = vunpack.c.l.b16 %v3555
  %v3766 = vunpack.c.h.b16 %v3555
  %v3767 = vunpack.c.l.b16 %v3556
  %v3768 = vunpack.c.h.b16 %v3556
  %v3769 = vunpack.c.l.b16 %v3557
  %v3770 = vunpack.c.h.b16 %v3557
  %v3771 = vunpack.c.l.b16 %v3558
  %v3772 = vunpack.c.h.b16 %v3558
  %v3773 = vunpack.c.l.b16 %v3559
  %v3774 = vunpack.c.h.b16 %v3559
  %v3775 = vunpack.c.l.b16 %v3560
  %v3776 = vunpack.c.h.b16 %v3560
  %v3777 = vunpack.c.l.b16 %v3561
  %v3778 = vunpack.c.h.b16 %v3561
  %v3779 = vunpack.c.l.b16 %v3562
  %v3780 = vunpack.c.h.b16 %v3562
  %v3781 = vunpack.c.l.b16 %v3563
  %v3782 = vunpack.c.h.b16 %v3563
  %v3783 = vunpack.c.l.b16 %v3564
  %v3784 = vunpack.c.h.b16 %v3564
  %v3785 = vunpack.c.l.b16 %v3565
  %v3786 = vunpack.c.h.b16 %v3565
  %v3787 = vunpack.c.l.b16 %v3566
  %v3788 = vunpack.c.h.b16 %v3566
  %v3789 = vunpack.c.l.b16 %v3567
  %v3790 = vunpack.c.h.b16 %v3567
  %v3791 = vunpack.c.l.b16 %v3568
  %v3792 = vunpack.c.h.b16 %v3568
  %v3793 = vunpack.c.l.b16 %v3569
  %v3794 = vunpack.c.h.b16 %v3569
  %v3795 = vunpack.c.l.b16 %v3570
  %v3796 = vunpack.c.h.b16 %v3570
  %v3797 = vpack.c.b16 %v3665, %v3663
  %v3798 = vpack.c.b16 %v3666, %v3664
  %v3799 = vpack.c.b16 %v3669, %v3667
  %v3800 = vpack.c.b16 %v3670, %v3668
  %v3801 = vpack.c.b16 %v3673, %v3671
  %v3802 = vpack.c.b16 %v3674, %v3672
  %v3803 = vpack.c.b16 %v3677, %v3675
  %v3804 = vpack.c.b16 %v3678, %v3676
  %v3805 = vpack.c.b16 %v3681, %v3679
  %v3806 = vpack.c.b16 %v3682, %v3680
  %v3807 = vpack.c.b16 %v3685, %v3683
  %v3808 = vpack.c.b16 %v3686, %v3684
  %v3809 = vpack.c.b16 %v3689, %v3687
  %v3810 = vpack.c.b16 %v3690, %v3688
  %v3811 = vpack.c.b16 %v3693, %v3691
  %v3812 = vpack.c.b16 %v3694, %v3692
  %v3813 = vpack.c.b16 %v3697, %v3695
  %v3814 = vpack.c.b16 %v3698, %v3696
  %v3815 = vpack.c.b16 %v3701, %v3699
  %v3816 = vpack.c.b16 %v3702, %v3700
  %v3817 = vpack.c.b16 %v3705, %v3703
  %v3818 = vpack.c.b16 %v3706, %v3704
  %v3819 = vpack.c.b16 %v3709, %v3707
  %v3820 = vpack.c.b16 %v3710, %v3708
  %v3821 = vpack.c.b16 %v3713, %v3711
  %v3822 = vpack.c.b16 %v3714, %v3712
  %v3823 = vpack.c.b16 %v3717, %v3715
  %v3824 = vpack.c.b16 %v3718, %v3716
  %v3825 = vpack.c.b16 %v3721, %v3719
  %v3826 = vpack.c.b16 %v3722, %v3720
  %v3827 = vpack.c.b16 %v3725, %v3723
  %v3828 = vpack.c.b16 %v3726, %v3724
  %v3829 = vpack.c.b16 %v3729, %v3727
  %v3830 = vpack.c.b16 %v3730, %v3728
  %v3831 = vpack.c.b16 %v3733, %v3731
  %v3832 = vpack.c.b16 %v3734, %v3732
  %v3833 = vpack.c.b16 %v3737, %v3735
  %v3834 = vpack.c.b16 %v3738, %v3736
  %v3835 = vpack.c.b16 %v3741, %v3739
  %v3836 = vpack.c.b16 %v3742, %v3740
  %v3837 = vpack.c.b16 %v3745, %v3743
  %v3838 = vpack.c.b16 %v3746, %v3744
  %v3839 = vpack.c.b16 %v3749, %v3747
  %v3840 = vpack.c.b16 %v3750, %v3748
  %v3841 = vpack.c.b16 %v3753, %v3751
  %v3842 = vpack.c.b16 %v3754, %v3752
  %v3843 = vpack.c.b16 %v3757, %v3755
  %v3844 = vpack.c.b16 %v3758, %v3756
  %v3845 = vpack.c.b16 %v3761, %v3759
  %v3846 = vpack.c.b16 %v3762, %v3760
  %v3847 = vpack.c.b16 %v3765, %v3763
  %v3848 = vpack.c.b16 %v3766, %v3764
  %v3849 = vpack.c.b16 %v3769, %v3767
  %v3850 = vpack.c.b16 %v3770, %v3768
  %v3851 = vpack.c.b16 %v3773, %v3771
  %v3852 = vpack.c.b16 %v3774, %v3772
  %v3853 = vpack.c.b16 %v3777, %v3775
  %v3854 = vpack.c.b16 %v3778, %v3776
  %v3855 = vpack.c.b16 %v3781, %v3779
  %v3856 = vpack.c.b16 %v3782, %v3780
  %v3857 = vpack.c.b16 %v3785, %v3783
  %v3858 = vpack.c.b16 %v3786, %v3784
  %v3859 = vpack.c.b16 %v3789, %v3787
  %v3860 = vpack.c.b16 %v3790, %v3788
  %v3861 = vpack.c.b16 %v3793, %v3791
  %v3862 = vpack.c.b16 %v3794, %v3792
  %v3863 = vpack.c.b16 %v3795, %v3795
  %v3864 = vpack.c.b16 %v3796, %v3796
  %v3866 = vshrl.u32 %v3797, 16
  %v3868 = vrot.slane %v3866, 3
  %v3869 = vshll.u32 %v3797, 16
  %v3871 = vrot.slane %v3869, 4
  %v3872 = vor.u32 %v3868, %v3871
  %v3874 = vshrl.u32 %v3799, 16
  %v3876 = vrot.slane %v3874, 3
  %v3877 = vshll.u32 %v3799, 16
  %v3879 = vrot.slane %v3877, 4
  %v3880 = vor.u32 %v3876, %v3879
  %v3881 = vsel %vm2260, %v3872, %v3880
  %v3883 = vshrl.u32 %v3798, 16
  %v3885 = vrot.slane %v3883, 3
  %v3886 = vshll.u32 %v3798, 16
  %v3888 = vrot.slane %v3886, 4
  %v3889 = vor.u32 %v3885, %v3888
  %v3891 = vshrl.u32 %v3800, 16
  %v3893 = vrot.slane %v3891, 3
  %v3894 = vshll.u32 %v3800, 16
  %v3896 = vrot.slane %v3894, 4
  %v3897 = vor.u32 %v3893, %v3896
  %v3898 = vsel %vm2260, %v3889, %v3897
  %v3900 = vshrl.u32 %v3801, 16
  %v3902 = vrot.slane %v3900, 3
  %v3903 = vshll.u32 %v3801, 16
  %v3905 = vrot.slane %v3903, 4
  %v3906 = vor.u32 %v3902, %v3905
  %v3907 = vsel %vm2260, %v3880, %v3906
  %v3909 = vshrl.u32 %v3802, 16
  %v3911 = vrot.slane %v3909, 3
  %v3912 = vshll.u32 %v3802, 16
  %v3914 = vrot.slane %v3912, 4
  %v3915 = vor.u32 %v3911, %v3914
  %v3916 = vsel %vm2260, %v3897, %v3915
  %v3918 = vshrl.u32 %v3803, 16
  %v3920 = vrot.slane %v3918, 3
  %v3921 = vshll.u32 %v3803, 16
  %v3923 = vrot.slane %v3921, 4
  %v3924 = vor.u32 %v3920, %v3923
  %v3925 = vsel %vm2260, %v3906, %v3924
  %v3927 = vshrl.u32 %v3804, 16
  %v3929 = vrot.slane %v3927, 3
  %v3930 = vshll.u32 %v3804, 16
  %v3932 = vrot.slane %v3930, 4
  %v3933 = vor.u32 %v3929, %v3932
  %v3934 = vsel %vm2260, %v3915, %v3933
  %v3936 = vshrl.u32 %v3805, 16
  %v3938 = vrot.slane %v3936, 3
  %v3939 = vshll.u32 %v3805, 16
  %v3941 = vrot.slane %v3939, 4
  %v3942 = vor.u32 %v3938, %v3941
  %v3943 = vsel %vm2260, %v3924, %v3942
  %v3945 = vshrl.u32 %v3806, 16
  %v3947 = vrot.slane %v3945, 3
  %v3948 = vshll.u32 %v3806, 16
  %v3950 = vrot.slane %v3948, 4
  %v3951 = vor.u32 %v3947, %v3950
  %v3952 = vsel %vm2260, %v3933, %v3951
  %v3954 = vshrl.u32 %v3807, 16
  %v3956 = vrot.slane %v3954, 3
  %v3957 = vshll.u32 %v3807, 16
  %v3959 = vrot.slane %v3957, 4
  %v3960 = vor.u32 %v3956, %v3959
  %v3961 = vsel %vm2260, %v3942, %v3960
  %v3963 = vshrl.u32 %v3808, 16
  %v3965 = vrot.slane %v3963, 3
  %v3966 = vshll.u32 %v3808, 16
  %v3968 = vrot.slane %v3966, 4
  %v3969 = vor.u32 %v3965, %v3968
  %v3970 = vsel %vm2260, %v3951, %v3969
  %v3972 = vshrl.u32 %v3809, 16
  %v3974 = vrot.slane %v3972, 3
  %v3975 = vshll.u32 %v3809, 16
  %v3977 = vrot.slane %v3975, 4
  %v3978 = vor.u32 %v3974, %v3977
  %v3979 = vsel %vm2260, %v3960, %v3978
  %v3981 = vshrl.u32 %v3810, 16
  %v3983 = vrot.slane %v3981, 3
  %v3984 = vshll.u32 %v3810, 16
  %v3986 = vrot.slane %v3984, 4
  %v3987 = vor.u32 %v3983, %v3986
  %v3988 = vsel %vm2260, %v3969, %v3987
  %v3990 = vshrl.u32 %v3811, 16
  %v3992 = vrot.slane %v3990, 3
  %v3993 = vshll.u32 %v3811, 16
  %v3995 = vrot.slane %v3993, 4
  %v3996 = vor.u32 %v3992, %v3995
  %v3997 = vsel %vm2260, %v3978, %v3996
  %v3999 = vshrl.u32 %v3812, 16
  %v4001 = vrot.slane %v3999, 3
  %v4002 = vshll.u32 %v3812, 16
  %v4004 = vrot.slane %v4002, 4
  %v4005 = vor.u32 %v4001, %v4004
  %v4006 = vsel %vm2260, %v3987, %v4005
  %v4008 = vshrl.u32 %v3813, 16
  %v4010 = vrot.slane %v4008, 3
  %v4011 = vshll.u32 %v3813, 16
  %v4013 = vrot.slane %v4011, 4
  %v4014 = vor.u32 %v4010, %v4013
  %v4015 = vsel %vm2260, %v3996, %v4014
  %v4017 = vshrl.u32 %v3814, 16
  %v4019 = vrot.slane %v4017, 3
  %v4020 = vshll.u32 %v3814, 16
  %v4022 = vrot.slane %v4020, 4
  %v4023 = vor.u32 %v4019, %v4022
  %v4024 = vsel %vm2260, %v4005, %v4023
  %v4026 = vshrl.u32 %v3815, 16
  %v4028 = vrot.slane %v4026, 3
  %v4029 = vshll.u32 %v3815, 16
  %v4031 = vrot.slane %v4029, 4
  %v4032 = vor.u32 %v4028, %v4031
  %v4033 = vsel %vm2260, %v4014, %v4032
  %v4035 = vshrl.u32 %v3816, 16
  %v4037 = vrot.slane %v4035, 3
  %v4038 = vshll.u32 %v3816, 16
  %v4040 = vrot.slane %v4038, 4
  %v4041 = vor.u32 %v4037, %v4040
  %v4042 = vsel %vm2260, %v4023, %v4041
  %v4044 = vshrl.u32 %v3817, 16
  %v4046 = vrot.slane %v4044, 3
  %v4047 = vshll.u32 %v3817, 16
  %v4049 = vrot.slane %v4047, 4
  %v4050 = vor.u32 %v4046, %v4049
  %v4051 = vsel %vm2260, %v4032, %v4050
  %v4053 = vshrl.u32 %v3818, 16
  %v4055 = vrot.slane %v4053, 3
  %v4056 = vshll.u32 %v3818, 16
  %v4058 = vrot.slane %v4056, 4
  %v4059 = vor.u32 %v4055, %v4058
  %v4060 = vsel %vm2260, %v4041, %v4059
  %v4062 = vshrl.u32 %v3819, 16
  %v4064 = vrot.slane %v4062, 3
  %v4065 = vshll.u32 %v3819, 16
  %v4067 = vrot.slane %v4065, 4
  %v4068 = vor.u32 %v4064, %v4067
  %v4069 = vsel %vm2260, %v4050, %v4068
  %v4071 = vshrl.u32 %v3820, 16
  %v4073 = vrot.slane %v4071, 3
  %v4074 = vshll.u32 %v3820, 16
  %v4076 = vrot.slane %v4074, 4
  %v4077 = vor.u32 %v4073, %v4076
  %v4078 = vsel %vm2260, %v4059, %v4077
  %v4080 = vshrl.u32 %v3821, 16
  %v4082 = vrot.slane %v4080, 3
  %v4083 = vshll.u32 %v3821, 16
  %v4085 = vrot.slane %v4083, 4
  %v4086 = vor.u32 %v4082, %v4085
  %v4087 = vsel %vm2260, %v4068, %v4086
  %v4089 = vshrl.u32 %v3822, 16
  %v4091 = vrot.slane %v4089, 3
  %v4092 = vshll.u32 %v3822, 16
  %v4094 = vrot.slane %v4092, 4
  %v4095 = vor.u32 %v4091, %v4094
  %v4096 = vsel %vm2260, %v4077, %v4095
  %v4098 = vshrl.u32 %v3823, 16
  %v4100 = vrot.slane %v4098, 3
  %v4101 = vshll.u32 %v3823, 16
  %v4103 = vrot.slane %v4101, 4
  %v4104 = vor.u32 %v4100, %v4103
  %v4105 = vsel %vm2260, %v4086, %v4104
  %v4107 = vshrl.u32 %v3824, 16
  %v4109 = vrot.slane %v4107, 3
  %v4110 = vshll.u32 %v3824, 16
  %v4112 = vrot.slane %v4110, 4
  %v4113 = vor.u32 %v4109, %v4112
  %v4114 = vsel %vm2260, %v4095, %v4113
  %v4116 = vshrl.u32 %v3825, 16
  %v4118 = vrot.slane %v4116, 3
  %v4119 = vshll.u32 %v3825, 16
  %v4121 = vrot.slane %v4119, 4
  %v4122 = vor.u32 %v4118, %v4121
  %v4123 = vsel %vm2260, %v4104, %v4122
  %v4125 = vshrl.u32 %v3826, 16
  %v4127 = vrot.slane %v4125, 3
  %v4128 = vshll.u32 %v3826, 16
  %v4130 = vrot.slane %v4128, 4
  %v4131 = vor.u32 %v4127, %v4130
  %v4132 = vsel %vm2260, %v4113, %v4131
  %v4134 = vshrl.u32 %v3827, 16
  %v4136 = vrot.slane %v4134, 3
  %v4137 = vshll.u32 %v3827, 16
  %v4139 = vrot.slane %v4137, 4
  %v4140 = vor.u32 %v4136, %v4139
  %v4141 = vsel %vm2260, %v4122, %v4140
  %v4143 = vshrl.u32 %v3828, 16
  %v4145 = vrot.slane %v4143, 3
  %v4146 = vshll.u32 %v3828, 16
  %v4148 = vrot.slane %v4146, 4
  %v4149 = vor.u32 %v4145, %v4148
  %v4150 = vsel %vm2260, %v4131, %v4149
  %v4152 = vshrl.u32 %v3829, 16
  %v4154 = vrot.slane %v4152, 3
  %v4155 = vshll.u32 %v3829, 16
  %v4157 = vrot.slane %v4155, 4
  %v4158 = vor.u32 %v4154, %v4157
  %v4159 = vsel %vm2260, %v4140, %v4158
  %v4161 = vshrl.u32 %v3830, 16
  %v4163 = vrot.slane %v4161, 3
  %v4164 = vshll.u32 %v3830, 16
  %v4166 = vrot.slane %v4164, 4
  %v4167 = vor.u32 %v4163, %v4166
  %v4168 = vsel %vm2260, %v4149, %v4167
  %v4170 = vshrl.u32 %v3831, 16
  %v4172 = vrot.slane %v4170, 3
  %v4173 = vshll.u32 %v3831, 16
  %v4175 = vrot.slane %v4173, 4
  %v4176 = vor.u32 %v4172, %v4175
  %v4177 = vsel %vm2260, %v4158, %v4176
  %v4179 = vshrl.u32 %v3832, 16
  %v4181 = vrot.slane %v4179, 3
  %v4182 = vshll.u32 %v3832, 16
  %v4184 = vrot.slane %v4182, 4
  %v4185 = vor.u32 %v4181, %v4184
  %v4186 = vsel %vm2260, %v4167, %v4185
  %v4188 = vshrl.u32 %v3833, 16
  %v4190 = vrot.slane %v4188, 3
  %v4191 = vshll.u32 %v3833, 16
  %v4193 = vrot.slane %v4191, 4
  %v4194 = vor.u32 %v4190, %v4193
  %v4195 = vsel %vm2260, %v4176, %v4194
  %v4197 = vshrl.u32 %v3834, 16
  %v4199 = vrot.slane %v4197, 3
  %v4200 = vshll.u32 %v3834, 16
  %v4202 = vrot.slane %v4200, 4
  %v4203 = vor.u32 %v4199, %v4202
  %v4204 = vsel %vm2260, %v4185, %v4203
  %v4206 = vshrl.u32 %v3835, 16
  %v4208 = vrot.slane %v4206, 3
  %v4209 = vshll.u32 %v3835, 16
  %v4211 = vrot.slane %v4209, 4
  %v4212 = vor.u32 %v4208, %v4211
  %v4213 = vsel %vm2260, %v4194, %v4212
  %v4215 = vshrl.u32 %v3836, 16
  %v4217 = vrot.slane %v4215, 3
  %v4218 = vshll.u32 %v3836, 16
  %v4220 = vrot.slane %v4218, 4
  %v4221 = vor.u32 %v4217, %v4220
  %v4222 = vsel %vm2260, %v4203, %v4221
  %v4224 = vshrl.u32 %v3837, 16
  %v4226 = vrot.slane %v4224, 3
  %v4227 = vshll.u32 %v3837, 16
  %v4229 = vrot.slane %v4227, 4
  %v4230 = vor.u32 %v4226, %v4229
  %v4231 = vsel %vm2260, %v4212, %v4230
  %v4233 = vshrl.u32 %v3838, 16
  %v4235 = vrot.slane %v4233, 3
  %v4236 = vshll.u32 %v3838, 16
  %v4238 = vrot.slane %v4236, 4
  %v4239 = vor.u32 %v4235, %v4238
  %v4240 = vsel %vm2260, %v4221, %v4239
  %v4242 = vshrl.u32 %v3839, 16
  %v4244 = vrot.slane %v4242, 3
  %v4245 = vshll.u32 %v3839, 16
  %v4247 = vrot.slane %v4245, 4
  %v4248 = vor.u32 %v4244, %v4247
  %v4249 = vsel %vm2260, %v4230, %v4248
  %v4251 = vshrl.u32 %v3840, 16
  %v4253 = vrot.slane %v4251, 3
  %v4254 = vshll.u32 %v3840, 16
  %v4256 = vrot.slane %v4254, 4
  %v4257 = vor.u32 %v4253, %v4256
  %v4258 = vsel %vm2260, %v4239, %v4257
  %v4260 = vshrl.u32 %v3841, 16
  %v4262 = vrot.slane %v4260, 3
  %v4263 = vshll.u32 %v3841, 16
  %v4265 = vrot.slane %v4263, 4
  %v4266 = vor.u32 %v4262, %v4265
  %v4267 = vsel %vm2260, %v4248, %v4266
  %v4269 = vshrl.u32 %v3842, 16
  %v4271 = vrot.slane %v4269, 3
  %v4272 = vshll.u32 %v3842, 16
  %v4274 = vrot.slane %v4272, 4
  %v4275 = vor.u32 %v4271, %v4274
  %v4276 = vsel %vm2260, %v4257, %v4275
  %v4278 = vshrl.u32 %v3843, 16
  %v4280 = vrot.slane %v4278, 3
  %v4281 = vshll.u32 %v3843, 16
  %v4283 = vrot.slane %v4281, 4
  %v4284 = vor.u32 %v4280, %v4283
  %v4285 = vsel %vm2260, %v4266, %v4284
  %v4287 = vshrl.u32 %v3844, 16
  %v4289 = vrot.slane %v4287, 3
  %v4290 = vshll.u32 %v3844, 16
  %v4292 = vrot.slane %v4290, 4
  %v4293 = vor.u32 %v4289, %v4292
  %v4294 = vsel %vm2260, %v4275, %v4293
  %v4296 = vshrl.u32 %v3845, 16
  %v4298 = vrot.slane %v4296, 3
  %v4299 = vshll.u32 %v3845, 16
  %v4301 = vrot.slane %v4299, 4
  %v4302 = vor.u32 %v4298, %v4301
  %v4303 = vsel %vm2260, %v4284, %v4302
  %v4305 = vshrl.u32 %v3846, 16
  %v4307 = vrot.slane %v4305, 3
  %v4308 = vshll.u32 %v3846, 16
  %v4310 = vrot.slane %v4308, 4
  %v4311 = vor.u32 %v4307, %v4310
  %v4312 = vsel %vm2260, %v4293, %v4311
  %v4314 = vshrl.u32 %v3847, 16
  %v4316 = vrot.slane %v4314, 3
  %v4317 = vshll.u32 %v3847, 16
  %v4319 = vrot.slane %v4317, 4
  %v4320 = vor.u32 %v4316, %v4319
  %v4321 = vsel %vm2260, %v4302, %v4320
  %v4323 = vshrl.u32 %v3848, 16
  %v4325 = vrot.slane %v4323, 3
  %v4326 = vshll.u32 %v3848, 16
  %v4328 = vrot.slane %v4326, 4
  %v4329 = vor.u32 %v4325, %v4328
  %v4330 = vsel %vm2260, %v4311, %v4329
  %v4332 = vshrl.u32 %v3849, 16
  %v4334 = vrot.slane %v4332, 3
  %v4335 = vshll.u32 %v3849, 16
  %v4337 = vrot.slane %v4335, 4
  %v4338 = vor.u32 %v4334, %v4337
  %v4339 = vsel %vm2260, %v4320, %v4338
  %v4341 = vshrl.u32 %v3850, 16
  %v4343 = vrot.slane %v4341, 3
  %v4344 = vshll.u32 %v3850, 16
  %v4346 = vrot.slane %v4344, 4
  %v4347 = vor.u32 %v4343, %v4346
  %v4348 = vsel %vm2260, %v4329, %v4347
  %v4350 = vshrl.u32 %v3851, 16
  %v4352 = vrot.slane %v4350, 3
  %v4353 = vshll.u32 %v3851, 16
  %v4355 = vrot.slane %v4353, 4
  %v4356 = vor.u32 %v4352, %v4355
  %v4357 = vsel %vm2260, %v4338, %v4356
  %v4359 = vshrl.u32 %v3852, 16
  %v4361 = vrot.slane %v4359, 3
  %v4362 = vshll.u32 %v3852, 16
  %v4364 = vrot.slane %v4362, 4
  %v4365 = vor.u32 %v4361, %v4364
  %v4366 = vsel %vm2260, %v4347, %v4365
  %v4368 = vshrl.u32 %v3853, 16
  %v4370 = vrot.slane %v4368, 3
  %v4371 = vshll.u32 %v3853, 16
  %v4373 = vrot.slane %v4371, 4
  %v4374 = vor.u32 %v4370, %v4373
  %v4375 = vsel %vm2260, %v4356, %v4374
  %v4377 = vshrl.u32 %v3854, 16
  %v4379 = vrot.slane %v4377, 3
  %v4380 = vshll.u32 %v3854, 16
  %v4382 = vrot.slane %v4380, 4
  %v4383 = vor.u32 %v4379, %v4382
  %v4384 = vsel %vm2260, %v4365, %v4383
  %v4386 = vshrl.u32 %v3855, 16
  %v4388 = vrot.slane %v4386, 3
  %v4389 = vshll.u32 %v3855, 16
  %v4391 = vrot.slane %v4389, 4
  %v4392 = vor.u32 %v4388, %v4391
  %v4393 = vsel %vm2260, %v4374, %v4392
  %v4395 = vshrl.u32 %v3856, 16
  %v4397 = vrot.slane %v4395, 3
  %v4398 = vshll.u32 %v3856, 16
  %v4400 = vrot.slane %v4398, 4
  %v4401 = vor.u32 %v4397, %v4400
  %v4402 = vsel %vm2260, %v4383, %v4401
  %v4404 = vshrl.u32 %v3857, 16
  %v4406 = vrot.slane %v4404, 3
  %v4407 = vshll.u32 %v3857, 16
  %v4409 = vrot.slane %v4407, 4
  %v4410 = vor.u32 %v4406, %v4409
  %v4411 = vsel %vm2260, %v4392, %v4410
  %v4413 = vshrl.u32 %v3858, 16
  %v4415 = vrot.slane %v4413, 3
  %v4416 = vshll.u32 %v3858, 16
  %v4418 = vrot.slane %v4416, 4
  %v4419 = vor.u32 %v4415, %v4418
  %v4420 = vsel %vm2260, %v4401, %v4419
  %v4422 = vshrl.u32 %v3859, 16
  %v4424 = vrot.slane %v4422, 3
  %v4425 = vshll.u32 %v3859, 16
  %v4427 = vrot.slane %v4425, 4
  %v4428 = vor.u32 %v4424, %v4427
  %v4429 = vsel %vm2260, %v4410, %v4428
  %v4431 = vshrl.u32 %v3860, 16
  %v4433 = vrot.slane %v4431, 3
  %v4434 = vshll.u32 %v3860, 16
  %v4436 = vrot.slane %v4434, 4
  %v4437 = vor.u32 %v4433, %v4436
  %v4438 = vsel %vm2260, %v4419, %v4437
  %v4440 = vshrl.u32 %v3861, 16
  %v4442 = vrot.slane %v4440, 3
  %v4443 = vshll.u32 %v3861, 16
  %v4445 = vrot.slane %v4443, 4
  %v4446 = vor.u32 %v4442, %v4445
  %v4447 = vsel %vm2260, %v4428, %v4446
  %v4449 = vshrl.u32 %v3862, 16
  %v4451 = vrot.slane %v4449, 3
  %v4452 = vshll.u32 %v3862, 16
  %v4454 = vrot.slane %v4452, 4
  %v4455 = vor.u32 %v4451, %v4454
  %v4456 = vsel %vm2260, %v4437, %v4455
  %v4458 = vshrl.u32 %v3863, 16
  %v4460 = vrot.slane %v4458, 3
  %v4461 = vshll.u32 %v3863, 16
  %v4463 = vrot.slane %v4461, 4
  %v4464 = vor.u32 %v4460, %v4463
  %v4465 = vsel %vm2260, %v4446, %v4464
  %v4467 = vshrl.u32 %v3864, 16
  %v4469 = vrot.slane %v4467, 3
  %v4470 = vshll.u32 %v3864, 16
  %v4472 = vrot.slane %v4470, 4
  %v4473 = vor.u32 %v4469, %v4472
  %v4474 = vsel %vm2260, %v4455, %v4473
  %v4532 = vunpack.c.l.b16 %v3572
  %v4533 = vunpack.c.l.b16 %v3573
  %v4534 = vunpack.c.l.b16 %v3574
  %v4535 = vunpack.c.l.b16 %v3575
  %v4536 = vunpack.c.l.b16 %v3576
  %v4537 = vunpack.c.l.b16 %v3577
  %v4538 = vunpack.c.l.b16 %v3578
  %v4539 = vunpack.c.l.b16 %v3579
  %v4540 = vunpack.c.l.b16 %v3580
  %v4541 = vunpack.c.l.b16 %v3581
  %v4542 = vunpack.c.l.b16 %v3582
  %v4543 = vunpack.c.l.b16 %v3583
  %v4544 = vunpack.c.l.b16 %v3584
  %v4545 = vunpack.c.l.b16 %v3585
  %v4546 = vunpack.c.l.b16 %v3586
  %v4547 = vunpack.c.l.b16 %v3587
  %v4548 = vunpack.c.l.b16 %v3588
  %v4549 = vunpack.c.l.b16 %v3589
  %v4550 = vunpack.c.l.b16 %v3590
  %v4551 = vunpack.c.l.b16 %v3591
  %v4552 = vunpack.c.l.b16 %v3592
  %v4553 = vunpack.c.l.b16 %v3593
  %v4554 = vunpack.c.l.b16 %v3594
  %v4555 = vunpack.c.l.b16 %v3595
  %v4556 = vpack.c.b16 %v4533, %v4532
  %v4557 = vpack.c.b16 %v4535, %v4534
  %v4558 = vpack.c.b16 %v4537, %v4536
  %v4559 = vpack.c.b16 %v4539, %v4538
  %v4560 = vpack.c.b16 %v4541, %v4540
  %v4561 = vpack.c.b16 %v4543, %v4542
  %v4562 = vpack.c.b16 %v4545, %v4544
  %v4563 = vpack.c.b16 %v4547, %v4546
  %v4564 = vpack.c.b16 %v4549, %v4548
  %v4565 = vpack.c.b16 %v4551, %v4550
  %v4566 = vpack.c.b16 %v4553, %v4552
  %v4567 = vpack.c.b16 %v4555, %v4554
  %v4581 = vsel %vm24, %v3898, 0
  %v4584 = vsel %vm24, %v3916, 0
  %v4587 = vsel %vm24, %v3934, 0
  %v4590 = vsel %vm24, %v3952, 0
  %v4593 = vsel %vm24, %v3970, 0
  %v4596 = vsel %vm24, %v3988, 0
  %v4599 = vsel %vm24, %v4006, 0
  %v4602 = vsel %vm24, %v4024, 0
  %v4605 = vsel %vm24, %v4042, 0
  %v4608 = vsel %vm24, %v4060, 0
  %v4611 = vsel %vm24, %v4078, 0
  %v4614 = vsel %vm24, %v4096, 0
  %v4617 = vsel %vm24, %v4114, 0
  %v4620 = vsel %vm24, %v4132, 0
  %v4623 = vsel %vm24, %v4150, 0
  %v4626 = vsel %vm24, %v4168, 0
  %v4629 = vsel %vm24, %v4186, 0
  %v4632 = vsel %vm24, %v4204, 0
  %v4635 = vsel %vm24, %v4222, 0
  %v4638 = vsel %vm24, %v4240, 0
  %v4641 = vsel %vm24, %v4258, 0
  %v4644 = vsel %vm24, %v4276, 0
  %v4647 = vsel %vm24, %v4294, 0
  %v4650 = vsel %vm24, %v4312, 0
  %v4653 = vsel %vm24, %v4330, 0
  %v4656 = vsel %vm24, %v4348, 0
  %v4659 = vsel %vm24, %v4366, 0
  %v4662 = vsel %vm24, %v4384, 0
  %v4665 = vsel %vm24, %v4402, 0
  %v4668 = vsel %vm24, %v4420, 0
  %v4671 = vsel %vm24, %v4438, 0
  %v4674 = vsel %vm24, %v4456, 0
  %v4677 = vsel %vm24, %v4474, 0
  %4679 = vmatprep.subr.bf16.mxu0 0
  %4680 = vmatpush1.bf16.msra.mxu0 %v4563
  %4681 = vmatprep.subr.bf16.mxu0 0
  %4682 = vmatpush1.bf16.msra.mxu0 %v4562
  %4683 = vmatprep.subr.bf16.mxu0 0
  %4684 = vmatpush1.bf16.msra.mxu0 %v4561
  %4685 = vmatprep.subr.bf16.mxu0 0
  %4686 = vmatpush1.bf16.msra.mxu0 %v4560
  %4687 = vmatprep.subr.bf16.mxu0 0
  %4688 = vmatpush1.bf16.msra.mxu0 %v4559
  %4689 = vmatprep.subr.bf16.mxu0 0
  %4690 = vmatpush1.bf16.msra.mxu0 %v4558
  %4691 = vmatprep.subr.bf16.mxu0 0
  %4692 = vmatpush1.bf16.msra.mxu0 %v4557
  %4693 = vmatprep.subr.bf16.mxu0 0
  %4694 = vmatpush1.bf16.msra.mxu0 %v4556
  %4695 = vmatprep.subr.bf16.mxu0 0
  %4696 = vmatpush2.bf16.msra.mxu0 0
  %4697 = vmatprep.subr.bf16.mxu0 0
  %4698 = vmatpush2.bf16.msra.mxu0 0
  %4699 = vmatprep.subr.bf16.mxu0 0
  %4700 = vmatpush2.bf16.msra.mxu0 0
  %4701 = vmatprep.subr.bf16.mxu0 0
  %4702 = vmatpush2.bf16.msra.mxu0 0
  %4703 = vmatprep.subr.bf16.mxu0 0
  %4704 = vmatpush2.bf16.msra.mxu0 %v4567
  %4705 = vmatprep.subr.bf16.mxu0 0
  %4706 = vmatpush2.bf16.msra.mxu0 %v4566
  %4707 = vmatprep.subr.bf16.mxu0 0
  %4708 = vmatpush2.bf16.msra.mxu0 %v4565
  %4709 = vmatprep.subr.bf16.mxu0 0
  %4710 = vmatpush2.bf16.msra.mxu0 %v4564
  %4711 = vmatprep.mubr.bf16.mxu0 %v4581
  %4712 = vmatmul.mubr.bf16.gmra.mxu0 %v3881
  %v4713 = vpop.f32.mrf.mxu0
  %v4714 = vadd.f32 0.0, %v4713
  %v4715 = vpop.f32.mrf.mxu0
  %v4716 = vpop.f32.mrf.mxu0
  %v4717 = vadd.f32 0.0, %v4716
  %v4718 = vpop.f32.mrf.mxu0
  %4719 = vmatprep.mubr.bf16.mxu0 %v4584
  %4720 = vmatmul.mubr.bf16.gmra.mxu0 %v3907
  %v4721 = vpop.f32.mrf.mxu0
  %v4722 = vadd.f32 0.0, %v4721
  %v4723 = vpop.f32.mrf.mxu0
  %v4724 = vpop.f32.mrf.mxu0
  %v4725 = vadd.f32 0.0, %v4724
  %v4726 = vpop.f32.mrf.mxu0
  %4727 = vmatprep.mubr.bf16.mxu0 %v4587
  %4728 = vmatmul.mubr.bf16.gmra.mxu0 %v3925
  %v4729 = vpop.f32.mrf.mxu0
  %v4730 = vadd.f32 0.0, %v4729
  %v4731 = vpop.f32.mrf.mxu0
  %v4732 = vpop.f32.mrf.mxu0
  %v4733 = vadd.f32 0.0, %v4732
  %v4734 = vpop.f32.mrf.mxu0
  %4735 = vmatprep.mubr.bf16.mxu0 %v4590
  %4736 = vmatmul.mubr.bf16.gmra.mxu0 %v3943
  %v4737 = vpop.f32.mrf.mxu0
  %v4738 = vadd.f32 0.0, %v4737
  %v4739 = vpop.f32.mrf.mxu0
  %v4740 = vpop.f32.mrf.mxu0
  %v4741 = vadd.f32 0.0, %v4740
  %v4742 = vpop.f32.mrf.mxu0
  %4743 = vmatprep.mubr.bf16.mxu0 %v4593
  %4744 = vmatmul.mubr.bf16.gmra.mxu0 %v3961
  %v4745 = vpop.f32.mrf.mxu0
  %v4746 = vadd.f32 0.0, %v4745
  %v4747 = vpop.f32.mrf.mxu0
  %v4748 = vpop.f32.mrf.mxu0
  %v4749 = vadd.f32 0.0, %v4748
  %v4750 = vpop.f32.mrf.mxu0
  %4751 = vmatprep.mubr.bf16.mxu0 %v4596
  %4752 = vmatmul.mubr.bf16.gmra.mxu0 %v3979
  %v4753 = vpop.f32.mrf.mxu0
  %v4754 = vadd.f32 0.0, %v4753
  %v4755 = vpop.f32.mrf.mxu0
  %v4756 = vpop.f32.mrf.mxu0
  %v4757 = vadd.f32 0.0, %v4756
  %v4758 = vpop.f32.mrf.mxu0
  %4759 = vmatprep.mubr.bf16.mxu0 %v4599
  %4760 = vmatmul.mubr.bf16.gmra.mxu0 %v3997
  %v4761 = vpop.f32.mrf.mxu0
  %v4762 = vadd.f32 0.0, %v4761
  %v4763 = vpop.f32.mrf.mxu0
  %v4764 = vpop.f32.mrf.mxu0
  %v4765 = vadd.f32 0.0, %v4764
  %v4766 = vpop.f32.mrf.mxu0
  %4767 = vmatprep.mubr.bf16.mxu0 %v4602
  %4768 = vmatmul.mubr.bf16.gmra.mxu0 %v4015
  %v4769 = vpop.f32.mrf.mxu0
  %v4770 = vadd.f32 0.0, %v4769
  %v4771 = vpop.f32.mrf.mxu0
  %v4772 = vpop.f32.mrf.mxu0
  %v4773 = vadd.f32 0.0, %v4772
  %v4774 = vpop.f32.mrf.mxu0
  %4775 = vmatprep.mubr.bf16.mxu0 %v4605
  %4776 = vmatmul.mubr.bf16.gmra.mxu0 %v4033
  %v4777 = vpop.f32.mrf.mxu0
  %v4778 = vadd.f32 0.0, %v4777
  %v4779 = vpop.f32.mrf.mxu0
  %v4780 = vpop.f32.mrf.mxu0
  %v4781 = vadd.f32 0.0, %v4780
  %v4782 = vpop.f32.mrf.mxu0
  %4783 = vmatprep.mubr.bf16.mxu0 %v4608
  %4784 = vmatmul.mubr.bf16.gmra.mxu0 %v4051
  %v4785 = vpop.f32.mrf.mxu0
  %v4786 = vadd.f32 0.0, %v4785
  %v4787 = vpop.f32.mrf.mxu0
  %v4788 = vpop.f32.mrf.mxu0
  %v4789 = vadd.f32 0.0, %v4788
  %v4790 = vpop.f32.mrf.mxu0
  %4791 = vmatprep.mubr.bf16.mxu0 %v4611
  %4792 = vmatmul.mubr.bf16.gmra.mxu0 %v4069
  %v4793 = vpop.f32.mrf.mxu0
  %v4794 = vadd.f32 0.0, %v4793
  %v4795 = vpop.f32.mrf.mxu0
  %v4796 = vpop.f32.mrf.mxu0
  %v4797 = vadd.f32 0.0, %v4796
  %v4798 = vpop.f32.mrf.mxu0
  %4799 = vmatprep.mubr.bf16.mxu0 %v4614
  %4800 = vmatmul.mubr.bf16.gmra.mxu0 %v4087
  %v4801 = vpop.f32.mrf.mxu0
  %v4802 = vadd.f32 0.0, %v4801
  %v4803 = vpop.f32.mrf.mxu0
  %v4804 = vpop.f32.mrf.mxu0
  %v4805 = vadd.f32 0.0, %v4804
  %v4806 = vpop.f32.mrf.mxu0
  %4807 = vmatprep.mubr.bf16.mxu0 %v4617
  %4808 = vmatmul.mubr.bf16.gmra.mxu0 %v4105
  %v4809 = vpop.f32.mrf.mxu0
  %v4810 = vadd.f32 0.0, %v4809
  %v4811 = vpop.f32.mrf.mxu0
  %v4812 = vpop.f32.mrf.mxu0
  %v4813 = vadd.f32 0.0, %v4812
  %v4814 = vpop.f32.mrf.mxu0
  %4815 = vmatprep.mubr.bf16.mxu0 %v4620
  %4816 = vmatmul.mubr.bf16.gmra.mxu0 %v4123
  %v4817 = vpop.f32.mrf.mxu0
  %v4818 = vadd.f32 0.0, %v4817
  %v4819 = vpop.f32.mrf.mxu0
  %v4820 = vpop.f32.mrf.mxu0
  %v4821 = vadd.f32 0.0, %v4820
  %v4822 = vpop.f32.mrf.mxu0
  %4823 = vmatprep.mubr.bf16.mxu0 %v4623
  %4824 = vmatmul.mubr.bf16.gmra.mxu0 %v4141
  %v4825 = vpop.f32.mrf.mxu0
  %v4826 = vadd.f32 0.0, %v4825
  %v4827 = vpop.f32.mrf.mxu0
  %v4828 = vpop.f32.mrf.mxu0
  %v4829 = vadd.f32 0.0, %v4828
  %v4830 = vpop.f32.mrf.mxu0
  %4831 = vmatprep.mubr.bf16.mxu0 %v4626
  %4832 = vmatmul.mubr.bf16.gmra.mxu0 %v4159
  %v4833 = vpop.f32.mrf.mxu0
  %v4834 = vadd.f32 0.0, %v4833
  %v4835 = vpop.f32.mrf.mxu0
  %v4836 = vpop.f32.mrf.mxu0
  %v4837 = vadd.f32 0.0, %v4836
  %v4838 = vpop.f32.mrf.mxu0
  %4839 = vmatprep.mubr.bf16.mxu0 %v4629
  %4840 = vmatmul.mubr.bf16.gmra.mxu0 %v4177
  %v4841 = vpop.f32.mrf.mxu0
  %v4842 = vadd.f32 0.0, %v4841
  %v4843 = vpop.f32.mrf.mxu0
  %v4844 = vpop.f32.mrf.mxu0
  %v4845 = vadd.f32 0.0, %v4844
  %v4846 = vpop.f32.mrf.mxu0
  %4847 = vmatprep.mubr.bf16.mxu0 %v4632
  %4848 = vmatmul.mubr.bf16.gmra.mxu0 %v4195
  %v4849 = vpop.f32.mrf.mxu0
  %v4850 = vadd.f32 0.0, %v4849
  %v4851 = vpop.f32.mrf.mxu0
  %v4852 = vpop.f32.mrf.mxu0
  %v4853 = vadd.f32 0.0, %v4852
  %v4854 = vpop.f32.mrf.mxu0
  %4855 = vmatprep.mubr.bf16.mxu0 %v4635
  %4856 = vmatmul.mubr.bf16.gmra.mxu0 %v4213
  %v4857 = vpop.f32.mrf.mxu0
  %v4858 = vadd.f32 0.0, %v4857
  %v4859 = vpop.f32.mrf.mxu0
  %v4860 = vpop.f32.mrf.mxu0
  %v4861 = vadd.f32 0.0, %v4860
  %v4862 = vpop.f32.mrf.mxu0
  %4863 = vmatprep.mubr.bf16.mxu0 %v4638
  %4864 = vmatmul.mubr.bf16.gmra.mxu0 %v4231
  %v4865 = vpop.f32.mrf.mxu0
  %v4866 = vadd.f32 0.0, %v4865
  %v4867 = vpop.f32.mrf.mxu0
  %v4868 = vpop.f32.mrf.mxu0
  %v4869 = vadd.f32 0.0, %v4868
  %v4870 = vpop.f32.mrf.mxu0
  %4871 = vmatprep.mubr.bf16.mxu0 %v4641
  %4872 = vmatmul.mubr.bf16.gmra.mxu0 %v4249
  %v4873 = vpop.f32.mrf.mxu0
  %v4874 = vadd.f32 0.0, %v4873
  %v4875 = vpop.f32.mrf.mxu0
  %v4876 = vpop.f32.mrf.mxu0
  %v4877 = vadd.f32 0.0, %v4876
  %v4878 = vpop.f32.mrf.mxu0
  %4879 = vmatprep.mubr.bf16.mxu0 %v4644
  %4880 = vmatmul.mubr.bf16.gmra.mxu0 %v4267
  %v4881 = vpop.f32.mrf.mxu0
  %v4882 = vadd.f32 0.0, %v4881
  %v4883 = vpop.f32.mrf.mxu0
  %v4884 = vpop.f32.mrf.mxu0
  %v4885 = vadd.f32 0.0, %v4884
  %v4886 = vpop.f32.mrf.mxu0
  %4887 = vmatprep.mubr.bf16.mxu0 %v4647
  %4888 = vmatmul.mubr.bf16.gmra.mxu0 %v4285
  %v4889 = vpop.f32.mrf.mxu0
  %v4890 = vadd.f32 0.0, %v4889
  %v4891 = vpop.f32.mrf.mxu0
  %v4892 = vpop.f32.mrf.mxu0
  %v4893 = vadd.f32 0.0, %v4892
  %v4894 = vpop.f32.mrf.mxu0
  %4895 = vmatprep.mubr.bf16.mxu0 %v4650
  %4896 = vmatmul.mubr.bf16.gmra.mxu0 %v4303
  %v4897 = vpop.f32.mrf.mxu0
  %v4898 = vadd.f32 0.0, %v4897
  %v4899 = vpop.f32.mrf.mxu0
  %v4900 = vpop.f32.mrf.mxu0
  %v4901 = vadd.f32 0.0, %v4900
  %v4902 = vpop.f32.mrf.mxu0
  %4903 = vmatprep.mubr.bf16.mxu0 %v4653
  %4904 = vmatmul.mubr.bf16.gmra.mxu0 %v4321
  %v4905 = vpop.f32.mrf.mxu0
  %v4906 = vadd.f32 0.0, %v4905
  %v4907 = vpop.f32.mrf.mxu0
  %v4908 = vpop.f32.mrf.mxu0
  %v4909 = vadd.f32 0.0, %v4908
  %v4910 = vpop.f32.mrf.mxu0
  %4911 = vmatprep.mubr.bf16.mxu0 %v4656
  %4912 = vmatmul.mubr.bf16.gmra.mxu0 %v4339
  %v4913 = vpop.f32.mrf.mxu0
  %v4914 = vadd.f32 0.0, %v4913
  %v4915 = vpop.f32.mrf.mxu0
  %v4916 = vpop.f32.mrf.mxu0
  %v4917 = vadd.f32 0.0, %v4916
  %v4918 = vpop.f32.mrf.mxu0
  %4919 = vmatprep.mubr.bf16.mxu0 %v4659
  %4920 = vmatmul.mubr.bf16.gmra.mxu0 %v4357
  %v4921 = vpop.f32.mrf.mxu0
  %v4922 = vadd.f32 0.0, %v4921
  %v4923 = vpop.f32.mrf.mxu0
  %v4924 = vpop.f32.mrf.mxu0
  %v4925 = vadd.f32 0.0, %v4924
  %v4926 = vpop.f32.mrf.mxu0
  %4927 = vmatprep.mubr.bf16.mxu0 %v4662
  %4928 = vmatmul.mubr.bf16.gmra.mxu0 %v4375
  %v4929 = vpop.f32.mrf.mxu0
  %v4930 = vadd.f32 0.0, %v4929
  %v4931 = vpop.f32.mrf.mxu0
  %v4932 = vpop.f32.mrf.mxu0
  %v4933 = vadd.f32 0.0, %v4932
  %v4934 = vpop.f32.mrf.mxu0
  %4935 = vmatprep.mubr.bf16.mxu0 %v4665
  %4936 = vmatmul.mubr.bf16.gmra.mxu0 %v4393
  %v4937 = vpop.f32.mrf.mxu0
  %v4938 = vadd.f32 0.0, %v4937
  %v4939 = vpop.f32.mrf.mxu0
  %v4940 = vpop.f32.mrf.mxu0
  %v4941 = vadd.f32 0.0, %v4940
  %v4942 = vpop.f32.mrf.mxu0
  %4943 = vmatprep.mubr.bf16.mxu0 %v4668
  %4944 = vmatmul.mubr.bf16.gmra.mxu0 %v4411
  %v4945 = vpop.f32.mrf.mxu0
  %v4946 = vadd.f32 0.0, %v4945
  %v4947 = vpop.f32.mrf.mxu0
  %v4948 = vpop.f32.mrf.mxu0
  %v4949 = vadd.f32 0.0, %v4948
  %v4950 = vpop.f32.mrf.mxu0
  %4951 = vmatprep.mubr.bf16.mxu0 %v4671
  %4952 = vmatmul.mubr.bf16.gmra.mxu0 %v4429
  %v4953 = vpop.f32.mrf.mxu0
  %v4954 = vadd.f32 0.0, %v4953
  %v4955 = vpop.f32.mrf.mxu0
  %v4956 = vpop.f32.mrf.mxu0
  %v4957 = vadd.f32 0.0, %v4956
  %v4958 = vpop.f32.mrf.mxu0
  %4959 = vmatprep.mubr.bf16.mxu0 %v4674
  %4960 = vmatmul.mubr.bf16.gmra.mxu0 %v4447
  %v4961 = vpop.f32.mrf.mxu0
  %v4962 = vadd.f32 0.0, %v4961
  %v4963 = vpop.f32.mrf.mxu0
  %v4964 = vpop.f32.mrf.mxu0
  %v4965 = vadd.f32 0.0, %v4964
  %v4966 = vpop.f32.mrf.mxu0
  %4967 = vmatprep.mubr.bf16.mxu0 %v4677
  %4968 = vmatmul.mubr.bf16.gmra.mxu0 %v4465
  %v4969 = vpop.f32.mrf.mxu0
  %v4970 = vadd.f32 0.0, %v4969
  %v4971 = vpop.f32.mrf.mxu0
  %v4972 = vpop.f32.mrf.mxu0
  %v4973 = vadd.f32 0.0, %v4972
  %v4974 = vpop.f32.mrf.mxu0
  %4975 = vdwg.mxu0
  %v4976 = vadd.f32 %v3438, %v4714
  %v4977 = vadd.f32 %v3439, %v4717
  %v4978 = vadd.f32 %v3440, %v4722
  %v4979 = vadd.f32 %v3441, %v4725
  %v4980 = vadd.f32 %v3442, %v4730
  %v4981 = vadd.f32 %v3443, %v4733
  %v4982 = vadd.f32 %v3444, %v4738
  %v4983 = vadd.f32 %v3445, %v4741
  %v4984 = vadd.f32 %v3446, %v4746
  %v4985 = vadd.f32 %v3447, %v4749
  %v4986 = vadd.f32 %v3448, %v4754
  %v4987 = vadd.f32 %v3449, %v4757
  %v4988 = vadd.f32 %v3450, %v4762
  %v4989 = vadd.f32 %v3451, %v4765
  %v4990 = vadd.f32 %v3452, %v4770
  %v4991 = vadd.f32 %v3453, %v4773
  %v4992 = vadd.f32 %v3454, %v4778
  %v4993 = vadd.f32 %v3455, %v4781
  %v4994 = vadd.f32 %v3456, %v4786
  %v4995 = vadd.f32 %v3457, %v4789
  %v4996 = vadd.f32 %v3458, %v4794
  %v4997 = vadd.f32 %v3459, %v4797
  %v4998 = vadd.f32 %v3460, %v4802
  %v4999 = vadd.f32 %v3461, %v4805
  %v5000 = vadd.f32 %v3462, %v4810
  %v5001 = vadd.f32 %v3463, %v4813
  %v5002 = vadd.f32 %v3464, %v4818
  %v5003 = vadd.f32 %v3465, %v4821
  %v5004 = vadd.f32 %v3466, %v4826
  %v5005 = vadd.f32 %v3467, %v4829
  %v5006 = vadd.f32 %v3468, %v4834
  %v5007 = vadd.f32 %v3469, %v4837
  %v5008 = vadd.f32 %v3470, %v4842
  %v5009 = vadd.f32 %v3471, %v4845
  %v5010 = vadd.f32 %v3472, %v4850
  %v5011 = vadd.f32 %v3473, %v4853
  %v5012 = vadd.f32 %v3474, %v4858
  %v5013 = vadd.f32 %v3475, %v4861
  %v5014 = vadd.f32 %v3476, %v4866
  %v5015 = vadd.f32 %v3477, %v4869
  %v5016 = vadd.f32 %v3478, %v4874
  %v5017 = vadd.f32 %v3479, %v4877
  %v5018 = vadd.f32 %v3480, %v4882
  %v5019 = vadd.f32 %v3481, %v4885
  %v5020 = vadd.f32 %v3482, %v4890
  %v5021 = vadd.f32 %v3483, %v4893
  %v5022 = vadd.f32 %v3484, %v4898
  %v5023 = vadd.f32 %v3485, %v4901
  %v5024 = vadd.f32 %v3486, %v4906
  %v5025 = vadd.f32 %v3487, %v4909
  %v5026 = vadd.f32 %v3488, %v4914
  %v5027 = vadd.f32 %v3489, %v4917
  %v5028 = vadd.f32 %v3490, %v4922
  %v5029 = vadd.f32 %v3491, %v4925
  %v5030 = vadd.f32 %v3492, %v4930
  %v5031 = vadd.f32 %v3493, %v4933
  %v5032 = vadd.f32 %v3494, %v4938
  %v5033 = vadd.f32 %v3495, %v4941
  %v5034 = vadd.f32 %v3496, %v4946
  %v5035 = vadd.f32 %v3497, %v4949
  %v5036 = vadd.f32 %v3498, %v4954
  %v5037 = vadd.f32 %v3499, %v4957
  %v5038 = vadd.f32 %v3500, %v4962
  %v5039 = vadd.f32 %v3501, %v4965
  %v5040 = vadd.f32 %v3502, %v4970
  %v5041 = vadd.f32 %v3503, %v4973
  %5042 = vst.msk [vmem:[#allocation2 + $0x20] sm:$0xff] %vm24, %v4976
  %5043 = vst.msk [vmem:[#allocation2 + $0x28] sm:$0xff] %vm24, %v4977
  %5044 = vst.msk [vmem:[#allocation2 + $0x30] sm:$0xff] %vm24, %v4978
  %5045 = vst.msk [vmem:[#allocation2 + $0x38] sm:$0xff] %vm24, %v4979
  %5046 = vst.msk [vmem:[#allocation2 + $0x40] sm:$0xff] %vm24, %v4980
  %5047 = vst.msk [vmem:[#allocation2 + $0x48] sm:$0xff] %vm24, %v4981
  %5048 = vst.msk [vmem:[#allocation2 + $0x50] sm:$0xff] %vm24, %v4982
  %5049 = vst.msk [vmem:[#allocation2 + $0x58] sm:$0xff] %vm24, %v4983
  %5050 = vst.msk [vmem:[#allocation2 + $0x60] sm:$0xff] %vm24, %v4984
  %5051 = vst.msk [vmem:[#allocation2 + $0x68] sm:$0xff] %vm24, %v4985
  %5052 = vst.msk [vmem:[#allocation2 + $0x70] sm:$0xff] %vm24, %v4986
  %5053 = vst.msk [vmem:[#allocation2 + $0x78] sm:$0xff] %vm24, %v4987
  %5054 = vst.msk [vmem:[#allocation2 + $0x80] sm:$0xff] %vm24, %v4988
  %5055 = vst.msk [vmem:[#allocation2 + $0x88] sm:$0xff] %vm24, %v4989
  %5056 = vst.msk [vmem:[#allocation2 + $0x90] sm:$0xff] %vm24, %v4990
  %5057 = vst.msk [vmem:[#allocation2 + $0x98] sm:$0xff] %vm24, %v4991
  %5058 = vst.msk [vmem:[#allocation2 + $0xa0] sm:$0xff] %vm24, %v4992
  %5059 = vst.msk [vmem:[#allocation2 + $0xa8] sm:$0xff] %vm24, %v4993
  %5060 = vst.msk [vmem:[#allocation2 + $0xb0] sm:$0xff] %vm24, %v4994
  %5061 = vst.msk [vmem:[#allocation2 + $0xb8] sm:$0xff] %vm24, %v4995
  %5062 = vst.msk [vmem:[#allocation2 + $0xc0] sm:$0xff] %vm24, %v4996
  %5063 = vst.msk [vmem:[#allocation2 + $0xc8] sm:$0xff] %vm24, %v4997
  %5064 = vst.msk [vmem:[#allocation2 + $0xd0] sm:$0xff] %vm24, %v4998
  %5065 = vst.msk [vmem:[#allocation2 + $0xd8] sm:$0xff] %vm24, %v4999
  %5066 = vst.msk [vmem:[#allocation2 + $0xe0] sm:$0xff] %vm24, %v5000
  %5067 = vst.msk [vmem:[#allocation2 + $0xe8] sm:$0xff] %vm24, %v5001
  %5068 = vst.msk [vmem:[#allocation2 + $0xf0] sm:$0xff] %vm24, %v5002
  %5069 = vst.msk [vmem:[#allocation2 + $0xf8] sm:$0xff] %vm24, %v5003
  %5070 = vst.msk [vmem:[#allocation2 + $0x100] sm:$0xff] %vm24, %v5004
  %5071 = vst.msk [vmem:[#allocation2 + $0x108] sm:$0xff] %vm24, %v5005
  %5072 = vst.msk [vmem:[#allocation2 + $0x110] sm:$0xff] %vm24, %v5006
  %5073 = vst.msk [vmem:[#allocation2 + $0x118] sm:$0xff] %vm24, %v5007
  %5074 = vst.msk [vmem:[#allocation2 + $0x120] sm:$0xff] %vm24, %v5008
  %5075 = vst.msk [vmem:[#allocation2 + $0x128] sm:$0xff] %vm24, %v5009
  %5076 = vst.msk [vmem:[#allocation2 + $0x130] sm:$0xff] %vm24, %v5010
  %5077 = vst.msk [vmem:[#allocation2 + $0x138] sm:$0xff] %vm24, %v5011
  %5078 = vst.msk [vmem:[#allocation2 + $0x140] sm:$0xff] %vm24, %v5012
  %5079 = vst.msk [vmem:[#allocation2 + $0x148] sm:$0xff] %vm24, %v5013
  %5080 = vst.msk [vmem:[#allocation2 + $0x150] sm:$0xff] %vm24, %v5014
  %5081 = vst.msk [vmem:[#allocation2 + $0x158] sm:$0xff] %vm24, %v5015
  %5082 = vst.msk [vmem:[#allocation2 + $0x160] sm:$0xff] %vm24, %v5016
  %5083 = vst.msk [vmem:[#allocation2 + $0x168] sm:$0xff] %vm24, %v5017
  %5084 = vst.msk [vmem:[#allocation2 + $0x170] sm:$0xff] %vm24, %v5018
  %5085 = vst.msk [vmem:[#allocation2 + $0x178] sm:$0xff] %vm24, %v5019
  %5086 = vst.msk [vmem:[#allocation2 + $0x180] sm:$0xff] %vm24, %v5020
  %5087 = vst.msk [vmem:[#allocation2 + $0x188] sm:$0xff] %vm24, %v5021
  %5088 = vst.msk [vmem:[#allocation2 + $0x190] sm:$0xff] %vm24, %v5022
  %5089 = vst.msk [vmem:[#allocation2 + $0x198] sm:$0xff] %vm24, %v5023
  %5090 = vst.msk [vmem:[#allocation2 + $0x1a0] sm:$0xff] %vm24, %v5024
  %5091 = vst.msk [vmem:[#allocation2 + $0x1a8] sm:$0xff] %vm24, %v5025
  %5092 = vst.msk [vmem:[#allocation2 + $0x1b0] sm:$0xff] %vm24, %v5026
  %5093 = vst.msk [vmem:[#allocation2 + $0x1b8] sm:$0xff] %vm24, %v5027
  %5094 = vst.msk [vmem:[#allocation2 + $0x1c0] sm:$0xff] %vm24, %v5028
  %5095 = vst.msk [vmem:[#allocation2 + $0x1c8] sm:$0xff] %vm24, %v5029
  %5096 = vst.msk [vmem:[#allocation2 + $0x1d0] sm:$0xff] %vm24, %v5030
  %5097 = vst.msk [vmem:[#allocation2 + $0x1d8] sm:$0xff] %vm24, %v5031
  %5098 = vst.msk [vmem:[#allocation2 + $0x1e0] sm:$0xff] %vm24, %v5032
  %5099 = vst.msk [vmem:[#allocation2 + $0x1e8] sm:$0xff] %vm24, %v5033
  %5100 = vst.msk [vmem:[#allocation2 + $0x1f0] sm:$0xff] %vm24, %v5034
  %5101 = vst.msk [vmem:[#allocation2 + $0x1f8] sm:$0xff] %vm24, %v5035
  %5102 = vst.msk [vmem:[#allocation2 + $0x200] sm:$0xff] %vm24, %v5036
  %5103 = vst.msk [vmem:[#allocation2 + $0x208] sm:$0xff] %vm24, %v5037
  %5104 = vst.msk [vmem:[#allocation2 + $0x210] sm:$0xff] %vm24, %v5038
  %5105 = vst.msk [vmem:[#allocation2 + $0x218] sm:$0xff] %vm24, %v5039
  %5106 = vst.msk [vmem:[#allocation2 + $0x220] sm:$0xff] %vm24, %v5040
  %5107 = vst.msk [vmem:[#allocation2 + $0x228] sm:$0xff] %vm24, %v5041
  %v5108 = vld [vmem:[#allocation2 + $0x20] sm:$0xff]
  %v5109 = vld [vmem:[#allocation2 + $0x28] sm:$0xff]
  %v5110 = vld [vmem:[#allocation2 + $0x30] sm:$0xff]
  %v5111 = vld [vmem:[#allocation2 + $0x38] sm:$0xff]
  %v5112 = vld [vmem:[#allocation2 + $0x40] sm:$0xff]
  %v5113 = vld [vmem:[#allocation2 + $0x48] sm:$0xff]
  %v5114 = vld [vmem:[#allocation2 + $0x50] sm:$0xff]
  %v5115 = vld [vmem:[#allocation2 + $0x58] sm:$0xff]
  %v5116 = vld [vmem:[#allocation2 + $0x60] sm:$0xff]
  %v5117 = vld [vmem:[#allocation2 + $0x68] sm:$0xff]
  %v5118 = vld [vmem:[#allocation2 + $0x70] sm:$0xff]
  %v5119 = vld [vmem:[#allocation2 + $0x78] sm:$0xff]
  %v5120 = vld [vmem:[#allocation2 + $0x80] sm:$0xff]
  %v5121 = vld [vmem:[#allocation2 + $0x88] sm:$0xff]
  %v5122 = vld [vmem:[#allocation2 + $0x90] sm:$0xff]
  %v5123 = vld [vmem:[#allocation2 + $0x98] sm:$0xff]
  %v5124 = vld [vmem:[#allocation2 + $0xa0] sm:$0xff]
  %v5125 = vld [vmem:[#allocation2 + $0xa8] sm:$0xff]
  %v5126 = vld [vmem:[#allocation2 + $0xb0] sm:$0xff]
  %v5127 = vld [vmem:[#allocation2 + $0xb8] sm:$0xff]
  %v5128 = vld [vmem:[#allocation2 + $0xc0] sm:$0xff]
  %v5129 = vld [vmem:[#allocation2 + $0xc8] sm:$0xff]
  %v5130 = vld [vmem:[#allocation2 + $0xd0] sm:$0xff]
  %v5131 = vld [vmem:[#allocation2 + $0xd8] sm:$0xff]
  %v5132 = vld [vmem:[#allocation2 + $0xe0] sm:$0xff]
  %v5133 = vld [vmem:[#allocation2 + $0xe8] sm:$0xff]
  %v5134 = vld [vmem:[#allocation2 + $0xf0] sm:$0xff]
  %v5135 = vld [vmem:[#allocation2 + $0xf8] sm:$0xff]
  %v5136 = vld [vmem:[#allocation2 + $0x100] sm:$0xff]
  %v5137 = vld [vmem:[#allocation2 + $0x108] sm:$0xff]
  %v5138 = vld [vmem:[#allocation2 + $0x110] sm:$0xff]
  %v5139 = vld [vmem:[#allocation2 + $0x118] sm:$0xff]
  %v5140 = vld [vmem:[#allocation2 + $0x120] sm:$0xff]
  %v5141 = vld [vmem:[#allocation2 + $0x128] sm:$0xff]
  %v5142 = vld [vmem:[#allocation2 + $0x130] sm:$0xff]
  %v5143 = vld [vmem:[#allocation2 + $0x138] sm:$0xff]
  %v5144 = vld [vmem:[#allocation2 + $0x140] sm:$0xff]
  %v5145 = vld [vmem:[#allocation2 + $0x148] sm:$0xff]
  %v5146 = vld [vmem:[#allocation2 + $0x150] sm:$0xff]
  %v5147 = vld [vmem:[#allocation2 + $0x158] sm:$0xff]
  %v5148 = vld [vmem:[#allocation2 + $0x160] sm:$0xff]
  %v5149 = vld [vmem:[#allocation2 + $0x168] sm:$0xff]
  %v5150 = vld [vmem:[#allocation2 + $0x170] sm:$0xff]
  %v5151 = vld [vmem:[#allocation2 + $0x178] sm:$0xff]
  %v5152 = vld [vmem:[#allocation2 + $0x180] sm:$0xff]
  %v5153 = vld [vmem:[#allocation2 + $0x188] sm:$0xff]
  %v5154 = vld [vmem:[#allocation2 + $0x190] sm:$0xff]
  %v5155 = vld [vmem:[#allocation2 + $0x198] sm:$0xff]
  %v5156 = vld [vmem:[#allocation2 + $0x1a0] sm:$0xff]
  %v5157 = vld [vmem:[#allocation2 + $0x1a8] sm:$0xff]
  %v5158 = vld [vmem:[#allocation2 + $0x1b0] sm:$0xff]
  %v5159 = vld [vmem:[#allocation2 + $0x1b8] sm:$0xff]
  %v5160 = vld [vmem:[#allocation2 + $0x1c0] sm:$0xff]
  %v5161 = vld [vmem:[#allocation2 + $0x1c8] sm:$0xff]
  %v5162 = vld [vmem:[#allocation2 + $0x1d0] sm:$0xff]
  %v5163 = vld [vmem:[#allocation2 + $0x1d8] sm:$0xff]
  %v5164 = vld [vmem:[#allocation2 + $0x1e0] sm:$0xff]
  %v5165 = vld [vmem:[#allocation2 + $0x1e8] sm:$0xff]
  %v5166 = vld [vmem:[#allocation2 + $0x1f0] sm:$0xff]
  %v5167 = vld [vmem:[#allocation2 + $0x1f8] sm:$0xff]
  %v5168 = vld [vmem:[#allocation2 + $0x200] sm:$0xff]
  %v5169 = vld [vmem:[#allocation2 + $0x208] sm:$0xff]
  %v5170 = vld [vmem:[#allocation2 + $0x210] sm:$0xff]
  %v5171 = vld [vmem:[#allocation2 + $0x218] sm:$0xff]
  %v5172 = vld [vmem:[#allocation2 + $0x220] sm:$0xff]
  %v5173 = vld [vmem:[#allocation2 + $0x228] sm:$0xff]
  %v5174 = vld [vmem:[#allocation3 + $0x28] sm:$0x88]
  %v5175 = vld [vmem:[#allocation3 + $0x30] sm:$0xff]
  %v5176 = vld [vmem:[#allocation3 + $0x38] sm:$0xff]
  %v5177 = vld [vmem:[#allocation3 + $0x40] sm:$0xff]
  %v5178 = vld [vmem:[#allocation3 + $0x48] sm:$0xff]
  %v5179 = vld [vmem:[#allocation3 + $0x50] sm:$0xff]
  %v5180 = vld [vmem:[#allocation3 + $0x58] sm:$0xff]
  %v5181 = vld [vmem:[#allocation3 + $0x60] sm:$0xff]
  %v5182 = vld [vmem:[#allocation3 + $0x68] sm:$0xff]
  %v5183 = vld [vmem:[#allocation3 + $0x70] sm:$0xff]
  %v5184 = vld [vmem:[#allocation3 + $0x78] sm:$0xff]
  %v5185 = vld [vmem:[#allocation3 + $0x80] sm:$0xff]
  %v5186 = vld [vmem:[#allocation3 + $0x88] sm:$0xff]
  %v5187 = vld [vmem:[#allocation3 + $0x90] sm:$0xff]
  %v5188 = vld [vmem:[#allocation3 + $0x98] sm:$0xff]
  %v5189 = vld [vmem:[#allocation3 + $0xa0] sm:$0xff]
  %v5190 = vld [vmem:[#allocation3 + $0xa8] sm:$0xff]
  %v5191 = vld [vmem:[#allocation3 + $0xb0] sm:$0xff]
  %v5192 = vld [vmem:[#allocation3 + $0xb8] sm:$0xff]
  %v5193 = vld [vmem:[#allocation3 + $0xc0] sm:$0xff]
  %v5194 = vld [vmem:[#allocation3 + $0xc8] sm:$0xff]
  %v5195 = vld [vmem:[#allocation3 + $0xd0] sm:$0xff]
  %v5196 = vld [vmem:[#allocation3 + $0xd8] sm:$0xff]
  %v5197 = vld [vmem:[#allocation3 + $0xe0] sm:$0xff]
  %v5198 = vld [vmem:[#allocation3 + $0xe8] sm:$0xff]
  %v5199 = vld [vmem:[#allocation3 + $0xf0] sm:$0xff]
  %v5200 = vld [vmem:[#allocation3 + $0xf8] sm:$0xff]
  %v5201 = vld [vmem:[#allocation3 + $0x100] sm:$0xff]
  %v5202 = vld [vmem:[#allocation3 + $0x108] sm:$0xff]
  %v5203 = vld [vmem:[#allocation3 + $0x110] sm:$0xff]
  %v5204 = vld [vmem:[#allocation3 + $0x118] sm:$0xff]
  %v5205 = vld [vmem:[#allocation3 + $0x120] sm:$0xff]
  %v5206 = vld [vmem:[#allocation3 + $0x128] sm:$0xff]
  %v5207 = vld [vmem:[#allocation3 + $0x130] sm:$0xff]
  %v5208 = vld [vmem:[#allocation3 + $0x138] sm:$0xff]
  %v5209 = vld [vmem:[#allocation3 + $0x140] sm:$0xff]
  %v5210 = vld [vmem:[#allocation3 + $0x148] sm:$0xff]
  %v5211 = vld [vmem:[#allocation3 + $0x150] sm:$0xff]
  %v5212 = vld [vmem:[#allocation3 + $0x158] sm:$0xff]
  %v5213 = vld [vmem:[#allocation3 + $0x160] sm:$0xff]
  %v5214 = vld [vmem:[#allocation3 + $0x168] sm:$0xff]
  %v5215 = vld [vmem:[#allocation3 + $0x170] sm:$0xff]
  %v5216 = vld [vmem:[#allocation3 + $0x178] sm:$0xff]
  %v5217 = vld [vmem:[#allocation3 + $0x180] sm:$0xff]
  %v5218 = vld [vmem:[#allocation3 + $0x188] sm:$0xff]
  %v5219 = vld [vmem:[#allocation3 + $0x190] sm:$0xff]
  %v5220 = vld [vmem:[#allocation3 + $0x198] sm:$0xff]
  %v5221 = vld [vmem:[#allocation3 + $0x1a0] sm:$0xff]
  %v5222 = vld [vmem:[#allocation3 + $0x1a8] sm:$0xff]
  %v5223 = vld [vmem:[#allocation3 + $0x1b0] sm:$0xff]
  %v5224 = vld [vmem:[#allocation3 + $0x1b8] sm:$0xff]
  %v5225 = vld [vmem:[#allocation3 + $0x1c0] sm:$0xff]
  %v5226 = vld [vmem:[#allocation3 + $0x1c8] sm:$0xff]
  %v5227 = vld [vmem:[#allocation3 + $0x1d0] sm:$0xff]
  %v5228 = vld [vmem:[#allocation3 + $0x1d8] sm:$0xff]
  %v5229 = vld [vmem:[#allocation3 + $0x1e0] sm:$0xff]
  %v5230 = vld [vmem:[#allocation3 + $0x1e8] sm:$0xff]
  %v5231 = vld [vmem:[#allocation3 + $0x1f0] sm:$0xff]
  %v5232 = vld [vmem:[#allocation3 + $0x1f8] sm:$0xff]
  %v5233 = vld [vmem:[#allocation3 + $0x200] sm:$0xff]
  %v5234 = vld [vmem:[#allocation3 + $0x208] sm:$0xff]
  %v5235 = vld [vmem:[#allocation3 + $0x210] sm:$0xff]
  %v5236 = vld [vmem:[#allocation3 + $0x218] sm:$0xff]
  %v5237 = vld [vmem:[#allocation3 + $0x220] sm:$0xff]
  %v5238 = vld [vmem:[#allocation3 + $0x228] sm:$0xff]
  %v5239 = vld [vmem:[#allocation3 + $0x230] sm:$0xff]
  %v5240 = vld [vmem:[#allocation3 + $0x238] sm:$0xff]
  %s5241 = scalar_lea.vmem %s0, 192
  %v5242 = vld [vmem:[%s5241] sm:$0xf]
  %v5243 = vld [vmem:[%s5241 + $0x4] sm:$0xf]
  %v5244 = vld [vmem:[%s5241 + $0x8] sm:$0xf]
  %v5245 = vld [vmem:[%s5241 + $0xc] sm:$0xf]
  %v5246 = vld [vmem:[%s5241 + $0x10] sm:$0xf]
  %v5247 = vld [vmem:[%s5241 + $0x14] sm:$0xf]
  %v5248 = vld [vmem:[%s5241 + $0x18] sm:$0xf]
  %v5249 = vld [vmem:[%s5241 + $0x1c] sm:$0xf]
  %v5250 = vld [vmem:[%s5241 + $0x20] sm:$0xf]
  %v5251 = vld [vmem:[%s5241 + $0x24] sm:$0xf]
  %v5252 = vld [vmem:[%s5241 + $0x28] sm:$0xf]
  %v5253 = vld [vmem:[%s5241 + $0x2c] sm:$0xf]
  %v5254 = vld [vmem:[%s5241 + $0x30] sm:$0xf]
  %v5255 = vld [vmem:[%s5241 + $0x34] sm:$0xf]
  %v5256 = vld [vmem:[%s5241 + $0x38] sm:$0xf]
  %v5257 = vld [vmem:[%s5241 + $0x3c] sm:$0xf]
  %v5258 = vld [vmem:[%s5241 + $0x40] sm:$0xf]
  %v5259 = vld [vmem:[%s5241 + $0x44] sm:$0xf]
  %v5260 = vld [vmem:[%s5241 + $0x48] sm:$0xf]
  %v5261 = vld [vmem:[%s5241 + $0x4c] sm:$0xf]
  %v5262 = vld [vmem:[%s5241 + $0x50] sm:$0xf]
  %v5263 = vld [vmem:[%s5241 + $0x54] sm:$0xf]
  %v5264 = vld [vmem:[%s5241 + $0x58] sm:$0xf]
  %v5265 = vld [vmem:[%s5241 + $0x5c] sm:$0xf]
  %v5333 = vunpack.c.l.b16 %v5174
  %v5334 = vunpack.c.h.b16 %v5174
  %v5335 = vunpack.c.l.b16 %v5175
  %v5336 = vunpack.c.h.b16 %v5175
  %v5337 = vunpack.c.l.b16 %v5176
  %v5338 = vunpack.c.h.b16 %v5176
  %v5339 = vunpack.c.l.b16 %v5177
  %v5340 = vunpack.c.h.b16 %v5177
  %v5341 = vunpack.c.l.b16 %v5178
  %v5342 = vunpack.c.h.b16 %v5178
  %v5343 = vunpack.c.l.b16 %v5179
  %v5344 = vunpack.c.h.b16 %v5179
  %v5345 = vunpack.c.l.b16 %v5180
  %v5346 = vunpack.c.h.b16 %v5180
  %v5347 = vunpack.c.l.b16 %v5181
  %v5348 = vunpack.c.h.b16 %v5181
  %v5349 = vunpack.c.l.b16 %v5182
  %v5350 = vunpack.c.h.b16 %v5182
  %v5351 = vunpack.c.l.b16 %v5183
  %v5352 = vunpack.c.h.b16 %v5183
  %v5353 = vunpack.c.l.b16 %v5184
  %v5354 = vunpack.c.h.b16 %v5184
  %v5355 = vunpack.c.l.b16 %v5185
  %v5356 = vunpack.c.h.b16 %v5185
  %v5357 = vunpack.c.l.b16 %v5186
  %v5358 = vunpack.c.h.b16 %v5186
  %v5359 = vunpack.c.l.b16 %v5187
  %v5360 = vunpack.c.h.b16 %v5187
  %v5361 = vunpack.c.l.b16 %v5188
  %v5362 = vunpack.c.h.b16 %v5188
  %v5363 = vunpack.c.l.b16 %v5189
  %v5364 = vunpack.c.h.b16 %v5189
  %v5365 = vunpack.c.l.b16 %v5190
  %v5366 = vunpack.c.h.b16 %v5190
  %v5367 = vunpack.c.l.b16 %v5191
  %v5368 = vunpack.c.h.b16 %v5191
  %v5369 = vunpack.c.l.b16 %v5192
  %v5370 = vunpack.c.h.b16 %v5192
  %v5371 = vunpack.c.l.b16 %v5193
  %v5372 = vunpack.c.h.b16 %v5193
  %v5373 = vunpack.c.l.b16 %v5194
  %v5374 = vunpack.c.h.b16 %v5194
  %v5375 = vunpack.c.l.b16 %v5195
  %v5376 = vunpack.c.h.b16 %v5195
  %v5377 = vunpack.c.l.b16 %v5196
  %v5378 = vunpack.c.h.b16 %v5196
  %v5379 = vunpack.c.l.b16 %v5197
  %v5380 = vunpack.c.h.b16 %v5197
  %v5381 = vunpack.c.l.b16 %v5198
  %v5382 = vunpack.c.h.b16 %v5198
  %v5383 = vunpack.c.l.b16 %v5199
  %v5384 = vunpack.c.h.b16 %v5199
  %v5385 = vunpack.c.l.b16 %v5200
  %v5386 = vunpack.c.h.b16 %v5200
  %v5387 = vunpack.c.l.b16 %v5201
  %v5388 = vunpack.c.h.b16 %v5201
  %v5389 = vunpack.c.l.b16 %v5202
  %v5390 = vunpack.c.h.b16 %v5202
  %v5391 = vunpack.c.l.b16 %v5203
  %v5392 = vunpack.c.h.b16 %v5203
  %v5393 = vunpack.c.l.b16 %v5204
  %v5394 = vunpack.c.h.b16 %v5204
  %v5395 = vunpack.c.l.b16 %v5205
  %v5396 = vunpack.c.h.b16 %v5205
  %v5397 = vunpack.c.l.b16 %v5206
  %v5398 = vunpack.c.h.b16 %v5206
  %v5399 = vunpack.c.l.b16 %v5207
  %v5400 = vunpack.c.h.b16 %v5207
  %v5401 = vunpack.c.l.b16 %v5208
  %v5402 = vunpack.c.h.b16 %v5208
  %v5403 = vunpack.c.l.b16 %v5209
  %v5404 = vunpack.c.h.b16 %v5209
  %v5405 = vunpack.c.l.b16 %v5210
  %v5406 = vunpack.c.h.b16 %v5210
  %v5407 = vunpack.c.l.b16 %v5211
  %v5408 = vunpack.c.h.b16 %v5211
  %v5409 = vunpack.c.l.b16 %v5212
  %v5410 = vunpack.c.h.b16 %v5212
  %v5411 = vunpack.c.l.b16 %v5213
  %v5412 = vunpack.c.h.b16 %v5213
  %v5413 = vunpack.c.l.b16 %v5214
  %v5414 = vunpack.c.h.b16 %v5214
  %v5415 = vunpack.c.l.b16 %v5215
  %v5416 = vunpack.c.h.b16 %v5215
  %v5417 = vunpack.c.l.b16 %v5216
  %v5418 = vunpack.c.h.b16 %v5216
  %v5419 = vunpack.c.l.b16 %v5217
  %v5420 = vunpack.c.h.b16 %v5217
  %v5421 = vunpack.c.l.b16 %v5218
  %v5422 = vunpack.c.h.b16 %v5218
  %v5423 = vunpack.c.l.b16 %v5219
  %v5424 = vunpack.c.h.b16 %v5219
  %v5425 = vunpack.c.l.b16 %v5220
  %v5426 = vunpack.c.h.b16 %v5220
  %v5427 = vunpack.c.l.b16 %v5221
  %v5428 = vunpack.c.h.b16 %v5221
  %v5429 = vunpack.c.l.b16 %v5222
  %v5430 = vunpack.c.h.b16 %v5222
  %v5431 = vunpack.c.l.b16 %v5223
  %v5432 = vunpack.c.h.b16 %v5223
  %v5433 = vunpack.c.l.b16 %v5224
  %v5434 = vunpack.c.h.b16 %v5224
  %v5435 = vunpack.c.l.b16 %v5225
  %v5436 = vunpack.c.h.b16 %v5225
  %v5437 = vunpack.c.l.b16 %v5226
  %v5438 = vunpack.c.h.b16 %v5226
  %v5439 = vunpack.c.l.b16 %v5227
  %v5440 = vunpack.c.h.b16 %v5227
  %v5441 = vunpack.c.l.b16 %v5228
  %v5442 = vunpack.c.h.b16 %v5228
  %v5443 = vunpack.c.l.b16 %v5229
  %v5444 = vunpack.c.h.b16 %v5229
  %v5445 = vunpack.c.l.b16 %v5230
  %v5446 = vunpack.c.h.b16 %v5230
  %v5447 = vunpack.c.l.b16 %v5231
  %v5448 = vunpack.c.h.b16 %v5231
  %v5449 = vunpack.c.l.b16 %v5232
  %v5450 = vunpack.c.h.b16 %v5232
  %v5451 = vunpack.c.l.b16 %v5233
  %v5452 = vunpack.c.h.b16 %v5233
  %v5453 = vunpack.c.l.b16 %v5234
  %v5454 = vunpack.c.h.b16 %v5234
  %v5455 = vunpack.c.l.b16 %v5235
  %v5456 = vunpack.c.h.b16 %v5235
  %v5457 = vunpack.c.l.b16 %v5236
  %v5458 = vunpack.c.h.b16 %v5236
  %v5459 = vunpack.c.l.b16 %v5237
  %v5460 = vunpack.c.h.b16 %v5237
  %v5461 = vunpack.c.l.b16 %v5238
  %v5462 = vunpack.c.h.b16 %v5238
  %v5463 = vunpack.c.l.b16 %v5239
  %v5464 = vunpack.c.h.b16 %v5239
  %v5465 = vunpack.c.l.b16 %v5240
  %v5466 = vunpack.c.h.b16 %v5240
  %v5467 = vpack.c.b16 %v5335, %v5333
  %v5468 = vpack.c.b16 %v5336, %v5334
  %v5469 = vpack.c.b16 %v5339, %v5337
  %v5470 = vpack.c.b16 %v5340, %v5338
  %v5471 = vpack.c.b16 %v5343, %v5341
  %v5472 = vpack.c.b16 %v5344, %v5342
  %v5473 = vpack.c.b16 %v5347, %v5345
  %v5474 = vpack.c.b16 %v5348, %v5346
  %v5475 = vpack.c.b16 %v5351, %v5349
  %v5476 = vpack.c.b16 %v5352, %v5350
  %v5477 = vpack.c.b16 %v5355, %v5353
  %v5478 = vpack.c.b16 %v5356, %v5354
  %v5479 = vpack.c.b16 %v5359, %v5357
  %v5480 = vpack.c.b16 %v5360, %v5358
  %v5481 = vpack.c.b16 %v5363, %v5361
  %v5482 = vpack.c.b16 %v5364, %v5362
  %v5483 = vpack.c.b16 %v5367, %v5365
  %v5484 = vpack.c.b16 %v5368, %v5366
  %v5485 = vpack.c.b16 %v5371, %v5369
  %v5486 = vpack.c.b16 %v5372, %v5370
  %v5487 = vpack.c.b16 %v5375, %v5373
  %v5488 = vpack.c.b16 %v5376, %v5374
  %v5489 = vpack.c.b16 %v5379, %v5377
  %v5490 = vpack.c.b16 %v5380, %v5378
  %v5491 = vpack.c.b16 %v5383, %v5381
  %v5492 = vpack.c.b16 %v5384, %v5382
  %v5493 = vpack.c.b16 %v5387, %v5385
  %v5494 = vpack.c.b16 %v5388, %v5386
  %v5495 = vpack.c.b16 %v5391, %v5389
  %v5496 = vpack.c.b16 %v5392, %v5390
  %v5497 = vpack.c.b16 %v5395, %v5393
  %v5498 = vpack.c.b16 %v5396, %v5394
  %v5499 = vpack.c.b16 %v5399, %v5397
  %v5500 = vpack.c.b16 %v5400, %v5398
  %v5501 = vpack.c.b16 %v5403, %v5401
  %v5502 = vpack.c.b16 %v5404, %v5402
  %v5503 = vpack.c.b16 %v5407, %v5405
  %v5504 = vpack.c.b16 %v5408, %v5406
  %v5505 = vpack.c.b16 %v5411, %v5409
  %v5506 = vpack.c.b16 %v5412, %v5410
  %v5507 = vpack.c.b16 %v5415, %v5413
  %v5508 = vpack.c.b16 %v5416, %v5414
  %v5509 = vpack.c.b16 %v5419, %v5417
  %v5510 = vpack.c.b16 %v5420, %v5418
  %v5511 = vpack.c.b16 %v5423, %v5421
  %v5512 = vpack.c.b16 %v5424, %v5422
  %v5513 = vpack.c.b16 %v5427, %v5425
  %v5514 = vpack.c.b16 %v5428, %v5426
  %v5515 = vpack.c.b16 %v5431, %v5429
  %v5516 = vpack.c.b16 %v5432, %v5430
  %v5517 = vpack.c.b16 %v5435, %v5433
  %v5518 = vpack.c.b16 %v5436, %v5434
  %v5519 = vpack.c.b16 %v5439, %v5437
  %v5520 = vpack.c.b16 %v5440, %v5438
  %v5521 = vpack.c.b16 %v5443, %v5441
  %v5522 = vpack.c.b16 %v5444, %v5442
  %v5523 = vpack.c.b16 %v5447, %v5445
  %v5524 = vpack.c.b16 %v5448, %v5446
  %v5525 = vpack.c.b16 %v5451, %v5449
  %v5526 = vpack.c.b16 %v5452, %v5450
  %v5527 = vpack.c.b16 %v5455, %v5453
  %v5528 = vpack.c.b16 %v5456, %v5454
  %v5529 = vpack.c.b16 %v5459, %v5457
  %v5530 = vpack.c.b16 %v5460, %v5458
  %v5531 = vpack.c.b16 %v5463, %v5461
  %v5532 = vpack.c.b16 %v5464, %v5462
  %v5533 = vpack.c.b16 %v5465, %v5465
  %v5534 = vpack.c.b16 %v5466, %v5466
  %v5536 = vshrl.u32 %v5467, 16
  %v5538 = vrot.slane %v5536, 3
  %v5539 = vshll.u32 %v5467, 16
  %v5541 = vrot.slane %v5539, 4
  %v5542 = vor.u32 %v5538, %v5541
  %v5544 = vshrl.u32 %v5469, 16
  %v5546 = vrot.slane %v5544, 3
  %v5547 = vshll.u32 %v5469, 16
  %v5549 = vrot.slane %v5547, 4
  %v5550 = vor.u32 %v5546, %v5549
  %v5551 = vsel %vm2260, %v5542, %v5550
  %v5553 = vshrl.u32 %v5468, 16
  %v5555 = vrot.slane %v5553, 3
  %v5556 = vshll.u32 %v5468, 16
  %v5558 = vrot.slane %v5556, 4
  %v5559 = vor.u32 %v5555, %v5558
  %v5561 = vshrl.u32 %v5470, 16
  %v5563 = vrot.slane %v5561, 3
  %v5564 = vshll.u32 %v5470, 16
  %v5566 = vrot.slane %v5564, 4
  %v5567 = vor.u32 %v5563, %v5566
  %v5568 = vsel %vm2260, %v5559, %v5567
  %v5570 = vshrl.u32 %v5471, 16
  %v5572 = vrot.slane %v5570, 3
  %v5573 = vshll.u32 %v5471, 16
  %v5575 = vrot.slane %v5573, 4
  %v5576 = vor.u32 %v5572, %v5575
  %v5577 = vsel %vm2260, %v5550, %v5576
  %v5579 = vshrl.u32 %v5472, 16
  %v5581 = vrot.slane %v5579, 3
  %v5582 = vshll.u32 %v5472, 16
  %v5584 = vrot.slane %v5582, 4
  %v5585 = vor.u32 %v5581, %v5584
  %v5586 = vsel %vm2260, %v5567, %v5585
  %v5588 = vshrl.u32 %v5473, 16
  %v5590 = vrot.slane %v5588, 3
  %v5591 = vshll.u32 %v5473, 16
  %v5593 = vrot.slane %v5591, 4
  %v5594 = vor.u32 %v5590, %v5593
  %v5595 = vsel %vm2260, %v5576, %v5594
  %v5597 = vshrl.u32 %v5474, 16
  %v5599 = vrot.slane %v5597, 3
  %v5600 = vshll.u32 %v5474, 16
  %v5602 = vrot.slane %v5600, 4
  %v5603 = vor.u32 %v5599, %v5602
  %v5604 = vsel %vm2260, %v5585, %v5603
  %v5606 = vshrl.u32 %v5475, 16
  %v5608 = vrot.slane %v5606, 3
  %v5609 = vshll.u32 %v5475, 16
  %v5611 = vrot.slane %v5609, 4
  %v5612 = vor.u32 %v5608, %v5611
  %v5613 = vsel %vm2260, %v5594, %v5612
  %v5615 = vshrl.u32 %v5476, 16
  %v5617 = vrot.slane %v5615, 3
  %v5618 = vshll.u32 %v5476, 16
  %v5620 = vrot.slane %v5618, 4
  %v5621 = vor.u32 %v5617, %v5620
  %v5622 = vsel %vm2260, %v5603, %v5621
  %v5624 = vshrl.u32 %v5477, 16
  %v5626 = vrot.slane %v5624, 3
  %v5627 = vshll.u32 %v5477, 16
  %v5629 = vrot.slane %v5627, 4
  %v5630 = vor.u32 %v5626, %v5629
  %v5631 = vsel %vm2260, %v5612, %v5630
  %v5633 = vshrl.u32 %v5478, 16
  %v5635 = vrot.slane %v5633, 3
  %v5636 = vshll.u32 %v5478, 16
  %v5638 = vrot.slane %v5636, 4
  %v5639 = vor.u32 %v5635, %v5638
  %v5640 = vsel %vm2260, %v5621, %v5639
  %v5642 = vshrl.u32 %v5479, 16
  %v5644 = vrot.slane %v5642, 3
  %v5645 = vshll.u32 %v5479, 16
  %v5647 = vrot.slane %v5645, 4
  %v5648 = vor.u32 %v5644, %v5647
  %v5649 = vsel %vm2260, %v5630, %v5648
  %v5651 = vshrl.u32 %v5480, 16
  %v5653 = vrot.slane %v5651, 3
  %v5654 = vshll.u32 %v5480, 16
  %v5656 = vrot.slane %v5654, 4
  %v5657 = vor.u32 %v5653, %v5656
  %v5658 = vsel %vm2260, %v5639, %v5657
  %v5660 = vshrl.u32 %v5481, 16
  %v5662 = vrot.slane %v5660, 3
  %v5663 = vshll.u32 %v5481, 16
  %v5665 = vrot.slane %v5663, 4
  %v5666 = vor.u32 %v5662, %v5665
  %v5667 = vsel %vm2260, %v5648, %v5666
  %v5669 = vshrl.u32 %v5482, 16
  %v5671 = vrot.slane %v5669, 3
  %v5672 = vshll.u32 %v5482, 16
  %v5674 = vrot.slane %v5672, 4
  %v5675 = vor.u32 %v5671, %v5674
  %v5676 = vsel %vm2260, %v5657, %v5675
  %v5678 = vshrl.u32 %v5483, 16
  %v5680 = vrot.slane %v5678, 3
  %v5681 = vshll.u32 %v5483, 16
  %v5683 = vrot.slane %v5681, 4
  %v5684 = vor.u32 %v5680, %v5683
  %v5685 = vsel %vm2260, %v5666, %v5684
  %v5687 = vshrl.u32 %v5484, 16
  %v5689 = vrot.slane %v5687, 3
  %v5690 = vshll.u32 %v5484, 16
  %v5692 = vrot.slane %v5690, 4
  %v5693 = vor.u32 %v5689, %v5692
  %v5694 = vsel %vm2260, %v5675, %v5693
  %v5696 = vshrl.u32 %v5485, 16
  %v5698 = vrot.slane %v5696, 3
  %v5699 = vshll.u32 %v5485, 16
  %v5701 = vrot.slane %v5699, 4
  %v5702 = vor.u32 %v5698, %v5701
  %v5703 = vsel %vm2260, %v5684, %v5702
  %v5705 = vshrl.u32 %v5486, 16
  %v5707 = vrot.slane %v5705, 3
  %v5708 = vshll.u32 %v5486, 16
  %v5710 = vrot.slane %v5708, 4
  %v5711 = vor.u32 %v5707, %v5710
  %v5712 = vsel %vm2260, %v5693, %v5711
  %v5714 = vshrl.u32 %v5487, 16
  %v5716 = vrot.slane %v5714, 3
  %v5717 = vshll.u32 %v5487, 16
  %v5719 = vrot.slane %v5717, 4
  %v5720 = vor.u32 %v5716, %v5719
  %v5721 = vsel %vm2260, %v5702, %v5720
  %v5723 = vshrl.u32 %v5488, 16
  %v5725 = vrot.slane %v5723, 3
  %v5726 = vshll.u32 %v5488, 16
  %v5728 = vrot.slane %v5726, 4
  %v5729 = vor.u32 %v5725, %v5728
  %v5730 = vsel %vm2260, %v5711, %v5729
  %v5732 = vshrl.u32 %v5489, 16
  %v5734 = vrot.slane %v5732, 3
  %v5735 = vshll.u32 %v5489, 16
  %v5737 = vrot.slane %v5735, 4
  %v5738 = vor.u32 %v5734, %v5737
  %v5739 = vsel %vm2260, %v5720, %v5738
  %v5741 = vshrl.u32 %v5490, 16
  %v5743 = vrot.slane %v5741, 3
  %v5744 = vshll.u32 %v5490, 16
  %v5746 = vrot.slane %v5744, 4
  %v5747 = vor.u32 %v5743, %v5746
  %v5748 = vsel %vm2260, %v5729, %v5747
  %v5750 = vshrl.u32 %v5491, 16
  %v5752 = vrot.slane %v5750, 3
  %v5753 = vshll.u32 %v5491, 16
  %v5755 = vrot.slane %v5753, 4
  %v5756 = vor.u32 %v5752, %v5755
  %v5757 = vsel %vm2260, %v5738, %v5756
  %v5759 = vshrl.u32 %v5492, 16
  %v5761 = vrot.slane %v5759, 3
  %v5762 = vshll.u32 %v5492, 16
  %v5764 = vrot.slane %v5762, 4
  %v5765 = vor.u32 %v5761, %v5764
  %v5766 = vsel %vm2260, %v5747, %v5765
  %v5768 = vshrl.u32 %v5493, 16
  %v5770 = vrot.slane %v5768, 3
  %v5771 = vshll.u32 %v5493, 16
  %v5773 = vrot.slane %v5771, 4
  %v5774 = vor.u32 %v5770, %v5773
  %v5775 = vsel %vm2260, %v5756, %v5774
  %v5777 = vshrl.u32 %v5494, 16
  %v5779 = vrot.slane %v5777, 3
  %v5780 = vshll.u32 %v5494, 16
  %v5782 = vrot.slane %v5780, 4
  %v5783 = vor.u32 %v5779, %v5782
  %v5784 = vsel %vm2260, %v5765, %v5783
  %v5786 = vshrl.u32 %v5495, 16
  %v5788 = vrot.slane %v5786, 3
  %v5789 = vshll.u32 %v5495, 16
  %v5791 = vrot.slane %v5789, 4
  %v5792 = vor.u32 %v5788, %v5791
  %v5793 = vsel %vm2260, %v5774, %v5792
  %v5795 = vshrl.u32 %v5496, 16
  %v5797 = vrot.slane %v5795, 3
  %v5798 = vshll.u32 %v5496, 16
  %v5800 = vrot.slane %v5798, 4
  %v5801 = vor.u32 %v5797, %v5800
  %v5802 = vsel %vm2260, %v5783, %v5801
  %v5804 = vshrl.u32 %v5497, 16
  %v5806 = vrot.slane %v5804, 3
  %v5807 = vshll.u32 %v5497, 16
  %v5809 = vrot.slane %v5807, 4
  %v5810 = vor.u32 %v5806, %v5809
  %v5811 = vsel %vm2260, %v5792, %v5810
  %v5813 = vshrl.u32 %v5498, 16
  %v5815 = vrot.slane %v5813, 3
  %v5816 = vshll.u32 %v5498, 16
  %v5818 = vrot.slane %v5816, 4
  %v5819 = vor.u32 %v5815, %v5818
  %v5820 = vsel %vm2260, %v5801, %v5819
  %v5822 = vshrl.u32 %v5499, 16
  %v5824 = vrot.slane %v5822, 3
  %v5825 = vshll.u32 %v5499, 16
  %v5827 = vrot.slane %v5825, 4
  %v5828 = vor.u32 %v5824, %v5827
  %v5829 = vsel %vm2260, %v5810, %v5828
  %v5831 = vshrl.u32 %v5500, 16
  %v5833 = vrot.slane %v5831, 3
  %v5834 = vshll.u32 %v5500, 16
  %v5836 = vrot.slane %v5834, 4
  %v5837 = vor.u32 %v5833, %v5836
  %v5838 = vsel %vm2260, %v5819, %v5837
  %v5840 = vshrl.u32 %v5501, 16
  %v5842 = vrot.slane %v5840, 3
  %v5843 = vshll.u32 %v5501, 16
  %v5845 = vrot.slane %v5843, 4
  %v5846 = vor.u32 %v5842, %v5845
  %v5847 = vsel %vm2260, %v5828, %v5846
  %v5849 = vshrl.u32 %v5502, 16
  %v5851 = vrot.slane %v5849, 3
  %v5852 = vshll.u32 %v5502, 16
  %v5854 = vrot.slane %v5852, 4
  %v5855 = vor.u32 %v5851, %v5854
  %v5856 = vsel %vm2260, %v5837, %v5855
  %v5858 = vshrl.u32 %v5503, 16
  %v5860 = vrot.slane %v5858, 3
  %v5861 = vshll.u32 %v5503, 16
  %v5863 = vrot.slane %v5861, 4
  %v5864 = vor.u32 %v5860, %v5863
  %v5865 = vsel %vm2260, %v5846, %v5864
  %v5867 = vshrl.u32 %v5504, 16
  %v5869 = vrot.slane %v5867, 3
  %v5870 = vshll.u32 %v5504, 16
  %v5872 = vrot.slane %v5870, 4
  %v5873 = vor.u32 %v5869, %v5872
  %v5874 = vsel %vm2260, %v5855, %v5873
  %v5876 = vshrl.u32 %v5505, 16
  %v5878 = vrot.slane %v5876, 3
  %v5879 = vshll.u32 %v5505, 16
  %v5881 = vrot.slane %v5879, 4
  %v5882 = vor.u32 %v5878, %v5881
  %v5883 = vsel %vm2260, %v5864, %v5882
  %v5885 = vshrl.u32 %v5506, 16
  %v5887 = vrot.slane %v5885, 3
  %v5888 = vshll.u32 %v5506, 16
  %v5890 = vrot.slane %v5888, 4
  %v5891 = vor.u32 %v5887, %v5890
  %v5892 = vsel %vm2260, %v5873, %v5891
  %v5894 = vshrl.u32 %v5507, 16
  %v5896 = vrot.slane %v5894, 3
  %v5897 = vshll.u32 %v5507, 16
  %v5899 = vrot.slane %v5897, 4
  %v5900 = vor.u32 %v5896, %v5899
  %v5901 = vsel %vm2260, %v5882, %v5900
  %v5903 = vshrl.u32 %v5508, 16
  %v5905 = vrot.slane %v5903, 3
  %v5906 = vshll.u32 %v5508, 16
  %v5908 = vrot.slane %v5906, 4
  %v5909 = vor.u32 %v5905, %v5908
  %v5910 = vsel %vm2260, %v5891, %v5909
  %v5912 = vshrl.u32 %v5509, 16
  %v5914 = vrot.slane %v5912, 3
  %v5915 = vshll.u32 %v5509, 16
  %v5917 = vrot.slane %v5915, 4
  %v5918 = vor.u32 %v5914, %v5917
  %v5919 = vsel %vm2260, %v5900, %v5918
  %v5921 = vshrl.u32 %v5510, 16
  %v5923 = vrot.slane %v5921, 3
  %v5924 = vshll.u32 %v5510, 16
  %v5926 = vrot.slane %v5924, 4
  %v5927 = vor.u32 %v5923, %v5926
  %v5928 = vsel %vm2260, %v5909, %v5927
  %v5930 = vshrl.u32 %v5511, 16
  %v5932 = vrot.slane %v5930, 3
  %v5933 = vshll.u32 %v5511, 16
  %v5935 = vrot.slane %v5933, 4
  %v5936 = vor.u32 %v5932, %v5935
  %v5937 = vsel %vm2260, %v5918, %v5936
  %v5939 = vshrl.u32 %v5512, 16
  %v5941 = vrot.slane %v5939, 3
  %v5942 = vshll.u32 %v5512, 16
  %v5944 = vrot.slane %v5942, 4
  %v5945 = vor.u32 %v5941, %v5944
  %v5946 = vsel %vm2260, %v5927, %v5945
  %v5948 = vshrl.u32 %v5513, 16
  %v5950 = vrot.slane %v5948, 3
  %v5951 = vshll.u32 %v5513, 16
  %v5953 = vrot.slane %v5951, 4
  %v5954 = vor.u32 %v5950, %v5953
  %v5955 = vsel %vm2260, %v5936, %v5954
  %v5957 = vshrl.u32 %v5514, 16
  %v5959 = vrot.slane %v5957, 3
  %v5960 = vshll.u32 %v5514, 16
  %v5962 = vrot.slane %v5960, 4
  %v5963 = vor.u32 %v5959, %v5962
  %v5964 = vsel %vm2260, %v5945, %v5963
  %v5966 = vshrl.u32 %v5515, 16
  %v5968 = vrot.slane %v5966, 3
  %v5969 = vshll.u32 %v5515, 16
  %v5971 = vrot.slane %v5969, 4
  %v5972 = vor.u32 %v5968, %v5971
  %v5973 = vsel %vm2260, %v5954, %v5972
  %v5975 = vshrl.u32 %v5516, 16
  %v5977 = vrot.slane %v5975, 3
  %v5978 = vshll.u32 %v5516, 16
  %v5980 = vrot.slane %v5978, 4
  %v5981 = vor.u32 %v5977, %v5980
  %v5982 = vsel %vm2260, %v5963, %v5981
  %v5984 = vshrl.u32 %v5517, 16
  %v5986 = vrot.slane %v5984, 3
  %v5987 = vshll.u32 %v5517, 16
  %v5989 = vrot.slane %v5987, 4
  %v5990 = vor.u32 %v5986, %v5989
  %v5991 = vsel %vm2260, %v5972, %v5990
  %v5993 = vshrl.u32 %v5518, 16
  %v5995 = vrot.slane %v5993, 3
  %v5996 = vshll.u32 %v5518, 16
  %v5998 = vrot.slane %v5996, 4
  %v5999 = vor.u32 %v5995, %v5998
  %v6000 = vsel %vm2260, %v5981, %v5999
  %v6002 = vshrl.u32 %v5519, 16
  %v6004 = vrot.slane %v6002, 3
  %v6005 = vshll.u32 %v5519, 16
  %v6007 = vrot.slane %v6005, 4
  %v6008 = vor.u32 %v6004, %v6007
  %v6009 = vsel %vm2260, %v5990, %v6008
  %v6011 = vshrl.u32 %v5520, 16
  %v6013 = vrot.slane %v6011, 3
  %v6014 = vshll.u32 %v5520, 16
  %v6016 = vrot.slane %v6014, 4
  %v6017 = vor.u32 %v6013, %v6016
  %v6018 = vsel %vm2260, %v5999, %v6017
  %v6020 = vshrl.u32 %v5521, 16
  %v6022 = vrot.slane %v6020, 3
  %v6023 = vshll.u32 %v5521, 16
  %v6025 = vrot.slane %v6023, 4
  %v6026 = vor.u32 %v6022, %v6025
  %v6027 = vsel %vm2260, %v6008, %v6026
  %v6029 = vshrl.u32 %v5522, 16
  %v6031 = vrot.slane %v6029, 3
  %v6032 = vshll.u32 %v5522, 16
  %v6034 = vrot.slane %v6032, 4
  %v6035 = vor.u32 %v6031, %v6034
  %v6036 = vsel %vm2260, %v6017, %v6035
  %v6038 = vshrl.u32 %v5523, 16
  %v6040 = vrot.slane %v6038, 3
  %v6041 = vshll.u32 %v5523, 16
  %v6043 = vrot.slane %v6041, 4
  %v6044 = vor.u32 %v6040, %v6043
  %v6045 = vsel %vm2260, %v6026, %v6044
  %v6047 = vshrl.u32 %v5524, 16
  %v6049 = vrot.slane %v6047, 3
  %v6050 = vshll.u32 %v5524, 16
  %v6052 = vrot.slane %v6050, 4
  %v6053 = vor.u32 %v6049, %v6052
  %v6054 = vsel %vm2260, %v6035, %v6053
  %v6056 = vshrl.u32 %v5525, 16
  %v6058 = vrot.slane %v6056, 3
  %v6059 = vshll.u32 %v5525, 16
  %v6061 = vrot.slane %v6059, 4
  %v6062 = vor.u32 %v6058, %v6061
  %v6063 = vsel %vm2260, %v6044, %v6062
  %v6065 = vshrl.u32 %v5526, 16
  %v6067 = vrot.slane %v6065, 3
  %v6068 = vshll.u32 %v5526, 16
  %v6070 = vrot.slane %v6068, 4
  %v6071 = vor.u32 %v6067, %v6070
  %v6072 = vsel %vm2260, %v6053, %v6071
  %v6074 = vshrl.u32 %v5527, 16
  %v6076 = vrot.slane %v6074, 3
  %v6077 = vshll.u32 %v5527, 16
  %v6079 = vrot.slane %v6077, 4
  %v6080 = vor.u32 %v6076, %v6079
  %v6081 = vsel %vm2260, %v6062, %v6080
  %v6083 = vshrl.u32 %v5528, 16
  %v6085 = vrot.slane %v6083, 3
  %v6086 = vshll.u32 %v5528, 16
  %v6088 = vrot.slane %v6086, 4
  %v6089 = vor.u32 %v6085, %v6088
  %v6090 = vsel %vm2260, %v6071, %v6089
  %v6092 = vshrl.u32 %v5529, 16
  %v6094 = vrot.slane %v6092, 3
  %v6095 = vshll.u32 %v5529, 16
  %v6097 = vrot.slane %v6095, 4
  %v6098 = vor.u32 %v6094, %v6097
  %v6099 = vsel %vm2260, %v6080, %v6098
  %v6101 = vshrl.u32 %v5530, 16
  %v6103 = vrot.slane %v6101, 3
  %v6104 = vshll.u32 %v5530, 16
  %v6106 = vrot.slane %v6104, 4
  %v6107 = vor.u32 %v6103, %v6106
  %v6108 = vsel %vm2260, %v6089, %v6107
  %v6110 = vshrl.u32 %v5531, 16
  %v6112 = vrot.slane %v6110, 3
  %v6113 = vshll.u32 %v5531, 16
  %v6115 = vrot.slane %v6113, 4
  %v6116 = vor.u32 %v6112, %v6115
  %v6117 = vsel %vm2260, %v6098, %v6116
  %v6119 = vshrl.u32 %v5532, 16
  %v6121 = vrot.slane %v6119, 3
  %v6122 = vshll.u32 %v5532, 16
  %v6124 = vrot.slane %v6122, 4
  %v6125 = vor.u32 %v6121, %v6124
  %v6126 = vsel %vm2260, %v6107, %v6125
  %v6128 = vshrl.u32 %v5533, 16
  %v6130 = vrot.slane %v6128, 3
  %v6131 = vshll.u32 %v5533, 16
  %v6133 = vrot.slane %v6131, 4
  %v6134 = vor.u32 %v6130, %v6133
  %v6135 = vsel %vm2260, %v6116, %v6134
  %v6137 = vshrl.u32 %v5534, 16
  %v6139 = vrot.slane %v6137, 3
  %v6140 = vshll.u32 %v5534, 16
  %v6142 = vrot.slane %v6140, 4
  %v6143 = vor.u32 %v6139, %v6142
  %v6144 = vsel %vm2260, %v6125, %v6143
  %v6202 = vunpack.c.l.b16 %v5242
  %v6203 = vunpack.c.l.b16 %v5243
  %v6204 = vunpack.c.l.b16 %v5244
  %v6205 = vunpack.c.l.b16 %v5245
  %v6206 = vunpack.c.l.b16 %v5246
  %v6207 = vunpack.c.l.b16 %v5247
  %v6208 = vunpack.c.l.b16 %v5248
  %v6209 = vunpack.c.l.b16 %v5249
  %v6210 = vunpack.c.l.b16 %v5250
  %v6211 = vunpack.c.l.b16 %v5251
  %v6212 = vunpack.c.l.b16 %v5252
  %v6213 = vunpack.c.l.b16 %v5253
  %v6214 = vunpack.c.l.b16 %v5254
  %v6215 = vunpack.c.l.b16 %v5255
  %v6216 = vunpack.c.l.b16 %v5256
  %v6217 = vunpack.c.l.b16 %v5257
  %v6218 = vunpack.c.l.b16 %v5258
  %v6219 = vunpack.c.l.b16 %v5259
  %v6220 = vunpack.c.l.b16 %v5260
  %v6221 = vunpack.c.l.b16 %v5261
  %v6222 = vunpack.c.l.b16 %v5262
  %v6223 = vunpack.c.l.b16 %v5263
  %v6224 = vunpack.c.l.b16 %v5264
  %v6225 = vunpack.c.l.b16 %v5265
  %v6226 = vpack.c.b16 %v6203, %v6202
  %v6227 = vpack.c.b16 %v6205, %v6204
  %v6228 = vpack.c.b16 %v6207, %v6206
  %v6229 = vpack.c.b16 %v6209, %v6208
  %v6230 = vpack.c.b16 %v6211, %v6210
  %v6231 = vpack.c.b16 %v6213, %v6212
  %v6232 = vpack.c.b16 %v6215, %v6214
  %v6233 = vpack.c.b16 %v6217, %v6216
  %v6234 = vpack.c.b16 %v6219, %v6218
  %v6235 = vpack.c.b16 %v6221, %v6220
  %v6236 = vpack.c.b16 %v6223, %v6222
  %v6237 = vpack.c.b16 %v6225, %v6224
  %v6251 = vsel %vm24, %v5568, 0
  %v6254 = vsel %vm24, %v5586, 0
  %v6257 = vsel %vm24, %v5604, 0
  %v6260 = vsel %vm24, %v5622, 0
  %v6263 = vsel %vm24, %v5640, 0
  %v6266 = vsel %vm24, %v5658, 0
  %v6269 = vsel %vm24, %v5676, 0
  %v6272 = vsel %vm24, %v5694, 0
  %v6275 = vsel %vm24, %v5712, 0
  %v6278 = vsel %vm24, %v5730, 0
  %v6281 = vsel %vm24, %v5748, 0
  %v6284 = vsel %vm24, %v5766, 0
  %v6287 = vsel %vm24, %v5784, 0
  %v6290 = vsel %vm24, %v5802, 0
  %v6293 = vsel %vm24, %v5820, 0
  %v6296 = vsel %vm24, %v5838, 0
  %v6299 = vsel %vm24, %v5856, 0
  %v6302 = vsel %vm24, %v5874, 0
  %v6305 = vsel %vm24, %v5892, 0
  %v6308 = vsel %vm24, %v5910, 0
  %v6311 = vsel %vm24, %v5928, 0
  %v6314 = vsel %vm24, %v5946, 0
  %v6317 = vsel %vm24, %v5964, 0
  %v6320 = vsel %vm24, %v5982, 0
  %v6323 = vsel %vm24, %v6000, 0
  %v6326 = vsel %vm24, %v6018, 0
  %v6329 = vsel %vm24, %v6036, 0
  %v6332 = vsel %vm24, %v6054, 0
  %v6335 = vsel %vm24, %v6072, 0
  %v6338 = vsel %vm24, %v6090, 0
  %v6341 = vsel %vm24, %v6108, 0
  %v6344 = vsel %vm24, %v6126, 0
  %v6347 = vsel %vm24, %v6144, 0
  %6349 = vmatprep.subr.bf16.mxu0 0
  %6350 = vmatpush1.bf16.msra.mxu0 %v6233
  %6351 = vmatprep.subr.bf16.mxu0 0
  %6352 = vmatpush1.bf16.msra.mxu0 %v6232
  %6353 = vmatprep.subr.bf16.mxu0 0
  %6354 = vmatpush1.bf16.msra.mxu0 %v6231
  %6355 = vmatprep.subr.bf16.mxu0 0
  %6356 = vmatpush1.bf16.msra.mxu0 %v6230
  %6357 = vmatprep.subr.bf16.mxu0 0
  %6358 = vmatpush1.bf16.msra.mxu0 %v6229
  %6359 = vmatprep.subr.bf16.mxu0 0
  %6360 = vmatpush1.bf16.msra.mxu0 %v6228
  %6361 = vmatprep.subr.bf16.mxu0 0
  %6362 = vmatpush1.bf16.msra.mxu0 %v6227
  %6363 = vmatprep.subr.bf16.mxu0 0
  %6364 = vmatpush1.bf16.msra.mxu0 %v6226
  %6365 = vmatprep.subr.bf16.mxu0 0
  %6366 = vmatpush2.bf16.msra.mxu0 0
  %6367 = vmatprep.subr.bf16.mxu0 0
  %6368 = vmatpush2.bf16.msra.mxu0 0
  %6369 = vmatprep.subr.bf16.mxu0 0
  %6370 = vmatpush2.bf16.msra.mxu0 0
  %6371 = vmatprep.subr.bf16.mxu0 0
  %6372 = vmatpush2.bf16.msra.mxu0 0
  %6373 = vmatprep.subr.bf16.mxu0 0
  %6374 = vmatpush2.bf16.msra.mxu0 %v6237
  %6375 = vmatprep.subr.bf16.mxu0 0
  %6376 = vmatpush2.bf16.msra.mxu0 %v6236
  %6377 = vmatprep.subr.bf16.mxu0 0
  %6378 = vmatpush2.bf16.msra.mxu0 %v6235
  %6379 = vmatprep.subr.bf16.mxu0 0
  %6380 = vmatpush2.bf16.msra.mxu0 %v6234
  %6381 = vmatprep.mubr.bf16.mxu0 %v6251
  %6382 = vmatmul.mubr.bf16.gmra.mxu0 %v5551
  %v6383 = vpop.f32.mrf.mxu0
  %v6384 = vadd.f32 0.0, %v6383
  %v6385 = vpop.f32.mrf.mxu0
  %v6386 = vpop.f32.mrf.mxu0
  %v6387 = vadd.f32 0.0, %v6386
  %v6388 = vpop.f32.mrf.mxu0
  %6389 = vmatprep.mubr.bf16.mxu0 %v6254
  %6390 = vmatmul.mubr.bf16.gmra.mxu0 %v5577
  %v6391 = vpop.f32.mrf.mxu0
  %v6392 = vadd.f32 0.0, %v6391
  %v6393 = vpop.f32.mrf.mxu0
  %v6394 = vpop.f32.mrf.mxu0
  %v6395 = vadd.f32 0.0, %v6394
  %v6396 = vpop.f32.mrf.mxu0
  %6397 = vmatprep.mubr.bf16.mxu0 %v6257
  %6398 = vmatmul.mubr.bf16.gmra.mxu0 %v5595
  %v6399 = vpop.f32.mrf.mxu0
  %v6400 = vadd.f32 0.0, %v6399
  %v6401 = vpop.f32.mrf.mxu0
  %v6402 = vpop.f32.mrf.mxu0
  %v6403 = vadd.f32 0.0, %v6402
  %v6404 = vpop.f32.mrf.mxu0
  %6405 = vmatprep.mubr.bf16.mxu0 %v6260
  %6406 = vmatmul.mubr.bf16.gmra.mxu0 %v5613
  %v6407 = vpop.f32.mrf.mxu0
  %v6408 = vadd.f32 0.0, %v6407
  %v6409 = vpop.f32.mrf.mxu0
  %v6410 = vpop.f32.mrf.mxu0
  %v6411 = vadd.f32 0.0, %v6410
  %v6412 = vpop.f32.mrf.mxu0
  %6413 = vmatprep.mubr.bf16.mxu0 %v6263
  %6414 = vmatmul.mubr.bf16.gmra.mxu0 %v5631
  %v6415 = vpop.f32.mrf.mxu0
  %v6416 = vadd.f32 0.0, %v6415
  %v6417 = vpop.f32.mrf.mxu0
  %v6418 = vpop.f32.mrf.mxu0
  %v6419 = vadd.f32 0.0, %v6418
  %v6420 = vpop.f32.mrf.mxu0
  %6421 = vmatprep.mubr.bf16.mxu0 %v6266
  %6422 = vmatmul.mubr.bf16.gmra.mxu0 %v5649
  %v6423 = vpop.f32.mrf.mxu0
  %v6424 = vadd.f32 0.0, %v6423
  %v6425 = vpop.f32.mrf.mxu0
  %v6426 = vpop.f32.mrf.mxu0
  %v6427 = vadd.f32 0.0, %v6426
  %v6428 = vpop.f32.mrf.mxu0
  %6429 = vmatprep.mubr.bf16.mxu0 %v6269
  %6430 = vmatmul.mubr.bf16.gmra.mxu0 %v5667
  %v6431 = vpop.f32.mrf.mxu0
  %v6432 = vadd.f32 0.0, %v6431
  %v6433 = vpop.f32.mrf.mxu0
  %v6434 = vpop.f32.mrf.mxu0
  %v6435 = vadd.f32 0.0, %v6434
  %v6436 = vpop.f32.mrf.mxu0
  %6437 = vmatprep.mubr.bf16.mxu0 %v6272
  %6438 = vmatmul.mubr.bf16.gmra.mxu0 %v5685
  %v6439 = vpop.f32.mrf.mxu0
  %v6440 = vadd.f32 0.0, %v6439
  %v6441 = vpop.f32.mrf.mxu0
  %v6442 = vpop.f32.mrf.mxu0
  %v6443 = vadd.f32 0.0, %v6442
  %v6444 = vpop.f32.mrf.mxu0
  %6445 = vmatprep.mubr.bf16.mxu0 %v6275
  %6446 = vmatmul.mubr.bf16.gmra.mxu0 %v5703
  %v6447 = vpop.f32.mrf.mxu0
  %v6448 = vadd.f32 0.0, %v6447
  %v6449 = vpop.f32.mrf.mxu0
  %v6450 = vpop.f32.mrf.mxu0
  %v6451 = vadd.f32 0.0, %v6450
  %v6452 = vpop.f32.mrf.mxu0
  %6453 = vmatprep.mubr.bf16.mxu0 %v6278
  %6454 = vmatmul.mubr.bf16.gmra.mxu0 %v5721
  %v6455 = vpop.f32.mrf.mxu0
  %v6456 = vadd.f32 0.0, %v6455
  %v6457 = vpop.f32.mrf.mxu0
  %v6458 = vpop.f32.mrf.mxu0
  %v6459 = vadd.f32 0.0, %v6458
  %v6460 = vpop.f32.mrf.mxu0
  %6461 = vmatprep.mubr.bf16.mxu0 %v6281
  %6462 = vmatmul.mubr.bf16.gmra.mxu0 %v5739
  %v6463 = vpop.f32.mrf.mxu0
  %v6464 = vadd.f32 0.0, %v6463
  %v6465 = vpop.f32.mrf.mxu0
  %v6466 = vpop.f32.mrf.mxu0
  %v6467 = vadd.f32 0.0, %v6466
  %v6468 = vpop.f32.mrf.mxu0
  %6469 = vmatprep.mubr.bf16.mxu0 %v6284
  %6470 = vmatmul.mubr.bf16.gmra.mxu0 %v5757
  %v6471 = vpop.f32.mrf.mxu0
  %v6472 = vadd.f32 0.0, %v6471
  %v6473 = vpop.f32.mrf.mxu0
  %v6474 = vpop.f32.mrf.mxu0
  %v6475 = vadd.f32 0.0, %v6474
  %v6476 = vpop.f32.mrf.mxu0
  %6477 = vmatprep.mubr.bf16.mxu0 %v6287
  %6478 = vmatmul.mubr.bf16.gmra.mxu0 %v5775
  %v6479 = vpop.f32.mrf.mxu0
  %v6480 = vadd.f32 0.0, %v6479
  %v6481 = vpop.f32.mrf.mxu0
  %v6482 = vpop.f32.mrf.mxu0
  %v6483 = vadd.f32 0.0, %v6482
  %v6484 = vpop.f32.mrf.mxu0
  %6485 = vmatprep.mubr.bf16.mxu0 %v6290
  %6486 = vmatmul.mubr.bf16.gmra.mxu0 %v5793
  %v6487 = vpop.f32.mrf.mxu0
  %v6488 = vadd.f32 0.0, %v6487
  %v6489 = vpop.f32.mrf.mxu0
  %v6490 = vpop.f32.mrf.mxu0
  %v6491 = vadd.f32 0.0, %v6490
  %v6492 = vpop.f32.mrf.mxu0
  %6493 = vmatprep.mubr.bf16.mxu0 %v6293
  %6494 = vmatmul.mubr.bf16.gmra.mxu0 %v5811
  %v6495 = vpop.f32.mrf.mxu0
  %v6496 = vadd.f32 0.0, %v6495
  %v6497 = vpop.f32.mrf.mxu0
  %v6498 = vpop.f32.mrf.mxu0
  %v6499 = vadd.f32 0.0, %v6498
  %v6500 = vpop.f32.mrf.mxu0
  %6501 = vmatprep.mubr.bf16.mxu0 %v6296
  %6502 = vmatmul.mubr.bf16.gmra.mxu0 %v5829
  %v6503 = vpop.f32.mrf.mxu0
  %v6504 = vadd.f32 0.0, %v6503
  %v6505 = vpop.f32.mrf.mxu0
  %v6506 = vpop.f32.mrf.mxu0
  %v6507 = vadd.f32 0.0, %v6506
  %v6508 = vpop.f32.mrf.mxu0
  %6509 = vmatprep.mubr.bf16.mxu0 %v6299
  %6510 = vmatmul.mubr.bf16.gmra.mxu0 %v5847
  %v6511 = vpop.f32.mrf.mxu0
  %v6512 = vadd.f32 0.0, %v6511
  %v6513 = vpop.f32.mrf.mxu0
  %v6514 = vpop.f32.mrf.mxu0
  %v6515 = vadd.f32 0.0, %v6514
  %v6516 = vpop.f32.mrf.mxu0
  %6517 = vmatprep.mubr.bf16.mxu0 %v6302
  %6518 = vmatmul.mubr.bf16.gmra.mxu0 %v5865
  %v6519 = vpop.f32.mrf.mxu0
  %v6520 = vadd.f32 0.0, %v6519
  %v6521 = vpop.f32.mrf.mxu0
  %v6522 = vpop.f32.mrf.mxu0
  %v6523 = vadd.f32 0.0, %v6522
  %v6524 = vpop.f32.mrf.mxu0
  %6525 = vmatprep.mubr.bf16.mxu0 %v6305
  %6526 = vmatmul.mubr.bf16.gmra.mxu0 %v5883
  %v6527 = vpop.f32.mrf.mxu0
  %v6528 = vadd.f32 0.0, %v6527
  %v6529 = vpop.f32.mrf.mxu0
  %v6530 = vpop.f32.mrf.mxu0
  %v6531 = vadd.f32 0.0, %v6530
  %v6532 = vpop.f32.mrf.mxu0
  %6533 = vmatprep.mubr.bf16.mxu0 %v6308
  %6534 = vmatmul.mubr.bf16.gmra.mxu0 %v5901
  %v6535 = vpop.f32.mrf.mxu0
  %v6536 = vadd.f32 0.0, %v6535
  %v6537 = vpop.f32.mrf.mxu0
  %v6538 = vpop.f32.mrf.mxu0
  %v6539 = vadd.f32 0.0, %v6538
  %v6540 = vpop.f32.mrf.mxu0
  %6541 = vmatprep.mubr.bf16.mxu0 %v6311
  %6542 = vmatmul.mubr.bf16.gmra.mxu0 %v5919
  %v6543 = vpop.f32.mrf.mxu0
  %v6544 = vadd.f32 0.0, %v6543
  %v6545 = vpop.f32.mrf.mxu0
  %v6546 = vpop.f32.mrf.mxu0
  %v6547 = vadd.f32 0.0, %v6546
  %v6548 = vpop.f32.mrf.mxu0
  %6549 = vmatprep.mubr.bf16.mxu0 %v6314
  %6550 = vmatmul.mubr.bf16.gmra.mxu0 %v5937
  %v6551 = vpop.f32.mrf.mxu0
  %v6552 = vadd.f32 0.0, %v6551
  %v6553 = vpop.f32.mrf.mxu0
  %v6554 = vpop.f32.mrf.mxu0
  %v6555 = vadd.f32 0.0, %v6554
  %v6556 = vpop.f32.mrf.mxu0
  %6557 = vmatprep.mubr.bf16.mxu0 %v6317
  %6558 = vmatmul.mubr.bf16.gmra.mxu0 %v5955
  %v6559 = vpop.f32.mrf.mxu0
  %v6560 = vadd.f32 0.0, %v6559
  %v6561 = vpop.f32.mrf.mxu0
  %v6562 = vpop.f32.mrf.mxu0
  %v6563 = vadd.f32 0.0, %v6562
  %v6564 = vpop.f32.mrf.mxu0
  %6565 = vmatprep.mubr.bf16.mxu0 %v6320
  %6566 = vmatmul.mubr.bf16.gmra.mxu0 %v5973
  %v6567 = vpop.f32.mrf.mxu0
  %v6568 = vadd.f32 0.0, %v6567
  %v6569 = vpop.f32.mrf.mxu0
  %v6570 = vpop.f32.mrf.mxu0
  %v6571 = vadd.f32 0.0, %v6570
  %v6572 = vpop.f32.mrf.mxu0
  %6573 = vmatprep.mubr.bf16.mxu0 %v6323
  %6574 = vmatmul.mubr.bf16.gmra.mxu0 %v5991
  %v6575 = vpop.f32.mrf.mxu0
  %v6576 = vadd.f32 0.0, %v6575
  %v6577 = vpop.f32.mrf.mxu0
  %v6578 = vpop.f32.mrf.mxu0
  %v6579 = vadd.f32 0.0, %v6578
  %v6580 = vpop.f32.mrf.mxu0
  %6581 = vmatprep.mubr.bf16.mxu0 %v6326
  %6582 = vmatmul.mubr.bf16.gmra.mxu0 %v6009
  %v6583 = vpop.f32.mrf.mxu0
  %v6584 = vadd.f32 0.0, %v6583
  %v6585 = vpop.f32.mrf.mxu0
  %v6586 = vpop.f32.mrf.mxu0
  %v6587 = vadd.f32 0.0, %v6586
  %v6588 = vpop.f32.mrf.mxu0
  %6589 = vmatprep.mubr.bf16.mxu0 %v6329
  %6590 = vmatmul.mubr.bf16.gmra.mxu0 %v6027
  %v6591 = vpop.f32.mrf.mxu0
  %v6592 = vadd.f32 0.0, %v6591
  %v6593 = vpop.f32.mrf.mxu0
  %v6594 = vpop.f32.mrf.mxu0
  %v6595 = vadd.f32 0.0, %v6594
  %v6596 = vpop.f32.mrf.mxu0
  %6597 = vmatprep.mubr.bf16.mxu0 %v6332
  %6598 = vmatmul.mubr.bf16.gmra.mxu0 %v6045
  %v6599 = vpop.f32.mrf.mxu0
  %v6600 = vadd.f32 0.0, %v6599
  %v6601 = vpop.f32.mrf.mxu0
  %v6602 = vpop.f32.mrf.mxu0
  %v6603 = vadd.f32 0.0, %v6602
  %v6604 = vpop.f32.mrf.mxu0
  %6605 = vmatprep.mubr.bf16.mxu0 %v6335
  %6606 = vmatmul.mubr.bf16.gmra.mxu0 %v6063
  %v6607 = vpop.f32.mrf.mxu0
  %v6608 = vadd.f32 0.0, %v6607
  %v6609 = vpop.f32.mrf.mxu0
  %v6610 = vpop.f32.mrf.mxu0
  %v6611 = vadd.f32 0.0, %v6610
  %v6612 = vpop.f32.mrf.mxu0
  %6613 = vmatprep.mubr.bf16.mxu0 %v6338
  %6614 = vmatmul.mubr.bf16.gmra.mxu0 %v6081
  %v6615 = vpop.f32.mrf.mxu0
  %v6616 = vadd.f32 0.0, %v6615
  %v6617 = vpop.f32.mrf.mxu0
  %v6618 = vpop.f32.mrf.mxu0
  %v6619 = vadd.f32 0.0, %v6618
  %v6620 = vpop.f32.mrf.mxu0
  %6621 = vmatprep.mubr.bf16.mxu0 %v6341
  %6622 = vmatmul.mubr.bf16.gmra.mxu0 %v6099
  %v6623 = vpop.f32.mrf.mxu0
  %v6624 = vadd.f32 0.0, %v6623
  %v6625 = vpop.f32.mrf.mxu0
  %v6626 = vpop.f32.mrf.mxu0
  %v6627 = vadd.f32 0.0, %v6626
  %v6628 = vpop.f32.mrf.mxu0
  %6629 = vmatprep.mubr.bf16.mxu0 %v6344
  %6630 = vmatmul.mubr.bf16.gmra.mxu0 %v6117
  %v6631 = vpop.f32.mrf.mxu0
  %v6632 = vadd.f32 0.0, %v6631
  %v6633 = vpop.f32.mrf.mxu0
  %v6634 = vpop.f32.mrf.mxu0
  %v6635 = vadd.f32 0.0, %v6634
  %v6636 = vpop.f32.mrf.mxu0
  %6637 = vmatprep.mubr.bf16.mxu0 %v6347
  %6638 = vmatmul.mubr.bf16.gmra.mxu0 %v6135
  %v6639 = vpop.f32.mrf.mxu0
  %v6640 = vadd.f32 0.0, %v6639
  %v6641 = vpop.f32.mrf.mxu0
  %v6642 = vpop.f32.mrf.mxu0
  %v6643 = vadd.f32 0.0, %v6642
  %v6644 = vpop.f32.mrf.mxu0
  %6645 = vdwg.mxu0
  %v6646 = vadd.f32 %v5108, %v6384
  %v6647 = vadd.f32 %v5109, %v6387
  %v6648 = vadd.f32 %v5110, %v6392
  %v6649 = vadd.f32 %v5111, %v6395
  %v6650 = vadd.f32 %v5112, %v6400
  %v6651 = vadd.f32 %v5113, %v6403
  %v6652 = vadd.f32 %v5114, %v6408
  %v6653 = vadd.f32 %v5115, %v6411
  %v6654 = vadd.f32 %v5116, %v6416
  %v6655 = vadd.f32 %v5117, %v6419
  %v6656 = vadd.f32 %v5118, %v6424
  %v6657 = vadd.f32 %v5119, %v6427
  %v6658 = vadd.f32 %v5120, %v6432
  %v6659 = vadd.f32 %v5121, %v6435
  %v6660 = vadd.f32 %v5122, %v6440
  %v6661 = vadd.f32 %v5123, %v6443
  %v6662 = vadd.f32 %v5124, %v6448
  %v6663 = vadd.f32 %v5125, %v6451
  %v6664 = vadd.f32 %v5126, %v6456
  %v6665 = vadd.f32 %v5127, %v6459
  %v6666 = vadd.f32 %v5128, %v6464
  %v6667 = vadd.f32 %v5129, %v6467
  %v6668 = vadd.f32 %v5130, %v6472
  %v6669 = vadd.f32 %v5131, %v6475
  %v6670 = vadd.f32 %v5132, %v6480
  %v6671 = vadd.f32 %v5133, %v6483
  %v6672 = vadd.f32 %v5134, %v6488
  %v6673 = vadd.f32 %v5135, %v6491
  %v6674 = vadd.f32 %v5136, %v6496
  %v6675 = vadd.f32 %v5137, %v6499
  %v6676 = vadd.f32 %v5138, %v6504
  %v6677 = vadd.f32 %v5139, %v6507
  %v6678 = vadd.f32 %v5140, %v6512
  %v6679 = vadd.f32 %v5141, %v6515
  %v6680 = vadd.f32 %v5142, %v6520
  %v6681 = vadd.f32 %v5143, %v6523
  %v6682 = vadd.f32 %v5144, %v6528
  %v6683 = vadd.f32 %v5145, %v6531
  %v6684 = vadd.f32 %v5146, %v6536
  %v6685 = vadd.f32 %v5147, %v6539
  %v6686 = vadd.f32 %v5148, %v6544
  %v6687 = vadd.f32 %v5149, %v6547
  %v6688 = vadd.f32 %v5150, %v6552
  %v6689 = vadd.f32 %v5151, %v6555
  %v6690 = vadd.f32 %v5152, %v6560
  %v6691 = vadd.f32 %v5153, %v6563
  %v6692 = vadd.f32 %v5154, %v6568
  %v6693 = vadd.f32 %v5155, %v6571
  %v6694 = vadd.f32 %v5156, %v6576
  %v6695 = vadd.f32 %v5157, %v6579
  %v6696 = vadd.f32 %v5158, %v6584
  %v6697 = vadd.f32 %v5159, %v6587
  %v6698 = vadd.f32 %v5160, %v6592
  %v6699 = vadd.f32 %v5161, %v6595
  %v6700 = vadd.f32 %v5162, %v6600
  %v6701 = vadd.f32 %v5163, %v6603
  %v6702 = vadd.f32 %v5164, %v6608
  %v6703 = vadd.f32 %v5165, %v6611
  %v6704 = vadd.f32 %v5166, %v6616
  %v6705 = vadd.f32 %v5167, %v6619
  %v6706 = vadd.f32 %v5168, %v6624
  %v6707 = vadd.f32 %v5169, %v6627
  %v6708 = vadd.f32 %v5170, %v6632
  %v6709 = vadd.f32 %v5171, %v6635
  %v6710 = vadd.f32 %v5172, %v6640
  %v6711 = vadd.f32 %v5173, %v6643
  %v6712 = vmax.f32 %v6646, 0.0
  %v6713 = vmax.f32 %v6647, 0.0
  %v6714 = vmax.f32 %v6648, 0.0
  %v6715 = vmax.f32 %v6649, 0.0
  %v6716 = vmax.f32 %v6650, 0.0
  %v6717 = vmax.f32 %v6651, 0.0
  %v6718 = vmax.f32 %v6652, 0.0
  %v6719 = vmax.f32 %v6653, 0.0
  %v6720 = vmax.f32 %v6654, 0.0
  %v6721 = vmax.f32 %v6655, 0.0
  %v6722 = vmax.f32 %v6656, 0.0
  %v6723 = vmax.f32 %v6657, 0.0
  %v6724 = vmax.f32 %v6658, 0.0
  %v6725 = vmax.f32 %v6659, 0.0
  %v6726 = vmax.f32 %v6660, 0.0
  %v6727 = vmax.f32 %v6661, 0.0
  %v6728 = vmax.f32 %v6662, 0.0
  %v6729 = vmax.f32 %v6663, 0.0
  %v6730 = vmax.f32 %v6664, 0.0
  %v6731 = vmax.f32 %v6665, 0.0
  %v6732 = vmax.f32 %v6666, 0.0
  %v6733 = vmax.f32 %v6667, 0.0
  %v6734 = vmax.f32 %v6668, 0.0
  %v6735 = vmax.f32 %v6669, 0.0
  %v6736 = vmax.f32 %v6670, 0.0
  %v6737 = vmax.f32 %v6671, 0.0
  %v6738 = vmax.f32 %v6672, 0.0
  %v6739 = vmax.f32 %v6673, 0.0
  %v6740 = vmax.f32 %v6674, 0.0
  %v6741 = vmax.f32 %v6675, 0.0
  %v6742 = vmax.f32 %v6676, 0.0
  %v6743 = vmax.f32 %v6677, 0.0
  %v6744 = vmax.f32 %v6678, 0.0
  %v6745 = vmax.f32 %v6679, 0.0
  %v6746 = vmax.f32 %v6680, 0.0
  %v6747 = vmax.f32 %v6681, 0.0
  %v6748 = vmax.f32 %v6682, 0.0
  %v6749 = vmax.f32 %v6683, 0.0
  %v6750 = vmax.f32 %v6684, 0.0
  %v6751 = vmax.f32 %v6685, 0.0
  %v6752 = vmax.f32 %v6686, 0.0
  %v6753 = vmax.f32 %v6687, 0.0
  %v6754 = vmax.f32 %v6688, 0.0
  %v6755 = vmax.f32 %v6689, 0.0
  %v6756 = vmax.f32 %v6690, 0.0
  %v6757 = vmax.f32 %v6691, 0.0
  %v6758 = vmax.f32 %v6692, 0.0
  %v6759 = vmax.f32 %v6693, 0.0
  %v6760 = vmax.f32 %v6694, 0.0
  %v6761 = vmax.f32 %v6695, 0.0
  %v6762 = vmax.f32 %v6696, 0.0
  %v6763 = vmax.f32 %v6697, 0.0
  %v6764 = vmax.f32 %v6698, 0.0
  %v6765 = vmax.f32 %v6699, 0.0
  %v6766 = vmax.f32 %v6700, 0.0
  %v6767 = vmax.f32 %v6701, 0.0
  %v6768 = vmax.f32 %v6702, 0.0
  %v6769 = vmax.f32 %v6703, 0.0
  %v6770 = vmax.f32 %v6704, 0.0
  %v6771 = vmax.f32 %v6705, 0.0
  %v6772 = vmax.f32 %v6706, 0.0
  %v6773 = vmax.f32 %v6707, 0.0
  %v6774 = vmax.f32 %v6708, 0.0
  %v6775 = vmax.f32 %v6709, 0.0
  %v6776 = vmax.f32 %v6710, 0.0
  %v6777 = vmax.f32 %v6711, 0.0
  %6778 = vst.msk [vmem:[#allocation2 + $0x20] sm:$0xff] %vm24, %v6712
  %6779 = vst.msk [vmem:[#allocation2 + $0x28] sm:$0xff] %vm24, %v6713
  %6780 = vst.msk [vmem:[#allocation2 + $0x30] sm:$0xff] %vm24, %v6714
  %6781 = vst.msk [vmem:[#allocation2 + $0x38] sm:$0xff] %vm24, %v6715
  %6782 = vst.msk [vmem:[#allocation2 + $0x40] sm:$0xff] %vm24, %v6716
  %6783 = vst.msk [vmem:[#allocation2 + $0x48] sm:$0xff] %vm24, %v6717
  %6784 = vst.msk [vmem:[#allocation2 + $0x50] sm:$0xff] %vm24, %v6718
  %6785 = vst.msk [vmem:[#allocation2 + $0x58] sm:$0xff] %vm24, %v6719
  %6786 = vst.msk [vmem:[#allocation2 + $0x60] sm:$0xff] %vm24, %v6720
  %6787 = vst.msk [vmem:[#allocation2 + $0x68] sm:$0xff] %vm24, %v6721
  %6788 = vst.msk [vmem:[#allocation2 + $0x70] sm:$0xff] %vm24, %v6722
  %6789 = vst.msk [vmem:[#allocation2 + $0x78] sm:$0xff] %vm24, %v6723
  %6790 = vst.msk [vmem:[#allocation2 + $0x80] sm:$0xff] %vm24, %v6724
  %6791 = vst.msk [vmem:[#allocation2 + $0x88] sm:$0xff] %vm24, %v6725
  %6792 = vst.msk [vmem:[#allocation2 + $0x90] sm:$0xff] %vm24, %v6726
  %6793 = vst.msk [vmem:[#allocation2 + $0x98] sm:$0xff] %vm24, %v6727
  %6794 = vst.msk [vmem:[#allocation2 + $0xa0] sm:$0xff] %vm24, %v6728
  %6795 = vst.msk [vmem:[#allocation2 + $0xa8] sm:$0xff] %vm24, %v6729
  %6796 = vst.msk [vmem:[#allocation2 + $0xb0] sm:$0xff] %vm24, %v6730
  %6797 = vst.msk [vmem:[#allocation2 + $0xb8] sm:$0xff] %vm24, %v6731
  %6798 = vst.msk [vmem:[#allocation2 + $0xc0] sm:$0xff] %vm24, %v6732
  %6799 = vst.msk [vmem:[#allocation2 + $0xc8] sm:$0xff] %vm24, %v6733
  %6800 = vst.msk [vmem:[#allocation2 + $0xd0] sm:$0xff] %vm24, %v6734
  %6801 = vst.msk [vmem:[#allocation2 + $0xd8] sm:$0xff] %vm24, %v6735
  %6802 = vst.msk [vmem:[#allocation2 + $0xe0] sm:$0xff] %vm24, %v6736
  %6803 = vst.msk [vmem:[#allocation2 + $0xe8] sm:$0xff] %vm24, %v6737
  %6804 = vst.msk [vmem:[#allocation2 + $0xf0] sm:$0xff] %vm24, %v6738
  %6805 = vst.msk [vmem:[#allocation2 + $0xf8] sm:$0xff] %vm24, %v6739
  %6806 = vst.msk [vmem:[#allocation2 + $0x100] sm:$0xff] %vm24, %v6740
  %6807 = vst.msk [vmem:[#allocation2 + $0x108] sm:$0xff] %vm24, %v6741
  %6808 = vst.msk [vmem:[#allocation2 + $0x110] sm:$0xff] %vm24, %v6742
  %6809 = vst.msk [vmem:[#allocation2 + $0x118] sm:$0xff] %vm24, %v6743
  %6810 = vst.msk [vmem:[#allocation2 + $0x120] sm:$0xff] %vm24, %v6744
  %6811 = vst.msk [vmem:[#allocation2 + $0x128] sm:$0xff] %vm24, %v6745
  %6812 = vst.msk [vmem:[#allocation2 + $0x130] sm:$0xff] %vm24, %v6746
  %6813 = vst.msk [vmem:[#allocation2 + $0x138] sm:$0xff] %vm24, %v6747
  %6814 = vst.msk [vmem:[#allocation2 + $0x140] sm:$0xff] %vm24, %v6748
  %6815 = vst.msk [vmem:[#allocation2 + $0x148] sm:$0xff] %vm24, %v6749
  %6816 = vst.msk [vmem:[#allocation2 + $0x150] sm:$0xff] %vm24, %v6750
  %6817 = vst.msk [vmem:[#allocation2 + $0x158] sm:$0xff] %vm24, %v6751
  %6818 = vst.msk [vmem:[#allocation2 + $0x160] sm:$0xff] %vm24, %v6752
  %6819 = vst.msk [vmem:[#allocation2 + $0x168] sm:$0xff] %vm24, %v6753
  %6820 = vst.msk [vmem:[#allocation2 + $0x170] sm:$0xff] %vm24, %v6754
  %6821 = vst.msk [vmem:[#allocation2 + $0x178] sm:$0xff] %vm24, %v6755
  %6822 = vst.msk [vmem:[#allocation2 + $0x180] sm:$0xff] %vm24, %v6756
  %6823 = vst.msk [vmem:[#allocation2 + $0x188] sm:$0xff] %vm24, %v6757
  %6824 = vst.msk [vmem:[#allocation2 + $0x190] sm:$0xff] %vm24, %v6758
  %6825 = vst.msk [vmem:[#allocation2 + $0x198] sm:$0xff] %vm24, %v6759
  %6826 = vst.msk [vmem:[#allocation2 + $0x1a0] sm:$0xff] %vm24, %v6760
  %6827 = vst.msk [vmem:[#allocation2 + $0x1a8] sm:$0xff] %vm24, %v6761
  %6828 = vst.msk [vmem:[#allocation2 + $0x1b0] sm:$0xff] %vm24, %v6762
  %6829 = vst.msk [vmem:[#allocation2 + $0x1b8] sm:$0xff] %vm24, %v6763
  %6830 = vst.msk [vmem:[#allocation2 + $0x1c0] sm:$0xff] %vm24, %v6764
  %6831 = vst.msk [vmem:[#allocation2 + $0x1c8] sm:$0xff] %vm24, %v6765
  %6832 = vst.msk [vmem:[#allocation2 + $0x1d0] sm:$0xff] %vm24, %v6766
  %6833 = vst.msk [vmem:[#allocation2 + $0x1d8] sm:$0xff] %vm24, %v6767
  %6834 = vst.msk [vmem:[#allocation2 + $0x1e0] sm:$0xff] %vm24, %v6768
  %6835 = vst.msk [vmem:[#allocation2 + $0x1e8] sm:$0xff] %vm24, %v6769
  %6836 = vst.msk [vmem:[#allocation2 + $0x1f0] sm:$0xff] %vm24, %v6770
  %6837 = vst.msk [vmem:[#allocation2 + $0x1f8] sm:$0xff] %vm24, %v6771
  %6838 = vst.msk [vmem:[#allocation2 + $0x200] sm:$0xff] %vm24, %v6772
  %6839 = vst.msk [vmem:[#allocation2 + $0x208] sm:$0xff] %vm24, %v6773
  %6840 = vst.msk [vmem:[#allocation2 + $0x210] sm:$0xff] %vm24, %v6774
  %6841 = vst.msk [vmem:[#allocation2 + $0x218] sm:$0xff] %vm24, %v6775
  %6842 = vst.msk [vmem:[#allocation2 + $0x220] sm:$0xff] %vm24, %v6776
  %6843 = vst.msk [vmem:[#allocation2 + $0x228] sm:$0xff] %vm24, %v6777
  %6844 = vst.msk [vmem:[#allocation2 + $0x120] sm:$0xff] %vm24, 0.0
  %6845 = vst.msk [vmem:[#allocation2 + $0x128] sm:$0xff] %vm24, 0.0
  %v6846 = vld [vmem:[#allocation2] sm:$0xff]
  %v6847 = vld [vmem:[#allocation2 + $0x8] sm:$0xff]
  %v6848 = vld [vmem:[#allocation2 + $0x10] sm:$0xff]
  %v6849 = vld [vmem:[#allocation2 + $0x18] sm:$0xff]
  %v6850 = vld [vmem:[#allocation2 + $0x20] sm:$0xff]
  %v6851 = vld [vmem:[#allocation2 + $0x28] sm:$0xff]
  %v6852 = vld [vmem:[#allocation2 + $0x30] sm:$0xff]
  %v6853 = vld [vmem:[#allocation2 + $0x38] sm:$0xff]
  %v6854 = vld [vmem:[#allocation2 + $0x40] sm:$0xff]
  %v6855 = vld [vmem:[#allocation2 + $0x48] sm:$0xff]
  %v6856 = vld [vmem:[#allocation2 + $0x50] sm:$0xff]
  %v6857 = vld [vmem:[#allocation2 + $0x58] sm:$0xff]
  %v6858 = vld [vmem:[#allocation2 + $0x60] sm:$0xff]
  %v6859 = vld [vmem:[#allocation2 + $0x68] sm:$0xff]
  %v6860 = vld [vmem:[#allocation2 + $0x70] sm:$0xff]
  %v6861 = vld [vmem:[#allocation2 + $0x78] sm:$0xff]
  %v6862 = vld [vmem:[#allocation2 + $0x80] sm:$0xff]
  %v6863 = vld [vmem:[#allocation2 + $0x88] sm:$0xff]
  %v6864 = vld [vmem:[#allocation2 + $0x90] sm:$0xff]
  %v6865 = vld [vmem:[#allocation2 + $0x98] sm:$0xff]
  %v6866 = vld [vmem:[#allocation2 + $0xa0] sm:$0xff]
  %v6867 = vld [vmem:[#allocation2 + $0xa8] sm:$0xff]
  %v6868 = vld [vmem:[#allocation2 + $0xb0] sm:$0xff]
  %v6869 = vld [vmem:[#allocation2 + $0xb8] sm:$0xff]
  %v6870 = vld [vmem:[#allocation2 + $0xc0] sm:$0xff]
  %v6871 = vld [vmem:[#allocation2 + $0xc8] sm:$0xff]
  %v6872 = vld [vmem:[#allocation2 + $0xd0] sm:$0xff]
  %v6873 = vld [vmem:[#allocation2 + $0xd8] sm:$0xff]
  %v6874 = vld [vmem:[#allocation2 + $0xe0] sm:$0xff]
  %v6875 = vld [vmem:[#allocation2 + $0xe8] sm:$0xff]
  %v6876 = vld [vmem:[#allocation2 + $0xf0] sm:$0xff]
  %v6877 = vld [vmem:[#allocation2 + $0xf8] sm:$0xff]
  %v6878 = vld [vmem:[#allocation2 + $0x100] sm:$0xff]
  %v6879 = vld [vmem:[#allocation2 + $0x108] sm:$0xff]
  %v6880 = vld [vmem:[#allocation2 + $0x110] sm:$0xff]
  %v6881 = vld [vmem:[#allocation2 + $0x118] sm:$0xff]
  %v6882 = vld [vmem:[#allocation2 + $0x120] sm:$0xff]
  %v6883 = vld [vmem:[#allocation2 + $0x128] sm:$0xff]
  %v6884 = vld [vmem:[#allocation2 + $0x130] sm:$0xff]
  %v6885 = vld [vmem:[#allocation2 + $0x138] sm:$0xff]
  %v6886 = vld [vmem:[#allocation2 + $0x140] sm:$0xff]
  %v6887 = vld [vmem:[#allocation2 + $0x148] sm:$0xff]
  %v6888 = vld [vmem:[#allocation2 + $0x150] sm:$0xff]
  %v6889 = vld [vmem:[#allocation2 + $0x158] sm:$0xff]
  %v6890 = vld [vmem:[#allocation2 + $0x160] sm:$0xff]
  %v6891 = vld [vmem:[#allocation2 + $0x168] sm:$0xff]
  %v6892 = vld [vmem:[#allocation2 + $0x170] sm:$0xff]
  %v6893 = vld [vmem:[#allocation2 + $0x178] sm:$0xff]
  %v6894 = vld [vmem:[#allocation2 + $0x180] sm:$0xff]
  %v6895 = vld [vmem:[#allocation2 + $0x188] sm:$0xff]
  %v6896 = vld [vmem:[#allocation2 + $0x190] sm:$0xff]
  %v6897 = vld [vmem:[#allocation2 + $0x198] sm:$0xff]
  %v6898 = vld [vmem:[#allocation2 + $0x1a0] sm:$0xff]
  %v6899 = vld [vmem:[#allocation2 + $0x1a8] sm:$0xff]
  %v6900 = vld [vmem:[#allocation2 + $0x1b0] sm:$0xff]
  %v6901 = vld [vmem:[#allocation2 + $0x1b8] sm:$0xff]
  %v6902 = vld [vmem:[#allocation2 + $0x1c0] sm:$0xff]
  %v6903 = vld [vmem:[#allocation2 + $0x1c8] sm:$0xff]
  %v6904 = vld [vmem:[#allocation2 + $0x1d0] sm:$0xff]
  %v6905 = vld [vmem:[#allocation2 + $0x1d8] sm:$0xff]
  %v6906 = vld [vmem:[#allocation2 + $0x1e0] sm:$0xff]
  %v6907 = vld [vmem:[#allocation2 + $0x1e8] sm:$0xff]
  %v6908 = vld [vmem:[#allocation2 + $0x1f0] sm:$0xff]
  %v6909 = vld [vmem:[#allocation2 + $0x1f8] sm:$0xff]
  %v6910 = vld [vmem:[#allocation2 + $0x200] sm:$0xff]
  %v6911 = vld [vmem:[#allocation2 + $0x208] sm:$0xff]
  %v6912 = vld [vmem:[#allocation2 + $0x210] sm:$0xff]
  %v6913 = vld [vmem:[#allocation2 + $0x218] sm:$0xff]
  %v6914 = vld [vmem:[#allocation2 + $0x220] sm:$0xff]
  %v6915 = vld [vmem:[#allocation2 + $0x228] sm:$0xff]
  %v6916 = vld [vmem:[#allocation2 + $0x230] sm:$0xff]
  %v6917 = vld [vmem:[#allocation2 + $0x238] sm:$0xff]
  %v6918 = vld [vmem:[%s4] sm:$0xff]
  %v6919 = vld [vmem:[%s4 + $0x8] sm:$0xff]
  %v6920 = vld [vmem:[%s4 + $0x10] sm:$0xff]
  %v6921 = vld [vmem:[%s4 + $0x18] sm:$0xff]
  %v6922 = vld [vmem:[%s4 + $0x20] sm:$0xff]
  %v6923 = vld [vmem:[%s4 + $0x28] sm:$0xff]
  %v6924 = vld [vmem:[%s4 + $0x30] sm:$0xff]
  %v6925 = vld [vmem:[%s4 + $0x38] sm:$0xff]
  %v6926 = vld [vmem:[%s4 + $0x40] sm:$0xff]
  %v6927 = vld [vmem:[%s4 + $0x48] sm:$0xff]
  %v6928 = vld [vmem:[%s4 + $0x50] sm:$0xff]
  %v6929 = vld [vmem:[%s4 + $0x58] sm:$0xff]
  %v6930 = vld [vmem:[%s4 + $0x60] sm:$0xff]
  %v6931 = vld [vmem:[%s4 + $0x68] sm:$0xff]
  %v6932 = vld [vmem:[%s4 + $0x70] sm:$0xff]
  %v6933 = vld [vmem:[%s4 + $0x78] sm:$0xff]
  %v6934 = vld [vmem:[%s4 + $0x80] sm:$0xff]
  %v6935 = vld [vmem:[%s4 + $0x88] sm:$0xff]
  %v6936 = vld [vmem:[%s4 + $0x90] sm:$0xff]
  %v6937 = vld [vmem:[%s4 + $0x98] sm:$0xff]
  %v6938 = vld [vmem:[%s4 + $0xa0] sm:$0xff]
  %v6939 = vld [vmem:[%s4 + $0xa8] sm:$0xff]
  %v6940 = vld [vmem:[%s4 + $0xb0] sm:$0xff]
  %v6941 = vld [vmem:[%s4 + $0xb8] sm:$0xff]
  %v6942 = vld [vmem:[%s4 + $0xc0] sm:$0xff]
  %v6943 = vld [vmem:[%s4 + $0xc8] sm:$0xff]
  %v6944 = vld [vmem:[%s4 + $0xd0] sm:$0xff]
  %v6945 = vld [vmem:[%s4 + $0xd8] sm:$0xff]
  %v6946 = vld [vmem:[%s4 + $0xe0] sm:$0xff]
  %v6947 = vld [vmem:[%s4 + $0xe8] sm:$0xff]
  %v6948 = vld [vmem:[%s4 + $0xf0] sm:$0xff]
  %v6949 = vld [vmem:[%s4 + $0xf8] sm:$0xff]
  %v6950 = vld [vmem:[%s4 + $0x100] sm:$0xff]
  %v6951 = vld [vmem:[%s4 + $0x108] sm:$0xff]
  %v6952 = vld [vmem:[%s4 + $0x110] sm:$0xff]
  %v6953 = vld [vmem:[%s4 + $0x118] sm:$0xff]
  %v6954 = vld [vmem:[%s4 + $0x120] sm:$0xff]
  %v6955 = vld [vmem:[%s4 + $0x128] sm:$0xff]
  %v6956 = vld [vmem:[%s4 + $0x130] sm:$0xff]
  %v6957 = vld [vmem:[%s4 + $0x138] sm:$0xff]
  %v6958 = vld [vmem:[%s4 + $0x140] sm:$0xff]
  %v6959 = vld [vmem:[%s4 + $0x148] sm:$0xff]
  %v6960 = vld [vmem:[%s4 + $0x150] sm:$0xff]
  %v6961 = vld [vmem:[%s4 + $0x158] sm:$0xff]
  %v6962 = vld [vmem:[%s4 + $0x160] sm:$0xff]
  %v6963 = vld [vmem:[%s4 + $0x168] sm:$0xff]
  %v6964 = vld [vmem:[%s4 + $0x170] sm:$0xff]
  %v6965 = vld [vmem:[%s4 + $0x178] sm:$0xff]
  %v6966 = vld [vmem:[%s4 + $0x180] sm:$0xff]
  %v6967 = vld [vmem:[%s4 + $0x188] sm:$0xff]
  %v6968 = vld [vmem:[%s4 + $0x190] sm:$0xff]
  %v6969 = vld [vmem:[%s4 + $0x198] sm:$0xff]
  %v6970 = vld [vmem:[%s4 + $0x1a0] sm:$0xff]
  %v6971 = vld [vmem:[%s4 + $0x1a8] sm:$0xff]
  %v6972 = vld [vmem:[%s4 + $0x1b0] sm:$0xff]
  %v6973 = vld [vmem:[%s4 + $0x1b8] sm:$0xff]
  %v6974 = vld [vmem:[%s4 + $0x1c0] sm:$0xff]
  %v6975 = vld [vmem:[%s4 + $0x1c8] sm:$0xff]
  %v6976 = vld [vmem:[%s4 + $0x1d0] sm:$0xff]
  %v6977 = vld [vmem:[%s4 + $0x1d8] sm:$0xff]
  %v6978 = vld [vmem:[%s4 + $0x1e0] sm:$0xff]
  %v6979 = vld [vmem:[%s4 + $0x1e8] sm:$0xff]
  %v6980 = vld [vmem:[%s4 + $0x1f0] sm:$0xff]
  %v6981 = vld [vmem:[%s4 + $0x1f8] sm:$0xff]
  %v6982 = vld [vmem:[%s4 + $0x200] sm:$0xff]
  %v6983 = vld [vmem:[%s4 + $0x208] sm:$0xff]
  %v6984 = vld [vmem:[%s4 + $0x210] sm:$0xff]
  %v6985 = vld [vmem:[%s4 + $0x218] sm:$0xff]
  %v6986 = vld [vmem:[%s4 + $0x220] sm:$0xff]
  %v6987 = vld [vmem:[%s4 + $0x228] sm:$0xff]
  %v6988 = vld [vmem:[%s4 + $0x230] sm:$0xff]
  %v6989 = vld [vmem:[%s4 + $0x238] sm:$0xff]
  %v6990 = vmul.f32 %v6846, %v6918
  %v6991 = vmul.f32 %v6847, %v6919
  %v6992 = vmul.f32 %v6848, %v6920
  %v6993 = vmul.f32 %v6849, %v6921
  %v6994 = vmul.f32 %v6850, %v6922
  %v6995 = vmul.f32 %v6851, %v6923
  %v6996 = vmul.f32 %v6852, %v6924
  %v6997 = vmul.f32 %v6853, %v6925
  %v6998 = vmul.f32 %v6854, %v6926
  %v6999 = vmul.f32 %v6855, %v6927
  %v7000 = vmul.f32 %v6856, %v6928
  %v7001 = vmul.f32 %v6857, %v6929
  %v7002 = vmul.f32 %v6858, %v6930
  %v7003 = vmul.f32 %v6859, %v6931
  %v7004 = vmul.f32 %v6860, %v6932
  %v7005 = vmul.f32 %v6861, %v6933
  %v7006 = vmul.f32 %v6862, %v6934
  %v7007 = vmul.f32 %v6863, %v6935
  %v7008 = vmul.f32 %v6864, %v6936
  %v7009 = vmul.f32 %v6865, %v6937
  %v7010 = vmul.f32 %v6866, %v6938
  %v7011 = vmul.f32 %v6867, %v6939
  %v7012 = vmul.f32 %v6868, %v6940
  %v7013 = vmul.f32 %v6869, %v6941
  %v7014 = vmul.f32 %v6870, %v6942
  %v7015 = vmul.f32 %v6871, %v6943
  %v7016 = vmul.f32 %v6872, %v6944
  %v7017 = vmul.f32 %v6873, %v6945
  %v7018 = vmul.f32 %v6874, %v6946
  %v7019 = vmul.f32 %v6875, %v6947
  %v7020 = vmul.f32 %v6876, %v6948
  %v7021 = vmul.f32 %v6877, %v6949
  %v7022 = vmul.f32 %v6878, %v6950
  %v7023 = vmul.f32 %v6879, %v6951
  %v7024 = vmul.f32 %v6880, %v6952
  %v7025 = vmul.f32 %v6881, %v6953
  %v7026 = vmul.f32 %v6882, %v6954
  %v7027 = vmul.f32 %v6883, %v6955
  %v7028 = vmul.f32 %v6884, %v6956
  %v7029 = vmul.f32 %v6885, %v6957
  %v7030 = vmul.f32 %v6886, %v6958
  %v7031 = vmul.f32 %v6887, %v6959
  %v7032 = vmul.f32 %v6888, %v6960
  %v7033 = vmul.f32 %v6889, %v6961
  %v7034 = vmul.f32 %v6890, %v6962
  %v7035 = vmul.f32 %v6891, %v6963
  %v7036 = vmul.f32 %v6892, %v6964
  %v7037 = vmul.f32 %v6893, %v6965
  %v7038 = vmul.f32 %v6894, %v6966
  %v7039 = vmul.f32 %v6895, %v6967
  %v7040 = vmul.f32 %v6896, %v6968
  %v7041 = vmul.f32 %v6897, %v6969
  %v7042 = vmul.f32 %v6898, %v6970
  %v7043 = vmul.f32 %v6899, %v6971
  %v7044 = vmul.f32 %v6900, %v6972
  %v7045 = vmul.f32 %v6901, %v6973
  %v7046 = vmul.f32 %v6902, %v6974
  %v7047 = vmul.f32 %v6903, %v6975
  %v7048 = vmul.f32 %v6904, %v6976
  %v7049 = vmul.f32 %v6905, %v6977
  %v7050 = vmul.f32 %v6906, %v6978
  %v7051 = vmul.f32 %v6907, %v6979
  %v7052 = vmul.f32 %v6908, %v6980
  %v7053 = vmul.f32 %v6909, %v6981
  %v7054 = vmul.f32 %v6910, %v6982
  %v7055 = vmul.f32 %v6911, %v6983
  %v7056 = vmul.f32 %v6912, %v6984
  %v7057 = vmul.f32 %v6913, %v6985
  %v7058 = vmul.f32 %v6914, %v6986
  %v7059 = vmul.f32 %v6915, %v6987
  %v7060 = vmul.f32 %v6916, %v6988
  %v7061 = vmul.f32 %v6917, %v6989
  %v7062 = vpack.c.bf16 %v6991, %v6990
  %v7063 = vpack.c.bf16 %v6993, %v6992
  %v7064 = vpack.c.bf16 %v6995, %v6994
  %v7065 = vpack.c.bf16 %v6997, %v6996
  %v7066 = vpack.c.bf16 %v6999, %v6998
  %v7067 = vpack.c.bf16 %v7001, %v7000
  %v7068 = vpack.c.bf16 %v7003, %v7002
  %v7069 = vpack.c.bf16 %v7005, %v7004
  %v7070 = vpack.c.bf16 %v7007, %v7006
  %v7071 = vpack.c.bf16 %v7009, %v7008
  %v7072 = vpack.c.bf16 %v7011, %v7010
  %v7073 = vpack.c.bf16 %v7013, %v7012
  %v7074 = vpack.c.bf16 %v7015, %v7014
  %v7075 = vpack.c.bf16 %v7017, %v7016
  %v7076 = vpack.c.bf16 %v7019, %v7018
  %v7077 = vpack.c.bf16 %v7021, %v7020
  %v7078 = vpack.c.bf16 %v7023, %v7022
  %v7079 = vpack.c.bf16 %v7025, %v7024
  %v7080 = vpack.c.bf16 %v7027, %v7026
  %v7081 = vpack.c.bf16 %v7029, %v7028
  %v7082 = vpack.c.bf16 %v7031, %v7030
  %v7083 = vpack.c.bf16 %v7033, %v7032
  %v7084 = vpack.c.bf16 %v7035, %v7034
  %v7085 = vpack.c.bf16 %v7037, %v7036
  %v7086 = vpack.c.bf16 %v7039, %v7038
  %v7087 = vpack.c.bf16 %v7041, %v7040
  %v7088 = vpack.c.bf16 %v7043, %v7042
  %v7089 = vpack.c.bf16 %v7045, %v7044
  %v7090 = vpack.c.bf16 %v7047, %v7046
  %v7091 = vpack.c.bf16 %v7049, %v7048
  %v7092 = vpack.c.bf16 %v7051, %v7050
  %v7093 = vpack.c.bf16 %v7053, %v7052
  %v7094 = vpack.c.bf16 %v7055, %v7054
  %v7095 = vpack.c.bf16 %v7057, %v7056
  %v7096 = vpack.c.bf16 %v7059, %v7058
  %v7097 = vpack.c.bf16 %v7061, %v7060
  %v7134 = vunpack.c.l.b16 %v7062
  %v7135 = vunpack.c.h.b16 %v7062
  %v7136 = vunpack.c.l.b16 %v7063
  %v7137 = vunpack.c.h.b16 %v7063
  %v7138 = vunpack.c.l.b16 %v7064
  %v7139 = vunpack.c.h.b16 %v7064
  %v7140 = vunpack.c.l.b16 %v7065
  %v7141 = vunpack.c.h.b16 %v7065
  %v7142 = vunpack.c.l.b16 %v7066
  %v7143 = vunpack.c.h.b16 %v7066
  %v7144 = vunpack.c.l.b16 %v7067
  %v7145 = vunpack.c.h.b16 %v7067
  %v7146 = vunpack.c.l.b16 %v7068
  %v7147 = vunpack.c.h.b16 %v7068
  %v7148 = vunpack.c.l.b16 %v7069
  %v7149 = vunpack.c.h.b16 %v7069
  %v7150 = vunpack.c.l.b16 %v7070
  %v7151 = vunpack.c.h.b16 %v7070
  %v7152 = vunpack.c.l.b16 %v7071
  %v7153 = vunpack.c.h.b16 %v7071
  %v7154 = vunpack.c.l.b16 %v7072
  %v7155 = vunpack.c.h.b16 %v7072
  %v7156 = vunpack.c.l.b16 %v7073
  %v7157 = vunpack.c.h.b16 %v7073
  %v7158 = vunpack.c.l.b16 %v7074
  %v7159 = vunpack.c.h.b16 %v7074
  %v7160 = vunpack.c.l.b16 %v7075
  %v7161 = vunpack.c.h.b16 %v7075
  %v7162 = vunpack.c.l.b16 %v7076
  %v7163 = vunpack.c.h.b16 %v7076
  %v7164 = vunpack.c.l.b16 %v7077
  %v7165 = vunpack.c.h.b16 %v7077
  %v7166 = vunpack.c.l.b16 %v7078
  %v7167 = vunpack.c.h.b16 %v7078
  %v7168 = vunpack.c.l.b16 %v7079
  %v7169 = vunpack.c.h.b16 %v7079
  %v7170 = vunpack.c.l.b16 %v7080
  %v7171 = vunpack.c.h.b16 %v7080
  %v7172 = vunpack.c.l.b16 %v7081
  %v7173 = vunpack.c.h.b16 %v7081
  %v7174 = vunpack.c.l.b16 %v7082
  %v7175 = vunpack.c.h.b16 %v7082
  %v7176 = vunpack.c.l.b16 %v7083
  %v7177 = vunpack.c.h.b16 %v7083
  %v7178 = vunpack.c.l.b16 %v7084
  %v7179 = vunpack.c.h.b16 %v7084
  %v7180 = vunpack.c.l.b16 %v7085
  %v7181 = vunpack.c.h.b16 %v7085
  %v7182 = vunpack.c.l.b16 %v7086
  %v7183 = vunpack.c.h.b16 %v7086
  %v7184 = vunpack.c.l.b16 %v7087
  %v7185 = vunpack.c.h.b16 %v7087
  %v7186 = vunpack.c.l.b16 %v7088
  %v7187 = vunpack.c.h.b16 %v7088
  %v7188 = vunpack.c.l.b16 %v7089
  %v7189 = vunpack.c.h.b16 %v7089
  %v7190 = vunpack.c.l.b16 %v7090
  %v7191 = vunpack.c.h.b16 %v7090
  %v7192 = vunpack.c.l.b16 %v7091
  %v7193 = vunpack.c.h.b16 %v7091
  %v7194 = vunpack.c.l.b16 %v7092
  %v7195 = vunpack.c.h.b16 %v7092
  %v7196 = vunpack.c.l.b16 %v7093
  %v7197 = vunpack.c.h.b16 %v7093
  %v7198 = vunpack.c.l.b16 %v7094
  %v7199 = vunpack.c.h.b16 %v7094
  %v7200 = vunpack.c.l.b16 %v7095
  %v7201 = vunpack.c.h.b16 %v7095
  %v7202 = vunpack.c.l.b16 %v7096
  %v7203 = vunpack.c.h.b16 %v7096
  %v7204 = vunpack.c.l.b16 %v7097
  %v7205 = vunpack.c.h.b16 %v7097
  %v7206 = vpack.c.b16 %v7134, %v7134
  %v7207 = vpack.c.b16 %v7135, %v7135
  %v7208 = vpack.c.b16 %v7136, %v7136
  %v7209 = vpack.c.b16 %v7137, %v7137
  %v7210 = vpack.c.b16 %v7138, %v7138
  %v7211 = vpack.c.b16 %v7139, %v7139
  %v7212 = vpack.c.b16 %v7140, %v7140
  %v7213 = vpack.c.b16 %v7141, %v7141
  %v7214 = vpack.c.b16 %v7142, %v7142
  %v7215 = vpack.c.b16 %v7143, %v7143
  %v7216 = vpack.c.b16 %v7144, %v7144
  %v7217 = vpack.c.b16 %v7145, %v7145
  %v7218 = vpack.c.b16 %v7146, %v7146
  %v7219 = vpack.c.b16 %v7147, %v7147
  %v7220 = vpack.c.b16 %v7148, %v7148
  %v7221 = vpack.c.b16 %v7149, %v7149
  %v7222 = vpack.c.b16 %v7150, %v7150
  %v7223 = vpack.c.b16 %v7151, %v7151
  %v7224 = vpack.c.b16 %v7152, %v7152
  %v7225 = vpack.c.b16 %v7153, %v7153
  %v7226 = vpack.c.b16 %v7154, %v7154
  %v7227 = vpack.c.b16 %v7155, %v7155
  %v7228 = vpack.c.b16 %v7156, %v7156
  %v7229 = vpack.c.b16 %v7157, %v7157
  %v7230 = vpack.c.b16 %v7158, %v7158
  %v7231 = vpack.c.b16 %v7159, %v7159
  %v7232 = vpack.c.b16 %v7160, %v7160
  %v7233 = vpack.c.b16 %v7161, %v7161
  %v7234 = vpack.c.b16 %v7162, %v7162
  %v7235 = vpack.c.b16 %v7163, %v7163
  %v7236 = vpack.c.b16 %v7164, %v7164
  %v7237 = vpack.c.b16 %v7165, %v7165
  %v7238 = vpack.c.b16 %v7166, %v7166
  %v7239 = vpack.c.b16 %v7167, %v7167
  %v7240 = vpack.c.b16 %v7168, %v7168
  %v7241 = vpack.c.b16 %v7169, %v7169
  %v7242 = vpack.c.b16 %v7170, %v7170
  %v7243 = vpack.c.b16 %v7171, %v7171
  %v7244 = vpack.c.b16 %v7172, %v7172
  %v7245 = vpack.c.b16 %v7173, %v7173
  %v7246 = vpack.c.b16 %v7174, %v7174
  %v7247 = vpack.c.b16 %v7175, %v7175
  %v7248 = vpack.c.b16 %v7176, %v7176
  %v7249 = vpack.c.b16 %v7177, %v7177
  %v7250 = vpack.c.b16 %v7178, %v7178
  %v7251 = vpack.c.b16 %v7179, %v7179
  %v7252 = vpack.c.b16 %v7180, %v7180
  %v7253 = vpack.c.b16 %v7181, %v7181
  %v7254 = vpack.c.b16 %v7182, %v7182
  %v7255 = vpack.c.b16 %v7183, %v7183
  %v7256 = vpack.c.b16 %v7184, %v7184
  %v7257 = vpack.c.b16 %v7185, %v7185
  %v7258 = vpack.c.b16 %v7186, %v7186
  %v7259 = vpack.c.b16 %v7187, %v7187
  %v7260 = vpack.c.b16 %v7188, %v7188
  %v7261 = vpack.c.b16 %v7189, %v7189
  %v7262 = vpack.c.b16 %v7190, %v7190
  %v7263 = vpack.c.b16 %v7191, %v7191
  %v7264 = vpack.c.b16 %v7192, %v7192
  %v7265 = vpack.c.b16 %v7193, %v7193
  %v7266 = vpack.c.b16 %v7194, %v7194
  %v7267 = vpack.c.b16 %v7195, %v7195
  %v7268 = vpack.c.b16 %v7196, %v7196
  %v7269 = vpack.c.b16 %v7197, %v7197
  %v7270 = vpack.c.b16 %v7198, %v7198
  %v7271 = vpack.c.b16 %v7199, %v7199
  %v7272 = vpack.c.b16 %v7200, %v7200
  %v7273 = vpack.c.b16 %v7201, %v7201
  %v7274 = vpack.c.b16 %v7202, %v7202
  %v7275 = vpack.c.b16 %v7203, %v7203
  %v7276 = vpack.c.b16 %v7204, %v7204
  %v7277 = vpack.c.b16 %v7205, %v7205
  %7350 = vst.msk [vmem:[#allocation3] sm:$0xf] %vm667, %v7206
  %7351 = vst.msk [vmem:[#allocation3 + $0x8] sm:$0xf] %vm667, %v7207
  %7352 = vst.msk [vmem:[#allocation3 + $0x10] sm:$0xf] %vm667, %v7208
  %7353 = vst.msk [vmem:[#allocation3 + $0x18] sm:$0xf] %vm667, %v7209
  %7354 = vst.msk [vmem:[#allocation3 + $0x20] sm:$0xf] %vm667, %v7210
  %7355 = vst.msk [vmem:[#allocation3 + $0x28] sm:$0xf] %vm667, %v7211
  %7356 = vst.msk [vmem:[#allocation3 + $0x30] sm:$0xf] %vm667, %v7212
  %7357 = vst.msk [vmem:[#allocation3 + $0x38] sm:$0xf] %vm667, %v7213
  %7358 = vst.msk [vmem:[#allocation3 + $0x40] sm:$0xf] %vm667, %v7214
  %7359 = vst.msk [vmem:[#allocation3 + $0x48] sm:$0xf] %vm667, %v7215
  %7360 = vst.msk [vmem:[#allocation3 + $0x50] sm:$0xf] %vm667, %v7216
  %7361 = vst.msk [vmem:[#allocation3 + $0x58] sm:$0xf] %vm667, %v7217
  %7362 = vst.msk [vmem:[#allocation3 + $0x60] sm:$0xf] %vm667, %v7218
  %7363 = vst.msk [vmem:[#allocation3 + $0x68] sm:$0xf] %vm667, %v7219
  %7364 = vst.msk [vmem:[#allocation3 + $0x70] sm:$0xf] %vm667, %v7220
  %7365 = vst.msk [vmem:[#allocation3 + $0x78] sm:$0xf] %vm667, %v7221
  %7366 = vst.msk [vmem:[#allocation3 + $0x80] sm:$0xf] %vm667, %v7222
  %7367 = vst.msk [vmem:[#allocation3 + $0x88] sm:$0xf] %vm667, %v7223
  %7368 = vst.msk [vmem:[#allocation3 + $0x90] sm:$0xf] %vm667, %v7224
  %7369 = vst.msk [vmem:[#allocation3 + $0x98] sm:$0xf] %vm667, %v7225
  %7370 = vst.msk [vmem:[#allocation3 + $0xa0] sm:$0xf] %vm667, %v7226
  %7371 = vst.msk [vmem:[#allocation3 + $0xa8] sm:$0xf] %vm667, %v7227
  %7372 = vst.msk [vmem:[#allocation3 + $0xb0] sm:$0xf] %vm667, %v7228
  %7373 = vst.msk [vmem:[#allocation3 + $0xb8] sm:$0xf] %vm667, %v7229
  %7374 = vst.msk [vmem:[#allocation3 + $0xc0] sm:$0xf] %vm667, %v7230
  %7375 = vst.msk [vmem:[#allocation3 + $0xc8] sm:$0xf] %vm667, %v7231
  %7376 = vst.msk [vmem:[#allocation3 + $0xd0] sm:$0xf] %vm667, %v7232
  %7377 = vst.msk [vmem:[#allocation3 + $0xd8] sm:$0xf] %vm667, %v7233
  %7378 = vst.msk [vmem:[#allocation3 + $0xe0] sm:$0xf] %vm667, %v7234
  %7379 = vst.msk [vmem:[#allocation3 + $0xe8] sm:$0xf] %vm667, %v7235
  %7380 = vst.msk [vmem:[#allocation3 + $0xf0] sm:$0xf] %vm667, %v7236
  %7381 = vst.msk [vmem:[#allocation3 + $0xf8] sm:$0xf] %vm667, %v7237
  %7382 = vst.msk [vmem:[#allocation3 + $0x100] sm:$0xf] %vm667, %v7238
  %7383 = vst.msk [vmem:[#allocation3 + $0x108] sm:$0xf] %vm667, %v7239
  %7384 = vst.msk [vmem:[#allocation3 + $0x110] sm:$0xf] %vm667, %v7240
  %7385 = vst.msk [vmem:[#allocation3 + $0x118] sm:$0xf] %vm667, %v7241
  %7386 = vst.msk [vmem:[#allocation3 + $0x120] sm:$0xf] %vm667, %v7242
  %7387 = vst.msk [vmem:[#allocation3 + $0x128] sm:$0xf] %vm667, %v7243
  %7388 = vst.msk [vmem:[#allocation3 + $0x130] sm:$0xf] %vm667, %v7244
  %7389 = vst.msk [vmem:[#allocation3 + $0x138] sm:$0xf] %vm667, %v7245
  %7390 = vst.msk [vmem:[#allocation3 + $0x140] sm:$0xf] %vm667, %v7246
  %7391 = vst.msk [vmem:[#allocation3 + $0x148] sm:$0xf] %vm667, %v7247
  %7392 = vst.msk [vmem:[#allocation3 + $0x150] sm:$0xf] %vm667, %v7248
  %7393 = vst.msk [vmem:[#allocation3 + $0x158] sm:$0xf] %vm667, %v7249
  %7394 = vst.msk [vmem:[#allocation3 + $0x160] sm:$0xf] %vm667, %v7250
  %7395 = vst.msk [vmem:[#allocation3 + $0x168] sm:$0xf] %vm667, %v7251
  %7396 = vst.msk [vmem:[#allocation3 + $0x170] sm:$0xf] %vm667, %v7252
  %7397 = vst.msk [vmem:[#allocation3 + $0x178] sm:$0xf] %vm667, %v7253
  %7398 = vst.msk [vmem:[#allocation3 + $0x180] sm:$0xf] %vm667, %v7254
  %7399 = vst.msk [vmem:[#allocation3 + $0x188] sm:$0xf] %vm667, %v7255
  %7400 = vst.msk [vmem:[#allocation3 + $0x190] sm:$0xf] %vm667, %v7256
  %7401 = vst.msk [vmem:[#allocation3 + $0x198] sm:$0xf] %vm667, %v7257
  %7402 = vst.msk [vmem:[#allocation3 + $0x1a0] sm:$0xf] %vm667, %v7258
  %7403 = vst.msk [vmem:[#allocation3 + $0x1a8] sm:$0xf] %vm667, %v7259
  %7404 = vst.msk [vmem:[#allocation3 + $0x1b0] sm:$0xf] %vm667, %v7260
  %7405 = vst.msk [vmem:[#allocation3 + $0x1b8] sm:$0xf] %vm667, %v7261
  %7406 = vst.msk [vmem:[#allocation3 + $0x1c0] sm:$0xf] %vm667, %v7262
  %7407 = vst.msk [vmem:[#allocation3 + $0x1c8] sm:$0xf] %vm667, %v7263
  %7408 = vst.msk [vmem:[#allocation3 + $0x1d0] sm:$0xf] %vm667, %v7264
  %7409 = vst.msk [vmem:[#allocation3 + $0x1d8] sm:$0xf] %vm667, %v7265
  %7410 = vst.msk [vmem:[#allocation3 + $0x1e0] sm:$0xf] %vm667, %v7266
  %7411 = vst.msk [vmem:[#allocation3 + $0x1e8] sm:$0xf] %vm667, %v7267
  %7412 = vst.msk [vmem:[#allocation3 + $0x1f0] sm:$0xf] %vm667, %v7268
  %7413 = vst.msk [vmem:[#allocation3 + $0x1f8] sm:$0xf] %vm667, %v7269
  %7414 = vst.msk [vmem:[#allocation3 + $0x200] sm:$0xf] %vm667, %v7270
  %7415 = vst.msk [vmem:[#allocation3 + $0x208] sm:$0xf] %vm667, %v7271
  %7416 = vst.msk [vmem:[#allocation3 + $0x210] sm:$0xf] %vm667, %v7272
  %7417 = vst.msk [vmem:[#allocation3 + $0x218] sm:$0xf] %vm667, %v7273
  %7418 = vst.msk [vmem:[#allocation3 + $0x220] sm:$0xf] %vm667, %v7274
  %7419 = vst.msk [vmem:[#allocation3 + $0x228] sm:$0xf] %vm667, %v7275
  %7420 = vst.msk [vmem:[#allocation3 + $0x230] sm:$0xf] %vm667, %v7276
  %7421 = vst.msk [vmem:[#allocation3 + $0x238] sm:$0xf] %vm667, %v7277
  %v7422 = vld [vmem:[#allocation2 + $0x1] sm:$0xff]
  %v7423 = vld [vmem:[#allocation2 + $0x9] sm:$0xff]
  %v7424 = vld [vmem:[#allocation2 + $0x11] sm:$0xff]
  %v7425 = vld [vmem:[#allocation2 + $0x19] sm:$0xff]
  %v7426 = vld [vmem:[#allocation2 + $0x21] sm:$0xff]
  %v7427 = vld [vmem:[#allocation2 + $0x29] sm:$0xff]
  %v7428 = vld [vmem:[#allocation2 + $0x31] sm:$0xff]
  %v7429 = vld [vmem:[#allocation2 + $0x39] sm:$0xff]
  %v7430 = vld [vmem:[#allocation2 + $0x41] sm:$0xff]
  %v7431 = vld [vmem:[#allocation2 + $0x49] sm:$0xff]
  %v7432 = vld [vmem:[#allocation2 + $0x51] sm:$0xff]
  %v7433 = vld [vmem:[#allocation2 + $0x59] sm:$0xff]
  %v7434 = vld [vmem:[#allocation2 + $0x61] sm:$0xff]
  %v7435 = vld [vmem:[#allocation2 + $0x69] sm:$0xff]
  %v7436 = vld [vmem:[#allocation2 + $0x71] sm:$0xff]
  %v7437 = vld [vmem:[#allocation2 + $0x79] sm:$0xff]
  %v7438 = vld [vmem:[#allocation2 + $0x81] sm:$0xff]
  %v7439 = vld [vmem:[#allocation2 + $0x89] sm:$0xff]
  %v7440 = vld [vmem:[#allocation2 + $0x91] sm:$0xff]
  %v7441 = vld [vmem:[#allocation2 + $0x99] sm:$0xff]
  %v7442 = vld [vmem:[#allocation2 + $0xa1] sm:$0xff]
  %v7443 = vld [vmem:[#allocation2 + $0xa9] sm:$0xff]
  %v7444 = vld [vmem:[#allocation2 + $0xb1] sm:$0xff]
  %v7445 = vld [vmem:[#allocation2 + $0xb9] sm:$0xff]
  %v7446 = vld [vmem:[#allocation2 + $0xc1] sm:$0xff]
  %v7447 = vld [vmem:[#allocation2 + $0xc9] sm:$0xff]
  %v7448 = vld [vmem:[#allocation2 + $0xd1] sm:$0xff]
  %v7449 = vld [vmem:[#allocation2 + $0xd9] sm:$0xff]
  %v7450 = vld [vmem:[#allocation2 + $0xe1] sm:$0xff]
  %v7451 = vld [vmem:[#allocation2 + $0xe9] sm:$0xff]
  %v7452 = vld [vmem:[#allocation2 + $0xf1] sm:$0xff]
  %v7453 = vld [vmem:[#allocation2 + $0xf9] sm:$0xff]
  %v7454 = vld [vmem:[#allocation2 + $0x101] sm:$0xff]
  %v7455 = vld [vmem:[#allocation2 + $0x109] sm:$0xff]
  %v7456 = vld [vmem:[#allocation2 + $0x111] sm:$0xff]
  %v7457 = vld [vmem:[#allocation2 + $0x119] sm:$0xff]
  %v7458 = vld [vmem:[#allocation2 + $0x121] sm:$0xff]
  %v7459 = vld [vmem:[#allocation2 + $0x129] sm:$0xff]
  %v7460 = vld [vmem:[#allocation2 + $0x131] sm:$0xff]
  %v7461 = vld [vmem:[#allocation2 + $0x139] sm:$0xff]
  %v7462 = vld [vmem:[#allocation2 + $0x141] sm:$0xff]
  %v7463 = vld [vmem:[#allocation2 + $0x149] sm:$0xff]
  %v7464 = vld [vmem:[#allocation2 + $0x151] sm:$0xff]
  %v7465 = vld [vmem:[#allocation2 + $0x159] sm:$0xff]
  %v7466 = vld [vmem:[#allocation2 + $0x161] sm:$0xff]
  %v7467 = vld [vmem:[#allocation2 + $0x169] sm:$0xff]
  %v7468 = vld [vmem:[#allocation2 + $0x171] sm:$0xff]
  %v7469 = vld [vmem:[#allocation2 + $0x179] sm:$0xff]
  %v7470 = vld [vmem:[#allocation2 + $0x181] sm:$0xff]
  %v7471 = vld [vmem:[#allocation2 + $0x189] sm:$0xff]
  %v7472 = vld [vmem:[#allocation2 + $0x191] sm:$0xff]
  %v7473 = vld [vmem:[#allocation2 + $0x199] sm:$0xff]
  %v7474 = vld [vmem:[#allocation2 + $0x1a1] sm:$0xff]
  %v7475 = vld [vmem:[#allocation2 + $0x1a9] sm:$0xff]
  %v7476 = vld [vmem:[#allocation2 + $0x1b1] sm:$0xff]
  %v7477 = vld [vmem:[#allocation2 + $0x1b9] sm:$0xff]
  %v7478 = vld [vmem:[#allocation2 + $0x1c1] sm:$0xff]
  %v7479 = vld [vmem:[#allocation2 + $0x1c9] sm:$0xff]
  %v7480 = vld [vmem:[#allocation2 + $0x1d1] sm:$0xff]
  %v7481 = vld [vmem:[#allocation2 + $0x1d9] sm:$0xff]
  %v7482 = vld [vmem:[#allocation2 + $0x1e1] sm:$0xff]
  %v7483 = vld [vmem:[#allocation2 + $0x1e9] sm:$0xff]
  %v7484 = vld [vmem:[#allocation2 + $0x1f1] sm:$0xff]
  %v7485 = vld [vmem:[#allocation2 + $0x1f9] sm:$0xff]
  %v7486 = vld [vmem:[#allocation2 + $0x201] sm:$0xff]
  %v7487 = vld [vmem:[#allocation2 + $0x209] sm:$0xff]
  %v7488 = vld [vmem:[#allocation2 + $0x211] sm:$0xff]
  %v7489 = vld [vmem:[#allocation2 + $0x219] sm:$0xff]
  %v7490 = vld [vmem:[#allocation2 + $0x221] sm:$0xff]
  %v7491 = vld [vmem:[#allocation2 + $0x229] sm:$0xff]
  %v7492 = vld [vmem:[#allocation2 + $0x231] sm:$0xff]
  %v7493 = vld [vmem:[#allocation2 + $0x239] sm:$0xff]
  %v7494 = vpack.c.bf16 %v7423, %v7422
  %v7495 = vpack.c.bf16 %v7425, %v7424
  %v7496 = vpack.c.bf16 %v7427, %v7426
  %v7497 = vpack.c.bf16 %v7429, %v7428
  %v7498 = vpack.c.bf16 %v7431, %v7430
  %v7499 = vpack.c.bf16 %v7433, %v7432
  %v7500 = vpack.c.bf16 %v7435, %v7434
  %v7501 = vpack.c.bf16 %v7437, %v7436
  %v7502 = vpack.c.bf16 %v7439, %v7438
  %v7503 = vpack.c.bf16 %v7441, %v7440
  %v7504 = vpack.c.bf16 %v7443, %v7442
  %v7505 = vpack.c.bf16 %v7445, %v7444
  %v7506 = vpack.c.bf16 %v7447, %v7446
  %v7507 = vpack.c.bf16 %v7449, %v7448
  %v7508 = vpack.c.bf16 %v7451, %v7450
  %v7509 = vpack.c.bf16 %v7453, %v7452
  %v7510 = vpack.c.bf16 %v7455, %v7454
  %v7511 = vpack.c.bf16 %v7457, %v7456
  %v7512 = vpack.c.bf16 %v7459, %v7458
  %v7513 = vpack.c.bf16 %v7461, %v7460
  %v7514 = vpack.c.bf16 %v7463, %v7462
  %v7515 = vpack.c.bf16 %v7465, %v7464
  %v7516 = vpack.c.bf16 %v7467, %v7466
  %v7517 = vpack.c.bf16 %v7469, %v7468
  %v7518 = vpack.c.bf16 %v7471, %v7470
  %v7519 = vpack.c.bf16 %v7473, %v7472
  %v7520 = vpack.c.bf16 %v7475, %v7474
  %v7521 = vpack.c.bf16 %v7477, %v7476
  %v7522 = vpack.c.bf16 %v7479, %v7478
  %v7523 = vpack.c.bf16 %v7481, %v7480
  %v7524 = vpack.c.bf16 %v7483, %v7482
  %v7525 = vpack.c.bf16 %v7485, %v7484
  %v7526 = vpack.c.bf16 %v7487, %v7486
  %v7527 = vpack.c.bf16 %v7489, %v7488
  %v7528 = vpack.c.bf16 %v7491, %v7490
  %v7529 = vpack.c.bf16 %v7493, %v7492
  %v7566 = vunpack.c.l.b16 %v7494
  %v7567 = vunpack.c.h.b16 %v7494
  %v7568 = vunpack.c.l.b16 %v7495
  %v7569 = vunpack.c.h.b16 %v7495
  %v7570 = vunpack.c.l.b16 %v7496
  %v7571 = vunpack.c.h.b16 %v7496
  %v7572 = vunpack.c.l.b16 %v7497
  %v7573 = vunpack.c.h.b16 %v7497
  %v7574 = vunpack.c.l.b16 %v7498
  %v7575 = vunpack.c.h.b16 %v7498
  %v7576 = vunpack.c.l.b16 %v7499
  %v7577 = vunpack.c.h.b16 %v7499
  %v7578 = vunpack.c.l.b16 %v7500
  %v7579 = vunpack.c.h.b16 %v7500
  %v7580 = vunpack.c.l.b16 %v7501
  %v7581 = vunpack.c.h.b16 %v7501
  %v7582 = vunpack.c.l.b16 %v7502
  %v7583 = vunpack.c.h.b16 %v7502
  %v7584 = vunpack.c.l.b16 %v7503
  %v7585 = vunpack.c.h.b16 %v7503
  %v7586 = vunpack.c.l.b16 %v7504
  %v7587 = vunpack.c.h.b16 %v7504
  %v7588 = vunpack.c.l.b16 %v7505
  %v7589 = vunpack.c.h.b16 %v7505
  %v7590 = vunpack.c.l.b16 %v7506
  %v7591 = vunpack.c.h.b16 %v7506
  %v7592 = vunpack.c.l.b16 %v7507
  %v7593 = vunpack.c.h.b16 %v7507
  %v7594 = vunpack.c.l.b16 %v7508
  %v7595 = vunpack.c.h.b16 %v7508
  %v7596 = vunpack.c.l.b16 %v7509
  %v7597 = vunpack.c.h.b16 %v7509
  %v7598 = vunpack.c.l.b16 %v7510
  %v7599 = vunpack.c.h.b16 %v7510
  %v7600 = vunpack.c.l.b16 %v7511
  %v7601 = vunpack.c.h.b16 %v7511
  %v7602 = vunpack.c.l.b16 %v7512
  %v7603 = vunpack.c.h.b16 %v7512
  %v7604 = vunpack.c.l.b16 %v7513
  %v7605 = vunpack.c.h.b16 %v7513
  %v7606 = vunpack.c.l.b16 %v7514
  %v7607 = vunpack.c.h.b16 %v7514
  %v7608 = vunpack.c.l.b16 %v7515
  %v7609 = vunpack.c.h.b16 %v7515
  %v7610 = vunpack.c.l.b16 %v7516
  %v7611 = vunpack.c.h.b16 %v7516
  %v7612 = vunpack.c.l.b16 %v7517
  %v7613 = vunpack.c.h.b16 %v7517
  %v7614 = vunpack.c.l.b16 %v7518
  %v7615 = vunpack.c.h.b16 %v7518
  %v7616 = vunpack.c.l.b16 %v7519
  %v7617 = vunpack.c.h.b16 %v7519
  %v7618 = vunpack.c.l.b16 %v7520
  %v7619 = vunpack.c.h.b16 %v7520
  %v7620 = vunpack.c.l.b16 %v7521
  %v7621 = vunpack.c.h.b16 %v7521
  %v7622 = vunpack.c.l.b16 %v7522
  %v7623 = vunpack.c.h.b16 %v7522
  %v7624 = vunpack.c.l.b16 %v7523
  %v7625 = vunpack.c.h.b16 %v7523
  %v7626 = vunpack.c.l.b16 %v7524
  %v7627 = vunpack.c.h.b16 %v7524
  %v7628 = vunpack.c.l.b16 %v7525
  %v7629 = vunpack.c.h.b16 %v7525
  %v7630 = vunpack.c.l.b16 %v7526
  %v7631 = vunpack.c.h.b16 %v7526
  %v7632 = vunpack.c.l.b16 %v7527
  %v7633 = vunpack.c.h.b16 %v7527
  %v7634 = vunpack.c.l.b16 %v7528
  %v7635 = vunpack.c.h.b16 %v7528
  %v7636 = vunpack.c.l.b16 %v7529
  %v7637 = vunpack.c.h.b16 %v7529
  %v7638 = vpack.c.b16 %v7566, %v7566
  %v7639 = vpack.c.b16 %v7567, %v7567
  %v7640 = vpack.c.b16 %v7568, %v7568
  %v7641 = vpack.c.b16 %v7569, %v7569
  %v7642 = vpack.c.b16 %v7570, %v7570
  %v7643 = vpack.c.b16 %v7571, %v7571
  %v7644 = vpack.c.b16 %v7572, %v7572
  %v7645 = vpack.c.b16 %v7573, %v7573
  %v7646 = vpack.c.b16 %v7574, %v7574
  %v7647 = vpack.c.b16 %v7575, %v7575
  %v7648 = vpack.c.b16 %v7576, %v7576
  %v7649 = vpack.c.b16 %v7577, %v7577
  %v7650 = vpack.c.b16 %v7578, %v7578
  %v7651 = vpack.c.b16 %v7579, %v7579
  %v7652 = vpack.c.b16 %v7580, %v7580
  %v7653 = vpack.c.b16 %v7581, %v7581
  %v7654 = vpack.c.b16 %v7582, %v7582
  %v7655 = vpack.c.b16 %v7583, %v7583
  %v7656 = vpack.c.b16 %v7584, %v7584
  %v7657 = vpack.c.b16 %v7585, %v7585
  %v7658 = vpack.c.b16 %v7586, %v7586
  %v7659 = vpack.c.b16 %v7587, %v7587
  %v7660 = vpack.c.b16 %v7588, %v7588
  %v7661 = vpack.c.b16 %v7589, %v7589
  %v7662 = vpack.c.b16 %v7590, %v7590
  %v7663 = vpack.c.b16 %v7591, %v7591
  %v7664 = vpack.c.b16 %v7592, %v7592
  %v7665 = vpack.c.b16 %v7593, %v7593
  %v7666 = vpack.c.b16 %v7594, %v7594
  %v7667 = vpack.c.b16 %v7595, %v7595
  %v7668 = vpack.c.b16 %v7596, %v7596
  %v7669 = vpack.c.b16 %v7597, %v7597
  %v7670 = vpack.c.b16 %v7598, %v7598
  %v7671 = vpack.c.b16 %v7599, %v7599
  %v7672 = vpack.c.b16 %v7600, %v7600
  %v7673 = vpack.c.b16 %v7601, %v7601
  %v7674 = vpack.c.b16 %v7602, %v7602
  %v7675 = vpack.c.b16 %v7603, %v7603
  %v7676 = vpack.c.b16 %v7604, %v7604
  %v7677 = vpack.c.b16 %v7605, %v7605
  %v7678 = vpack.c.b16 %v7606, %v7606
  %v7679 = vpack.c.b16 %v7607, %v7607
  %v7680 = vpack.c.b16 %v7608, %v7608
  %v7681 = vpack.c.b16 %v7609, %v7609
  %v7682 = vpack.c.b16 %v7610, %v7610
  %v7683 = vpack.c.b16 %v7611, %v7611
  %v7684 = vpack.c.b16 %v7612, %v7612
  %v7685 = vpack.c.b16 %v7613, %v7613
  %v7686 = vpack.c.b16 %v7614, %v7614
  %v7687 = vpack.c.b16 %v7615, %v7615
  %v7688 = vpack.c.b16 %v7616, %v7616
  %v7689 = vpack.c.b16 %v7617, %v7617
  %v7690 = vpack.c.b16 %v7618, %v7618
  %v7691 = vpack.c.b16 %v7619, %v7619
  %v7692 = vpack.c.b16 %v7620, %v7620
  %v7693 = vpack.c.b16 %v7621, %v7621
  %v7694 = vpack.c.b16 %v7622, %v7622
  %v7695 = vpack.c.b16 %v7623, %v7623
  %v7696 = vpack.c.b16 %v7624, %v7624
  %v7697 = vpack.c.b16 %v7625, %v7625
  %v7698 = vpack.c.b16 %v7626, %v7626
  %v7699 = vpack.c.b16 %v7627, %v7627
  %v7700 = vpack.c.b16 %v7628, %v7628
  %v7701 = vpack.c.b16 %v7629, %v7629
  %v7702 = vpack.c.b16 %v7630, %v7630
  %v7703 = vpack.c.b16 %v7631, %v7631
  %v7704 = vpack.c.b16 %v7632, %v7632
  %v7705 = vpack.c.b16 %v7633, %v7633
  %v7706 = vpack.c.b16 %v7634, %v7634
  %v7707 = vpack.c.b16 %v7635, %v7635
  %v7708 = vpack.c.b16 %v7636, %v7636
  %v7709 = vpack.c.b16 %v7637, %v7637
  %7710 = vrot.lane.b32.xlu0 %v7638, 64
  %v7711 = vpop.permute.xlu0 %7710
  %7712 = vrot.lane.b32.xlu0 %v7639, 64
  %v7713 = vpop.permute.xlu0 %7712
  %7714 = vrot.lane.b32.xlu0 %v7640, 64
  %v7715 = vpop.permute.xlu0 %7714
  %7716 = vrot.lane.b32.xlu0 %v7641, 64
  %v7717 = vpop.permute.xlu0 %7716
  %7718 = vrot.lane.b32.xlu0 %v7642, 64
  %v7719 = vpop.permute.xlu0 %7718
  %7720 = vrot.lane.b32.xlu0 %v7643, 64
  %v7721 = vpop.permute.xlu0 %7720
  %7722 = vrot.lane.b32.xlu0 %v7644, 64
  %v7723 = vpop.permute.xlu0 %7722
  %7724 = vrot.lane.b32.xlu0 %v7645, 64
  %v7725 = vpop.permute.xlu0 %7724
  %7726 = vrot.lane.b32.xlu0 %v7646, 64
  %v7727 = vpop.permute.xlu0 %7726
  %7728 = vrot.lane.b32.xlu0 %v7647, 64
  %v7729 = vpop.permute.xlu0 %7728
  %7730 = vrot.lane.b32.xlu0 %v7648, 64
  %v7731 = vpop.permute.xlu0 %7730
  %7732 = vrot.lane.b32.xlu0 %v7649, 64
  %v7733 = vpop.permute.xlu0 %7732
  %7734 = vrot.lane.b32.xlu0 %v7650, 64
  %v7735 = vpop.permute.xlu0 %7734
  %7736 = vrot.lane.b32.xlu0 %v7651, 64
  %v7737 = vpop.permute.xlu0 %7736
  %7738 = vrot.lane.b32.xlu0 %v7652, 64
  %v7739 = vpop.permute.xlu0 %7738
  %7740 = vrot.lane.b32.xlu0 %v7653, 64
  %v7741 = vpop.permute.xlu0 %7740
  %7742 = vrot.lane.b32.xlu0 %v7654, 64
  %v7743 = vpop.permute.xlu0 %7742
  %7744 = vrot.lane.b32.xlu0 %v7655, 64
  %v7745 = vpop.permute.xlu0 %7744
  %7746 = vrot.lane.b32.xlu0 %v7656, 64
  %v7747 = vpop.permute.xlu0 %7746
  %7748 = vrot.lane.b32.xlu0 %v7657, 64
  %v7749 = vpop.permute.xlu0 %7748
  %7750 = vrot.lane.b32.xlu0 %v7658, 64
  %v7751 = vpop.permute.xlu0 %7750
  %7752 = vrot.lane.b32.xlu0 %v7659, 64
  %v7753 = vpop.permute.xlu0 %7752
  %7754 = vrot.lane.b32.xlu0 %v7660, 64
  %v7755 = vpop.permute.xlu0 %7754
  %7756 = vrot.lane.b32.xlu0 %v7661, 64
  %v7757 = vpop.permute.xlu0 %7756
  %7758 = vrot.lane.b32.xlu0 %v7662, 64
  %v7759 = vpop.permute.xlu0 %7758
  %7760 = vrot.lane.b32.xlu0 %v7663, 64
  %v7761 = vpop.permute.xlu0 %7760
  %7762 = vrot.lane.b32.xlu0 %v7664, 64
  %v7763 = vpop.permute.xlu0 %7762
  %7764 = vrot.lane.b32.xlu0 %v7665, 64
  %v7765 = vpop.permute.xlu0 %7764
  %7766 = vrot.lane.b32.xlu0 %v7666, 64
  %v7767 = vpop.permute.xlu0 %7766
  %7768 = vrot.lane.b32.xlu0 %v7667, 64
  %v7769 = vpop.permute.xlu0 %7768
  %7770 = vrot.lane.b32.xlu0 %v7668, 64
  %v7771 = vpop.permute.xlu0 %7770
  %7772 = vrot.lane.b32.xlu0 %v7669, 64
  %v7773 = vpop.permute.xlu0 %7772
  %7774 = vrot.lane.b32.xlu0 %v7670, 64
  %v7775 = vpop.permute.xlu0 %7774
  %7776 = vrot.lane.b32.xlu0 %v7671, 64
  %v7777 = vpop.permute.xlu0 %7776
  %7778 = vrot.lane.b32.xlu0 %v7672, 64
  %v7779 = vpop.permute.xlu0 %7778
  %7780 = vrot.lane.b32.xlu0 %v7673, 64
  %v7781 = vpop.permute.xlu0 %7780
  %7782 = vrot.lane.b32.xlu0 %v7674, 64
  %v7783 = vpop.permute.xlu0 %7782
  %7784 = vrot.lane.b32.xlu0 %v7675, 64
  %v7785 = vpop.permute.xlu0 %7784
  %7786 = vrot.lane.b32.xlu0 %v7676, 64
  %v7787 = vpop.permute.xlu0 %7786
  %7788 = vrot.lane.b32.xlu0 %v7677, 64
  %v7789 = vpop.permute.xlu0 %7788
  %7790 = vrot.lane.b32.xlu0 %v7678, 64
  %v7791 = vpop.permute.xlu0 %7790
  %7792 = vrot.lane.b32.xlu0 %v7679, 64
  %v7793 = vpop.permute.xlu0 %7792
  %7794 = vrot.lane.b32.xlu0 %v7680, 64
  %v7795 = vpop.permute.xlu0 %7794
  %7796 = vrot.lane.b32.xlu0 %v7681, 64
  %v7797 = vpop.permute.xlu0 %7796
  %7798 = vrot.lane.b32.xlu0 %v7682, 64
  %v7799 = vpop.permute.xlu0 %7798
  %7800 = vrot.lane.b32.xlu0 %v7683, 64
  %v7801 = vpop.permute.xlu0 %7800
  %7802 = vrot.lane.b32.xlu0 %v7684, 64
  %v7803 = vpop.permute.xlu0 %7802
  %7804 = vrot.lane.b32.xlu0 %v7685, 64
  %v7805 = vpop.permute.xlu0 %7804
  %7806 = vrot.lane.b32.xlu0 %v7686, 64
  %v7807 = vpop.permute.xlu0 %7806
  %7808 = vrot.lane.b32.xlu0 %v7687, 64
  %v7809 = vpop.permute.xlu0 %7808
  %7810 = vrot.lane.b32.xlu0 %v7688, 64
  %v7811 = vpop.permute.xlu0 %7810
  %7812 = vrot.lane.b32.xlu0 %v7689, 64
  %v7813 = vpop.permute.xlu0 %7812
  %7814 = vrot.lane.b32.xlu0 %v7690, 64
  %v7815 = vpop.permute.xlu0 %7814
  %7816 = vrot.lane.b32.xlu0 %v7691, 64
  %v7817 = vpop.permute.xlu0 %7816
  %7818 = vrot.lane.b32.xlu0 %v7692, 64
  %v7819 = vpop.permute.xlu0 %7818
  %7820 = vrot.lane.b32.xlu0 %v7693, 64
  %v7821 = vpop.permute.xlu0 %7820
  %7822 = vrot.lane.b32.xlu0 %v7694, 64
  %v7823 = vpop.permute.xlu0 %7822
  %7824 = vrot.lane.b32.xlu0 %v7695, 64
  %v7825 = vpop.permute.xlu0 %7824
  %7826 = vrot.lane.b32.xlu0 %v7696, 64
  %v7827 = vpop.permute.xlu0 %7826
  %7828 = vrot.lane.b32.xlu0 %v7697, 64
  %v7829 = vpop.permute.xlu0 %7828
  %7830 = vrot.lane.b32.xlu0 %v7698, 64
  %v7831 = vpop.permute.xlu0 %7830
  %7832 = vrot.lane.b32.xlu0 %v7699, 64
  %v7833 = vpop.permute.xlu0 %7832
  %7834 = vrot.lane.b32.xlu0 %v7700, 64
  %v7835 = vpop.permute.xlu0 %7834
  %7836 = vrot.lane.b32.xlu0 %v7701, 64
  %v7837 = vpop.permute.xlu0 %7836
  %7838 = vrot.lane.b32.xlu0 %v7702, 64
  %v7839 = vpop.permute.xlu0 %7838
  %7840 = vrot.lane.b32.xlu0 %v7703, 64
  %v7841 = vpop.permute.xlu0 %7840
  %7842 = vrot.lane.b32.xlu0 %v7704, 64
  %v7843 = vpop.permute.xlu0 %7842
  %7844 = vrot.lane.b32.xlu0 %v7705, 64
  %v7845 = vpop.permute.xlu0 %7844
  %7846 = vrot.lane.b32.xlu0 %v7706, 64
  %v7847 = vpop.permute.xlu0 %7846
  %7848 = vrot.lane.b32.xlu0 %v7707, 64
  %v7849 = vpop.permute.xlu0 %7848
  %7850 = vrot.lane.b32.xlu0 %v7708, 64
  %v7851 = vpop.permute.xlu0 %7850
  %7852 = vrot.lane.b32.xlu0 %v7709, 64
  %v7853 = vpop.permute.xlu0 %7852
  %7926 = vst.msk [vmem:[#allocation3] sm:$0xf] %vm1244, %v7711
  %7927 = vst.msk [vmem:[#allocation3 + $0x8] sm:$0xf] %vm1244, %v7713
  %7928 = vst.msk [vmem:[#allocation3 + $0x10] sm:$0xf] %vm1244, %v7715
  %7929 = vst.msk [vmem:[#allocation3 + $0x18] sm:$0xf] %vm1244, %v7717
  %7930 = vst.msk [vmem:[#allocation3 + $0x20] sm:$0xf] %vm1244, %v7719
  %7931 = vst.msk [vmem:[#allocation3 + $0x28] sm:$0xf] %vm1244, %v7721
  %7932 = vst.msk [vmem:[#allocation3 + $0x30] sm:$0xf] %vm1244, %v7723
  %7933 = vst.msk [vmem:[#allocation3 + $0x38] sm:$0xf] %vm1244, %v7725
  %7934 = vst.msk [vmem:[#allocation3 + $0x40] sm:$0xf] %vm1244, %v7727
  %7935 = vst.msk [vmem:[#allocation3 + $0x48] sm:$0xf] %vm1244, %v7729
  %7936 = vst.msk [vmem:[#allocation3 + $0x50] sm:$0xf] %vm1244, %v7731
  %7937 = vst.msk [vmem:[#allocation3 + $0x58] sm:$0xf] %vm1244, %v7733
  %7938 = vst.msk [vmem:[#allocation3 + $0x60] sm:$0xf] %vm1244, %v7735
  %7939 = vst.msk [vmem:[#allocation3 + $0x68] sm:$0xf] %vm1244, %v7737
  %7940 = vst.msk [vmem:[#allocation3 + $0x70] sm:$0xf] %vm1244, %v7739
  %7941 = vst.msk [vmem:[#allocation3 + $0x78] sm:$0xf] %vm1244, %v7741
  %7942 = vst.msk [vmem:[#allocation3 + $0x80] sm:$0xf] %vm1244, %v7743
  %7943 = vst.msk [vmem:[#allocation3 + $0x88] sm:$0xf] %vm1244, %v7745
  %7944 = vst.msk [vmem:[#allocation3 + $0x90] sm:$0xf] %vm1244, %v7747
  %7945 = vst.msk [vmem:[#allocation3 + $0x98] sm:$0xf] %vm1244, %v7749
  %7946 = vst.msk [vmem:[#allocation3 + $0xa0] sm:$0xf] %vm1244, %v7751
  %7947 = vst.msk [vmem:[#allocation3 + $0xa8] sm:$0xf] %vm1244, %v7753
  %7948 = vst.msk [vmem:[#allocation3 + $0xb0] sm:$0xf] %vm1244, %v7755
  %7949 = vst.msk [vmem:[#allocation3 + $0xb8] sm:$0xf] %vm1244, %v7757
  %7950 = vst.msk [vmem:[#allocation3 + $0xc0] sm:$0xf] %vm1244, %v7759
  %7951 = vst.msk [vmem:[#allocation3 + $0xc8] sm:$0xf] %vm1244, %v7761
  %7952 = vst.msk [vmem:[#allocation3 + $0xd0] sm:$0xf] %vm1244, %v7763
  %7953 = vst.msk [vmem:[#allocation3 + $0xd8] sm:$0xf] %vm1244, %v7765
  %7954 = vst.msk [vmem:[#allocation3 + $0xe0] sm:$0xf] %vm1244, %v7767
  %7955 = vst.msk [vmem:[#allocation3 + $0xe8] sm:$0xf] %vm1244, %v7769
  %7956 = vst.msk [vmem:[#allocation3 + $0xf0] sm:$0xf] %vm1244, %v7771
  %7957 = vst.msk [vmem:[#allocation3 + $0xf8] sm:$0xf] %vm1244, %v7773
  %7958 = vst.msk [vmem:[#allocation3 + $0x100] sm:$0xf] %vm1244, %v7775
  %7959 = vst.msk [vmem:[#allocation3 + $0x108] sm:$0xf] %vm1244, %v7777
  %7960 = vst.msk [vmem:[#allocation3 + $0x110] sm:$0xf] %vm1244, %v7779
  %7961 = vst.msk [vmem:[#allocation3 + $0x118] sm:$0xf] %vm1244, %v7781
  %7962 = vst.msk [vmem:[#allocation3 + $0x120] sm:$0xf] %vm1244, %v7783
  %7963 = vst.msk [vmem:[#allocation3 + $0x128] sm:$0xf] %vm1244, %v7785
  %7964 = vst.msk [vmem:[#allocation3 + $0x130] sm:$0xf] %vm1244, %v7787
  %7965 = vst.msk [vmem:[#allocation3 + $0x138] sm:$0xf] %vm1244, %v7789
  %7966 = vst.msk [vmem:[#allocation3 + $0x140] sm:$0xf] %vm1244, %v7791
  %7967 = vst.msk [vmem:[#allocation3 + $0x148] sm:$0xf] %vm1244, %v7793
  %7968 = vst.msk [vmem:[#allocation3 + $0x150] sm:$0xf] %vm1244, %v7795
  %7969 = vst.msk [vmem:[#allocation3 + $0x158] sm:$0xf] %vm1244, %v7797
  %7970 = vst.msk [vmem:[#allocation3 + $0x160] sm:$0xf] %vm1244, %v7799
  %7971 = vst.msk [vmem:[#allocation3 + $0x168] sm:$0xf] %vm1244, %v7801
  %7972 = vst.msk [vmem:[#allocation3 + $0x170] sm:$0xf] %vm1244, %v7803
  %7973 = vst.msk [vmem:[#allocation3 + $0x178] sm:$0xf] %vm1244, %v7805
  %7974 = vst.msk [vmem:[#allocation3 + $0x180] sm:$0xf] %vm1244, %v7807
  %7975 = vst.msk [vmem:[#allocation3 + $0x188] sm:$0xf] %vm1244, %v7809
  %7976 = vst.msk [vmem:[#allocation3 + $0x190] sm:$0xf] %vm1244, %v7811
  %7977 = vst.msk [vmem:[#allocation3 + $0x198] sm:$0xf] %vm1244, %v7813
  %7978 = vst.msk [vmem:[#allocation3 + $0x1a0] sm:$0xf] %vm1244, %v7815
  %7979 = vst.msk [vmem:[#allocation3 + $0x1a8] sm:$0xf] %vm1244, %v7817
  %7980 = vst.msk [vmem:[#allocation3 + $0x1b0] sm:$0xf] %vm1244, %v7819
  %7981 = vst.msk [vmem:[#allocation3 + $0x1b8] sm:$0xf] %vm1244, %v7821
  %7982 = vst.msk [vmem:[#allocation3 + $0x1c0] sm:$0xf] %vm1244, %v7823
  %7983 = vst.msk [vmem:[#allocation3 + $0x1c8] sm:$0xf] %vm1244, %v7825
  %7984 = vst.msk [vmem:[#allocation3 + $0x1d0] sm:$0xf] %vm1244, %v7827
  %7985 = vst.msk [vmem:[#allocation3 + $0x1d8] sm:$0xf] %vm1244, %v7829
  %7986 = vst.msk [vmem:[#allocation3 + $0x1e0] sm:$0xf] %vm1244, %v7831
  %7987 = vst.msk [vmem:[#allocation3 + $0x1e8] sm:$0xf] %vm1244, %v7833
  %7988 = vst.msk [vmem:[#allocation3 + $0x1f0] sm:$0xf] %vm1244, %v7835
  %7989 = vst.msk [vmem:[#allocation3 + $0x1f8] sm:$0xf] %vm1244, %v7837
  %7990 = vst.msk [vmem:[#allocation3 + $0x200] sm:$0xf] %vm1244, %v7839
  %7991 = vst.msk [vmem:[#allocation3 + $0x208] sm:$0xf] %vm1244, %v7841
  %7992 = vst.msk [vmem:[#allocation3 + $0x210] sm:$0xf] %vm1244, %v7843
  %7993 = vst.msk [vmem:[#allocation3 + $0x218] sm:$0xf] %vm1244, %v7845
  %7994 = vst.msk [vmem:[#allocation3 + $0x220] sm:$0xf] %vm1244, %v7847
  %7995 = vst.msk [vmem:[#allocation3 + $0x228] sm:$0xf] %vm1244, %v7849
  %7996 = vst.msk [vmem:[#allocation3 + $0x230] sm:$0xf] %vm1244, %v7851
  %7997 = vst.msk [vmem:[#allocation3 + $0x238] sm:$0xf] %vm1244, %v7853
  %v7998 = vld [vmem:[#allocation2 + $0x2] sm:$0xff]
  %v7999 = vld [vmem:[#allocation2 + $0xa] sm:$0xff]
  %v8000 = vld [vmem:[#allocation2 + $0x12] sm:$0xff]
  %v8001 = vld [vmem:[#allocation2 + $0x1a] sm:$0xff]
  %v8002 = vld [vmem:[#allocation2 + $0x22] sm:$0xff]
  %v8003 = vld [vmem:[#allocation2 + $0x2a] sm:$0xff]
  %v8004 = vld [vmem:[#allocation2 + $0x32] sm:$0xff]
  %v8005 = vld [vmem:[#allocation2 + $0x3a] sm:$0xff]
  %v8006 = vld [vmem:[#allocation2 + $0x42] sm:$0xff]
  %v8007 = vld [vmem:[#allocation2 + $0x4a] sm:$0xff]
  %v8008 = vld [vmem:[#allocation2 + $0x52] sm:$0xff]
  %v8009 = vld [vmem:[#allocation2 + $0x5a] sm:$0xff]
  %v8010 = vld [vmem:[#allocation2 + $0x62] sm:$0xff]
  %v8011 = vld [vmem:[#allocation2 + $0x6a] sm:$0xff]
  %v8012 = vld [vmem:[#allocation2 + $0x72] sm:$0xff]
  %v8013 = vld [vmem:[#allocation2 + $0x7a] sm:$0xff]
  %v8014 = vld [vmem:[#allocation2 + $0x82] sm:$0xff]
  %v8015 = vld [vmem:[#allocation2 + $0x8a] sm:$0xff]
  %v8016 = vld [vmem:[#allocation2 + $0x92] sm:$0xff]
  %v8017 = vld [vmem:[#allocation2 + $0x9a] sm:$0xff]
  %v8018 = vld [vmem:[#allocation2 + $0xa2] sm:$0xff]
  %v8019 = vld [vmem:[#allocation2 + $0xaa] sm:$0xff]
  %v8020 = vld [vmem:[#allocation2 + $0xb2] sm:$0xff]
  %v8021 = vld [vmem:[#allocation2 + $0xba] sm:$0xff]
  %v8022 = vld [vmem:[#allocation2 + $0xc2] sm:$0xff]
  %v8023 = vld [vmem:[#allocation2 + $0xca] sm:$0xff]
  %v8024 = vld [vmem:[#allocation2 + $0xd2] sm:$0xff]
  %v8025 = vld [vmem:[#allocation2 + $0xda] sm:$0xff]
  %v8026 = vld [vmem:[#allocation2 + $0xe2] sm:$0xff]
  %v8027 = vld [vmem:[#allocation2 + $0xea] sm:$0xff]
  %v8028 = vld [vmem:[#allocation2 + $0xf2] sm:$0xff]
  %v8029 = vld [vmem:[#allocation2 + $0xfa] sm:$0xff]
  %v8030 = vld [vmem:[#allocation2 + $0x102] sm:$0xff]
  %v8031 = vld [vmem:[#allocation2 + $0x10a] sm:$0xff]
  %v8032 = vld [vmem:[#allocation2 + $0x112] sm:$0xff]
  %v8033 = vld [vmem:[#allocation2 + $0x11a] sm:$0xff]
  %v8034 = vld [vmem:[#allocation2 + $0x122] sm:$0xff]
  %v8035 = vld [vmem:[#allocation2 + $0x12a] sm:$0xff]
  %v8036 = vld [vmem:[#allocation2 + $0x132] sm:$0xff]
  %v8037 = vld [vmem:[#allocation2 + $0x13a] sm:$0xff]
  %v8038 = vld [vmem:[#allocation2 + $0x142] sm:$0xff]
  %v8039 = vld [vmem:[#allocation2 + $0x14a] sm:$0xff]
  %v8040 = vld [vmem:[#allocation2 + $0x152] sm:$0xff]
  %v8041 = vld [vmem:[#allocation2 + $0x15a] sm:$0xff]
  %v8042 = vld [vmem:[#allocation2 + $0x162] sm:$0xff]
  %v8043 = vld [vmem:[#allocation2 + $0x16a] sm:$0xff]
  %v8044 = vld [vmem:[#allocation2 + $0x172] sm:$0xff]
  %v8045 = vld [vmem:[#allocation2 + $0x17a] sm:$0xff]
  %v8046 = vld [vmem:[#allocation2 + $0x182] sm:$0xff]
  %v8047 = vld [vmem:[#allocation2 + $0x18a] sm:$0xff]
  %v8048 = vld [vmem:[#allocation2 + $0x192] sm:$0xff]
  %v8049 = vld [vmem:[#allocation2 + $0x19a] sm:$0xff]
  %v8050 = vld [vmem:[#allocation2 + $0x1a2] sm:$0xff]
  %v8051 = vld [vmem:[#allocation2 + $0x1aa] sm:$0xff]
  %v8052 = vld [vmem:[#allocation2 + $0x1b2] sm:$0xff]
  %v8053 = vld [vmem:[#allocation2 + $0x1ba] sm:$0xff]
  %v8054 = vld [vmem:[#allocation2 + $0x1c2] sm:$0xff]
  %v8055 = vld [vmem:[#allocation2 + $0x1ca] sm:$0xff]
  %v8056 = vld [vmem:[#allocation2 + $0x1d2] sm:$0xff]
  %v8057 = vld [vmem:[#allocation2 + $0x1da] sm:$0xff]
  %v8058 = vld [vmem:[#allocation2 + $0x1e2] sm:$0xff]
  %v8059 = vld [vmem:[#allocation2 + $0x1ea] sm:$0xff]
  %v8060 = vld [vmem:[#allocation2 + $0x1f2] sm:$0xff]
  %v8061 = vld [vmem:[#allocation2 + $0x1fa] sm:$0xff]
  %v8062 = vld [vmem:[#allocation2 + $0x202] sm:$0xff]
  %v8063 = vld [vmem:[#allocation2 + $0x20a] sm:$0xff]
  %v8064 = vld [vmem:[#allocation2 + $0x212] sm:$0xff]
  %v8065 = vld [vmem:[#allocation2 + $0x21a] sm:$0xff]
  %v8066 = vld [vmem:[#allocation2 + $0x222] sm:$0xff]
  %v8067 = vld [vmem:[#allocation2 + $0x22a] sm:$0xff]
  %v8068 = vld [vmem:[#allocation2 + $0x232] sm:$0xff]
  %v8069 = vld [vmem:[#allocation2 + $0x23a] sm:$0xff]
  %v8070 = vld [vmem:[%s4 + $0x1] sm:$0xff]
  %v8071 = vld [vmem:[%s4 + $0x9] sm:$0xff]
  %v8072 = vld [vmem:[%s4 + $0x11] sm:$0xff]
  %v8073 = vld [vmem:[%s4 + $0x19] sm:$0xff]
  %v8074 = vld [vmem:[%s4 + $0x21] sm:$0xff]
  %v8075 = vld [vmem:[%s4 + $0x29] sm:$0xff]
  %v8076 = vld [vmem:[%s4 + $0x31] sm:$0xff]
  %v8077 = vld [vmem:[%s4 + $0x39] sm:$0xff]
  %v8078 = vld [vmem:[%s4 + $0x41] sm:$0xff]
  %v8079 = vld [vmem:[%s4 + $0x49] sm:$0xff]
  %v8080 = vld [vmem:[%s4 + $0x51] sm:$0xff]
  %v8081 = vld [vmem:[%s4 + $0x59] sm:$0xff]
  %v8082 = vld [vmem:[%s4 + $0x61] sm:$0xff]
  %v8083 = vld [vmem:[%s4 + $0x69] sm:$0xff]
  %v8084 = vld [vmem:[%s4 + $0x71] sm:$0xff]
  %v8085 = vld [vmem:[%s4 + $0x79] sm:$0xff]
  %v8086 = vld [vmem:[%s4 + $0x81] sm:$0xff]
  %v8087 = vld [vmem:[%s4 + $0x89] sm:$0xff]
  %v8088 = vld [vmem:[%s4 + $0x91] sm:$0xff]
  %v8089 = vld [vmem:[%s4 + $0x99] sm:$0xff]
  %v8090 = vld [vmem:[%s4 + $0xa1] sm:$0xff]
  %v8091 = vld [vmem:[%s4 + $0xa9] sm:$0xff]
  %v8092 = vld [vmem:[%s4 + $0xb1] sm:$0xff]
  %v8093 = vld [vmem:[%s4 + $0xb9] sm:$0xff]
  %v8094 = vld [vmem:[%s4 + $0xc1] sm:$0xff]
  %v8095 = vld [vmem:[%s4 + $0xc9] sm:$0xff]
  %v8096 = vld [vmem:[%s4 + $0xd1] sm:$0xff]
  %v8097 = vld [vmem:[%s4 + $0xd9] sm:$0xff]
  %v8098 = vld [vmem:[%s4 + $0xe1] sm:$0xff]
  %v8099 = vld [vmem:[%s4 + $0xe9] sm:$0xff]
  %v8100 = vld [vmem:[%s4 + $0xf1] sm:$0xff]
  %v8101 = vld [vmem:[%s4 + $0xf9] sm:$0xff]
  %v8102 = vld [vmem:[%s4 + $0x101] sm:$0xff]
  %v8103 = vld [vmem:[%s4 + $0x109] sm:$0xff]
  %v8104 = vld [vmem:[%s4 + $0x111] sm:$0xff]
  %v8105 = vld [vmem:[%s4 + $0x119] sm:$0xff]
  %v8106 = vld [vmem:[%s4 + $0x121] sm:$0xff]
  %v8107 = vld [vmem:[%s4 + $0x129] sm:$0xff]
  %v8108 = vld [vmem:[%s4 + $0x131] sm:$0xff]
  %v8109 = vld [vmem:[%s4 + $0x139] sm:$0xff]
  %v8110 = vld [vmem:[%s4 + $0x141] sm:$0xff]
  %v8111 = vld [vmem:[%s4 + $0x149] sm:$0xff]
  %v8112 = vld [vmem:[%s4 + $0x151] sm:$0xff]
  %v8113 = vld [vmem:[%s4 + $0x159] sm:$0xff]
  %v8114 = vld [vmem:[%s4 + $0x161] sm:$0xff]
  %v8115 = vld [vmem:[%s4 + $0x169] sm:$0xff]
  %v8116 = vld [vmem:[%s4 + $0x171] sm:$0xff]
  %v8117 = vld [vmem:[%s4 + $0x179] sm:$0xff]
  %v8118 = vld [vmem:[%s4 + $0x181] sm:$0xff]
  %v8119 = vld [vmem:[%s4 + $0x189] sm:$0xff]
  %v8120 = vld [vmem:[%s4 + $0x191] sm:$0xff]
  %v8121 = vld [vmem:[%s4 + $0x199] sm:$0xff]
  %v8122 = vld [vmem:[%s4 + $0x1a1] sm:$0xff]
  %v8123 = vld [vmem:[%s4 + $0x1a9] sm:$0xff]
  %v8124 = vld [vmem:[%s4 + $0x1b1] sm:$0xff]
  %v8125 = vld [vmem:[%s4 + $0x1b9] sm:$0xff]
  %v8126 = vld [vmem:[%s4 + $0x1c1] sm:$0xff]
  %v8127 = vld [vmem:[%s4 + $0x1c9] sm:$0xff]
  %v8128 = vld [vmem:[%s4 + $0x1d1] sm:$0xff]
  %v8129 = vld [vmem:[%s4 + $0x1d9] sm:$0xff]
  %v8130 = vld [vmem:[%s4 + $0x1e1] sm:$0xff]
  %v8131 = vld [vmem:[%s4 + $0x1e9] sm:$0xff]
  %v8132 = vld [vmem:[%s4 + $0x1f1] sm:$0xff]
  %v8133 = vld [vmem:[%s4 + $0x1f9] sm:$0xff]
  %v8134 = vld [vmem:[%s4 + $0x201] sm:$0xff]
  %v8135 = vld [vmem:[%s4 + $0x209] sm:$0xff]
  %v8136 = vld [vmem:[%s4 + $0x211] sm:$0xff]
  %v8137 = vld [vmem:[%s4 + $0x219] sm:$0xff]
  %v8138 = vld [vmem:[%s4 + $0x221] sm:$0xff]
  %v8139 = vld [vmem:[%s4 + $0x229] sm:$0xff]
  %v8140 = vld [vmem:[%s4 + $0x231] sm:$0xff]
  %v8141 = vld [vmem:[%s4 + $0x239] sm:$0xff]
  %v8142 = vmul.f32 %v7998, %v8070
  %v8143 = vmul.f32 %v7999, %v8071
  %v8144 = vmul.f32 %v8000, %v8072
  %v8145 = vmul.f32 %v8001, %v8073
  %v8146 = vmul.f32 %v8002, %v8074
  %v8147 = vmul.f32 %v8003, %v8075
  %v8148 = vmul.f32 %v8004, %v8076
  %v8149 = vmul.f32 %v8005, %v8077
  %v8150 = vmul.f32 %v8006, %v8078
  %v8151 = vmul.f32 %v8007, %v8079
  %v8152 = vmul.f32 %v8008, %v8080
  %v8153 = vmul.f32 %v8009, %v8081
  %v8154 = vmul.f32 %v8010, %v8082
  %v8155 = vmul.f32 %v8011, %v8083
  %v8156 = vmul.f32 %v8012, %v8084
  %v8157 = vmul.f32 %v8013, %v8085
  %v8158 = vmul.f32 %v8014, %v8086
  %v8159 = vmul.f32 %v8015, %v8087
  %v8160 = vmul.f32 %v8016, %v8088
  %v8161 = vmul.f32 %v8017, %v8089
  %v8162 = vmul.f32 %v8018, %v8090
  %v8163 = vmul.f32 %v8019, %v8091
  %v8164 = vmul.f32 %v8020, %v8092
  %v8165 = vmul.f32 %v8021, %v8093
  %v8166 = vmul.f32 %v8022, %v8094
  %v8167 = vmul.f32 %v8023, %v8095
  %v8168 = vmul.f32 %v8024, %v8096
  %v8169 = vmul.f32 %v8025, %v8097
  %v8170 = vmul.f32 %v8026, %v8098
  %v8171 = vmul.f32 %v8027, %v8099
  %v8172 = vmul.f32 %v8028, %v8100
  %v8173 = vmul.f32 %v8029, %v8101
  %v8174 = vmul.f32 %v8030, %v8102
  %v8175 = vmul.f32 %v8031, %v8103
  %v8176 = vmul.f32 %v8032, %v8104
  %v8177 = vmul.f32 %v8033, %v8105
  %v8178 = vmul.f32 %v8034, %v8106
  %v8179 = vmul.f32 %v8035, %v8107
  %v8180 = vmul.f32 %v8036, %v8108
  %v8181 = vmul.f32 %v8037, %v8109
  %v8182 = vmul.f32 %v8038, %v8110
  %v8183 = vmul.f32 %v8039, %v8111
  %v8184 = vmul.f32 %v8040, %v8112
  %v8185 = vmul.f32 %v8041, %v8113
  %v8186 = vmul.f32 %v8042, %v8114
  %v8187 = vmul.f32 %v8043, %v8115
  %v8188 = vmul.f32 %v8044, %v8116
  %v8189 = vmul.f32 %v8045, %v8117
  %v8190 = vmul.f32 %v8046, %v8118
  %v8191 = vmul.f32 %v8047, %v8119
  %v8192 = vmul.f32 %v8048, %v8120
  %v8193 = vmul.f32 %v8049, %v8121
  %v8194 = vmul.f32 %v8050, %v8122
  %v8195 = vmul.f32 %v8051, %v8123
  %v8196 = vmul.f32 %v8052, %v8124
  %v8197 = vmul.f32 %v8053, %v8125
  %v8198 = vmul.f32 %v8054, %v8126
  %v8199 = vmul.f32 %v8055, %v8127
  %v8200 = vmul.f32 %v8056, %v8128
  %v8201 = vmul.f32 %v8057, %v8129
  %v8202 = vmul.f32 %v8058, %v8130
  %v8203 = vmul.f32 %v8059, %v8131
  %v8204 = vmul.f32 %v8060, %v8132
  %v8205 = vmul.f32 %v8061, %v8133
  %v8206 = vmul.f32 %v8062, %v8134
  %v8207 = vmul.f32 %v8063, %v8135
  %v8208 = vmul.f32 %v8064, %v8136
  %v8209 = vmul.f32 %v8065, %v8137
  %v8210 = vmul.f32 %v8066, %v8138
  %v8211 = vmul.f32 %v8067, %v8139
  %v8212 = vmul.f32 %v8068, %v8140
  %v8213 = vmul.f32 %v8069, %v8141
  %v8214 = vpack.c.bf16 %v8143, %v8142
  %v8215 = vpack.c.bf16 %v8145, %v8144
  %v8216 = vpack.c.bf16 %v8147, %v8146
  %v8217 = vpack.c.bf16 %v8149, %v8148
  %v8218 = vpack.c.bf16 %v8151, %v8150
  %v8219 = vpack.c.bf16 %v8153, %v8152
  %v8220 = vpack.c.bf16 %v8155, %v8154
  %v8221 = vpack.c.bf16 %v8157, %v8156
  %v8222 = vpack.c.bf16 %v8159, %v8158
  %v8223 = vpack.c.bf16 %v8161, %v8160
  %v8224 = vpack.c.bf16 %v8163, %v8162
  %v8225 = vpack.c.bf16 %v8165, %v8164
  %v8226 = vpack.c.bf16 %v8167, %v8166
  %v8227 = vpack.c.bf16 %v8169, %v8168
  %v8228 = vpack.c.bf16 %v8171, %v8170
  %v8229 = vpack.c.bf16 %v8173, %v8172
  %v8230 = vpack.c.bf16 %v8175, %v8174
  %v8231 = vpack.c.bf16 %v8177, %v8176
  %v8232 = vpack.c.bf16 %v8179, %v8178
  %v8233 = vpack.c.bf16 %v8181, %v8180
  %v8234 = vpack.c.bf16 %v8183, %v8182
  %v8235 = vpack.c.bf16 %v8185, %v8184
  %v8236 = vpack.c.bf16 %v8187, %v8186
  %v8237 = vpack.c.bf16 %v8189, %v8188
  %v8238 = vpack.c.bf16 %v8191, %v8190
  %v8239 = vpack.c.bf16 %v8193, %v8192
  %v8240 = vpack.c.bf16 %v8195, %v8194
  %v8241 = vpack.c.bf16 %v8197, %v8196
  %v8242 = vpack.c.bf16 %v8199, %v8198
  %v8243 = vpack.c.bf16 %v8201, %v8200
  %v8244 = vpack.c.bf16 %v8203, %v8202
  %v8245 = vpack.c.bf16 %v8205, %v8204
  %v8246 = vpack.c.bf16 %v8207, %v8206
  %v8247 = vpack.c.bf16 %v8209, %v8208
  %v8248 = vpack.c.bf16 %v8211, %v8210
  %v8249 = vpack.c.bf16 %v8213, %v8212
  %v8286 = vunpack.c.l.b16 %v8214
  %v8287 = vunpack.c.h.b16 %v8214
  %v8288 = vunpack.c.l.b16 %v8215
  %v8289 = vunpack.c.h.b16 %v8215
  %v8290 = vunpack.c.l.b16 %v8216
  %v8291 = vunpack.c.h.b16 %v8216
  %v8292 = vunpack.c.l.b16 %v8217
  %v8293 = vunpack.c.h.b16 %v8217
  %v8294 = vunpack.c.l.b16 %v8218
  %v8295 = vunpack.c.h.b16 %v8218
  %v8296 = vunpack.c.l.b16 %v8219
  %v8297 = vunpack.c.h.b16 %v8219
  %v8298 = vunpack.c.l.b16 %v8220
  %v8299 = vunpack.c.h.b16 %v8220
  %v8300 = vunpack.c.l.b16 %v8221
  %v8301 = vunpack.c.h.b16 %v8221
  %v8302 = vunpack.c.l.b16 %v8222
  %v8303 = vunpack.c.h.b16 %v8222
  %v8304 = vunpack.c.l.b16 %v8223
  %v8305 = vunpack.c.h.b16 %v8223
  %v8306 = vunpack.c.l.b16 %v8224
  %v8307 = vunpack.c.h.b16 %v8224
  %v8308 = vunpack.c.l.b16 %v8225
  %v8309 = vunpack.c.h.b16 %v8225
  %v8310 = vunpack.c.l.b16 %v8226
  %v8311 = vunpack.c.h.b16 %v8226
  %v8312 = vunpack.c.l.b16 %v8227
  %v8313 = vunpack.c.h.b16 %v8227
  %v8314 = vunpack.c.l.b16 %v8228
  %v8315 = vunpack.c.h.b16 %v8228
  %v8316 = vunpack.c.l.b16 %v8229
  %v8317 = vunpack.c.h.b16 %v8229
  %v8318 = vunpack.c.l.b16 %v8230
  %v8319 = vunpack.c.h.b16 %v8230
  %v8320 = vunpack.c.l.b16 %v8231
  %v8321 = vunpack.c.h.b16 %v8231
  %v8322 = vunpack.c.l.b16 %v8232
  %v8323 = vunpack.c.h.b16 %v8232
  %v8324 = vunpack.c.l.b16 %v8233
  %v8325 = vunpack.c.h.b16 %v8233
  %v8326 = vunpack.c.l.b16 %v8234
  %v8327 = vunpack.c.h.b16 %v8234
  %v8328 = vunpack.c.l.b16 %v8235
  %v8329 = vunpack.c.h.b16 %v8235
  %v8330 = vunpack.c.l.b16 %v8236
  %v8331 = vunpack.c.h.b16 %v8236
  %v8332 = vunpack.c.l.b16 %v8237
  %v8333 = vunpack.c.h.b16 %v8237
  %v8334 = vunpack.c.l.b16 %v8238
  %v8335 = vunpack.c.h.b16 %v8238
  %v8336 = vunpack.c.l.b16 %v8239
  %v8337 = vunpack.c.h.b16 %v8239
  %v8338 = vunpack.c.l.b16 %v8240
  %v8339 = vunpack.c.h.b16 %v8240
  %v8340 = vunpack.c.l.b16 %v8241
  %v8341 = vunpack.c.h.b16 %v8241
  %v8342 = vunpack.c.l.b16 %v8242
  %v8343 = vunpack.c.h.b16 %v8242
  %v8344 = vunpack.c.l.b16 %v8243
  %v8345 = vunpack.c.h.b16 %v8243
  %v8346 = vunpack.c.l.b16 %v8244
  %v8347 = vunpack.c.h.b16 %v8244
  %v8348 = vunpack.c.l.b16 %v8245
  %v8349 = vunpack.c.h.b16 %v8245
  %v8350 = vunpack.c.l.b16 %v8246
  %v8351 = vunpack.c.h.b16 %v8246
  %v8352 = vunpack.c.l.b16 %v8247
  %v8353 = vunpack.c.h.b16 %v8247
  %v8354 = vunpack.c.l.b16 %v8248
  %v8355 = vunpack.c.h.b16 %v8248
  %v8356 = vunpack.c.l.b16 %v8249
  %v8357 = vunpack.c.h.b16 %v8249
  %v8358 = vpack.c.b16 %v8286, %v8286
  %v8359 = vpack.c.b16 %v8287, %v8287
  %v8360 = vpack.c.b16 %v8288, %v8288
  %v8361 = vpack.c.b16 %v8289, %v8289
  %v8362 = vpack.c.b16 %v8290, %v8290
  %v8363 = vpack.c.b16 %v8291, %v8291
  %v8364 = vpack.c.b16 %v8292, %v8292
  %v8365 = vpack.c.b16 %v8293, %v8293
  %v8366 = vpack.c.b16 %v8294, %v8294
  %v8367 = vpack.c.b16 %v8295, %v8295
  %v8368 = vpack.c.b16 %v8296, %v8296
  %v8369 = vpack.c.b16 %v8297, %v8297
  %v8370 = vpack.c.b16 %v8298, %v8298
  %v8371 = vpack.c.b16 %v8299, %v8299
  %v8372 = vpack.c.b16 %v8300, %v8300
  %v8373 = vpack.c.b16 %v8301, %v8301
  %v8374 = vpack.c.b16 %v8302, %v8302
  %v8375 = vpack.c.b16 %v8303, %v8303
  %v8376 = vpack.c.b16 %v8304, %v8304
  %v8377 = vpack.c.b16 %v8305, %v8305
  %v8378 = vpack.c.b16 %v8306, %v8306
  %v8379 = vpack.c.b16 %v8307, %v8307
  %v8380 = vpack.c.b16 %v8308, %v8308
  %v8381 = vpack.c.b16 %v8309, %v8309
  %v8382 = vpack.c.b16 %v8310, %v8310
  %v8383 = vpack.c.b16 %v8311, %v8311
  %v8384 = vpack.c.b16 %v8312, %v8312
  %v8385 = vpack.c.b16 %v8313, %v8313
  %v8386 = vpack.c.b16 %v8314, %v8314
  %v8387 = vpack.c.b16 %v8315, %v8315
  %v8388 = vpack.c.b16 %v8316, %v8316
  %v8389 = vpack.c.b16 %v8317, %v8317
  %v8390 = vpack.c.b16 %v8318, %v8318
  %v8391 = vpack.c.b16 %v8319, %v8319
  %v8392 = vpack.c.b16 %v8320, %v8320
  %v8393 = vpack.c.b16 %v8321, %v8321
  %v8394 = vpack.c.b16 %v8322, %v8322
  %v8395 = vpack.c.b16 %v8323, %v8323
  %v8396 = vpack.c.b16 %v8324, %v8324
  %v8397 = vpack.c.b16 %v8325, %v8325
  %v8398 = vpack.c.b16 %v8326, %v8326
  %v8399 = vpack.c.b16 %v8327, %v8327
  %v8400 = vpack.c.b16 %v8328, %v8328
  %v8401 = vpack.c.b16 %v8329, %v8329
  %v8402 = vpack.c.b16 %v8330, %v8330
  %v8403 = vpack.c.b16 %v8331, %v8331
  %v8404 = vpack.c.b16 %v8332, %v8332
  %v8405 = vpack.c.b16 %v8333, %v8333
  %v8406 = vpack.c.b16 %v8334, %v8334
  %v8407 = vpack.c.b16 %v8335, %v8335
  %v8408 = vpack.c.b16 %v8336, %v8336
  %v8409 = vpack.c.b16 %v8337, %v8337
  %v8410 = vpack.c.b16 %v8338, %v8338
  %v8411 = vpack.c.b16 %v8339, %v8339
  %v8412 = vpack.c.b16 %v8340, %v8340
  %v8413 = vpack.c.b16 %v8341, %v8341
  %v8414 = vpack.c.b16 %v8342, %v8342
  %v8415 = vpack.c.b16 %v8343, %v8343
  %v8416 = vpack.c.b16 %v8344, %v8344
  %v8417 = vpack.c.b16 %v8345, %v8345
  %v8418 = vpack.c.b16 %v8346, %v8346
  %v8419 = vpack.c.b16 %v8347, %v8347
  %v8420 = vpack.c.b16 %v8348, %v8348
  %v8421 = vpack.c.b16 %v8349, %v8349
  %v8422 = vpack.c.b16 %v8350, %v8350
  %v8423 = vpack.c.b16 %v8351, %v8351
  %v8424 = vpack.c.b16 %v8352, %v8352
  %v8425 = vpack.c.b16 %v8353, %v8353
  %v8426 = vpack.c.b16 %v8354, %v8354
  %v8427 = vpack.c.b16 %v8355, %v8355
  %v8428 = vpack.c.b16 %v8356, %v8356
  %v8429 = vpack.c.b16 %v8357, %v8357
  %8502 = vst.msk [vmem:[#allocation3 + $0x4] sm:$0xf] %vm667, %v8358
  %8503 = vst.msk [vmem:[#allocation3 + $0xc] sm:$0xf] %vm667, %v8359
  %8504 = vst.msk [vmem:[#allocation3 + $0x14] sm:$0xf] %vm667, %v8360
  %8505 = vst.msk [vmem:[#allocation3 + $0x1c] sm:$0xf] %vm667, %v8361
  %8506 = vst.msk [vmem:[#allocation3 + $0x24] sm:$0xf] %vm667, %v8362
  %8507 = vst.msk [vmem:[#allocation3 + $0x2c] sm:$0xf] %vm667, %v8363
  %8508 = vst.msk [vmem:[#allocation3 + $0x34] sm:$0xf] %vm667, %v8364
  %8509 = vst.msk [vmem:[#allocation3 + $0x3c] sm:$0xf] %vm667, %v8365
  %8510 = vst.msk [vmem:[#allocation3 + $0x44] sm:$0xf] %vm667, %v8366
  %8511 = vst.msk [vmem:[#allocation3 + $0x4c] sm:$0xf] %vm667, %v8367
  %8512 = vst.msk [vmem:[#allocation3 + $0x54] sm:$0xf] %vm667, %v8368
  %8513 = vst.msk [vmem:[#allocation3 + $0x5c] sm:$0xf] %vm667, %v8369
  %8514 = vst.msk [vmem:[#allocation3 + $0x64] sm:$0xf] %vm667, %v8370
  %8515 = vst.msk [vmem:[#allocation3 + $0x6c] sm:$0xf] %vm667, %v8371
  %8516 = vst.msk [vmem:[#allocation3 + $0x74] sm:$0xf] %vm667, %v8372
  %8517 = vst.msk [vmem:[#allocation3 + $0x7c] sm:$0xf] %vm667, %v8373
  %8518 = vst.msk [vmem:[#allocation3 + $0x84] sm:$0xf] %vm667, %v8374
  %8519 = vst.msk [vmem:[#allocation3 + $0x8c] sm:$0xf] %vm667, %v8375
  %8520 = vst.msk [vmem:[#allocation3 + $0x94] sm:$0xf] %vm667, %v8376
  %8521 = vst.msk [vmem:[#allocation3 + $0x9c] sm:$0xf] %vm667, %v8377
  %8522 = vst.msk [vmem:[#allocation3 + $0xa4] sm:$0xf] %vm667, %v8378
  %8523 = vst.msk [vmem:[#allocation3 + $0xac] sm:$0xf] %vm667, %v8379
  %8524 = vst.msk [vmem:[#allocation3 + $0xb4] sm:$0xf] %vm667, %v8380
  %8525 = vst.msk [vmem:[#allocation3 + $0xbc] sm:$0xf] %vm667, %v8381
  %8526 = vst.msk [vmem:[#allocation3 + $0xc4] sm:$0xf] %vm667, %v8382
  %8527 = vst.msk [vmem:[#allocation3 + $0xcc] sm:$0xf] %vm667, %v8383
  %8528 = vst.msk [vmem:[#allocation3 + $0xd4] sm:$0xf] %vm667, %v8384
  %8529 = vst.msk [vmem:[#allocation3 + $0xdc] sm:$0xf] %vm667, %v8385
  %8530 = vst.msk [vmem:[#allocation3 + $0xe4] sm:$0xf] %vm667, %v8386
  %8531 = vst.msk [vmem:[#allocation3 + $0xec] sm:$0xf] %vm667, %v8387
  %8532 = vst.msk [vmem:[#allocation3 + $0xf4] sm:$0xf] %vm667, %v8388
  %8533 = vst.msk [vmem:[#allocation3 + $0xfc] sm:$0xf] %vm667, %v8389
  %8534 = vst.msk [vmem:[#allocation3 + $0x104] sm:$0xf] %vm667, %v8390
  %8535 = vst.msk [vmem:[#allocation3 + $0x10c] sm:$0xf] %vm667, %v8391
  %8536 = vst.msk [vmem:[#allocation3 + $0x114] sm:$0xf] %vm667, %v8392
  %8537 = vst.msk [vmem:[#allocation3 + $0x11c] sm:$0xf] %vm667, %v8393
  %8538 = vst.msk [vmem:[#allocation3 + $0x124] sm:$0xf] %vm667, %v8394
  %8539 = vst.msk [vmem:[#allocation3 + $0x12c] sm:$0xf] %vm667, %v8395
  %8540 = vst.msk [vmem:[#allocation3 + $0x134] sm:$0xf] %vm667, %v8396
  %8541 = vst.msk [vmem:[#allocation3 + $0x13c] sm:$0xf] %vm667, %v8397
  %8542 = vst.msk [vmem:[#allocation3 + $0x144] sm:$0xf] %vm667, %v8398
  %8543 = vst.msk [vmem:[#allocation3 + $0x14c] sm:$0xf] %vm667, %v8399
  %8544 = vst.msk [vmem:[#allocation3 + $0x154] sm:$0xf] %vm667, %v8400
  %8545 = vst.msk [vmem:[#allocation3 + $0x15c] sm:$0xf] %vm667, %v8401
  %8546 = vst.msk [vmem:[#allocation3 + $0x164] sm:$0xf] %vm667, %v8402
  %8547 = vst.msk [vmem:[#allocation3 + $0x16c] sm:$0xf] %vm667, %v8403
  %8548 = vst.msk [vmem:[#allocation3 + $0x174] sm:$0xf] %vm667, %v8404
  %8549 = vst.msk [vmem:[#allocation3 + $0x17c] sm:$0xf] %vm667, %v8405
  %8550 = vst.msk [vmem:[#allocation3 + $0x184] sm:$0xf] %vm667, %v8406
  %8551 = vst.msk [vmem:[#allocation3 + $0x18c] sm:$0xf] %vm667, %v8407
  %8552 = vst.msk [vmem:[#allocation3 + $0x194] sm:$0xf] %vm667, %v8408
  %8553 = vst.msk [vmem:[#allocation3 + $0x19c] sm:$0xf] %vm667, %v8409
  %8554 = vst.msk [vmem:[#allocation3 + $0x1a4] sm:$0xf] %vm667, %v8410
  %8555 = vst.msk [vmem:[#allocation3 + $0x1ac] sm:$0xf] %vm667, %v8411
  %8556 = vst.msk [vmem:[#allocation3 + $0x1b4] sm:$0xf] %vm667, %v8412
  %8557 = vst.msk [vmem:[#allocation3 + $0x1bc] sm:$0xf] %vm667, %v8413
  %8558 = vst.msk [vmem:[#allocation3 + $0x1c4] sm:$0xf] %vm667, %v8414
  %8559 = vst.msk [vmem:[#allocation3 + $0x1cc] sm:$0xf] %vm667, %v8415
  %8560 = vst.msk [vmem:[#allocation3 + $0x1d4] sm:$0xf] %vm667, %v8416
  %8561 = vst.msk [vmem:[#allocation3 + $0x1dc] sm:$0xf] %vm667, %v8417
  %8562 = vst.msk [vmem:[#allocation3 + $0x1e4] sm:$0xf] %vm667, %v8418
  %8563 = vst.msk [vmem:[#allocation3 + $0x1ec] sm:$0xf] %vm667, %v8419
  %8564 = vst.msk [vmem:[#allocation3 + $0x1f4] sm:$0xf] %vm667, %v8420
  %8565 = vst.msk [vmem:[#allocation3 + $0x1fc] sm:$0xf] %vm667, %v8421
  %8566 = vst.msk [vmem:[#allocation3 + $0x204] sm:$0xf] %vm667, %v8422
  %8567 = vst.msk [vmem:[#allocation3 + $0x20c] sm:$0xf] %vm667, %v8423
  %8568 = vst.msk [vmem:[#allocation3 + $0x214] sm:$0xf] %vm667, %v8424
  %8569 = vst.msk [vmem:[#allocation3 + $0x21c] sm:$0xf] %vm667, %v8425
  %8570 = vst.msk [vmem:[#allocation3 + $0x224] sm:$0xf] %vm667, %v8426
  %8571 = vst.msk [vmem:[#allocation3 + $0x22c] sm:$0xf] %vm667, %v8427
  %8572 = vst.msk [vmem:[#allocation3 + $0x234] sm:$0xf] %vm667, %v8428
  %8573 = vst.msk [vmem:[#allocation3 + $0x23c] sm:$0xf] %vm667, %v8429
  %v8574 = vld [vmem:[#allocation3 + $0x8] sm:$0x88]
  %v8575 = vld [vmem:[#allocation3 + $0x10] sm:$0xff]
  %v8576 = vld [vmem:[#allocation3 + $0x18] sm:$0xff]
  %v8577 = vld [vmem:[#allocation3 + $0x20] sm:$0xff]
  %v8578 = vld [vmem:[#allocation3 + $0x28] sm:$0xff]
  %v8579 = vld [vmem:[#allocation3 + $0x30] sm:$0xff]
  %v8580 = vld [vmem:[#allocation3 + $0x38] sm:$0xff]
  %v8581 = vld [vmem:[#allocation3 + $0x40] sm:$0xff]
  %v8582 = vld [vmem:[#allocation3 + $0x48] sm:$0xff]
  %v8583 = vld [vmem:[#allocation3 + $0x50] sm:$0xff]
  %v8584 = vld [vmem:[#allocation3 + $0x58] sm:$0xff]
  %v8585 = vld [vmem:[#allocation3 + $0x60] sm:$0xff]
  %v8586 = vld [vmem:[#allocation3 + $0x68] sm:$0xff]
  %v8587 = vld [vmem:[#allocation3 + $0x70] sm:$0xff]
  %v8588 = vld [vmem:[#allocation3 + $0x78] sm:$0xff]
  %v8589 = vld [vmem:[#allocation3 + $0x80] sm:$0xff]
  %v8590 = vld [vmem:[#allocation3 + $0x88] sm:$0xff]
  %v8591 = vld [vmem:[#allocation3 + $0x90] sm:$0xff]
  %v8592 = vld [vmem:[#allocation3 + $0x98] sm:$0xff]
  %v8593 = vld [vmem:[#allocation3 + $0xa0] sm:$0xff]
  %v8594 = vld [vmem:[#allocation3 + $0xa8] sm:$0xff]
  %v8595 = vld [vmem:[#allocation3 + $0xb0] sm:$0xff]
  %v8596 = vld [vmem:[#allocation3 + $0xb8] sm:$0xff]
  %v8597 = vld [vmem:[#allocation3 + $0xc0] sm:$0xff]
  %v8598 = vld [vmem:[#allocation3 + $0xc8] sm:$0xff]
  %v8599 = vld [vmem:[#allocation3 + $0xd0] sm:$0xff]
  %v8600 = vld [vmem:[#allocation3 + $0xd8] sm:$0xff]
  %v8601 = vld [vmem:[#allocation3 + $0xe0] sm:$0xff]
  %v8602 = vld [vmem:[#allocation3 + $0xe8] sm:$0xff]
  %v8603 = vld [vmem:[#allocation3 + $0xf0] sm:$0xff]
  %v8604 = vld [vmem:[#allocation3 + $0xf8] sm:$0xff]
  %v8605 = vld [vmem:[#allocation3 + $0x100] sm:$0xff]
  %v8606 = vld [vmem:[#allocation3 + $0x108] sm:$0xff]
  %v8607 = vld [vmem:[#allocation3 + $0x110] sm:$0xff]
  %v8608 = vld [vmem:[#allocation3 + $0x118] sm:$0xff]
  %v8609 = vld [vmem:[#allocation3 + $0x120] sm:$0xff]
  %v8610 = vld [vmem:[#allocation3 + $0x128] sm:$0xff]
  %v8611 = vld [vmem:[#allocation3 + $0x130] sm:$0xff]
  %v8612 = vld [vmem:[#allocation3 + $0x138] sm:$0xff]
  %v8613 = vld [vmem:[#allocation3 + $0x140] sm:$0xff]
  %v8614 = vld [vmem:[#allocation3 + $0x148] sm:$0xff]
  %v8615 = vld [vmem:[#allocation3 + $0x150] sm:$0xff]
  %v8616 = vld [vmem:[#allocation3 + $0x158] sm:$0xff]
  %v8617 = vld [vmem:[#allocation3 + $0x160] sm:$0xff]
  %v8618 = vld [vmem:[#allocation3 + $0x168] sm:$0xff]
  %v8619 = vld [vmem:[#allocation3 + $0x170] sm:$0xff]
  %v8620 = vld [vmem:[#allocation3 + $0x178] sm:$0xff]
  %v8621 = vld [vmem:[#allocation3 + $0x180] sm:$0xff]
  %v8622 = vld [vmem:[#allocation3 + $0x188] sm:$0xff]
  %v8623 = vld [vmem:[#allocation3 + $0x190] sm:$0xff]
  %v8624 = vld [vmem:[#allocation3 + $0x198] sm:$0xff]
  %v8625 = vld [vmem:[#allocation3 + $0x1a0] sm:$0xff]
  %v8626 = vld [vmem:[#allocation3 + $0x1a8] sm:$0xff]
  %v8627 = vld [vmem:[#allocation3 + $0x1b0] sm:$0xff]
  %v8628 = vld [vmem:[#allocation3 + $0x1b8] sm:$0xff]
  %v8629 = vld [vmem:[#allocation3 + $0x1c0] sm:$0xff]
  %v8630 = vld [vmem:[#allocation3 + $0x1c8] sm:$0xff]
  %v8631 = vld [vmem:[#allocation3 + $0x1d0] sm:$0xff]
  %v8632 = vld [vmem:[#allocation3 + $0x1d8] sm:$0xff]
  %v8633 = vld [vmem:[#allocation3 + $0x1e0] sm:$0xff]
  %v8634 = vld [vmem:[#allocation3 + $0x1e8] sm:$0xff]
  %v8635 = vld [vmem:[#allocation3 + $0x1f0] sm:$0xff]
  %v8636 = vld [vmem:[#allocation3 + $0x1f8] sm:$0xff]
  %v8637 = vld [vmem:[#allocation3 + $0x200] sm:$0xff]
  %v8638 = vld [vmem:[#allocation3 + $0x208] sm:$0xff]
  %v8639 = vld [vmem:[#allocation3 + $0x210] sm:$0xff]
  %v8640 = vld [vmem:[#allocation3 + $0x218] sm:$0xff]
  %v8641 = vld [vmem:[%s2] sm:$0xf]
  %v8642 = vld [vmem:[%s2 + $0x4] sm:$0xf]
  %v8643 = vld [vmem:[%s2 + $0x8] sm:$0xf]
  %v8644 = vld [vmem:[%s2 + $0xc] sm:$0xf]
  %v8645 = vld [vmem:[%s2 + $0x10] sm:$0xf]
  %v8646 = vld [vmem:[%s2 + $0x14] sm:$0xf]
  %v8647 = vld [vmem:[%s2 + $0x18] sm:$0xf]
  %v8648 = vld [vmem:[%s2 + $0x1c] sm:$0xf]
  %v8649 = vld [vmem:[%s2 + $0x20] sm:$0xf]
  %v8650 = vld [vmem:[%s2 + $0x24] sm:$0xf]
  %v8651 = vld [vmem:[%s2 + $0x28] sm:$0xf]
  %v8652 = vld [vmem:[%s2 + $0x2c] sm:$0xf]
  %v8653 = vld [vmem:[%s2 + $0x30] sm:$0xf]
  %v8654 = vld [vmem:[%s2 + $0x34] sm:$0xf]
  %v8655 = vld [vmem:[%s2 + $0x38] sm:$0xf]
  %v8656 = vld [vmem:[%s2 + $0x3c] sm:$0xf]
  %v8657 = vld [vmem:[%s2 + $0x40] sm:$0xf]
  %v8658 = vld [vmem:[%s2 + $0x44] sm:$0xf]
  %v8659 = vld [vmem:[%s2 + $0x48] sm:$0xf]
  %v8660 = vld [vmem:[%s2 + $0x4c] sm:$0xf]
  %v8661 = vld [vmem:[%s2 + $0x50] sm:$0xf]
  %v8662 = vld [vmem:[%s2 + $0x54] sm:$0xf]
  %v8663 = vld [vmem:[%s2 + $0x58] sm:$0xf]
  %v8664 = vld [vmem:[%s2 + $0x5c] sm:$0xf]
  %v8665 = vld [vmem:[%s3] sm:$0x1]
  %v8667 = vlaneseq
  %v8668 = vshrl.u32 %v8667, 7
  %v8669 = vsub.s32 0, %v8668
  %v8670 = vrot.slane %v8665, %v8669
  %v8739 = vunpack.c.l.b16 %v8574
  %v8740 = vunpack.c.h.b16 %v8574
  %v8741 = vunpack.c.l.b16 %v8575
  %v8742 = vunpack.c.h.b16 %v8575
  %v8743 = vunpack.c.l.b16 %v8576
  %v8744 = vunpack.c.h.b16 %v8576
  %v8745 = vunpack.c.l.b16 %v8577
  %v8746 = vunpack.c.h.b16 %v8577
  %v8747 = vunpack.c.l.b16 %v8578
  %v8748 = vunpack.c.h.b16 %v8578
  %v8749 = vunpack.c.l.b16 %v8579
  %v8750 = vunpack.c.h.b16 %v8579
  %v8751 = vunpack.c.l.b16 %v8580
  %v8752 = vunpack.c.h.b16 %v8580
  %v8753 = vunpack.c.l.b16 %v8581
  %v8754 = vunpack.c.h.b16 %v8581
  %v8755 = vunpack.c.l.b16 %v8582
  %v8756 = vunpack.c.h.b16 %v8582
  %v8757 = vunpack.c.l.b16 %v8583
  %v8758 = vunpack.c.h.b16 %v8583
  %v8759 = vunpack.c.l.b16 %v8584
  %v8760 = vunpack.c.h.b16 %v8584
  %v8761 = vunpack.c.l.b16 %v8585
  %v8762 = vunpack.c.h.b16 %v8585
  %v8763 = vunpack.c.l.b16 %v8586
  %v8764 = vunpack.c.h.b16 %v8586
  %v8765 = vunpack.c.l.b16 %v8587
  %v8766 = vunpack.c.h.b16 %v8587
  %v8767 = vunpack.c.l.b16 %v8588
  %v8768 = vunpack.c.h.b16 %v8588
  %v8769 = vunpack.c.l.b16 %v8589
  %v8770 = vunpack.c.h.b16 %v8589
  %v8771 = vunpack.c.l.b16 %v8590
  %v8772 = vunpack.c.h.b16 %v8590
  %v8773 = vunpack.c.l.b16 %v8591
  %v8774 = vunpack.c.h.b16 %v8591
  %v8775 = vunpack.c.l.b16 %v8592
  %v8776 = vunpack.c.h.b16 %v8592
  %v8777 = vunpack.c.l.b16 %v8593
  %v8778 = vunpack.c.h.b16 %v8593
  %v8779 = vunpack.c.l.b16 %v8594
  %v8780 = vunpack.c.h.b16 %v8594
  %v8781 = vunpack.c.l.b16 %v8595
  %v8782 = vunpack.c.h.b16 %v8595
  %v8783 = vunpack.c.l.b16 %v8596
  %v8784 = vunpack.c.h.b16 %v8596
  %v8785 = vunpack.c.l.b16 %v8597
  %v8786 = vunpack.c.h.b16 %v8597
  %v8787 = vunpack.c.l.b16 %v8598
  %v8788 = vunpack.c.h.b16 %v8598
  %v8789 = vunpack.c.l.b16 %v8599
  %v8790 = vunpack.c.h.b16 %v8599
  %v8791 = vunpack.c.l.b16 %v8600
  %v8792 = vunpack.c.h.b16 %v8600
  %v8793 = vunpack.c.l.b16 %v8601
  %v8794 = vunpack.c.h.b16 %v8601
  %v8795 = vunpack.c.l.b16 %v8602
  %v8796 = vunpack.c.h.b16 %v8602
  %v8797 = vunpack.c.l.b16 %v8603
  %v8798 = vunpack.c.h.b16 %v8603
  %v8799 = vunpack.c.l.b16 %v8604
  %v8800 = vunpack.c.h.b16 %v8604
  %v8801 = vunpack.c.l.b16 %v8605
  %v8802 = vunpack.c.h.b16 %v8605
  %v8803 = vunpack.c.l.b16 %v8606
  %v8804 = vunpack.c.h.b16 %v8606
  %v8805 = vunpack.c.l.b16 %v8607
  %v8806 = vunpack.c.h.b16 %v8607
  %v8807 = vunpack.c.l.b16 %v8608
  %v8808 = vunpack.c.h.b16 %v8608
  %v8809 = vunpack.c.l.b16 %v8609
  %v8810 = vunpack.c.h.b16 %v8609
  %v8811 = vunpack.c.l.b16 %v8610
  %v8812 = vunpack.c.h.b16 %v8610
  %v8813 = vunpack.c.l.b16 %v8611
  %v8814 = vunpack.c.h.b16 %v8611
  %v8815 = vunpack.c.l.b16 %v8612
  %v8816 = vunpack.c.h.b16 %v8612
  %v8817 = vunpack.c.l.b16 %v8613
  %v8818 = vunpack.c.h.b16 %v8613
  %v8819 = vunpack.c.l.b16 %v8614
  %v8820 = vunpack.c.h.b16 %v8614
  %v8821 = vunpack.c.l.b16 %v8615
  %v8822 = vunpack.c.h.b16 %v8615
  %v8823 = vunpack.c.l.b16 %v8616
  %v8824 = vunpack.c.h.b16 %v8616
  %v8825 = vunpack.c.l.b16 %v8617
  %v8826 = vunpack.c.h.b16 %v8617
  %v8827 = vunpack.c.l.b16 %v8618
  %v8828 = vunpack.c.h.b16 %v8618
  %v8829 = vunpack.c.l.b16 %v8619
  %v8830 = vunpack.c.h.b16 %v8619
  %v8831 = vunpack.c.l.b16 %v8620
  %v8832 = vunpack.c.h.b16 %v8620
  %v8833 = vunpack.c.l.b16 %v8621
  %v8834 = vunpack.c.h.b16 %v8621
  %v8835 = vunpack.c.l.b16 %v8622
  %v8836 = vunpack.c.h.b16 %v8622
  %v8837 = vunpack.c.l.b16 %v8623
  %v8838 = vunpack.c.h.b16 %v8623
  %v8839 = vunpack.c.l.b16 %v8624
  %v8840 = vunpack.c.h.b16 %v8624
  %v8841 = vunpack.c.l.b16 %v8625
  %v8842 = vunpack.c.h.b16 %v8625
  %v8843 = vunpack.c.l.b16 %v8626
  %v8844 = vunpack.c.h.b16 %v8626
  %v8845 = vunpack.c.l.b16 %v8627
  %v8846 = vunpack.c.h.b16 %v8627
  %v8847 = vunpack.c.l.b16 %v8628
  %v8848 = vunpack.c.h.b16 %v8628
  %v8849 = vunpack.c.l.b16 %v8629
  %v8850 = vunpack.c.h.b16 %v8629
  %v8851 = vunpack.c.l.b16 %v8630
  %v8852 = vunpack.c.h.b16 %v8630
  %v8853 = vunpack.c.l.b16 %v8631
  %v8854 = vunpack.c.h.b16 %v8631
  %v8855 = vunpack.c.l.b16 %v8632
  %v8856 = vunpack.c.h.b16 %v8632
  %v8857 = vunpack.c.l.b16 %v8633
  %v8858 = vunpack.c.h.b16 %v8633
  %v8859 = vunpack.c.l.b16 %v8634
  %v8860 = vunpack.c.h.b16 %v8634
  %v8861 = vunpack.c.l.b16 %v8635
  %v8862 = vunpack.c.h.b16 %v8635
  %v8863 = vunpack.c.l.b16 %v8636
  %v8864 = vunpack.c.h.b16 %v8636
  %v8865 = vunpack.c.l.b16 %v8637
  %v8866 = vunpack.c.h.b16 %v8637
  %v8867 = vunpack.c.l.b16 %v8638
  %v8868 = vunpack.c.h.b16 %v8638
  %v8869 = vunpack.c.l.b16 %v8639
  %v8870 = vunpack.c.h.b16 %v8639
  %v8871 = vunpack.c.l.b16 %v8640
  %v8872 = vunpack.c.h.b16 %v8640
  %v8873 = vpack.c.b16 %v8741, %v8739
  %v8874 = vpack.c.b16 %v8742, %v8740
  %v8875 = vpack.c.b16 %v8745, %v8743
  %v8876 = vpack.c.b16 %v8746, %v8744
  %v8877 = vpack.c.b16 %v8749, %v8747
  %v8878 = vpack.c.b16 %v8750, %v8748
  %v8879 = vpack.c.b16 %v8753, %v8751
  %v8880 = vpack.c.b16 %v8754, %v8752
  %v8881 = vpack.c.b16 %v8757, %v8755
  %v8882 = vpack.c.b16 %v8758, %v8756
  %v8883 = vpack.c.b16 %v8761, %v8759
  %v8884 = vpack.c.b16 %v8762, %v8760
  %v8885 = vpack.c.b16 %v8765, %v8763
  %v8886 = vpack.c.b16 %v8766, %v8764
  %v8887 = vpack.c.b16 %v8769, %v8767
  %v8888 = vpack.c.b16 %v8770, %v8768
  %v8889 = vpack.c.b16 %v8773, %v8771
  %v8890 = vpack.c.b16 %v8774, %v8772
  %v8891 = vpack.c.b16 %v8777, %v8775
  %v8892 = vpack.c.b16 %v8778, %v8776
  %v8893 = vpack.c.b16 %v8781, %v8779
  %v8894 = vpack.c.b16 %v8782, %v8780
  %v8895 = vpack.c.b16 %v8785, %v8783
  %v8896 = vpack.c.b16 %v8786, %v8784
  %v8897 = vpack.c.b16 %v8789, %v8787
  %v8898 = vpack.c.b16 %v8790, %v8788
  %v8899 = vpack.c.b16 %v8793, %v8791
  %v8900 = vpack.c.b16 %v8794, %v8792
  %v8901 = vpack.c.b16 %v8797, %v8795
  %v8902 = vpack.c.b16 %v8798, %v8796
  %v8903 = vpack.c.b16 %v8801, %v8799
  %v8904 = vpack.c.b16 %v8802, %v8800
  %v8905 = vpack.c.b16 %v8805, %v8803
  %v8906 = vpack.c.b16 %v8806, %v8804
  %v8907 = vpack.c.b16 %v8809, %v8807
  %v8908 = vpack.c.b16 %v8810, %v8808
  %v8909 = vpack.c.b16 %v8813, %v8811
  %v8910 = vpack.c.b16 %v8814, %v8812
  %v8911 = vpack.c.b16 %v8817, %v8815
  %v8912 = vpack.c.b16 %v8818, %v8816
  %v8913 = vpack.c.b16 %v8821, %v8819
  %v8914 = vpack.c.b16 %v8822, %v8820
  %v8915 = vpack.c.b16 %v8825, %v8823
  %v8916 = vpack.c.b16 %v8826, %v8824
  %v8917 = vpack.c.b16 %v8829, %v8827
  %v8918 = vpack.c.b16 %v8830, %v8828
  %v8919 = vpack.c.b16 %v8833, %v8831
  %v8920 = vpack.c.b16 %v8834, %v8832
  %v8921 = vpack.c.b16 %v8837, %v8835
  %v8922 = vpack.c.b16 %v8838, %v8836
  %v8923 = vpack.c.b16 %v8841, %v8839
  %v8924 = vpack.c.b16 %v8842, %v8840
  %v8925 = vpack.c.b16 %v8845, %v8843
  %v8926 = vpack.c.b16 %v8846, %v8844
  %v8927 = vpack.c.b16 %v8849, %v8847
  %v8928 = vpack.c.b16 %v8850, %v8848
  %v8929 = vpack.c.b16 %v8853, %v8851
  %v8930 = vpack.c.b16 %v8854, %v8852
  %v8931 = vpack.c.b16 %v8857, %v8855
  %v8932 = vpack.c.b16 %v8858, %v8856
  %v8933 = vpack.c.b16 %v8861, %v8859
  %v8934 = vpack.c.b16 %v8862, %v8860
  %v8935 = vpack.c.b16 %v8865, %v8863
  %v8936 = vpack.c.b16 %v8866, %v8864
  %v8937 = vpack.c.b16 %v8869, %v8867
  %v8938 = vpack.c.b16 %v8870, %v8868
  %v8939 = vpack.c.b16 %v8871, %v8871
  %v8940 = vpack.c.b16 %v8872, %v8872
  %v8942 = vshrl.u32 %v8873, 16
  %v8944 = vrot.slane %v8942, 3
  %v8945 = vshll.u32 %v8873, 16
  %v8947 = vrot.slane %v8945, 4
  %v8948 = vor.u32 %v8944, %v8947
  %v8950 = vshrl.u32 %v8875, 16
  %v8952 = vrot.slane %v8950, 3
  %v8953 = vshll.u32 %v8875, 16
  %v8955 = vrot.slane %v8953, 4
  %v8956 = vor.u32 %v8952, %v8955
  %v8957 = vsel %vm2260, %v8948, %v8956
  %v8959 = vshrl.u32 %v8874, 16
  %v8961 = vrot.slane %v8959, 3
  %v8962 = vshll.u32 %v8874, 16
  %v8964 = vrot.slane %v8962, 4
  %v8965 = vor.u32 %v8961, %v8964
  %v8967 = vshrl.u32 %v8876, 16
  %v8969 = vrot.slane %v8967, 3
  %v8970 = vshll.u32 %v8876, 16
  %v8972 = vrot.slane %v8970, 4
  %v8973 = vor.u32 %v8969, %v8972
  %v8974 = vsel %vm2260, %v8965, %v8973
  %v8976 = vshrl.u32 %v8877, 16
  %v8978 = vrot.slane %v8976, 3
  %v8979 = vshll.u32 %v8877, 16
  %v8981 = vrot.slane %v8979, 4
  %v8982 = vor.u32 %v8978, %v8981
  %v8983 = vsel %vm2260, %v8956, %v8982
  %v8985 = vshrl.u32 %v8878, 16
  %v8987 = vrot.slane %v8985, 3
  %v8988 = vshll.u32 %v8878, 16
  %v8990 = vrot.slane %v8988, 4
  %v8991 = vor.u32 %v8987, %v8990
  %v8992 = vsel %vm2260, %v8973, %v8991
  %v8994 = vshrl.u32 %v8879, 16
  %v8996 = vrot.slane %v8994, 3
  %v8997 = vshll.u32 %v8879, 16
  %v8999 = vrot.slane %v8997, 4
  %v9000 = vor.u32 %v8996, %v8999
  %v9001 = vsel %vm2260, %v8982, %v9000
  %v9003 = vshrl.u32 %v8880, 16
  %v9005 = vrot.slane %v9003, 3
  %v9006 = vshll.u32 %v8880, 16
  %v9008 = vrot.slane %v9006, 4
  %v9009 = vor.u32 %v9005, %v9008
  %v9010 = vsel %vm2260, %v8991, %v9009
  %v9012 = vshrl.u32 %v8881, 16
  %v9014 = vrot.slane %v9012, 3
  %v9015 = vshll.u32 %v8881, 16
  %v9017 = vrot.slane %v9015, 4
  %v9018 = vor.u32 %v9014, %v9017
  %v9019 = vsel %vm2260, %v9000, %v9018
  %v9021 = vshrl.u32 %v8882, 16
  %v9023 = vrot.slane %v9021, 3
  %v9024 = vshll.u32 %v8882, 16
  %v9026 = vrot.slane %v9024, 4
  %v9027 = vor.u32 %v9023, %v9026
  %v9028 = vsel %vm2260, %v9009, %v9027
  %v9030 = vshrl.u32 %v8883, 16
  %v9032 = vrot.slane %v9030, 3
  %v9033 = vshll.u32 %v8883, 16
  %v9035 = vrot.slane %v9033, 4
  %v9036 = vor.u32 %v9032, %v9035
  %v9037 = vsel %vm2260, %v9018, %v9036
  %v9039 = vshrl.u32 %v8884, 16
  %v9041 = vrot.slane %v9039, 3
  %v9042 = vshll.u32 %v8884, 16
  %v9044 = vrot.slane %v9042, 4
  %v9045 = vor.u32 %v9041, %v9044
  %v9046 = vsel %vm2260, %v9027, %v9045
  %v9048 = vshrl.u32 %v8885, 16
  %v9050 = vrot.slane %v9048, 3
  %v9051 = vshll.u32 %v8885, 16
  %v9053 = vrot.slane %v9051, 4
  %v9054 = vor.u32 %v9050, %v9053
  %v9055 = vsel %vm2260, %v9036, %v9054
  %v9057 = vshrl.u32 %v8886, 16
  %v9059 = vrot.slane %v9057, 3
  %v9060 = vshll.u32 %v8886, 16
  %v9062 = vrot.slane %v9060, 4
  %v9063 = vor.u32 %v9059, %v9062
  %v9064 = vsel %vm2260, %v9045, %v9063
  %v9066 = vshrl.u32 %v8887, 16
  %v9068 = vrot.slane %v9066, 3
  %v9069 = vshll.u32 %v8887, 16
  %v9071 = vrot.slane %v9069, 4
  %v9072 = vor.u32 %v9068, %v9071
  %v9073 = vsel %vm2260, %v9054, %v9072
  %v9075 = vshrl.u32 %v8888, 16
  %v9077 = vrot.slane %v9075, 3
  %v9078 = vshll.u32 %v8888, 16
  %v9080 = vrot.slane %v9078, 4
  %v9081 = vor.u32 %v9077, %v9080
  %v9082 = vsel %vm2260, %v9063, %v9081
  %v9084 = vshrl.u32 %v8889, 16
  %v9086 = vrot.slane %v9084, 3
  %v9087 = vshll.u32 %v8889, 16
  %v9089 = vrot.slane %v9087, 4
  %v9090 = vor.u32 %v9086, %v9089
  %v9091 = vsel %vm2260, %v9072, %v9090
  %v9093 = vshrl.u32 %v8890, 16
  %v9095 = vrot.slane %v9093, 3
  %v9096 = vshll.u32 %v8890, 16
  %v9098 = vrot.slane %v9096, 4
  %v9099 = vor.u32 %v9095, %v9098
  %v9100 = vsel %vm2260, %v9081, %v9099
  %v9102 = vshrl.u32 %v8891, 16
  %v9104 = vrot.slane %v9102, 3
  %v9105 = vshll.u32 %v8891, 16
  %v9107 = vrot.slane %v9105, 4
  %v9108 = vor.u32 %v9104, %v9107
  %v9109 = vsel %vm2260, %v9090, %v9108
  %v9111 = vshrl.u32 %v8892, 16
  %v9113 = vrot.slane %v9111, 3
  %v9114 = vshll.u32 %v8892, 16
  %v9116 = vrot.slane %v9114, 4
  %v9117 = vor.u32 %v9113, %v9116
  %v9118 = vsel %vm2260, %v9099, %v9117
  %v9120 = vshrl.u32 %v8893, 16
  %v9122 = vrot.slane %v9120, 3
  %v9123 = vshll.u32 %v8893, 16
  %v9125 = vrot.slane %v9123, 4
  %v9126 = vor.u32 %v9122, %v9125
  %v9127 = vsel %vm2260, %v9108, %v9126
  %v9129 = vshrl.u32 %v8894, 16
  %v9131 = vrot.slane %v9129, 3
  %v9132 = vshll.u32 %v8894, 16
  %v9134 = vrot.slane %v9132, 4
  %v9135 = vor.u32 %v9131, %v9134
  %v9136 = vsel %vm2260, %v9117, %v9135
  %v9138 = vshrl.u32 %v8895, 16
  %v9140 = vrot.slane %v9138, 3
  %v9141 = vshll.u32 %v8895, 16
  %v9143 = vrot.slane %v9141, 4
  %v9144 = vor.u32 %v9140, %v9143
  %v9145 = vsel %vm2260, %v9126, %v9144
  %v9147 = vshrl.u32 %v8896, 16
  %v9149 = vrot.slane %v9147, 3
  %v9150 = vshll.u32 %v8896, 16
  %v9152 = vrot.slane %v9150, 4
  %v9153 = vor.u32 %v9149, %v9152
  %v9154 = vsel %vm2260, %v9135, %v9153
  %v9156 = vshrl.u32 %v8897, 16
  %v9158 = vrot.slane %v9156, 3
  %v9159 = vshll.u32 %v8897, 16
  %v9161 = vrot.slane %v9159, 4
  %v9162 = vor.u32 %v9158, %v9161
  %v9163 = vsel %vm2260, %v9144, %v9162
  %v9165 = vshrl.u32 %v8898, 16
  %v9167 = vrot.slane %v9165, 3
  %v9168 = vshll.u32 %v8898, 16
  %v9170 = vrot.slane %v9168, 4
  %v9171 = vor.u32 %v9167, %v9170
  %v9172 = vsel %vm2260, %v9153, %v9171
  %v9174 = vshrl.u32 %v8899, 16
  %v9176 = vrot.slane %v9174, 3
  %v9177 = vshll.u32 %v8899, 16
  %v9179 = vrot.slane %v9177, 4
  %v9180 = vor.u32 %v9176, %v9179
  %v9181 = vsel %vm2260, %v9162, %v9180
  %v9183 = vshrl.u32 %v8900, 16
  %v9185 = vrot.slane %v9183, 3
  %v9186 = vshll.u32 %v8900, 16
  %v9188 = vrot.slane %v9186, 4
  %v9189 = vor.u32 %v9185, %v9188
  %v9190 = vsel %vm2260, %v9171, %v9189
  %v9192 = vshrl.u32 %v8901, 16
  %v9194 = vrot.slane %v9192, 3
  %v9195 = vshll.u32 %v8901, 16
  %v9197 = vrot.slane %v9195, 4
  %v9198 = vor.u32 %v9194, %v9197
  %v9199 = vsel %vm2260, %v9180, %v9198
  %v9201 = vshrl.u32 %v8902, 16
  %v9203 = vrot.slane %v9201, 3
  %v9204 = vshll.u32 %v8902, 16
  %v9206 = vrot.slane %v9204, 4
  %v9207 = vor.u32 %v9203, %v9206
  %v9208 = vsel %vm2260, %v9189, %v9207
  %v9210 = vshrl.u32 %v8903, 16
  %v9212 = vrot.slane %v9210, 3
  %v9213 = vshll.u32 %v8903, 16
  %v9215 = vrot.slane %v9213, 4
  %v9216 = vor.u32 %v9212, %v9215
  %v9217 = vsel %vm2260, %v9198, %v9216
  %v9219 = vshrl.u32 %v8904, 16
  %v9221 = vrot.slane %v9219, 3
  %v9222 = vshll.u32 %v8904, 16
  %v9224 = vrot.slane %v9222, 4
  %v9225 = vor.u32 %v9221, %v9224
  %v9226 = vsel %vm2260, %v9207, %v9225
  %v9228 = vshrl.u32 %v8905, 16
  %v9230 = vrot.slane %v9228, 3
  %v9231 = vshll.u32 %v8905, 16
  %v9233 = vrot.slane %v9231, 4
  %v9234 = vor.u32 %v9230, %v9233
  %v9235 = vsel %vm2260, %v9216, %v9234
  %v9237 = vshrl.u32 %v8906, 16
  %v9239 = vrot.slane %v9237, 3
  %v9240 = vshll.u32 %v8906, 16
  %v9242 = vrot.slane %v9240, 4
  %v9243 = vor.u32 %v9239, %v9242
  %v9244 = vsel %vm2260, %v9225, %v9243
  %v9246 = vshrl.u32 %v8907, 16
  %v9248 = vrot.slane %v9246, 3
  %v9249 = vshll.u32 %v8907, 16
  %v9251 = vrot.slane %v9249, 4
  %v9252 = vor.u32 %v9248, %v9251
  %v9253 = vsel %vm2260, %v9234, %v9252
  %v9255 = vshrl.u32 %v8908, 16
  %v9257 = vrot.slane %v9255, 3
  %v9258 = vshll.u32 %v8908, 16
  %v9260 = vrot.slane %v9258, 4
  %v9261 = vor.u32 %v9257, %v9260
  %v9262 = vsel %vm2260, %v9243, %v9261
  %v9264 = vshrl.u32 %v8909, 16
  %v9266 = vrot.slane %v9264, 3
  %v9267 = vshll.u32 %v8909, 16
  %v9269 = vrot.slane %v9267, 4
  %v9270 = vor.u32 %v9266, %v9269
  %v9271 = vsel %vm2260, %v9252, %v9270
  %v9273 = vshrl.u32 %v8910, 16
  %v9275 = vrot.slane %v9273, 3
  %v9276 = vshll.u32 %v8910, 16
  %v9278 = vrot.slane %v9276, 4
  %v9279 = vor.u32 %v9275, %v9278
  %v9280 = vsel %vm2260, %v9261, %v9279
  %v9282 = vshrl.u32 %v8911, 16
  %v9284 = vrot.slane %v9282, 3
  %v9285 = vshll.u32 %v8911, 16
  %v9287 = vrot.slane %v9285, 4
  %v9288 = vor.u32 %v9284, %v9287
  %v9289 = vsel %vm2260, %v9270, %v9288
  %v9291 = vshrl.u32 %v8912, 16
  %v9293 = vrot.slane %v9291, 3
  %v9294 = vshll.u32 %v8912, 16
  %v9296 = vrot.slane %v9294, 4
  %v9297 = vor.u32 %v9293, %v9296
  %v9298 = vsel %vm2260, %v9279, %v9297
  %v9300 = vshrl.u32 %v8913, 16
  %v9302 = vrot.slane %v9300, 3
  %v9303 = vshll.u32 %v8913, 16
  %v9305 = vrot.slane %v9303, 4
  %v9306 = vor.u32 %v9302, %v9305
  %v9307 = vsel %vm2260, %v9288, %v9306
  %v9309 = vshrl.u32 %v8914, 16
  %v9311 = vrot.slane %v9309, 3
  %v9312 = vshll.u32 %v8914, 16
  %v9314 = vrot.slane %v9312, 4
  %v9315 = vor.u32 %v9311, %v9314
  %v9316 = vsel %vm2260, %v9297, %v9315
  %v9318 = vshrl.u32 %v8915, 16
  %v9320 = vrot.slane %v9318, 3
  %v9321 = vshll.u32 %v8915, 16
  %v9323 = vrot.slane %v9321, 4
  %v9324 = vor.u32 %v9320, %v9323
  %v9325 = vsel %vm2260, %v9306, %v9324
  %v9327 = vshrl.u32 %v8916, 16
  %v9329 = vrot.slane %v9327, 3
  %v9330 = vshll.u32 %v8916, 16
  %v9332 = vrot.slane %v9330, 4
  %v9333 = vor.u32 %v9329, %v9332
  %v9334 = vsel %vm2260, %v9315, %v9333
  %v9336 = vshrl.u32 %v8917, 16
  %v9338 = vrot.slane %v9336, 3
  %v9339 = vshll.u32 %v8917, 16
  %v9341 = vrot.slane %v9339, 4
  %v9342 = vor.u32 %v9338, %v9341
  %v9343 = vsel %vm2260, %v9324, %v9342
  %v9345 = vshrl.u32 %v8918, 16
  %v9347 = vrot.slane %v9345, 3
  %v9348 = vshll.u32 %v8918, 16
  %v9350 = vrot.slane %v9348, 4
  %v9351 = vor.u32 %v9347, %v9350
  %v9352 = vsel %vm2260, %v9333, %v9351
  %v9354 = vshrl.u32 %v8919, 16
  %v9356 = vrot.slane %v9354, 3
  %v9357 = vshll.u32 %v8919, 16
  %v9359 = vrot.slane %v9357, 4
  %v9360 = vor.u32 %v9356, %v9359
  %v9361 = vsel %vm2260, %v9342, %v9360
  %v9363 = vshrl.u32 %v8920, 16
  %v9365 = vrot.slane %v9363, 3
  %v9366 = vshll.u32 %v8920, 16
  %v9368 = vrot.slane %v9366, 4
  %v9369 = vor.u32 %v9365, %v9368
  %v9370 = vsel %vm2260, %v9351, %v9369
  %v9372 = vshrl.u32 %v8921, 16
  %v9374 = vrot.slane %v9372, 3
  %v9375 = vshll.u32 %v8921, 16
  %v9377 = vrot.slane %v9375, 4
  %v9378 = vor.u32 %v9374, %v9377
  %v9379 = vsel %vm2260, %v9360, %v9378
  %v9381 = vshrl.u32 %v8922, 16
  %v9383 = vrot.slane %v9381, 3
  %v9384 = vshll.u32 %v8922, 16
  %v9386 = vrot.slane %v9384, 4
  %v9387 = vor.u32 %v9383, %v9386
  %v9388 = vsel %vm2260, %v9369, %v9387
  %v9390 = vshrl.u32 %v8923, 16
  %v9392 = vrot.slane %v9390, 3
  %v9393 = vshll.u32 %v8923, 16
  %v9395 = vrot.slane %v9393, 4
  %v9396 = vor.u32 %v9392, %v9395
  %v9397 = vsel %vm2260, %v9378, %v9396
  %v9399 = vshrl.u32 %v8924, 16
  %v9401 = vrot.slane %v9399, 3
  %v9402 = vshll.u32 %v8924, 16
  %v9404 = vrot.slane %v9402, 4
  %v9405 = vor.u32 %v9401, %v9404
  %v9406 = vsel %vm2260, %v9387, %v9405
  %v9408 = vshrl.u32 %v8925, 16
  %v9410 = vrot.slane %v9408, 3
  %v9411 = vshll.u32 %v8925, 16
  %v9413 = vrot.slane %v9411, 4
  %v9414 = vor.u32 %v9410, %v9413
  %v9415 = vsel %vm2260, %v9396, %v9414
  %v9417 = vshrl.u32 %v8926, 16
  %v9419 = vrot.slane %v9417, 3
  %v9420 = vshll.u32 %v8926, 16
  %v9422 = vrot.slane %v9420, 4
  %v9423 = vor.u32 %v9419, %v9422
  %v9424 = vsel %vm2260, %v9405, %v9423
  %v9426 = vshrl.u32 %v8927, 16
  %v9428 = vrot.slane %v9426, 3
  %v9429 = vshll.u32 %v8927, 16
  %v9431 = vrot.slane %v9429, 4
  %v9432 = vor.u32 %v9428, %v9431
  %v9433 = vsel %vm2260, %v9414, %v9432
  %v9435 = vshrl.u32 %v8928, 16
  %v9437 = vrot.slane %v9435, 3
  %v9438 = vshll.u32 %v8928, 16
  %v9440 = vrot.slane %v9438, 4
  %v9441 = vor.u32 %v9437, %v9440
  %v9442 = vsel %vm2260, %v9423, %v9441
  %v9444 = vshrl.u32 %v8929, 16
  %v9446 = vrot.slane %v9444, 3
  %v9447 = vshll.u32 %v8929, 16
  %v9449 = vrot.slane %v9447, 4
  %v9450 = vor.u32 %v9446, %v9449
  %v9451 = vsel %vm2260, %v9432, %v9450
  %v9453 = vshrl.u32 %v8930, 16
  %v9455 = vrot.slane %v9453, 3
  %v9456 = vshll.u32 %v8930, 16
  %v9458 = vrot.slane %v9456, 4
  %v9459 = vor.u32 %v9455, %v9458
  %v9460 = vsel %vm2260, %v9441, %v9459
  %v9462 = vshrl.u32 %v8931, 16
  %v9464 = vrot.slane %v9462, 3
  %v9465 = vshll.u32 %v8931, 16
  %v9467 = vrot.slane %v9465, 4
  %v9468 = vor.u32 %v9464, %v9467
  %v9469 = vsel %vm2260, %v9450, %v9468
  %v9471 = vshrl.u32 %v8932, 16
  %v9473 = vrot.slane %v9471, 3
  %v9474 = vshll.u32 %v8932, 16
  %v9476 = vrot.slane %v9474, 4
  %v9477 = vor.u32 %v9473, %v9476
  %v9478 = vsel %vm2260, %v9459, %v9477
  %v9480 = vshrl.u32 %v8933, 16
  %v9482 = vrot.slane %v9480, 3
  %v9483 = vshll.u32 %v8933, 16
  %v9485 = vrot.slane %v9483, 4
  %v9486 = vor.u32 %v9482, %v9485
  %v9487 = vsel %vm2260, %v9468, %v9486
  %v9489 = vshrl.u32 %v8934, 16
  %v9491 = vrot.slane %v9489, 3
  %v9492 = vshll.u32 %v8934, 16
  %v9494 = vrot.slane %v9492, 4
  %v9495 = vor.u32 %v9491, %v9494
  %v9496 = vsel %vm2260, %v9477, %v9495
  %v9498 = vshrl.u32 %v8935, 16
  %v9500 = vrot.slane %v9498, 3
  %v9501 = vshll.u32 %v8935, 16
  %v9503 = vrot.slane %v9501, 4
  %v9504 = vor.u32 %v9500, %v9503
  %v9505 = vsel %vm2260, %v9486, %v9504
  %v9507 = vshrl.u32 %v8936, 16
  %v9509 = vrot.slane %v9507, 3
  %v9510 = vshll.u32 %v8936, 16
  %v9512 = vrot.slane %v9510, 4
  %v9513 = vor.u32 %v9509, %v9512
  %v9514 = vsel %vm2260, %v9495, %v9513
  %v9516 = vshrl.u32 %v8937, 16
  %v9518 = vrot.slane %v9516, 3
  %v9519 = vshll.u32 %v8937, 16
  %v9521 = vrot.slane %v9519, 4
  %v9522 = vor.u32 %v9518, %v9521
  %v9523 = vsel %vm2260, %v9504, %v9522
  %v9525 = vshrl.u32 %v8938, 16
  %v9527 = vrot.slane %v9525, 3
  %v9528 = vshll.u32 %v8938, 16
  %v9530 = vrot.slane %v9528, 4
  %v9531 = vor.u32 %v9527, %v9530
  %v9532 = vsel %vm2260, %v9513, %v9531
  %v9534 = vshrl.u32 %v8939, 16
  %v9536 = vrot.slane %v9534, 3
  %v9537 = vshll.u32 %v8939, 16
  %v9539 = vrot.slane %v9537, 4
  %v9540 = vor.u32 %v9536, %v9539
  %v9541 = vsel %vm2260, %v9522, %v9540
  %v9543 = vshrl.u32 %v8940, 16
  %v9545 = vrot.slane %v9543, 3
  %v9546 = vshll.u32 %v8940, 16
  %v9548 = vrot.slane %v9546, 4
  %v9549 = vor.u32 %v9545, %v9548
  %v9550 = vsel %vm2260, %v9531, %v9549
  %v9608 = vunpack.c.l.b16 %v8641
  %v9609 = vunpack.c.l.b16 %v8642
  %v9610 = vunpack.c.l.b16 %v8643
  %v9611 = vunpack.c.l.b16 %v8644
  %v9612 = vunpack.c.l.b16 %v8645
  %v9613 = vunpack.c.l.b16 %v8646
  %v9614 = vunpack.c.l.b16 %v8647
  %v9615 = vunpack.c.l.b16 %v8648
  %v9616 = vunpack.c.l.b16 %v8649
  %v9617 = vunpack.c.l.b16 %v8650
  %v9618 = vunpack.c.l.b16 %v8651
  %v9619 = vunpack.c.l.b16 %v8652
  %v9620 = vunpack.c.l.b16 %v8653
  %v9621 = vunpack.c.l.b16 %v8654
  %v9622 = vunpack.c.l.b16 %v8655
  %v9623 = vunpack.c.l.b16 %v8656
  %v9624 = vunpack.c.l.b16 %v8657
  %v9625 = vunpack.c.l.b16 %v8658
  %v9626 = vunpack.c.l.b16 %v8659
  %v9627 = vunpack.c.l.b16 %v8660
  %v9628 = vunpack.c.l.b16 %v8661
  %v9629 = vunpack.c.l.b16 %v8662
  %v9630 = vunpack.c.l.b16 %v8663
  %v9631 = vunpack.c.l.b16 %v8664
  %v9632 = vpack.c.b16 %v9609, %v9608
  %v9633 = vpack.c.b16 %v9611, %v9610
  %v9634 = vpack.c.b16 %v9613, %v9612
  %v9635 = vpack.c.b16 %v9615, %v9614
  %v9636 = vpack.c.b16 %v9617, %v9616
  %v9637 = vpack.c.b16 %v9619, %v9618
  %v9638 = vpack.c.b16 %v9621, %v9620
  %v9639 = vpack.c.b16 %v9623, %v9622
  %v9640 = vpack.c.b16 %v9625, %v9624
  %v9641 = vpack.c.b16 %v9627, %v9626
  %v9642 = vpack.c.b16 %v9629, %v9628
  %v9643 = vpack.c.b16 %v9631, %v9630
  %v9657 = vsel %vm24, %v8974, 0
  %v9660 = vsel %vm24, %v8992, 0
  %v9663 = vsel %vm24, %v9010, 0
  %v9666 = vsel %vm24, %v9028, 0
  %v9669 = vsel %vm24, %v9046, 0
  %v9672 = vsel %vm24, %v9064, 0
  %v9675 = vsel %vm24, %v9082, 0
  %v9678 = vsel %vm24, %v9100, 0
  %v9681 = vsel %vm24, %v9118, 0
  %v9684 = vsel %vm24, %v9136, 0
  %v9687 = vsel %vm24, %v9154, 0
  %v9690 = vsel %vm24, %v9172, 0
  %v9693 = vsel %vm24, %v9190, 0
  %v9696 = vsel %vm24, %v9208, 0
  %v9699 = vsel %vm24, %v9226, 0
  %v9702 = vsel %vm24, %v9244, 0
  %v9705 = vsel %vm24, %v9262, 0
  %v9708 = vsel %vm24, %v9280, 0
  %v9711 = vsel %vm24, %v9298, 0
  %v9714 = vsel %vm24, %v9316, 0
  %v9717 = vsel %vm24, %v9334, 0
  %v9720 = vsel %vm24, %v9352, 0
  %v9723 = vsel %vm24, %v9370, 0
  %v9726 = vsel %vm24, %v9388, 0
  %v9729 = vsel %vm24, %v9406, 0
  %v9732 = vsel %vm24, %v9424, 0
  %v9735 = vsel %vm24, %v9442, 0
  %v9738 = vsel %vm24, %v9460, 0
  %v9741 = vsel %vm24, %v9478, 0
  %v9744 = vsel %vm24, %v9496, 0
  %v9747 = vsel %vm24, %v9514, 0
  %v9750 = vsel %vm24, %v9532, 0
  %v9753 = vsel %vm24, %v9550, 0
  %9755 = vmatprep.subr.bf16.mxu0 0
  %9756 = vmatpush1.bf16.msra.mxu0 %v9639
  %9757 = vmatprep.subr.bf16.mxu0 0
  %9758 = vmatpush1.bf16.msra.mxu0 %v9638
  %9759 = vmatprep.subr.bf16.mxu0 0
  %9760 = vmatpush1.bf16.msra.mxu0 %v9637
  %9761 = vmatprep.subr.bf16.mxu0 0
  %9762 = vmatpush1.bf16.msra.mxu0 %v9636
  %9763 = vmatprep.subr.bf16.mxu0 0
  %9764 = vmatpush1.bf16.msra.mxu0 %v9635
  %9765 = vmatprep.subr.bf16.mxu0 0
  %9766 = vmatpush1.bf16.msra.mxu0 %v9634
  %9767 = vmatprep.subr.bf16.mxu0 0
  %9768 = vmatpush1.bf16.msra.mxu0 %v9633
  %9769 = vmatprep.subr.bf16.mxu0 0
  %9770 = vmatpush1.bf16.msra.mxu0 %v9632
  %9771 = vmatprep.subr.bf16.mxu0 0
  %9772 = vmatpush2.bf16.msra.mxu0 0
  %9773 = vmatprep.subr.bf16.mxu0 0
  %9774 = vmatpush2.bf16.msra.mxu0 0
  %9775 = vmatprep.subr.bf16.mxu0 0
  %9776 = vmatpush2.bf16.msra.mxu0 0
  %9777 = vmatprep.subr.bf16.mxu0 0
  %9778 = vmatpush2.bf16.msra.mxu0 0
  %9779 = vmatprep.subr.bf16.mxu0 0
  %9780 = vmatpush2.bf16.msra.mxu0 %v9643
  %9781 = vmatprep.subr.bf16.mxu0 0
  %9782 = vmatpush2.bf16.msra.mxu0 %v9642
  %9783 = vmatprep.subr.bf16.mxu0 0
  %9784 = vmatpush2.bf16.msra.mxu0 %v9641
  %9785 = vmatprep.subr.bf16.mxu0 0
  %9786 = vmatpush2.bf16.msra.mxu0 %v9640
  %9787 = vmatprep.mubr.bf16.mxu0 %v9657
  %9788 = vmatmul.mubr.bf16.gmra.mxu0 %v8957
  %v9789 = vpop.f32.mrf.mxu0
  %v9790 = vadd.f32 %v8670, %v9789
  %v9791 = vpop.f32.mrf.mxu0
  %v9792 = vpop.f32.mrf.mxu0
  %v9793 = vadd.f32 %v8670, %v9792
  %v9794 = vpop.f32.mrf.mxu0
  %9795 = vmatprep.mubr.bf16.mxu0 %v9660
  %9796 = vmatmul.mubr.bf16.gmra.mxu0 %v8983
  %v9797 = vpop.f32.mrf.mxu0
  %v9798 = vadd.f32 %v8670, %v9797
  %v9799 = vpop.f32.mrf.mxu0
  %v9800 = vpop.f32.mrf.mxu0
  %v9801 = vadd.f32 %v8670, %v9800
  %v9802 = vpop.f32.mrf.mxu0
  %9803 = vmatprep.mubr.bf16.mxu0 %v9663
  %9804 = vmatmul.mubr.bf16.gmra.mxu0 %v9001
  %v9805 = vpop.f32.mrf.mxu0
  %v9806 = vadd.f32 %v8670, %v9805
  %v9807 = vpop.f32.mrf.mxu0
  %v9808 = vpop.f32.mrf.mxu0
  %v9809 = vadd.f32 %v8670, %v9808
  %v9810 = vpop.f32.mrf.mxu0
  %9811 = vmatprep.mubr.bf16.mxu0 %v9666
  %9812 = vmatmul.mubr.bf16.gmra.mxu0 %v9019
  %v9813 = vpop.f32.mrf.mxu0
  %v9814 = vadd.f32 %v8670, %v9813
  %v9815 = vpop.f32.mrf.mxu0
  %v9816 = vpop.f32.mrf.mxu0
  %v9817 = vadd.f32 %v8670, %v9816
  %v9818 = vpop.f32.mrf.mxu0
  %9819 = vmatprep.mubr.bf16.mxu0 %v9669
  %9820 = vmatmul.mubr.bf16.gmra.mxu0 %v9037
  %v9821 = vpop.f32.mrf.mxu0
  %v9822 = vadd.f32 %v8670, %v9821
  %v9823 = vpop.f32.mrf.mxu0
  %v9824 = vpop.f32.mrf.mxu0
  %v9825 = vadd.f32 %v8670, %v9824
  %v9826 = vpop.f32.mrf.mxu0
  %9827 = vmatprep.mubr.bf16.mxu0 %v9672
  %9828 = vmatmul.mubr.bf16.gmra.mxu0 %v9055
  %v9829 = vpop.f32.mrf.mxu0
  %v9830 = vadd.f32 %v8670, %v9829
  %v9831 = vpop.f32.mrf.mxu0
  %v9832 = vpop.f32.mrf.mxu0
  %v9833 = vadd.f32 %v8670, %v9832
  %v9834 = vpop.f32.mrf.mxu0
  %9835 = vmatprep.mubr.bf16.mxu0 %v9675
  %9836 = vmatmul.mubr.bf16.gmra.mxu0 %v9073
  %v9837 = vpop.f32.mrf.mxu0
  %v9838 = vadd.f32 %v8670, %v9837
  %v9839 = vpop.f32.mrf.mxu0
  %v9840 = vpop.f32.mrf.mxu0
  %v9841 = vadd.f32 %v8670, %v9840
  %v9842 = vpop.f32.mrf.mxu0
  %9843 = vmatprep.mubr.bf16.mxu0 %v9678
  %9844 = vmatmul.mubr.bf16.gmra.mxu0 %v9091
  %v9845 = vpop.f32.mrf.mxu0
  %v9846 = vadd.f32 %v8670, %v9845
  %v9847 = vpop.f32.mrf.mxu0
  %v9848 = vpop.f32.mrf.mxu0
  %v9849 = vadd.f32 %v8670, %v9848
  %v9850 = vpop.f32.mrf.mxu0
  %9851 = vmatprep.mubr.bf16.mxu0 %v9681
  %9852 = vmatmul.mubr.bf16.gmra.mxu0 %v9109
  %v9853 = vpop.f32.mrf.mxu0
  %v9854 = vadd.f32 %v8670, %v9853
  %v9855 = vpop.f32.mrf.mxu0
  %v9856 = vpop.f32.mrf.mxu0
  %v9857 = vadd.f32 %v8670, %v9856
  %v9858 = vpop.f32.mrf.mxu0
  %9859 = vmatprep.mubr.bf16.mxu0 %v9684
  %9860 = vmatmul.mubr.bf16.gmra.mxu0 %v9127
  %v9861 = vpop.f32.mrf.mxu0
  %v9862 = vadd.f32 %v8670, %v9861
  %v9863 = vpop.f32.mrf.mxu0
  %v9864 = vpop.f32.mrf.mxu0
  %v9865 = vadd.f32 %v8670, %v9864
  %v9866 = vpop.f32.mrf.mxu0
  %9867 = vmatprep.mubr.bf16.mxu0 %v9687
  %9868 = vmatmul.mubr.bf16.gmra.mxu0 %v9145
  %v9869 = vpop.f32.mrf.mxu0
  %v9870 = vadd.f32 %v8670, %v9869
  %v9871 = vpop.f32.mrf.mxu0
  %v9872 = vpop.f32.mrf.mxu0
  %v9873 = vadd.f32 %v8670, %v9872
  %v9874 = vpop.f32.mrf.mxu0
  %9875 = vmatprep.mubr.bf16.mxu0 %v9690
  %9876 = vmatmul.mubr.bf16.gmra.mxu0 %v9163
  %v9877 = vpop.f32.mrf.mxu0
  %v9878 = vadd.f32 %v8670, %v9877
  %v9879 = vpop.f32.mrf.mxu0
  %v9880 = vpop.f32.mrf.mxu0
  %v9881 = vadd.f32 %v8670, %v9880
  %v9882 = vpop.f32.mrf.mxu0
  %9883 = vmatprep.mubr.bf16.mxu0 %v9693
  %9884 = vmatmul.mubr.bf16.gmra.mxu0 %v9181
  %v9885 = vpop.f32.mrf.mxu0
  %v9886 = vadd.f32 %v8670, %v9885
  %v9887 = vpop.f32.mrf.mxu0
  %v9888 = vpop.f32.mrf.mxu0
  %v9889 = vadd.f32 %v8670, %v9888
  %v9890 = vpop.f32.mrf.mxu0
  %9891 = vmatprep.mubr.bf16.mxu0 %v9696
  %9892 = vmatmul.mubr.bf16.gmra.mxu0 %v9199
  %v9893 = vpop.f32.mrf.mxu0
  %v9894 = vadd.f32 %v8670, %v9893
  %v9895 = vpop.f32.mrf.mxu0
  %v9896 = vpop.f32.mrf.mxu0
  %v9897 = vadd.f32 %v8670, %v9896
  %v9898 = vpop.f32.mrf.mxu0
  %9899 = vmatprep.mubr.bf16.mxu0 %v9699
  %9900 = vmatmul.mubr.bf16.gmra.mxu0 %v9217
  %v9901 = vpop.f32.mrf.mxu0
  %v9902 = vadd.f32 %v8670, %v9901
  %v9903 = vpop.f32.mrf.mxu0
  %v9904 = vpop.f32.mrf.mxu0
  %v9905 = vadd.f32 %v8670, %v9904
  %v9906 = vpop.f32.mrf.mxu0
  %9907 = vmatprep.mubr.bf16.mxu0 %v9702
  %9908 = vmatmul.mubr.bf16.gmra.mxu0 %v9235
  %v9909 = vpop.f32.mrf.mxu0
  %v9910 = vadd.f32 %v8670, %v9909
  %v9911 = vpop.f32.mrf.mxu0
  %v9912 = vpop.f32.mrf.mxu0
  %v9913 = vadd.f32 %v8670, %v9912
  %v9914 = vpop.f32.mrf.mxu0
  %9915 = vmatprep.mubr.bf16.mxu0 %v9705
  %9916 = vmatmul.mubr.bf16.gmra.mxu0 %v9253
  %v9917 = vpop.f32.mrf.mxu0
  %v9918 = vadd.f32 %v8670, %v9917
  %v9919 = vpop.f32.mrf.mxu0
  %v9920 = vpop.f32.mrf.mxu0
  %v9921 = vadd.f32 %v8670, %v9920
  %v9922 = vpop.f32.mrf.mxu0
  %9923 = vmatprep.mubr.bf16.mxu0 %v9708
  %9924 = vmatmul.mubr.bf16.gmra.mxu0 %v9271
  %v9925 = vpop.f32.mrf.mxu0
  %v9926 = vadd.f32 %v8670, %v9925
  %v9927 = vpop.f32.mrf.mxu0
  %v9928 = vpop.f32.mrf.mxu0
  %v9929 = vadd.f32 %v8670, %v9928
  %v9930 = vpop.f32.mrf.mxu0
  %9931 = vmatprep.mubr.bf16.mxu0 %v9711
  %9932 = vmatmul.mubr.bf16.gmra.mxu0 %v9289
  %v9933 = vpop.f32.mrf.mxu0
  %v9934 = vadd.f32 %v8670, %v9933
  %v9935 = vpop.f32.mrf.mxu0
  %v9936 = vpop.f32.mrf.mxu0
  %v9937 = vadd.f32 %v8670, %v9936
  %v9938 = vpop.f32.mrf.mxu0
  %9939 = vmatprep.mubr.bf16.mxu0 %v9714
  %9940 = vmatmul.mubr.bf16.gmra.mxu0 %v9307
  %v9941 = vpop.f32.mrf.mxu0
  %v9942 = vadd.f32 %v8670, %v9941
  %v9943 = vpop.f32.mrf.mxu0
  %v9944 = vpop.f32.mrf.mxu0
  %v9945 = vadd.f32 %v8670, %v9944
  %v9946 = vpop.f32.mrf.mxu0
  %9947 = vmatprep.mubr.bf16.mxu0 %v9717
  %9948 = vmatmul.mubr.bf16.gmra.mxu0 %v9325
  %v9949 = vpop.f32.mrf.mxu0
  %v9950 = vadd.f32 %v8670, %v9949
  %v9951 = vpop.f32.mrf.mxu0
  %v9952 = vpop.f32.mrf.mxu0
  %v9953 = vadd.f32 %v8670, %v9952
  %v9954 = vpop.f32.mrf.mxu0
  %9955 = vmatprep.mubr.bf16.mxu0 %v9720
  %9956 = vmatmul.mubr.bf16.gmra.mxu0 %v9343
  %v9957 = vpop.f32.mrf.mxu0
  %v9958 = vadd.f32 %v8670, %v9957
  %v9959 = vpop.f32.mrf.mxu0
  %v9960 = vpop.f32.mrf.mxu0
  %v9961 = vadd.f32 %v8670, %v9960
  %v9962 = vpop.f32.mrf.mxu0
  %9963 = vmatprep.mubr.bf16.mxu0 %v9723
  %9964 = vmatmul.mubr.bf16.gmra.mxu0 %v9361
  %v9965 = vpop.f32.mrf.mxu0
  %v9966 = vadd.f32 %v8670, %v9965
  %v9967 = vpop.f32.mrf.mxu0
  %v9968 = vpop.f32.mrf.mxu0
  %v9969 = vadd.f32 %v8670, %v9968
  %v9970 = vpop.f32.mrf.mxu0
  %9971 = vmatprep.mubr.bf16.mxu0 %v9726
  %9972 = vmatmul.mubr.bf16.gmra.mxu0 %v9379
  %v9973 = vpop.f32.mrf.mxu0
  %v9974 = vadd.f32 %v8670, %v9973
  %v9975 = vpop.f32.mrf.mxu0
  %v9976 = vpop.f32.mrf.mxu0
  %v9977 = vadd.f32 %v8670, %v9976
  %v9978 = vpop.f32.mrf.mxu0
  %9979 = vmatprep.mubr.bf16.mxu0 %v9729
  %9980 = vmatmul.mubr.bf16.gmra.mxu0 %v9397
  %v9981 = vpop.f32.mrf.mxu0
  %v9982 = vadd.f32 %v8670, %v9981
  %v9983 = vpop.f32.mrf.mxu0
  %v9984 = vpop.f32.mrf.mxu0
  %v9985 = vadd.f32 %v8670, %v9984
  %v9986 = vpop.f32.mrf.mxu0
  %9987 = vmatprep.mubr.bf16.mxu0 %v9732
  %9988 = vmatmul.mubr.bf16.gmra.mxu0 %v9415
  %v9989 = vpop.f32.mrf.mxu0
  %v9990 = vadd.f32 %v8670, %v9989
  %v9991 = vpop.f32.mrf.mxu0
  %v9992 = vpop.f32.mrf.mxu0
  %v9993 = vadd.f32 %v8670, %v9992
  %v9994 = vpop.f32.mrf.mxu0
  %9995 = vmatprep.mubr.bf16.mxu0 %v9735
  %9996 = vmatmul.mubr.bf16.gmra.mxu0 %v9433
  %v9997 = vpop.f32.mrf.mxu0
  %v9998 = vadd.f32 %v8670, %v9997
  %v9999 = vpop.f32.mrf.mxu0
  %v10000 = vpop.f32.mrf.mxu0
  %v10001 = vadd.f32 %v8670, %v10000
  %v10002 = vpop.f32.mrf.mxu0
  %10003 = vmatprep.mubr.bf16.mxu0 %v9738
  %10004 = vmatmul.mubr.bf16.gmra.mxu0 %v9451
  %v10005 = vpop.f32.mrf.mxu0
  %v10006 = vadd.f32 %v8670, %v10005
  %v10007 = vpop.f32.mrf.mxu0
  %v10008 = vpop.f32.mrf.mxu0
  %v10009 = vadd.f32 %v8670, %v10008
  %v10010 = vpop.f32.mrf.mxu0
  %10011 = vmatprep.mubr.bf16.mxu0 %v9741
  %10012 = vmatmul.mubr.bf16.gmra.mxu0 %v9469
  %v10013 = vpop.f32.mrf.mxu0
  %v10014 = vadd.f32 %v8670, %v10013
  %v10015 = vpop.f32.mrf.mxu0
  %v10016 = vpop.f32.mrf.mxu0
  %v10017 = vadd.f32 %v8670, %v10016
  %v10018 = vpop.f32.mrf.mxu0
  %10019 = vmatprep.mubr.bf16.mxu0 %v9744
  %10020 = vmatmul.mubr.bf16.gmra.mxu0 %v9487
  %v10021 = vpop.f32.mrf.mxu0
  %v10022 = vadd.f32 %v8670, %v10021
  %v10023 = vpop.f32.mrf.mxu0
  %v10024 = vpop.f32.mrf.mxu0
  %v10025 = vadd.f32 %v8670, %v10024
  %v10026 = vpop.f32.mrf.mxu0
  %10027 = vmatprep.mubr.bf16.mxu0 %v9747
  %10028 = vmatmul.mubr.bf16.gmra.mxu0 %v9505
  %v10029 = vpop.f32.mrf.mxu0
  %v10030 = vadd.f32 %v8670, %v10029
  %v10031 = vpop.f32.mrf.mxu0
  %v10032 = vpop.f32.mrf.mxu0
  %v10033 = vadd.f32 %v8670, %v10032
  %v10034 = vpop.f32.mrf.mxu0
  %10035 = vmatprep.mubr.bf16.mxu0 %v9750
  %10036 = vmatmul.mubr.bf16.gmra.mxu0 %v9523
  %v10037 = vpop.f32.mrf.mxu0
  %v10038 = vadd.f32 %v8670, %v10037
  %v10039 = vpop.f32.mrf.mxu0
  %v10040 = vpop.f32.mrf.mxu0
  %v10041 = vadd.f32 %v8670, %v10040
  %v10042 = vpop.f32.mrf.mxu0
  %10043 = vmatprep.mubr.bf16.mxu0 %v9753
  %10044 = vmatmul.mubr.bf16.gmra.mxu0 %v9541
  %v10045 = vpop.f32.mrf.mxu0
  %v10046 = vadd.f32 %v8670, %v10045
  %v10047 = vpop.f32.mrf.mxu0
  %v10048 = vpop.f32.mrf.mxu0
  %v10049 = vadd.f32 %v8670, %v10048
  %v10050 = vpop.f32.mrf.mxu0
  %10051 = vdwg.mxu0
  %10052 = vst.msk [vmem:[#allocation2 + $0x20] sm:$0xff] %vm24, %v9790
  %10053 = vst.msk [vmem:[#allocation2 + $0x28] sm:$0xff] %vm24, %v9793
  %10054 = vst.msk [vmem:[#allocation2 + $0x30] sm:$0xff] %vm24, %v9798
  %10055 = vst.msk [vmem:[#allocation2 + $0x38] sm:$0xff] %vm24, %v9801
  %10056 = vst.msk [vmem:[#allocation2 + $0x40] sm:$0xff] %vm24, %v9806
  %10057 = vst.msk [vmem:[#allocation2 + $0x48] sm:$0xff] %vm24, %v9809
  %10058 = vst.msk [vmem:[#allocation2 + $0x50] sm:$0xff] %vm24, %v9814
  %10059 = vst.msk [vmem:[#allocation2 + $0x58] sm:$0xff] %vm24, %v9817
  %10060 = vst.msk [vmem:[#allocation2 + $0x60] sm:$0xff] %vm24, %v9822
  %10061 = vst.msk [vmem:[#allocation2 + $0x68] sm:$0xff] %vm24, %v9825
  %10062 = vst.msk [vmem:[#allocation2 + $0x70] sm:$0xff] %vm24, %v9830
  %10063 = vst.msk [vmem:[#allocation2 + $0x78] sm:$0xff] %vm24, %v9833
  %10064 = vst.msk [vmem:[#allocation2 + $0x80] sm:$0xff] %vm24, %v9838
  %10065 = vst.msk [vmem:[#allocation2 + $0x88] sm:$0xff] %vm24, %v9841
  %10066 = vst.msk [vmem:[#allocation2 + $0x90] sm:$0xff] %vm24, %v9846
  %10067 = vst.msk [vmem:[#allocation2 + $0x98] sm:$0xff] %vm24, %v9849
  %10068 = vst.msk [vmem:[#allocation2 + $0xa0] sm:$0xff] %vm24, %v9854
  %10069 = vst.msk [vmem:[#allocation2 + $0xa8] sm:$0xff] %vm24, %v9857
  %10070 = vst.msk [vmem:[#allocation2 + $0xb0] sm:$0xff] %vm24, %v9862
  %10071 = vst.msk [vmem:[#allocation2 + $0xb8] sm:$0xff] %vm24, %v9865
  %10072 = vst.msk [vmem:[#allocation2 + $0xc0] sm:$0xff] %vm24, %v9870
  %10073 = vst.msk [vmem:[#allocation2 + $0xc8] sm:$0xff] %vm24, %v9873
  %10074 = vst.msk [vmem:[#allocation2 + $0xd0] sm:$0xff] %vm24, %v9878
  %10075 = vst.msk [vmem:[#allocation2 + $0xd8] sm:$0xff] %vm24, %v9881
  %10076 = vst.msk [vmem:[#allocation2 + $0xe0] sm:$0xff] %vm24, %v9886
  %10077 = vst.msk [vmem:[#allocation2 + $0xe8] sm:$0xff] %vm24, %v9889
  %10078 = vst.msk [vmem:[#allocation2 + $0xf0] sm:$0xff] %vm24, %v9894
  %10079 = vst.msk [vmem:[#allocation2 + $0xf8] sm:$0xff] %vm24, %v9897
  %10080 = vst.msk [vmem:[#allocation2 + $0x100] sm:$0xff] %vm24, %v9902
  %10081 = vst.msk [vmem:[#allocation2 + $0x108] sm:$0xff] %vm24, %v9905
  %10082 = vst.msk [vmem:[#allocation2 + $0x110] sm:$0xff] %vm24, %v9910
  %10083 = vst.msk [vmem:[#allocation2 + $0x118] sm:$0xff] %vm24, %v9913
  %10084 = vst.msk [vmem:[#allocation2 + $0x120] sm:$0xff] %vm24, %v9918
  %10085 = vst.msk [vmem:[#allocation2 + $0x128] sm:$0xff] %vm24, %v9921
  %10086 = vst.msk [vmem:[#allocation2 + $0x130] sm:$0xff] %vm24, %v9926
  %10087 = vst.msk [vmem:[#allocation2 + $0x138] sm:$0xff] %vm24, %v9929
  %10088 = vst.msk [vmem:[#allocation2 + $0x140] sm:$0xff] %vm24, %v9934
  %10089 = vst.msk [vmem:[#allocation2 + $0x148] sm:$0xff] %vm24, %v9937
  %10090 = vst.msk [vmem:[#allocation2 + $0x150] sm:$0xff] %vm24, %v9942
  %10091 = vst.msk [vmem:[#allocation2 + $0x158] sm:$0xff] %vm24, %v9945
  %10092 = vst.msk [vmem:[#allocation2 + $0x160] sm:$0xff] %vm24, %v9950
  %10093 = vst.msk [vmem:[#allocation2 + $0x168] sm:$0xff] %vm24, %v9953
  %10094 = vst.msk [vmem:[#allocation2 + $0x170] sm:$0xff] %vm24, %v9958
  %10095 = vst.msk [vmem:[#allocation2 + $0x178] sm:$0xff] %vm24, %v9961
  %10096 = vst.msk [vmem:[#allocation2 + $0x180] sm:$0xff] %vm24, %v9966
  %10097 = vst.msk [vmem:[#allocation2 + $0x188] sm:$0xff] %vm24, %v9969
  %10098 = vst.msk [vmem:[#allocation2 + $0x190] sm:$0xff] %vm24, %v9974
  %10099 = vst.msk [vmem:[#allocation2 + $0x198] sm:$0xff] %vm24, %v9977
  %10100 = vst.msk [vmem:[#allocation2 + $0x1a0] sm:$0xff] %vm24, %v9982
  %10101 = vst.msk [vmem:[#allocation2 + $0x1a8] sm:$0xff] %vm24, %v9985
  %10102 = vst.msk [vmem:[#allocation2 + $0x1b0] sm:$0xff] %vm24, %v9990
  %10103 = vst.msk [vmem:[#allocation2 + $0x1b8] sm:$0xff] %vm24, %v9993
  %10104 = vst.msk [vmem:[#allocation2 + $0x1c0] sm:$0xff] %vm24, %v9998
  %10105 = vst.msk [vmem:[#allocation2 + $0x1c8] sm:$0xff] %vm24, %v10001
  %10106 = vst.msk [vmem:[#allocation2 + $0x1d0] sm:$0xff] %vm24, %v10006
  %10107 = vst.msk [vmem:[#allocation2 + $0x1d8] sm:$0xff] %vm24, %v10009
  %10108 = vst.msk [vmem:[#allocation2 + $0x1e0] sm:$0xff] %vm24, %v10014
  %10109 = vst.msk [vmem:[#allocation2 + $0x1e8] sm:$0xff] %vm24, %v10017
  %10110 = vst.msk [vmem:[#allocation2 + $0x1f0] sm:$0xff] %vm24, %v10022
  %10111 = vst.msk [vmem:[#allocation2 + $0x1f8] sm:$0xff] %vm24, %v10025
  %10112 = vst.msk [vmem:[#allocation2 + $0x200] sm:$0xff] %vm24, %v10030
  %10113 = vst.msk [vmem:[#allocation2 + $0x208] sm:$0xff] %vm24, %v10033
  %10114 = vst.msk [vmem:[#allocation2 + $0x210] sm:$0xff] %vm24, %v10038
  %10115 = vst.msk [vmem:[#allocation2 + $0x218] sm:$0xff] %vm24, %v10041
  %10116 = vst.msk [vmem:[#allocation2 + $0x220] sm:$0xff] %vm24, %v10046
  %10117 = vst.msk [vmem:[#allocation2 + $0x228] sm:$0xff] %vm24, %v10049
  %v10118 = vld [vmem:[#allocation2 + $0x20] sm:$0xff]
  %v10119 = vld [vmem:[#allocation2 + $0x28] sm:$0xff]
  %v10120 = vld [vmem:[#allocation2 + $0x30] sm:$0xff]
  %v10121 = vld [vmem:[#allocation2 + $0x38] sm:$0xff]
  %v10122 = vld [vmem:[#allocation2 + $0x40] sm:$0xff]
  %v10123 = vld [vmem:[#allocation2 + $0x48] sm:$0xff]
  %v10124 = vld [vmem:[#allocation2 + $0x50] sm:$0xff]
  %v10125 = vld [vmem:[#allocation2 + $0x58] sm:$0xff]
  %v10126 = vld [vmem:[#allocation2 + $0x60] sm:$0xff]
  %v10127 = vld [vmem:[#allocation2 + $0x68] sm:$0xff]
  %v10128 = vld [vmem:[#allocation2 + $0x70] sm:$0xff]
  %v10129 = vld [vmem:[#allocation2 + $0x78] sm:$0xff]
  %v10130 = vld [vmem:[#allocation2 + $0x80] sm:$0xff]
  %v10131 = vld [vmem:[#allocation2 + $0x88] sm:$0xff]
  %v10132 = vld [vmem:[#allocation2 + $0x90] sm:$0xff]
  %v10133 = vld [vmem:[#allocation2 + $0x98] sm:$0xff]
  %v10134 = vld [vmem:[#allocation2 + $0xa0] sm:$0xff]
  %v10135 = vld [vmem:[#allocation2 + $0xa8] sm:$0xff]
  %v10136 = vld [vmem:[#allocation2 + $0xb0] sm:$0xff]
  %v10137 = vld [vmem:[#allocation2 + $0xb8] sm:$0xff]
  %v10138 = vld [vmem:[#allocation2 + $0xc0] sm:$0xff]
  %v10139 = vld [vmem:[#allocation2 + $0xc8] sm:$0xff]
  %v10140 = vld [vmem:[#allocation2 + $0xd0] sm:$0xff]
  %v10141 = vld [vmem:[#allocation2 + $0xd8] sm:$0xff]
  %v10142 = vld [vmem:[#allocation2 + $0xe0] sm:$0xff]
  %v10143 = vld [vmem:[#allocation2 + $0xe8] sm:$0xff]
  %v10144 = vld [vmem:[#allocation2 + $0xf0] sm:$0xff]
  %v10145 = vld [vmem:[#allocation2 + $0xf8] sm:$0xff]
  %v10146 = vld [vmem:[#allocation2 + $0x100] sm:$0xff]
  %v10147 = vld [vmem:[#allocation2 + $0x108] sm:$0xff]
  %v10148 = vld [vmem:[#allocation2 + $0x110] sm:$0xff]
  %v10149 = vld [vmem:[#allocation2 + $0x118] sm:$0xff]
  %v10150 = vld [vmem:[#allocation2 + $0x120] sm:$0xff]
  %v10151 = vld [vmem:[#allocation2 + $0x128] sm:$0xff]
  %v10152 = vld [vmem:[#allocation2 + $0x130] sm:$0xff]
  %v10153 = vld [vmem:[#allocation2 + $0x138] sm:$0xff]
  %v10154 = vld [vmem:[#allocation2 + $0x140] sm:$0xff]
  %v10155 = vld [vmem:[#allocation2 + $0x148] sm:$0xff]
  %v10156 = vld [vmem:[#allocation2 + $0x150] sm:$0xff]
  %v10157 = vld [vmem:[#allocation2 + $0x158] sm:$0xff]
  %v10158 = vld [vmem:[#allocation2 + $0x160] sm:$0xff]
  %v10159 = vld [vmem:[#allocation2 + $0x168] sm:$0xff]
  %v10160 = vld [vmem:[#allocation2 + $0x170] sm:$0xff]
  %v10161 = vld [vmem:[#allocation2 + $0x178] sm:$0xff]
  %v10162 = vld [vmem:[#allocation2 + $0x180] sm:$0xff]
  %v10163 = vld [vmem:[#allocation2 + $0x188] sm:$0xff]
  %v10164 = vld [vmem:[#allocation2 + $0x190] sm:$0xff]
  %v10165 = vld [vmem:[#allocation2 + $0x198] sm:$0xff]
  %v10166 = vld [vmem:[#allocation2 + $0x1a0] sm:$0xff]
  %v10167 = vld [vmem:[#allocation2 + $0x1a8] sm:$0xff]
  %v10168 = vld [vmem:[#allocation2 + $0x1b0] sm:$0xff]
  %v10169 = vld [vmem:[#allocation2 + $0x1b8] sm:$0xff]
  %v10170 = vld [vmem:[#allocation2 + $0x1c0] sm:$0xff]
  %v10171 = vld [vmem:[#allocation2 + $0x1c8] sm:$0xff]
  %v10172 = vld [vmem:[#allocation2 + $0x1d0] sm:$0xff]
  %v10173 = vld [vmem:[#allocation2 + $0x1d8] sm:$0xff]
  %v10174 = vld [vmem:[#allocation2 + $0x1e0] sm:$0xff]
  %v10175 = vld [vmem:[#allocation2 + $0x1e8] sm:$0xff]
  %v10176 = vld [vmem:[#allocation2 + $0x1f0] sm:$0xff]
  %v10177 = vld [vmem:[#allocation2 + $0x1f8] sm:$0xff]
  %v10178 = vld [vmem:[#allocation2 + $0x200] sm:$0xff]
  %v10179 = vld [vmem:[#allocation2 + $0x208] sm:$0xff]
  %v10180 = vld [vmem:[#allocation2 + $0x210] sm:$0xff]
  %v10181 = vld [vmem:[#allocation2 + $0x218] sm:$0xff]
  %v10182 = vld [vmem:[#allocation2 + $0x220] sm:$0xff]
  %v10183 = vld [vmem:[#allocation2 + $0x228] sm:$0xff]
  %v10184 = vld [vmem:[#allocation3 + $0x18] sm:$0x88]
  %v10185 = vld [vmem:[#allocation3 + $0x20] sm:$0xff]
  %v10186 = vld [vmem:[#allocation3 + $0x28] sm:$0xff]
  %v10187 = vld [vmem:[#allocation3 + $0x30] sm:$0xff]
  %v10188 = vld [vmem:[#allocation3 + $0x38] sm:$0xff]
  %v10189 = vld [vmem:[#allocation3 + $0x40] sm:$0xff]
  %v10190 = vld [vmem:[#allocation3 + $0x48] sm:$0xff]
  %v10191 = vld [vmem:[#allocation3 + $0x50] sm:$0xff]
  %v10192 = vld [vmem:[#allocation3 + $0x58] sm:$0xff]
  %v10193 = vld [vmem:[#allocation3 + $0x60] sm:$0xff]
  %v10194 = vld [vmem:[#allocation3 + $0x68] sm:$0xff]
  %v10195 = vld [vmem:[#allocation3 + $0x70] sm:$0xff]
  %v10196 = vld [vmem:[#allocation3 + $0x78] sm:$0xff]
  %v10197 = vld [vmem:[#allocation3 + $0x80] sm:$0xff]
  %v10198 = vld [vmem:[#allocation3 + $0x88] sm:$0xff]
  %v10199 = vld [vmem:[#allocation3 + $0x90] sm:$0xff]
  %v10200 = vld [vmem:[#allocation3 + $0x98] sm:$0xff]
  %v10201 = vld [vmem:[#allocation3 + $0xa0] sm:$0xff]
  %v10202 = vld [vmem:[#allocation3 + $0xa8] sm:$0xff]
  %v10203 = vld [vmem:[#allocation3 + $0xb0] sm:$0xff]
  %v10204 = vld [vmem:[#allocation3 + $0xb8] sm:$0xff]
  %v10205 = vld [vmem:[#allocation3 + $0xc0] sm:$0xff]
  %v10206 = vld [vmem:[#allocation3 + $0xc8] sm:$0xff]
  %v10207 = vld [vmem:[#allocation3 + $0xd0] sm:$0xff]
  %v10208 = vld [vmem:[#allocation3 + $0xd8] sm:$0xff]
  %v10209 = vld [vmem:[#allocation3 + $0xe0] sm:$0xff]
  %v10210 = vld [vmem:[#allocation3 + $0xe8] sm:$0xff]
  %v10211 = vld [vmem:[#allocation3 + $0xf0] sm:$0xff]
  %v10212 = vld [vmem:[#allocation3 + $0xf8] sm:$0xff]
  %v10213 = vld [vmem:[#allocation3 + $0x100] sm:$0xff]
  %v10214 = vld [vmem:[#allocation3 + $0x108] sm:$0xff]
  %v10215 = vld [vmem:[#allocation3 + $0x110] sm:$0xff]
  %v10216 = vld [vmem:[#allocation3 + $0x118] sm:$0xff]
  %v10217 = vld [vmem:[#allocation3 + $0x120] sm:$0xff]
  %v10218 = vld [vmem:[#allocation3 + $0x128] sm:$0xff]
  %v10219 = vld [vmem:[#allocation3 + $0x130] sm:$0xff]
  %v10220 = vld [vmem:[#allocation3 + $0x138] sm:$0xff]
  %v10221 = vld [vmem:[#allocation3 + $0x140] sm:$0xff]
  %v10222 = vld [vmem:[#allocation3 + $0x148] sm:$0xff]
  %v10223 = vld [vmem:[#allocation3 + $0x150] sm:$0xff]
  %v10224 = vld [vmem:[#allocation3 + $0x158] sm:$0xff]
  %v10225 = vld [vmem:[#allocation3 + $0x160] sm:$0xff]
  %v10226 = vld [vmem:[#allocation3 + $0x168] sm:$0xff]
  %v10227 = vld [vmem:[#allocation3 + $0x170] sm:$0xff]
  %v10228 = vld [vmem:[#allocation3 + $0x178] sm:$0xff]
  %v10229 = vld [vmem:[#allocation3 + $0x180] sm:$0xff]
  %v10230 = vld [vmem:[#allocation3 + $0x188] sm:$0xff]
  %v10231 = vld [vmem:[#allocation3 + $0x190] sm:$0xff]
  %v10232 = vld [vmem:[#allocation3 + $0x198] sm:$0xff]
  %v10233 = vld [vmem:[#allocation3 + $0x1a0] sm:$0xff]
  %v10234 = vld [vmem:[#allocation3 + $0x1a8] sm:$0xff]
  %v10235 = vld [vmem:[#allocation3 + $0x1b0] sm:$0xff]
  %v10236 = vld [vmem:[#allocation3 + $0x1b8] sm:$0xff]
  %v10237 = vld [vmem:[#allocation3 + $0x1c0] sm:$0xff]
  %v10238 = vld [vmem:[#allocation3 + $0x1c8] sm:$0xff]
  %v10239 = vld [vmem:[#allocation3 + $0x1d0] sm:$0xff]
  %v10240 = vld [vmem:[#allocation3 + $0x1d8] sm:$0xff]
  %v10241 = vld [vmem:[#allocation3 + $0x1e0] sm:$0xff]
  %v10242 = vld [vmem:[#allocation3 + $0x1e8] sm:$0xff]
  %v10243 = vld [vmem:[#allocation3 + $0x1f0] sm:$0xff]
  %v10244 = vld [vmem:[#allocation3 + $0x1f8] sm:$0xff]
  %v10245 = vld [vmem:[#allocation3 + $0x200] sm:$0xff]
  %v10246 = vld [vmem:[#allocation3 + $0x208] sm:$0xff]
  %v10247 = vld [vmem:[#allocation3 + $0x210] sm:$0xff]
  %v10248 = vld [vmem:[#allocation3 + $0x218] sm:$0xff]
  %v10249 = vld [vmem:[#allocation3 + $0x220] sm:$0xff]
  %v10250 = vld [vmem:[#allocation3 + $0x228] sm:$0xff]
  %s10251 = scalar_lea.vmem %s2, 96
  %v10252 = vld [vmem:[%s10251] sm:$0xf]
  %v10253 = vld [vmem:[%s10251 + $0x4] sm:$0xf]
  %v10254 = vld [vmem:[%s10251 + $0x8] sm:$0xf]
  %v10255 = vld [vmem:[%s10251 + $0xc] sm:$0xf]
  %v10256 = vld [vmem:[%s10251 + $0x10] sm:$0xf]
  %v10257 = vld [vmem:[%s10251 + $0x14] sm:$0xf]
  %v10258 = vld [vmem:[%s10251 + $0x18] sm:$0xf]
  %v10259 = vld [vmem:[%s10251 + $0x1c] sm:$0xf]
  %v10260 = vld [vmem:[%s10251 + $0x20] sm:$0xf]
  %v10261 = vld [vmem:[%s10251 + $0x24] sm:$0xf]
  %v10262 = vld [vmem:[%s10251 + $0x28] sm:$0xf]
  %v10263 = vld [vmem:[%s10251 + $0x2c] sm:$0xf]
  %v10264 = vld [vmem:[%s10251 + $0x30] sm:$0xf]
  %v10265 = vld [vmem:[%s10251 + $0x34] sm:$0xf]
  %v10266 = vld [vmem:[%s10251 + $0x38] sm:$0xf]
  %v10267 = vld [vmem:[%s10251 + $0x3c] sm:$0xf]
  %v10268 = vld [vmem:[%s10251 + $0x40] sm:$0xf]
  %v10269 = vld [vmem:[%s10251 + $0x44] sm:$0xf]
  %v10270 = vld [vmem:[%s10251 + $0x48] sm:$0xf]
  %v10271 = vld [vmem:[%s10251 + $0x4c] sm:$0xf]
  %v10272 = vld [vmem:[%s10251 + $0x50] sm:$0xf]
  %v10273 = vld [vmem:[%s10251 + $0x54] sm:$0xf]
  %v10274 = vld [vmem:[%s10251 + $0x58] sm:$0xf]
  %v10275 = vld [vmem:[%s10251 + $0x5c] sm:$0xf]
  %v10343 = vunpack.c.l.b16 %v10184
  %v10344 = vunpack.c.h.b16 %v10184
  %v10345 = vunpack.c.l.b16 %v10185
  %v10346 = vunpack.c.h.b16 %v10185
  %v10347 = vunpack.c.l.b16 %v10186
  %v10348 = vunpack.c.h.b16 %v10186
  %v10349 = vunpack.c.l.b16 %v10187
  %v10350 = vunpack.c.h.b16 %v10187
  %v10351 = vunpack.c.l.b16 %v10188
  %v10352 = vunpack.c.h.b16 %v10188
  %v10353 = vunpack.c.l.b16 %v10189
  %v10354 = vunpack.c.h.b16 %v10189
  %v10355 = vunpack.c.l.b16 %v10190
  %v10356 = vunpack.c.h.b16 %v10190
  %v10357 = vunpack.c.l.b16 %v10191
  %v10358 = vunpack.c.h.b16 %v10191
  %v10359 = vunpack.c.l.b16 %v10192
  %v10360 = vunpack.c.h.b16 %v10192
  %v10361 = vunpack.c.l.b16 %v10193
  %v10362 = vunpack.c.h.b16 %v10193
  %v10363 = vunpack.c.l.b16 %v10194
  %v10364 = vunpack.c.h.b16 %v10194
  %v10365 = vunpack.c.l.b16 %v10195
  %v10366 = vunpack.c.h.b16 %v10195
  %v10367 = vunpack.c.l.b16 %v10196
  %v10368 = vunpack.c.h.b16 %v10196
  %v10369 = vunpack.c.l.b16 %v10197
  %v10370 = vunpack.c.h.b16 %v10197
  %v10371 = vunpack.c.l.b16 %v10198
  %v10372 = vunpack.c.h.b16 %v10198
  %v10373 = vunpack.c.l.b16 %v10199
  %v10374 = vunpack.c.h.b16 %v10199
  %v10375 = vunpack.c.l.b16 %v10200
  %v10376 = vunpack.c.h.b16 %v10200
  %v10377 = vunpack.c.l.b16 %v10201
  %v10378 = vunpack.c.h.b16 %v10201
  %v10379 = vunpack.c.l.b16 %v10202
  %v10380 = vunpack.c.h.b16 %v10202
  %v10381 = vunpack.c.l.b16 %v10203
  %v10382 = vunpack.c.h.b16 %v10203
  %v10383 = vunpack.c.l.b16 %v10204
  %v10384 = vunpack.c.h.b16 %v10204
  %v10385 = vunpack.c.l.b16 %v10205
  %v10386 = vunpack.c.h.b16 %v10205
  %v10387 = vunpack.c.l.b16 %v10206
  %v10388 = vunpack.c.h.b16 %v10206
  %v10389 = vunpack.c.l.b16 %v10207
  %v10390 = vunpack.c.h.b16 %v10207
  %v10391 = vunpack.c.l.b16 %v10208
  %v10392 = vunpack.c.h.b16 %v10208
  %v10393 = vunpack.c.l.b16 %v10209
  %v10394 = vunpack.c.h.b16 %v10209
  %v10395 = vunpack.c.l.b16 %v10210
  %v10396 = vunpack.c.h.b16 %v10210
  %v10397 = vunpack.c.l.b16 %v10211
  %v10398 = vunpack.c.h.b16 %v10211
  %v10399 = vunpack.c.l.b16 %v10212
  %v10400 = vunpack.c.h.b16 %v10212
  %v10401 = vunpack.c.l.b16 %v10213
  %v10402 = vunpack.c.h.b16 %v10213
  %v10403 = vunpack.c.l.b16 %v10214
  %v10404 = vunpack.c.h.b16 %v10214
  %v10405 = vunpack.c.l.b16 %v10215
  %v10406 = vunpack.c.h.b16 %v10215
  %v10407 = vunpack.c.l.b16 %v10216
  %v10408 = vunpack.c.h.b16 %v10216
  %v10409 = vunpack.c.l.b16 %v10217
  %v10410 = vunpack.c.h.b16 %v10217
  %v10411 = vunpack.c.l.b16 %v10218
  %v10412 = vunpack.c.h.b16 %v10218
  %v10413 = vunpack.c.l.b16 %v10219
  %v10414 = vunpack.c.h.b16 %v10219
  %v10415 = vunpack.c.l.b16 %v10220
  %v10416 = vunpack.c.h.b16 %v10220
  %v10417 = vunpack.c.l.b16 %v10221
  %v10418 = vunpack.c.h.b16 %v10221
  %v10419 = vunpack.c.l.b16 %v10222
  %v10420 = vunpack.c.h.b16 %v10222
  %v10421 = vunpack.c.l.b16 %v10223
  %v10422 = vunpack.c.h.b16 %v10223
  %v10423 = vunpack.c.l.b16 %v10224
  %v10424 = vunpack.c.h.b16 %v10224
  %v10425 = vunpack.c.l.b16 %v10225
  %v10426 = vunpack.c.h.b16 %v10225
  %v10427 = vunpack.c.l.b16 %v10226
  %v10428 = vunpack.c.h.b16 %v10226
  %v10429 = vunpack.c.l.b16 %v10227
  %v10430 = vunpack.c.h.b16 %v10227
  %v10431 = vunpack.c.l.b16 %v10228
  %v10432 = vunpack.c.h.b16 %v10228
  %v10433 = vunpack.c.l.b16 %v10229
  %v10434 = vunpack.c.h.b16 %v10229
  %v10435 = vunpack.c.l.b16 %v10230
  %v10436 = vunpack.c.h.b16 %v10230
  %v10437 = vunpack.c.l.b16 %v10231
  %v10438 = vunpack.c.h.b16 %v10231
  %v10439 = vunpack.c.l.b16 %v10232
  %v10440 = vunpack.c.h.b16 %v10232
  %v10441 = vunpack.c.l.b16 %v10233
  %v10442 = vunpack.c.h.b16 %v10233
  %v10443 = vunpack.c.l.b16 %v10234
  %v10444 = vunpack.c.h.b16 %v10234
  %v10445 = vunpack.c.l.b16 %v10235
  %v10446 = vunpack.c.h.b16 %v10235
  %v10447 = vunpack.c.l.b16 %v10236
  %v10448 = vunpack.c.h.b16 %v10236
  %v10449 = vunpack.c.l.b16 %v10237
  %v10450 = vunpack.c.h.b16 %v10237
  %v10451 = vunpack.c.l.b16 %v10238
  %v10452 = vunpack.c.h.b16 %v10238
  %v10453 = vunpack.c.l.b16 %v10239
  %v10454 = vunpack.c.h.b16 %v10239
  %v10455 = vunpack.c.l.b16 %v10240
  %v10456 = vunpack.c.h.b16 %v10240
  %v10457 = vunpack.c.l.b16 %v10241
  %v10458 = vunpack.c.h.b16 %v10241
  %v10459 = vunpack.c.l.b16 %v10242
  %v10460 = vunpack.c.h.b16 %v10242
  %v10461 = vunpack.c.l.b16 %v10243
  %v10462 = vunpack.c.h.b16 %v10243
  %v10463 = vunpack.c.l.b16 %v10244
  %v10464 = vunpack.c.h.b16 %v10244
  %v10465 = vunpack.c.l.b16 %v10245
  %v10466 = vunpack.c.h.b16 %v10245
  %v10467 = vunpack.c.l.b16 %v10246
  %v10468 = vunpack.c.h.b16 %v10246
  %v10469 = vunpack.c.l.b16 %v10247
  %v10470 = vunpack.c.h.b16 %v10247
  %v10471 = vunpack.c.l.b16 %v10248
  %v10472 = vunpack.c.h.b16 %v10248
  %v10473 = vunpack.c.l.b16 %v10249
  %v10474 = vunpack.c.h.b16 %v10249
  %v10475 = vunpack.c.l.b16 %v10250
  %v10476 = vunpack.c.h.b16 %v10250
  %v10477 = vpack.c.b16 %v10345, %v10343
  %v10478 = vpack.c.b16 %v10346, %v10344
  %v10479 = vpack.c.b16 %v10349, %v10347
  %v10480 = vpack.c.b16 %v10350, %v10348
  %v10481 = vpack.c.b16 %v10353, %v10351
  %v10482 = vpack.c.b16 %v10354, %v10352
  %v10483 = vpack.c.b16 %v10357, %v10355
  %v10484 = vpack.c.b16 %v10358, %v10356
  %v10485 = vpack.c.b16 %v10361, %v10359
  %v10486 = vpack.c.b16 %v10362, %v10360
  %v10487 = vpack.c.b16 %v10365, %v10363
  %v10488 = vpack.c.b16 %v10366, %v10364
  %v10489 = vpack.c.b16 %v10369, %v10367
  %v10490 = vpack.c.b16 %v10370, %v10368
  %v10491 = vpack.c.b16 %v10373, %v10371
  %v10492 = vpack.c.b16 %v10374, %v10372
  %v10493 = vpack.c.b16 %v10377, %v10375
  %v10494 = vpack.c.b16 %v10378, %v10376
  %v10495 = vpack.c.b16 %v10381, %v10379
  %v10496 = vpack.c.b16 %v10382, %v10380
  %v10497 = vpack.c.b16 %v10385, %v10383
  %v10498 = vpack.c.b16 %v10386, %v10384
  %v10499 = vpack.c.b16 %v10389, %v10387
  %v10500 = vpack.c.b16 %v10390, %v10388
  %v10501 = vpack.c.b16 %v10393, %v10391
  %v10502 = vpack.c.b16 %v10394, %v10392
  %v10503 = vpack.c.b16 %v10397, %v10395
  %v10504 = vpack.c.b16 %v10398, %v10396
  %v10505 = vpack.c.b16 %v10401, %v10399
  %v10506 = vpack.c.b16 %v10402, %v10400
  %v10507 = vpack.c.b16 %v10405, %v10403
  %v10508 = vpack.c.b16 %v10406, %v10404
  %v10509 = vpack.c.b16 %v10409, %v10407
  %v10510 = vpack.c.b16 %v10410, %v10408
  %v10511 = vpack.c.b16 %v10413, %v10411
  %v10512 = vpack.c.b16 %v10414, %v10412
  %v10513 = vpack.c.b16 %v10417, %v10415
  %v10514 = vpack.c.b16 %v10418, %v10416
  %v10515 = vpack.c.b16 %v10421, %v10419
  %v10516 = vpack.c.b16 %v10422, %v10420
  %v10517 = vpack.c.b16 %v10425, %v10423
  %v10518 = vpack.c.b16 %v10426, %v10424
  %v10519 = vpack.c.b16 %v10429, %v10427
  %v10520 = vpack.c.b16 %v10430, %v10428
  %v10521 = vpack.c.b16 %v10433, %v10431
  %v10522 = vpack.c.b16 %v10434, %v10432
  %v10523 = vpack.c.b16 %v10437, %v10435
  %v10524 = vpack.c.b16 %v10438, %v10436
  %v10525 = vpack.c.b16 %v10441, %v10439
  %v10526 = vpack.c.b16 %v10442, %v10440
  %v10527 = vpack.c.b16 %v10445, %v10443
  %v10528 = vpack.c.b16 %v10446, %v10444
  %v10529 = vpack.c.b16 %v10449, %v10447
  %v10530 = vpack.c.b16 %v10450, %v10448
  %v10531 = vpack.c.b16 %v10453, %v10451
  %v10532 = vpack.c.b16 %v10454, %v10452
  %v10533 = vpack.c.b16 %v10457, %v10455
  %v10534 = vpack.c.b16 %v10458, %v10456
  %v10535 = vpack.c.b16 %v10461, %v10459
  %v10536 = vpack.c.b16 %v10462, %v10460
  %v10537 = vpack.c.b16 %v10465, %v10463
  %v10538 = vpack.c.b16 %v10466, %v10464
  %v10539 = vpack.c.b16 %v10469, %v10467
  %v10540 = vpack.c.b16 %v10470, %v10468
  %v10541 = vpack.c.b16 %v10473, %v10471
  %v10542 = vpack.c.b16 %v10474, %v10472
  %v10543 = vpack.c.b16 %v10475, %v10475
  %v10544 = vpack.c.b16 %v10476, %v10476
  %v10546 = vshrl.u32 %v10477, 16
  %v10548 = vrot.slane %v10546, 3
  %v10549 = vshll.u32 %v10477, 16
  %v10551 = vrot.slane %v10549, 4
  %v10552 = vor.u32 %v10548, %v10551
  %v10554 = vshrl.u32 %v10479, 16
  %v10556 = vrot.slane %v10554, 3
  %v10557 = vshll.u32 %v10479, 16
  %v10559 = vrot.slane %v10557, 4
  %v10560 = vor.u32 %v10556, %v10559
  %v10561 = vsel %vm2260, %v10552, %v10560
  %v10563 = vshrl.u32 %v10478, 16
  %v10565 = vrot.slane %v10563, 3
  %v10566 = vshll.u32 %v10478, 16
  %v10568 = vrot.slane %v10566, 4
  %v10569 = vor.u32 %v10565, %v10568
  %v10571 = vshrl.u32 %v10480, 16
  %v10573 = vrot.slane %v10571, 3
  %v10574 = vshll.u32 %v10480, 16
  %v10576 = vrot.slane %v10574, 4
  %v10577 = vor.u32 %v10573, %v10576
  %v10578 = vsel %vm2260, %v10569, %v10577
  %v10580 = vshrl.u32 %v10481, 16
  %v10582 = vrot.slane %v10580, 3
  %v10583 = vshll.u32 %v10481, 16
  %v10585 = vrot.slane %v10583, 4
  %v10586 = vor.u32 %v10582, %v10585
  %v10587 = vsel %vm2260, %v10560, %v10586
  %v10589 = vshrl.u32 %v10482, 16
  %v10591 = vrot.slane %v10589, 3
  %v10592 = vshll.u32 %v10482, 16
  %v10594 = vrot.slane %v10592, 4
  %v10595 = vor.u32 %v10591, %v10594
  %v10596 = vsel %vm2260, %v10577, %v10595
  %v10598 = vshrl.u32 %v10483, 16
  %v10600 = vrot.slane %v10598, 3
  %v10601 = vshll.u32 %v10483, 16
  %v10603 = vrot.slane %v10601, 4
  %v10604 = vor.u32 %v10600, %v10603
  %v10605 = vsel %vm2260, %v10586, %v10604
  %v10607 = vshrl.u32 %v10484, 16
  %v10609 = vrot.slane %v10607, 3
  %v10610 = vshll.u32 %v10484, 16
  %v10612 = vrot.slane %v10610, 4
  %v10613 = vor.u32 %v10609, %v10612
  %v10614 = vsel %vm2260, %v10595, %v10613
  %v10616 = vshrl.u32 %v10485, 16
  %v10618 = vrot.slane %v10616, 3
  %v10619 = vshll.u32 %v10485, 16
  %v10621 = vrot.slane %v10619, 4
  %v10622 = vor.u32 %v10618, %v10621
  %v10623 = vsel %vm2260, %v10604, %v10622
  %v10625 = vshrl.u32 %v10486, 16
  %v10627 = vrot.slane %v10625, 3
  %v10628 = vshll.u32 %v10486, 16
  %v10630 = vrot.slane %v10628, 4
  %v10631 = vor.u32 %v10627, %v10630
  %v10632 = vsel %vm2260, %v10613, %v10631
  %v10634 = vshrl.u32 %v10487, 16
  %v10636 = vrot.slane %v10634, 3
  %v10637 = vshll.u32 %v10487, 16
  %v10639 = vrot.slane %v10637, 4
  %v10640 = vor.u32 %v10636, %v10639
  %v10641 = vsel %vm2260, %v10622, %v10640
  %v10643 = vshrl.u32 %v10488, 16
  %v10645 = vrot.slane %v10643, 3
  %v10646 = vshll.u32 %v10488, 16
  %v10648 = vrot.slane %v10646, 4
  %v10649 = vor.u32 %v10645, %v10648
  %v10650 = vsel %vm2260, %v10631, %v10649
  %v10652 = vshrl.u32 %v10489, 16
  %v10654 = vrot.slane %v10652, 3
  %v10655 = vshll.u32 %v10489, 16
  %v10657 = vrot.slane %v10655, 4
  %v10658 = vor.u32 %v10654, %v10657
  %v10659 = vsel %vm2260, %v10640, %v10658
  %v10661 = vshrl.u32 %v10490, 16
  %v10663 = vrot.slane %v10661, 3
  %v10664 = vshll.u32 %v10490, 16
  %v10666 = vrot.slane %v10664, 4
  %v10667 = vor.u32 %v10663, %v10666
  %v10668 = vsel %vm2260, %v10649, %v10667
  %v10670 = vshrl.u32 %v10491, 16
  %v10672 = vrot.slane %v10670, 3
  %v10673 = vshll.u32 %v10491, 16
  %v10675 = vrot.slane %v10673, 4
  %v10676 = vor.u32 %v10672, %v10675
  %v10677 = vsel %vm2260, %v10658, %v10676
  %v10679 = vshrl.u32 %v10492, 16
  %v10681 = vrot.slane %v10679, 3
  %v10682 = vshll.u32 %v10492, 16
  %v10684 = vrot.slane %v10682, 4
  %v10685 = vor.u32 %v10681, %v10684
  %v10686 = vsel %vm2260, %v10667, %v10685
  %v10688 = vshrl.u32 %v10493, 16
  %v10690 = vrot.slane %v10688, 3
  %v10691 = vshll.u32 %v10493, 16
  %v10693 = vrot.slane %v10691, 4
  %v10694 = vor.u32 %v10690, %v10693
  %v10695 = vsel %vm2260, %v10676, %v10694
  %v10697 = vshrl.u32 %v10494, 16
  %v10699 = vrot.slane %v10697, 3
  %v10700 = vshll.u32 %v10494, 16
  %v10702 = vrot.slane %v10700, 4
  %v10703 = vor.u32 %v10699, %v10702
  %v10704 = vsel %vm2260, %v10685, %v10703
  %v10706 = vshrl.u32 %v10495, 16
  %v10708 = vrot.slane %v10706, 3
  %v10709 = vshll.u32 %v10495, 16
  %v10711 = vrot.slane %v10709, 4
  %v10712 = vor.u32 %v10708, %v10711
  %v10713 = vsel %vm2260, %v10694, %v10712
  %v10715 = vshrl.u32 %v10496, 16
  %v10717 = vrot.slane %v10715, 3
  %v10718 = vshll.u32 %v10496, 16
  %v10720 = vrot.slane %v10718, 4
  %v10721 = vor.u32 %v10717, %v10720
  %v10722 = vsel %vm2260, %v10703, %v10721
  %v10724 = vshrl.u32 %v10497, 16
  %v10726 = vrot.slane %v10724, 3
  %v10727 = vshll.u32 %v10497, 16
  %v10729 = vrot.slane %v10727, 4
  %v10730 = vor.u32 %v10726, %v10729
  %v10731 = vsel %vm2260, %v10712, %v10730
  %v10733 = vshrl.u32 %v10498, 16
  %v10735 = vrot.slane %v10733, 3
  %v10736 = vshll.u32 %v10498, 16
  %v10738 = vrot.slane %v10736, 4
  %v10739 = vor.u32 %v10735, %v10738
  %v10740 = vsel %vm2260, %v10721, %v10739
  %v10742 = vshrl.u32 %v10499, 16
  %v10744 = vrot.slane %v10742, 3
  %v10745 = vshll.u32 %v10499, 16
  %v10747 = vrot.slane %v10745, 4
  %v10748 = vor.u32 %v10744, %v10747
  %v10749 = vsel %vm2260, %v10730, %v10748
  %v10751 = vshrl.u32 %v10500, 16
  %v10753 = vrot.slane %v10751, 3
  %v10754 = vshll.u32 %v10500, 16
  %v10756 = vrot.slane %v10754, 4
  %v10757 = vor.u32 %v10753, %v10756
  %v10758 = vsel %vm2260, %v10739, %v10757
  %v10760 = vshrl.u32 %v10501, 16
  %v10762 = vrot.slane %v10760, 3
  %v10763 = vshll.u32 %v10501, 16
  %v10765 = vrot.slane %v10763, 4
  %v10766 = vor.u32 %v10762, %v10765
  %v10767 = vsel %vm2260, %v10748, %v10766
  %v10769 = vshrl.u32 %v10502, 16
  %v10771 = vrot.slane %v10769, 3
  %v10772 = vshll.u32 %v10502, 16
  %v10774 = vrot.slane %v10772, 4
  %v10775 = vor.u32 %v10771, %v10774
  %v10776 = vsel %vm2260, %v10757, %v10775
  %v10778 = vshrl.u32 %v10503, 16
  %v10780 = vrot.slane %v10778, 3
  %v10781 = vshll.u32 %v10503, 16
  %v10783 = vrot.slane %v10781, 4
  %v10784 = vor.u32 %v10780, %v10783
  %v10785 = vsel %vm2260, %v10766, %v10784
  %v10787 = vshrl.u32 %v10504, 16
  %v10789 = vrot.slane %v10787, 3
  %v10790 = vshll.u32 %v10504, 16
  %v10792 = vrot.slane %v10790, 4
  %v10793 = vor.u32 %v10789, %v10792
  %v10794 = vsel %vm2260, %v10775, %v10793
  %v10796 = vshrl.u32 %v10505, 16
  %v10798 = vrot.slane %v10796, 3
  %v10799 = vshll.u32 %v10505, 16
  %v10801 = vrot.slane %v10799, 4
  %v10802 = vor.u32 %v10798, %v10801
  %v10803 = vsel %vm2260, %v10784, %v10802
  %v10805 = vshrl.u32 %v10506, 16
  %v10807 = vrot.slane %v10805, 3
  %v10808 = vshll.u32 %v10506, 16
  %v10810 = vrot.slane %v10808, 4
  %v10811 = vor.u32 %v10807, %v10810
  %v10812 = vsel %vm2260, %v10793, %v10811
  %v10814 = vshrl.u32 %v10507, 16
  %v10816 = vrot.slane %v10814, 3
  %v10817 = vshll.u32 %v10507, 16
  %v10819 = vrot.slane %v10817, 4
  %v10820 = vor.u32 %v10816, %v10819
  %v10821 = vsel %vm2260, %v10802, %v10820
  %v10823 = vshrl.u32 %v10508, 16
  %v10825 = vrot.slane %v10823, 3
  %v10826 = vshll.u32 %v10508, 16
  %v10828 = vrot.slane %v10826, 4
  %v10829 = vor.u32 %v10825, %v10828
  %v10830 = vsel %vm2260, %v10811, %v10829
  %v10832 = vshrl.u32 %v10509, 16
  %v10834 = vrot.slane %v10832, 3
  %v10835 = vshll.u32 %v10509, 16
  %v10837 = vrot.slane %v10835, 4
  %v10838 = vor.u32 %v10834, %v10837
  %v10839 = vsel %vm2260, %v10820, %v10838
  %v10841 = vshrl.u32 %v10510, 16
  %v10843 = vrot.slane %v10841, 3
  %v10844 = vshll.u32 %v10510, 16
  %v10846 = vrot.slane %v10844, 4
  %v10847 = vor.u32 %v10843, %v10846
  %v10848 = vsel %vm2260, %v10829, %v10847
  %v10850 = vshrl.u32 %v10511, 16
  %v10852 = vrot.slane %v10850, 3
  %v10853 = vshll.u32 %v10511, 16
  %v10855 = vrot.slane %v10853, 4
  %v10856 = vor.u32 %v10852, %v10855
  %v10857 = vsel %vm2260, %v10838, %v10856
  %v10859 = vshrl.u32 %v10512, 16
  %v10861 = vrot.slane %v10859, 3
  %v10862 = vshll.u32 %v10512, 16
  %v10864 = vrot.slane %v10862, 4
  %v10865 = vor.u32 %v10861, %v10864
  %v10866 = vsel %vm2260, %v10847, %v10865
  %v10868 = vshrl.u32 %v10513, 16
  %v10870 = vrot.slane %v10868, 3
  %v10871 = vshll.u32 %v10513, 16
  %v10873 = vrot.slane %v10871, 4
  %v10874 = vor.u32 %v10870, %v10873
  %v10875 = vsel %vm2260, %v10856, %v10874
  %v10877 = vshrl.u32 %v10514, 16
  %v10879 = vrot.slane %v10877, 3
  %v10880 = vshll.u32 %v10514, 16
  %v10882 = vrot.slane %v10880, 4
  %v10883 = vor.u32 %v10879, %v10882
  %v10884 = vsel %vm2260, %v10865, %v10883
  %v10886 = vshrl.u32 %v10515, 16
  %v10888 = vrot.slane %v10886, 3
  %v10889 = vshll.u32 %v10515, 16
  %v10891 = vrot.slane %v10889, 4
  %v10892 = vor.u32 %v10888, %v10891
  %v10893 = vsel %vm2260, %v10874, %v10892
  %v10895 = vshrl.u32 %v10516, 16
  %v10897 = vrot.slane %v10895, 3
  %v10898 = vshll.u32 %v10516, 16
  %v10900 = vrot.slane %v10898, 4
  %v10901 = vor.u32 %v10897, %v10900
  %v10902 = vsel %vm2260, %v10883, %v10901
  %v10904 = vshrl.u32 %v10517, 16
  %v10906 = vrot.slane %v10904, 3
  %v10907 = vshll.u32 %v10517, 16
  %v10909 = vrot.slane %v10907, 4
  %v10910 = vor.u32 %v10906, %v10909
  %v10911 = vsel %vm2260, %v10892, %v10910
  %v10913 = vshrl.u32 %v10518, 16
  %v10915 = vrot.slane %v10913, 3
  %v10916 = vshll.u32 %v10518, 16
  %v10918 = vrot.slane %v10916, 4
  %v10919 = vor.u32 %v10915, %v10918
  %v10920 = vsel %vm2260, %v10901, %v10919
  %v10922 = vshrl.u32 %v10519, 16
  %v10924 = vrot.slane %v10922, 3
  %v10925 = vshll.u32 %v10519, 16
  %v10927 = vrot.slane %v10925, 4
  %v10928 = vor.u32 %v10924, %v10927
  %v10929 = vsel %vm2260, %v10910, %v10928
  %v10931 = vshrl.u32 %v10520, 16
  %v10933 = vrot.slane %v10931, 3
  %v10934 = vshll.u32 %v10520, 16
  %v10936 = vrot.slane %v10934, 4
  %v10937 = vor.u32 %v10933, %v10936
  %v10938 = vsel %vm2260, %v10919, %v10937
  %v10940 = vshrl.u32 %v10521, 16
  %v10942 = vrot.slane %v10940, 3
  %v10943 = vshll.u32 %v10521, 16
  %v10945 = vrot.slane %v10943, 4
  %v10946 = vor.u32 %v10942, %v10945
  %v10947 = vsel %vm2260, %v10928, %v10946
  %v10949 = vshrl.u32 %v10522, 16
  %v10951 = vrot.slane %v10949, 3
  %v10952 = vshll.u32 %v10522, 16
  %v10954 = vrot.slane %v10952, 4
  %v10955 = vor.u32 %v10951, %v10954
  %v10956 = vsel %vm2260, %v10937, %v10955
  %v10958 = vshrl.u32 %v10523, 16
  %v10960 = vrot.slane %v10958, 3
  %v10961 = vshll.u32 %v10523, 16
  %v10963 = vrot.slane %v10961, 4
  %v10964 = vor.u32 %v10960, %v10963
  %v10965 = vsel %vm2260, %v10946, %v10964
  %v10967 = vshrl.u32 %v10524, 16
  %v10969 = vrot.slane %v10967, 3
  %v10970 = vshll.u32 %v10524, 16
  %v10972 = vrot.slane %v10970, 4
  %v10973 = vor.u32 %v10969, %v10972
  %v10974 = vsel %vm2260, %v10955, %v10973
  %v10976 = vshrl.u32 %v10525, 16
  %v10978 = vrot.slane %v10976, 3
  %v10979 = vshll.u32 %v10525, 16
  %v10981 = vrot.slane %v10979, 4
  %v10982 = vor.u32 %v10978, %v10981
  %v10983 = vsel %vm2260, %v10964, %v10982
  %v10985 = vshrl.u32 %v10526, 16
  %v10987 = vrot.slane %v10985, 3
  %v10988 = vshll.u32 %v10526, 16
  %v10990 = vrot.slane %v10988, 4
  %v10991 = vor.u32 %v10987, %v10990
  %v10992 = vsel %vm2260, %v10973, %v10991
  %v10994 = vshrl.u32 %v10527, 16
  %v10996 = vrot.slane %v10994, 3
  %v10997 = vshll.u32 %v10527, 16
  %v10999 = vrot.slane %v10997, 4
  %v11000 = vor.u32 %v10996, %v10999
  %v11001 = vsel %vm2260, %v10982, %v11000
  %v11003 = vshrl.u32 %v10528, 16
  %v11005 = vrot.slane %v11003, 3
  %v11006 = vshll.u32 %v10528, 16
  %v11008 = vrot.slane %v11006, 4
  %v11009 = vor.u32 %v11005, %v11008
  %v11010 = vsel %vm2260, %v10991, %v11009
  %v11012 = vshrl.u32 %v10529, 16
  %v11014 = vrot.slane %v11012, 3
  %v11015 = vshll.u32 %v10529, 16
  %v11017 = vrot.slane %v11015, 4
  %v11018 = vor.u32 %v11014, %v11017
  %v11019 = vsel %vm2260, %v11000, %v11018
  %v11021 = vshrl.u32 %v10530, 16
  %v11023 = vrot.slane %v11021, 3
  %v11024 = vshll.u32 %v10530, 16
  %v11026 = vrot.slane %v11024, 4
  %v11027 = vor.u32 %v11023, %v11026
  %v11028 = vsel %vm2260, %v11009, %v11027
  %v11030 = vshrl.u32 %v10531, 16
  %v11032 = vrot.slane %v11030, 3
  %v11033 = vshll.u32 %v10531, 16
  %v11035 = vrot.slane %v11033, 4
  %v11036 = vor.u32 %v11032, %v11035
  %v11037 = vsel %vm2260, %v11018, %v11036
  %v11039 = vshrl.u32 %v10532, 16
  %v11041 = vrot.slane %v11039, 3
  %v11042 = vshll.u32 %v10532, 16
  %v11044 = vrot.slane %v11042, 4
  %v11045 = vor.u32 %v11041, %v11044
  %v11046 = vsel %vm2260, %v11027, %v11045
  %v11048 = vshrl.u32 %v10533, 16
  %v11050 = vrot.slane %v11048, 3
  %v11051 = vshll.u32 %v10533, 16
  %v11053 = vrot.slane %v11051, 4
  %v11054 = vor.u32 %v11050, %v11053
  %v11055 = vsel %vm2260, %v11036, %v11054
  %v11057 = vshrl.u32 %v10534, 16
  %v11059 = vrot.slane %v11057, 3
  %v11060 = vshll.u32 %v10534, 16
  %v11062 = vrot.slane %v11060, 4
  %v11063 = vor.u32 %v11059, %v11062
  %v11064 = vsel %vm2260, %v11045, %v11063
  %v11066 = vshrl.u32 %v10535, 16
  %v11068 = vrot.slane %v11066, 3
  %v11069 = vshll.u32 %v10535, 16
  %v11071 = vrot.slane %v11069, 4
  %v11072 = vor.u32 %v11068, %v11071
  %v11073 = vsel %vm2260, %v11054, %v11072
  %v11075 = vshrl.u32 %v10536, 16
  %v11077 = vrot.slane %v11075, 3
  %v11078 = vshll.u32 %v10536, 16
  %v11080 = vrot.slane %v11078, 4
  %v11081 = vor.u32 %v11077, %v11080
  %v11082 = vsel %vm2260, %v11063, %v11081
  %v11084 = vshrl.u32 %v10537, 16
  %v11086 = vrot.slane %v11084, 3
  %v11087 = vshll.u32 %v10537, 16
  %v11089 = vrot.slane %v11087, 4
  %v11090 = vor.u32 %v11086, %v11089
  %v11091 = vsel %vm2260, %v11072, %v11090
  %v11093 = vshrl.u32 %v10538, 16
  %v11095 = vrot.slane %v11093, 3
  %v11096 = vshll.u32 %v10538, 16
  %v11098 = vrot.slane %v11096, 4
  %v11099 = vor.u32 %v11095, %v11098
  %v11100 = vsel %vm2260, %v11081, %v11099
  %v11102 = vshrl.u32 %v10539, 16
  %v11104 = vrot.slane %v11102, 3
  %v11105 = vshll.u32 %v10539, 16
  %v11107 = vrot.slane %v11105, 4
  %v11108 = vor.u32 %v11104, %v11107
  %v11109 = vsel %vm2260, %v11090, %v11108
  %v11111 = vshrl.u32 %v10540, 16
  %v11113 = vrot.slane %v11111, 3
  %v11114 = vshll.u32 %v10540, 16
  %v11116 = vrot.slane %v11114, 4
  %v11117 = vor.u32 %v11113, %v11116
  %v11118 = vsel %vm2260, %v11099, %v11117
  %v11120 = vshrl.u32 %v10541, 16
  %v11122 = vrot.slane %v11120, 3
  %v11123 = vshll.u32 %v10541, 16
  %v11125 = vrot.slane %v11123, 4
  %v11126 = vor.u32 %v11122, %v11125
  %v11127 = vsel %vm2260, %v11108, %v11126
  %v11129 = vshrl.u32 %v10542, 16
  %v11131 = vrot.slane %v11129, 3
  %v11132 = vshll.u32 %v10542, 16
  %v11134 = vrot.slane %v11132, 4
  %v11135 = vor.u32 %v11131, %v11134
  %v11136 = vsel %vm2260, %v11117, %v11135
  %v11138 = vshrl.u32 %v10543, 16
  %v11140 = vrot.slane %v11138, 3
  %v11141 = vshll.u32 %v10543, 16
  %v11143 = vrot.slane %v11141, 4
  %v11144 = vor.u32 %v11140, %v11143
  %v11145 = vsel %vm2260, %v11126, %v11144
  %v11147 = vshrl.u32 %v10544, 16
  %v11149 = vrot.slane %v11147, 3
  %v11150 = vshll.u32 %v10544, 16
  %v11152 = vrot.slane %v11150, 4
  %v11153 = vor.u32 %v11149, %v11152
  %v11154 = vsel %vm2260, %v11135, %v11153
  %v11212 = vunpack.c.l.b16 %v10252
  %v11213 = vunpack.c.l.b16 %v10253
  %v11214 = vunpack.c.l.b16 %v10254
  %v11215 = vunpack.c.l.b16 %v10255
  %v11216 = vunpack.c.l.b16 %v10256
  %v11217 = vunpack.c.l.b16 %v10257
  %v11218 = vunpack.c.l.b16 %v10258
  %v11219 = vunpack.c.l.b16 %v10259
  %v11220 = vunpack.c.l.b16 %v10260
  %v11221 = vunpack.c.l.b16 %v10261
  %v11222 = vunpack.c.l.b16 %v10262
  %v11223 = vunpack.c.l.b16 %v10263
  %v11224 = vunpack.c.l.b16 %v10264
  %v11225 = vunpack.c.l.b16 %v10265
  %v11226 = vunpack.c.l.b16 %v10266
  %v11227 = vunpack.c.l.b16 %v10267
  %v11228 = vunpack.c.l.b16 %v10268
  %v11229 = vunpack.c.l.b16 %v10269
  %v11230 = vunpack.c.l.b16 %v10270
  %v11231 = vunpack.c.l.b16 %v10271
  %v11232 = vunpack.c.l.b16 %v10272
  %v11233 = vunpack.c.l.b16 %v10273
  %v11234 = vunpack.c.l.b16 %v10274
  %v11235 = vunpack.c.l.b16 %v10275
  %v11236 = vpack.c.b16 %v11213, %v11212
  %v11237 = vpack.c.b16 %v11215, %v11214
  %v11238 = vpack.c.b16 %v11217, %v11216
  %v11239 = vpack.c.b16 %v11219, %v11218
  %v11240 = vpack.c.b16 %v11221, %v11220
  %v11241 = vpack.c.b16 %v11223, %v11222
  %v11242 = vpack.c.b16 %v11225, %v11224
  %v11243 = vpack.c.b16 %v11227, %v11226
  %v11244 = vpack.c.b16 %v11229, %v11228
  %v11245 = vpack.c.b16 %v11231, %v11230
  %v11246 = vpack.c.b16 %v11233, %v11232
  %v11247 = vpack.c.b16 %v11235, %v11234
  %v11261 = vsel %vm24, %v10578, 0
  %v11264 = vsel %vm24, %v10596, 0
  %v11267 = vsel %vm24, %v10614, 0
  %v11270 = vsel %vm24, %v10632, 0
  %v11273 = vsel %vm24, %v10650, 0
  %v11276 = vsel %vm24, %v10668, 0
  %v11279 = vsel %vm24, %v10686, 0
  %v11282 = vsel %vm24, %v10704, 0
  %v11285 = vsel %vm24, %v10722, 0
  %v11288 = vsel %vm24, %v10740, 0
  %v11291 = vsel %vm24, %v10758, 0
  %v11294 = vsel %vm24, %v10776, 0
  %v11297 = vsel %vm24, %v10794, 0
  %v11300 = vsel %vm24, %v10812, 0
  %v11303 = vsel %vm24, %v10830, 0
  %v11306 = vsel %vm24, %v10848, 0
  %v11309 = vsel %vm24, %v10866, 0
  %v11312 = vsel %vm24, %v10884, 0
  %v11315 = vsel %vm24, %v10902, 0
  %v11318 = vsel %vm24, %v10920, 0
  %v11321 = vsel %vm24, %v10938, 0
  %v11324 = vsel %vm24, %v10956, 0
  %v11327 = vsel %vm24, %v10974, 0
  %v11330 = vsel %vm24, %v10992, 0
  %v11333 = vsel %vm24, %v11010, 0
  %v11336 = vsel %vm24, %v11028, 0
  %v11339 = vsel %vm24, %v11046, 0
  %v11342 = vsel %vm24, %v11064, 0
  %v11345 = vsel %vm24, %v11082, 0
  %v11348 = vsel %vm24, %v11100, 0
  %v11351 = vsel %vm24, %v11118, 0
  %v11354 = vsel %vm24, %v11136, 0
  %v11357 = vsel %vm24, %v11154, 0
  %11359 = vmatprep.subr.bf16.mxu0 0
  %11360 = vmatpush1.bf16.msra.mxu0 %v11243
  %11361 = vmatprep.subr.bf16.mxu0 0
  %11362 = vmatpush1.bf16.msra.mxu0 %v11242
  %11363 = vmatprep.subr.bf16.mxu0 0
  %11364 = vmatpush1.bf16.msra.mxu0 %v11241
  %11365 = vmatprep.subr.bf16.mxu0 0
  %11366 = vmatpush1.bf16.msra.mxu0 %v11240
  %11367 = vmatprep.subr.bf16.mxu0 0
  %11368 = vmatpush1.bf16.msra.mxu0 %v11239
  %11369 = vmatprep.subr.bf16.mxu0 0
  %11370 = vmatpush1.bf16.msra.mxu0 %v11238
  %11371 = vmatprep.subr.bf16.mxu0 0
  %11372 = vmatpush1.bf16.msra.mxu0 %v11237
  %11373 = vmatprep.subr.bf16.mxu0 0
  %11374 = vmatpush1.bf16.msra.mxu0 %v11236
  %11375 = vmatprep.subr.bf16.mxu0 0
  %11376 = vmatpush2.bf16.msra.mxu0 0
  %11377 = vmatprep.subr.bf16.mxu0 0
  %11378 = vmatpush2.bf16.msra.mxu0 0
  %11379 = vmatprep.subr.bf16.mxu0 0
  %11380 = vmatpush2.bf16.msra.mxu0 0
  %11381 = vmatprep.subr.bf16.mxu0 0
  %11382 = vmatpush2.bf16.msra.mxu0 0
  %11383 = vmatprep.subr.bf16.mxu0 0
  %11384 = vmatpush2.bf16.msra.mxu0 %v11247
  %11385 = vmatprep.subr.bf16.mxu0 0
  %11386 = vmatpush2.bf16.msra.mxu0 %v11246
  %11387 = vmatprep.subr.bf16.mxu0 0
  %11388 = vmatpush2.bf16.msra.mxu0 %v11245
  %11389 = vmatprep.subr.bf16.mxu0 0
  %11390 = vmatpush2.bf16.msra.mxu0 %v11244
  %11391 = vmatprep.mubr.bf16.mxu0 %v11261
  %11392 = vmatmul.mubr.bf16.gmra.mxu0 %v10561
  %v11393 = vpop.f32.mrf.mxu0
  %v11394 = vadd.f32 0.0, %v11393
  %v11395 = vpop.f32.mrf.mxu0
  %v11396 = vpop.f32.mrf.mxu0
  %v11397 = vadd.f32 0.0, %v11396
  %v11398 = vpop.f32.mrf.mxu0
  %11399 = vmatprep.mubr.bf16.mxu0 %v11264
  %11400 = vmatmul.mubr.bf16.gmra.mxu0 %v10587
  %v11401 = vpop.f32.mrf.mxu0
  %v11402 = vadd.f32 0.0, %v11401
  %v11403 = vpop.f32.mrf.mxu0
  %v11404 = vpop.f32.mrf.mxu0
  %v11405 = vadd.f32 0.0, %v11404
  %v11406 = vpop.f32.mrf.mxu0
  %11407 = vmatprep.mubr.bf16.mxu0 %v11267
  %11408 = vmatmul.mubr.bf16.gmra.mxu0 %v10605
  %v11409 = vpop.f32.mrf.mxu0
  %v11410 = vadd.f32 0.0, %v11409
  %v11411 = vpop.f32.mrf.mxu0
  %v11412 = vpop.f32.mrf.mxu0
  %v11413 = vadd.f32 0.0, %v11412
  %v11414 = vpop.f32.mrf.mxu0
  %11415 = vmatprep.mubr.bf16.mxu0 %v11270
  %11416 = vmatmul.mubr.bf16.gmra.mxu0 %v10623
  %v11417 = vpop.f32.mrf.mxu0
  %v11418 = vadd.f32 0.0, %v11417
  %v11419 = vpop.f32.mrf.mxu0
  %v11420 = vpop.f32.mrf.mxu0
  %v11421 = vadd.f32 0.0, %v11420
  %v11422 = vpop.f32.mrf.mxu0
  %11423 = vmatprep.mubr.bf16.mxu0 %v11273
  %11424 = vmatmul.mubr.bf16.gmra.mxu0 %v10641
  %v11425 = vpop.f32.mrf.mxu0
  %v11426 = vadd.f32 0.0, %v11425
  %v11427 = vpop.f32.mrf.mxu0
  %v11428 = vpop.f32.mrf.mxu0
  %v11429 = vadd.f32 0.0, %v11428
  %v11430 = vpop.f32.mrf.mxu0
  %11431 = vmatprep.mubr.bf16.mxu0 %v11276
  %11432 = vmatmul.mubr.bf16.gmra.mxu0 %v10659
  %v11433 = vpop.f32.mrf.mxu0
  %v11434 = vadd.f32 0.0, %v11433
  %v11435 = vpop.f32.mrf.mxu0
  %v11436 = vpop.f32.mrf.mxu0
  %v11437 = vadd.f32 0.0, %v11436
  %v11438 = vpop.f32.mrf.mxu0
  %11439 = vmatprep.mubr.bf16.mxu0 %v11279
  %11440 = vmatmul.mubr.bf16.gmra.mxu0 %v10677
  %v11441 = vpop.f32.mrf.mxu0
  %v11442 = vadd.f32 0.0, %v11441
  %v11443 = vpop.f32.mrf.mxu0
  %v11444 = vpop.f32.mrf.mxu0
  %v11445 = vadd.f32 0.0, %v11444
  %v11446 = vpop.f32.mrf.mxu0
  %11447 = vmatprep.mubr.bf16.mxu0 %v11282
  %11448 = vmatmul.mubr.bf16.gmra.mxu0 %v10695
  %v11449 = vpop.f32.mrf.mxu0
  %v11450 = vadd.f32 0.0, %v11449
  %v11451 = vpop.f32.mrf.mxu0
  %v11452 = vpop.f32.mrf.mxu0
  %v11453 = vadd.f32 0.0, %v11452
  %v11454 = vpop.f32.mrf.mxu0
  %11455 = vmatprep.mubr.bf16.mxu0 %v11285
  %11456 = vmatmul.mubr.bf16.gmra.mxu0 %v10713
  %v11457 = vpop.f32.mrf.mxu0
  %v11458 = vadd.f32 0.0, %v11457
  %v11459 = vpop.f32.mrf.mxu0
  %v11460 = vpop.f32.mrf.mxu0
  %v11461 = vadd.f32 0.0, %v11460
  %v11462 = vpop.f32.mrf.mxu0
  %11463 = vmatprep.mubr.bf16.mxu0 %v11288
  %11464 = vmatmul.mubr.bf16.gmra.mxu0 %v10731
  %v11465 = vpop.f32.mrf.mxu0
  %v11466 = vadd.f32 0.0, %v11465
  %v11467 = vpop.f32.mrf.mxu0
  %v11468 = vpop.f32.mrf.mxu0
  %v11469 = vadd.f32 0.0, %v11468
  %v11470 = vpop.f32.mrf.mxu0
  %11471 = vmatprep.mubr.bf16.mxu0 %v11291
  %11472 = vmatmul.mubr.bf16.gmra.mxu0 %v10749
  %v11473 = vpop.f32.mrf.mxu0
  %v11474 = vadd.f32 0.0, %v11473
  %v11475 = vpop.f32.mrf.mxu0
  %v11476 = vpop.f32.mrf.mxu0
  %v11477 = vadd.f32 0.0, %v11476
  %v11478 = vpop.f32.mrf.mxu0
  %11479 = vmatprep.mubr.bf16.mxu0 %v11294
  %11480 = vmatmul.mubr.bf16.gmra.mxu0 %v10767
  %v11481 = vpop.f32.mrf.mxu0
  %v11482 = vadd.f32 0.0, %v11481
  %v11483 = vpop.f32.mrf.mxu0
  %v11484 = vpop.f32.mrf.mxu0
  %v11485 = vadd.f32 0.0, %v11484
  %v11486 = vpop.f32.mrf.mxu0
  %11487 = vmatprep.mubr.bf16.mxu0 %v11297
  %11488 = vmatmul.mubr.bf16.gmra.mxu0 %v10785
  %v11489 = vpop.f32.mrf.mxu0
  %v11490 = vadd.f32 0.0, %v11489
  %v11491 = vpop.f32.mrf.mxu0
  %v11492 = vpop.f32.mrf.mxu0
  %v11493 = vadd.f32 0.0, %v11492
  %v11494 = vpop.f32.mrf.mxu0
  %11495 = vmatprep.mubr.bf16.mxu0 %v11300
  %11496 = vmatmul.mubr.bf16.gmra.mxu0 %v10803
  %v11497 = vpop.f32.mrf.mxu0
  %v11498 = vadd.f32 0.0, %v11497
  %v11499 = vpop.f32.mrf.mxu0
  %v11500 = vpop.f32.mrf.mxu0
  %v11501 = vadd.f32 0.0, %v11500
  %v11502 = vpop.f32.mrf.mxu0
  %11503 = vmatprep.mubr.bf16.mxu0 %v11303
  %11504 = vmatmul.mubr.bf16.gmra.mxu0 %v10821
  %v11505 = vpop.f32.mrf.mxu0
  %v11506 = vadd.f32 0.0, %v11505
  %v11507 = vpop.f32.mrf.mxu0
  %v11508 = vpop.f32.mrf.mxu0
  %v11509 = vadd.f32 0.0, %v11508
  %v11510 = vpop.f32.mrf.mxu0
  %11511 = vmatprep.mubr.bf16.mxu0 %v11306
  %11512 = vmatmul.mubr.bf16.gmra.mxu0 %v10839
  %v11513 = vpop.f32.mrf.mxu0
  %v11514 = vadd.f32 0.0, %v11513
  %v11515 = vpop.f32.mrf.mxu0
  %v11516 = vpop.f32.mrf.mxu0
  %v11517 = vadd.f32 0.0, %v11516
  %v11518 = vpop.f32.mrf.mxu0
  %11519 = vmatprep.mubr.bf16.mxu0 %v11309
  %11520 = vmatmul.mubr.bf16.gmra.mxu0 %v10857
  %v11521 = vpop.f32.mrf.mxu0
  %v11522 = vadd.f32 0.0, %v11521
  %v11523 = vpop.f32.mrf.mxu0
  %v11524 = vpop.f32.mrf.mxu0
  %v11525 = vadd.f32 0.0, %v11524
  %v11526 = vpop.f32.mrf.mxu0
  %11527 = vmatprep.mubr.bf16.mxu0 %v11312
  %11528 = vmatmul.mubr.bf16.gmra.mxu0 %v10875
  %v11529 = vpop.f32.mrf.mxu0
  %v11530 = vadd.f32 0.0, %v11529
  %v11531 = vpop.f32.mrf.mxu0
  %v11532 = vpop.f32.mrf.mxu0
  %v11533 = vadd.f32 0.0, %v11532
  %v11534 = vpop.f32.mrf.mxu0
  %11535 = vmatprep.mubr.bf16.mxu0 %v11315
  %11536 = vmatmul.mubr.bf16.gmra.mxu0 %v10893
  %v11537 = vpop.f32.mrf.mxu0
  %v11538 = vadd.f32 0.0, %v11537
  %v11539 = vpop.f32.mrf.mxu0
  %v11540 = vpop.f32.mrf.mxu0
  %v11541 = vadd.f32 0.0, %v11540
  %v11542 = vpop.f32.mrf.mxu0
  %11543 = vmatprep.mubr.bf16.mxu0 %v11318
  %11544 = vmatmul.mubr.bf16.gmra.mxu0 %v10911
  %v11545 = vpop.f32.mrf.mxu0
  %v11546 = vadd.f32 0.0, %v11545
  %v11547 = vpop.f32.mrf.mxu0
  %v11548 = vpop.f32.mrf.mxu0
  %v11549 = vadd.f32 0.0, %v11548
  %v11550 = vpop.f32.mrf.mxu0
  %11551 = vmatprep.mubr.bf16.mxu0 %v11321
  %11552 = vmatmul.mubr.bf16.gmra.mxu0 %v10929
  %v11553 = vpop.f32.mrf.mxu0
  %v11554 = vadd.f32 0.0, %v11553
  %v11555 = vpop.f32.mrf.mxu0
  %v11556 = vpop.f32.mrf.mxu0
  %v11557 = vadd.f32 0.0, %v11556
  %v11558 = vpop.f32.mrf.mxu0
  %11559 = vmatprep.mubr.bf16.mxu0 %v11324
  %11560 = vmatmul.mubr.bf16.gmra.mxu0 %v10947
  %v11561 = vpop.f32.mrf.mxu0
  %v11562 = vadd.f32 0.0, %v11561
  %v11563 = vpop.f32.mrf.mxu0
  %v11564 = vpop.f32.mrf.mxu0
  %v11565 = vadd.f32 0.0, %v11564
  %v11566 = vpop.f32.mrf.mxu0
  %11567 = vmatprep.mubr.bf16.mxu0 %v11327
  %11568 = vmatmul.mubr.bf16.gmra.mxu0 %v10965
  %v11569 = vpop.f32.mrf.mxu0
  %v11570 = vadd.f32 0.0, %v11569
  %v11571 = vpop.f32.mrf.mxu0
  %v11572 = vpop.f32.mrf.mxu0
  %v11573 = vadd.f32 0.0, %v11572
  %v11574 = vpop.f32.mrf.mxu0
  %11575 = vmatprep.mubr.bf16.mxu0 %v11330
  %11576 = vmatmul.mubr.bf16.gmra.mxu0 %v10983
  %v11577 = vpop.f32.mrf.mxu0
  %v11578 = vadd.f32 0.0, %v11577
  %v11579 = vpop.f32.mrf.mxu0
  %v11580 = vpop.f32.mrf.mxu0
  %v11581 = vadd.f32 0.0, %v11580
  %v11582 = vpop.f32.mrf.mxu0
  %11583 = vmatprep.mubr.bf16.mxu0 %v11333
  %11584 = vmatmul.mubr.bf16.gmra.mxu0 %v11001
  %v11585 = vpop.f32.mrf.mxu0
  %v11586 = vadd.f32 0.0, %v11585
  %v11587 = vpop.f32.mrf.mxu0
  %v11588 = vpop.f32.mrf.mxu0
  %v11589 = vadd.f32 0.0, %v11588
  %v11590 = vpop.f32.mrf.mxu0
  %11591 = vmatprep.mubr.bf16.mxu0 %v11336
  %11592 = vmatmul.mubr.bf16.gmra.mxu0 %v11019
  %v11593 = vpop.f32.mrf.mxu0
  %v11594 = vadd.f32 0.0, %v11593
  %v11595 = vpop.f32.mrf.mxu0
  %v11596 = vpop.f32.mrf.mxu0
  %v11597 = vadd.f32 0.0, %v11596
  %v11598 = vpop.f32.mrf.mxu0
  %11599 = vmatprep.mubr.bf16.mxu0 %v11339
  %11600 = vmatmul.mubr.bf16.gmra.mxu0 %v11037
  %v11601 = vpop.f32.mrf.mxu0
  %v11602 = vadd.f32 0.0, %v11601
  %v11603 = vpop.f32.mrf.mxu0
  %v11604 = vpop.f32.mrf.mxu0
  %v11605 = vadd.f32 0.0, %v11604
  %v11606 = vpop.f32.mrf.mxu0
  %11607 = vmatprep.mubr.bf16.mxu0 %v11342
  %11608 = vmatmul.mubr.bf16.gmra.mxu0 %v11055
  %v11609 = vpop.f32.mrf.mxu0
  %v11610 = vadd.f32 0.0, %v11609
  %v11611 = vpop.f32.mrf.mxu0
  %v11612 = vpop.f32.mrf.mxu0
  %v11613 = vadd.f32 0.0, %v11612
  %v11614 = vpop.f32.mrf.mxu0
  %11615 = vmatprep.mubr.bf16.mxu0 %v11345
  %11616 = vmatmul.mubr.bf16.gmra.mxu0 %v11073
  %v11617 = vpop.f32.mrf.mxu0
  %v11618 = vadd.f32 0.0, %v11617
  %v11619 = vpop.f32.mrf.mxu0
  %v11620 = vpop.f32.mrf.mxu0
  %v11621 = vadd.f32 0.0, %v11620
  %v11622 = vpop.f32.mrf.mxu0
  %11623 = vmatprep.mubr.bf16.mxu0 %v11348
  %11624 = vmatmul.mubr.bf16.gmra.mxu0 %v11091
  %v11625 = vpop.f32.mrf.mxu0
  %v11626 = vadd.f32 0.0, %v11625
  %v11627 = vpop.f32.mrf.mxu0
  %v11628 = vpop.f32.mrf.mxu0
  %v11629 = vadd.f32 0.0, %v11628
  %v11630 = vpop.f32.mrf.mxu0
  %11631 = vmatprep.mubr.bf16.mxu0 %v11351
  %11632 = vmatmul.mubr.bf16.gmra.mxu0 %v11109
  %v11633 = vpop.f32.mrf.mxu0
  %v11634 = vadd.f32 0.0, %v11633
  %v11635 = vpop.f32.mrf.mxu0
  %v11636 = vpop.f32.mrf.mxu0
  %v11637 = vadd.f32 0.0, %v11636
  %v11638 = vpop.f32.mrf.mxu0
  %11639 = vmatprep.mubr.bf16.mxu0 %v11354
  %11640 = vmatmul.mubr.bf16.gmra.mxu0 %v11127
  %v11641 = vpop.f32.mrf.mxu0
  %v11642 = vadd.f32 0.0, %v11641
  %v11643 = vpop.f32.mrf.mxu0
  %v11644 = vpop.f32.mrf.mxu0
  %v11645 = vadd.f32 0.0, %v11644
  %v11646 = vpop.f32.mrf.mxu0
  %11647 = vmatprep.mubr.bf16.mxu0 %v11357
  %11648 = vmatmul.mubr.bf16.gmra.mxu0 %v11145
  %v11649 = vpop.f32.mrf.mxu0
  %v11650 = vadd.f32 0.0, %v11649
  %v11651 = vpop.f32.mrf.mxu0
  %v11652 = vpop.f32.mrf.mxu0
  %v11653 = vadd.f32 0.0, %v11652
  %v11654 = vpop.f32.mrf.mxu0
  %11655 = vdwg.mxu0
  %v11656 = vadd.f32 %v10118, %v11394
  %v11657 = vadd.f32 %v10119, %v11397
  %v11658 = vadd.f32 %v10120, %v11402
  %v11659 = vadd.f32 %v10121, %v11405
  %v11660 = vadd.f32 %v10122, %v11410
  %v11661 = vadd.f32 %v10123, %v11413
  %v11662 = vadd.f32 %v10124, %v11418
  %v11663 = vadd.f32 %v10125, %v11421
  %v11664 = vadd.f32 %v10126, %v11426
  %v11665 = vadd.f32 %v10127, %v11429
  %v11666 = vadd.f32 %v10128, %v11434
  %v11667 = vadd.f32 %v10129, %v11437
  %v11668 = vadd.f32 %v10130, %v11442
  %v11669 = vadd.f32 %v10131, %v11445
  %v11670 = vadd.f32 %v10132, %v11450
  %v11671 = vadd.f32 %v10133, %v11453
  %v11672 = vadd.f32 %v10134, %v11458
  %v11673 = vadd.f32 %v10135, %v11461
  %v11674 = vadd.f32 %v10136, %v11466
  %v11675 = vadd.f32 %v10137, %v11469
  %v11676 = vadd.f32 %v10138, %v11474
  %v11677 = vadd.f32 %v10139, %v11477
  %v11678 = vadd.f32 %v10140, %v11482
  %v11679 = vadd.f32 %v10141, %v11485
  %v11680 = vadd.f32 %v10142, %v11490
  %v11681 = vadd.f32 %v10143, %v11493
  %v11682 = vadd.f32 %v10144, %v11498
  %v11683 = vadd.f32 %v10145, %v11501
  %v11684 = vadd.f32 %v10146, %v11506
  %v11685 = vadd.f32 %v10147, %v11509
  %v11686 = vadd.f32 %v10148, %v11514
  %v11687 = vadd.f32 %v10149, %v11517
  %v11688 = vadd.f32 %v10150, %v11522
  %v11689 = vadd.f32 %v10151, %v11525
  %v11690 = vadd.f32 %v10152, %v11530
  %v11691 = vadd.f32 %v10153, %v11533
  %v11692 = vadd.f32 %v10154, %v11538
  %v11693 = vadd.f32 %v10155, %v11541
  %v11694 = vadd.f32 %v10156, %v11546
  %v11695 = vadd.f32 %v10157, %v11549
  %v11696 = vadd.f32 %v10158, %v11554
  %v11697 = vadd.f32 %v10159, %v11557
  %v11698 = vadd.f32 %v10160, %v11562
  %v11699 = vadd.f32 %v10161, %v11565
  %v11700 = vadd.f32 %v10162, %v11570
  %v11701 = vadd.f32 %v10163, %v11573
  %v11702 = vadd.f32 %v10164, %v11578
  %v11703 = vadd.f32 %v10165, %v11581
  %v11704 = vadd.f32 %v10166, %v11586
  %v11705 = vadd.f32 %v10167, %v11589
  %v11706 = vadd.f32 %v10168, %v11594
  %v11707 = vadd.f32 %v10169, %v11597
  %v11708 = vadd.f32 %v10170, %v11602
  %v11709 = vadd.f32 %v10171, %v11605
  %v11710 = vadd.f32 %v10172, %v11610
  %v11711 = vadd.f32 %v10173, %v11613
  %v11712 = vadd.f32 %v10174, %v11618
  %v11713 = vadd.f32 %v10175, %v11621
  %v11714 = vadd.f32 %v10176, %v11626
  %v11715 = vadd.f32 %v10177, %v11629
  %v11716 = vadd.f32 %v10178, %v11634
  %v11717 = vadd.f32 %v10179, %v11637
  %v11718 = vadd.f32 %v10180, %v11642
  %v11719 = vadd.f32 %v10181, %v11645
  %v11720 = vadd.f32 %v10182, %v11650
  %v11721 = vadd.f32 %v10183, %v11653
  %11722 = vst.msk [vmem:[#allocation2 + $0x20] sm:$0xff] %vm24, %v11656
  %11723 = vst.msk [vmem:[#allocation2 + $0x28] sm:$0xff] %vm24, %v11657
  %11724 = vst.msk [vmem:[#allocation2 + $0x30] sm:$0xff] %vm24, %v11658
  %11725 = vst.msk [vmem:[#allocation2 + $0x38] sm:$0xff] %vm24, %v11659
  %11726 = vst.msk [vmem:[#allocation2 + $0x40] sm:$0xff] %vm24, %v11660
  %11727 = vst.msk [vmem:[#allocation2 + $0x48] sm:$0xff] %vm24, %v11661
  %11728 = vst.msk [vmem:[#allocation2 + $0x50] sm:$0xff] %vm24, %v11662
  %11729 = vst.msk [vmem:[#allocation2 + $0x58] sm:$0xff] %vm24, %v11663
  %11730 = vst.msk [vmem:[#allocation2 + $0x60] sm:$0xff] %vm24, %v11664
  %11731 = vst.msk [vmem:[#allocation2 + $0x68] sm:$0xff] %vm24, %v11665
  %11732 = vst.msk [vmem:[#allocation2 + $0x70] sm:$0xff] %vm24, %v11666
  %11733 = vst.msk [vmem:[#allocation2 + $0x78] sm:$0xff] %vm24, %v11667
  %11734 = vst.msk [vmem:[#allocation2 + $0x80] sm:$0xff] %vm24, %v11668
  %11735 = vst.msk [vmem:[#allocation2 + $0x88] sm:$0xff] %vm24, %v11669
  %11736 = vst.msk [vmem:[#allocation2 + $0x90] sm:$0xff] %vm24, %v11670
  %11737 = vst.msk [vmem:[#allocation2 + $0x98] sm:$0xff] %vm24, %v11671
  %11738 = vst.msk [vmem:[#allocation2 + $0xa0] sm:$0xff] %vm24, %v11672
  %11739 = vst.msk [vmem:[#allocation2 + $0xa8] sm:$0xff] %vm24, %v11673
  %11740 = vst.msk [vmem:[#allocation2 + $0xb0] sm:$0xff] %vm24, %v11674
  %11741 = vst.msk [vmem:[#allocation2 + $0xb8] sm:$0xff] %vm24, %v11675
  %11742 = vst.msk [vmem:[#allocation2 + $0xc0] sm:$0xff] %vm24, %v11676
  %11743 = vst.msk [vmem:[#allocation2 + $0xc8] sm:$0xff] %vm24, %v11677
  %11744 = vst.msk [vmem:[#allocation2 + $0xd0] sm:$0xff] %vm24, %v11678
  %11745 = vst.msk [vmem:[#allocation2 + $0xd8] sm:$0xff] %vm24, %v11679
  %11746 = vst.msk [vmem:[#allocation2 + $0xe0] sm:$0xff] %vm24, %v11680
  %11747 = vst.msk [vmem:[#allocation2 + $0xe8] sm:$0xff] %vm24, %v11681
  %11748 = vst.msk [vmem:[#allocation2 + $0xf0] sm:$0xff] %vm24, %v11682
  %11749 = vst.msk [vmem:[#allocation2 + $0xf8] sm:$0xff] %vm24, %v11683
  %11750 = vst.msk [vmem:[#allocation2 + $0x100] sm:$0xff] %vm24, %v11684
  %11751 = vst.msk [vmem:[#allocation2 + $0x108] sm:$0xff] %vm24, %v11685
  %11752 = vst.msk [vmem:[#allocation2 + $0x110] sm:$0xff] %vm24, %v11686
  %11753 = vst.msk [vmem:[#allocation2 + $0x118] sm:$0xff] %vm24, %v11687
  %11754 = vst.msk [vmem:[#allocation2 + $0x120] sm:$0xff] %vm24, %v11688
  %11755 = vst.msk [vmem:[#allocation2 + $0x128] sm:$0xff] %vm24, %v11689
  %11756 = vst.msk [vmem:[#allocation2 + $0x130] sm:$0xff] %vm24, %v11690
  %11757 = vst.msk [vmem:[#allocation2 + $0x138] sm:$0xff] %vm24, %v11691
  %11758 = vst.msk [vmem:[#allocation2 + $0x140] sm:$0xff] %vm24, %v11692
  %11759 = vst.msk [vmem:[#allocation2 + $0x148] sm:$0xff] %vm24, %v11693
  %11760 = vst.msk [vmem:[#allocation2 + $0x150] sm:$0xff] %vm24, %v11694
  %11761 = vst.msk [vmem:[#allocation2 + $0x158] sm:$0xff] %vm24, %v11695
  %11762 = vst.msk [vmem:[#allocation2 + $0x160] sm:$0xff] %vm24, %v11696
  %11763 = vst.msk [vmem:[#allocation2 + $0x168] sm:$0xff] %vm24, %v11697
  %11764 = vst.msk [vmem:[#allocation2 + $0x170] sm:$0xff] %vm24, %v11698
  %11765 = vst.msk [vmem:[#allocation2 + $0x178] sm:$0xff] %vm24, %v11699
  %11766 = vst.msk [vmem:[#allocation2 + $0x180] sm:$0xff] %vm24, %v11700
  %11767 = vst.msk [vmem:[#allocation2 + $0x188] sm:$0xff] %vm24, %v11701
  %11768 = vst.msk [vmem:[#allocation2 + $0x190] sm:$0xff] %vm24, %v11702
  %11769 = vst.msk [vmem:[#allocation2 + $0x198] sm:$0xff] %vm24, %v11703
  %11770 = vst.msk [vmem:[#allocation2 + $0x1a0] sm:$0xff] %vm24, %v11704
  %11771 = vst.msk [vmem:[#allocation2 + $0x1a8] sm:$0xff] %vm24, %v11705
  %11772 = vst.msk [vmem:[#allocation2 + $0x1b0] sm:$0xff] %vm24, %v11706
  %11773 = vst.msk [vmem:[#allocation2 + $0x1b8] sm:$0xff] %vm24, %v11707
  %11774 = vst.msk [vmem:[#allocation2 + $0x1c0] sm:$0xff] %vm24, %v11708
  %11775 = vst.msk [vmem:[#allocation2 + $0x1c8] sm:$0xff] %vm24, %v11709
  %11776 = vst.msk [vmem:[#allocation2 + $0x1d0] sm:$0xff] %vm24, %v11710
  %11777 = vst.msk [vmem:[#allocation2 + $0x1d8] sm:$0xff] %vm24, %v11711
  %11778 = vst.msk [vmem:[#allocation2 + $0x1e0] sm:$0xff] %vm24, %v11712
  %11779 = vst.msk [vmem:[#allocation2 + $0x1e8] sm:$0xff] %vm24, %v11713
  %11780 = vst.msk [vmem:[#allocation2 + $0x1f0] sm:$0xff] %vm24, %v11714
  %11781 = vst.msk [vmem:[#allocation2 + $0x1f8] sm:$0xff] %vm24, %v11715
  %11782 = vst.msk [vmem:[#allocation2 + $0x200] sm:$0xff] %vm24, %v11716
  %11783 = vst.msk [vmem:[#allocation2 + $0x208] sm:$0xff] %vm24, %v11717
  %11784 = vst.msk [vmem:[#allocation2 + $0x210] sm:$0xff] %vm24, %v11718
  %11785 = vst.msk [vmem:[#allocation2 + $0x218] sm:$0xff] %vm24, %v11719
  %11786 = vst.msk [vmem:[#allocation2 + $0x220] sm:$0xff] %vm24, %v11720
  %11787 = vst.msk [vmem:[#allocation2 + $0x228] sm:$0xff] %vm24, %v11721
  %v11788 = vld [vmem:[#allocation2 + $0x20] sm:$0xff]
  %v11789 = vld [vmem:[#allocation2 + $0x28] sm:$0xff]
  %v11790 = vld [vmem:[#allocation2 + $0x30] sm:$0xff]
  %v11791 = vld [vmem:[#allocation2 + $0x38] sm:$0xff]
  %v11792 = vld [vmem:[#allocation2 + $0x40] sm:$0xff]
  %v11793 = vld [vmem:[#allocation2 + $0x48] sm:$0xff]
  %v11794 = vld [vmem:[#allocation2 + $0x50] sm:$0xff]
  %v11795 = vld [vmem:[#allocation2 + $0x58] sm:$0xff]
  %v11796 = vld [vmem:[#allocation2 + $0x60] sm:$0xff]
  %v11797 = vld [vmem:[#allocation2 + $0x68] sm:$0xff]
  %v11798 = vld [vmem:[#allocation2 + $0x70] sm:$0xff]
  %v11799 = vld [vmem:[#allocation2 + $0x78] sm:$0xff]
  %v11800 = vld [vmem:[#allocation2 + $0x80] sm:$0xff]
  %v11801 = vld [vmem:[#allocation2 + $0x88] sm:$0xff]
  %v11802 = vld [vmem:[#allocation2 + $0x90] sm:$0xff]
  %v11803 = vld [vmem:[#allocation2 + $0x98] sm:$0xff]
  %v11804 = vld [vmem:[#allocation2 + $0xa0] sm:$0xff]
  %v11805 = vld [vmem:[#allocation2 + $0xa8] sm:$0xff]
  %v11806 = vld [vmem:[#allocation2 + $0xb0] sm:$0xff]
  %v11807 = vld [vmem:[#allocation2 + $0xb8] sm:$0xff]
  %v11808 = vld [vmem:[#allocation2 + $0xc0] sm:$0xff]
  %v11809 = vld [vmem:[#allocation2 + $0xc8] sm:$0xff]
  %v11810 = vld [vmem:[#allocation2 + $0xd0] sm:$0xff]
  %v11811 = vld [vmem:[#allocation2 + $0xd8] sm:$0xff]
  %v11812 = vld [vmem:[#allocation2 + $0xe0] sm:$0xff]
  %v11813 = vld [vmem:[#allocation2 + $0xe8] sm:$0xff]
  %v11814 = vld [vmem:[#allocation2 + $0xf0] sm:$0xff]
  %v11815 = vld [vmem:[#allocation2 + $0xf8] sm:$0xff]
  %v11816 = vld [vmem:[#allocation2 + $0x100] sm:$0xff]
  %v11817 = vld [vmem:[#allocation2 + $0x108] sm:$0xff]
  %v11818 = vld [vmem:[#allocation2 + $0x110] sm:$0xff]
  %v11819 = vld [vmem:[#allocation2 + $0x118] sm:$0xff]
  %v11820 = vld [vmem:[#allocation2 + $0x120] sm:$0xff]
  %v11821 = vld [vmem:[#allocation2 + $0x128] sm:$0xff]
  %v11822 = vld [vmem:[#allocation2 + $0x130] sm:$0xff]
  %v11823 = vld [vmem:[#allocation2 + $0x138] sm:$0xff]
  %v11824 = vld [vmem:[#allocation2 + $0x140] sm:$0xff]
  %v11825 = vld [vmem:[#allocation2 + $0x148] sm:$0xff]
  %v11826 = vld [vmem:[#allocation2 + $0x150] sm:$0xff]
  %v11827 = vld [vmem:[#allocation2 + $0x158] sm:$0xff]
  %v11828 = vld [vmem:[#allocation2 + $0x160] sm:$0xff]
  %v11829 = vld [vmem:[#allocation2 + $0x168] sm:$0xff]
  %v11830 = vld [vmem:[#allocation2 + $0x170] sm:$0xff]
  %v11831 = vld [vmem:[#allocation2 + $0x178] sm:$0xff]
  %v11832 = vld [vmem:[#allocation2 + $0x180] sm:$0xff]
  %v11833 = vld [vmem:[#allocation2 + $0x188] sm:$0xff]
  %v11834 = vld [vmem:[#allocation2 + $0x190] sm:$0xff]
  %v11835 = vld [vmem:[#allocation2 + $0x198] sm:$0xff]
  %v11836 = vld [vmem:[#allocation2 + $0x1a0] sm:$0xff]
  %v11837 = vld [vmem:[#allocation2 + $0x1a8] sm:$0xff]
  %v11838 = vld [vmem:[#allocation2 + $0x1b0] sm:$0xff]
  %v11839 = vld [vmem:[#allocation2 + $0x1b8] sm:$0xff]
  %v11840 = vld [vmem:[#allocation2 + $0x1c0] sm:$0xff]
  %v11841 = vld [vmem:[#allocation2 + $0x1c8] sm:$0xff]
  %v11842 = vld [vmem:[#allocation2 + $0x1d0] sm:$0xff]
  %v11843 = vld [vmem:[#allocation2 + $0x1d8] sm:$0xff]
  %v11844 = vld [vmem:[#allocation2 + $0x1e0] sm:$0xff]
  %v11845 = vld [vmem:[#allocation2 + $0x1e8] sm:$0xff]
  %v11846 = vld [vmem:[#allocation2 + $0x1f0] sm:$0xff]
  %v11847 = vld [vmem:[#allocation2 + $0x1f8] sm:$0xff]
  %v11848 = vld [vmem:[#allocation2 + $0x200] sm:$0xff]
  %v11849 = vld [vmem:[#allocation2 + $0x208] sm:$0xff]
  %v11850 = vld [vmem:[#allocation2 + $0x210] sm:$0xff]
  %v11851 = vld [vmem:[#allocation2 + $0x218] sm:$0xff]
  %v11852 = vld [vmem:[#allocation2 + $0x220] sm:$0xff]
  %v11853 = vld [vmem:[#allocation2 + $0x228] sm:$0xff]
  %v11854 = vld [vmem:[#allocation3 + $0x28] sm:$0x88]
  %v11855 = vld [vmem:[#allocation3 + $0x30] sm:$0xff]
  %v11856 = vld [vmem:[#allocation3 + $0x38] sm:$0xff]
  %v11857 = vld [vmem:[#allocation3 + $0x40] sm:$0xff]
  %v11858 = vld [vmem:[#allocation3 + $0x48] sm:$0xff]
  %v11859 = vld [vmem:[#allocation3 + $0x50] sm:$0xff]
  %v11860 = vld [vmem:[#allocation3 + $0x58] sm:$0xff]
  %v11861 = vld [vmem:[#allocation3 + $0x60] sm:$0xff]
  %v11862 = vld [vmem:[#allocation3 + $0x68] sm:$0xff]
  %v11863 = vld [vmem:[#allocation3 + $0x70] sm:$0xff]
  %v11864 = vld [vmem:[#allocation3 + $0x78] sm:$0xff]
  %v11865 = vld [vmem:[#allocation3 + $0x80] sm:$0xff]
  %v11866 = vld [vmem:[#allocation3 + $0x88] sm:$0xff]
  %v11867 = vld [vmem:[#allocation3 + $0x90] sm:$0xff]
  %v11868 = vld [vmem:[#allocation3 + $0x98] sm:$0xff]
  %v11869 = vld [vmem:[#allocation3 + $0xa0] sm:$0xff]
  %v11870 = vld [vmem:[#allocation3 + $0xa8] sm:$0xff]
  %v11871 = vld [vmem:[#allocation3 + $0xb0] sm:$0xff]
  %v11872 = vld [vmem:[#allocation3 + $0xb8] sm:$0xff]
  %v11873 = vld [vmem:[#allocation3 + $0xc0] sm:$0xff]
  %v11874 = vld [vmem:[#allocation3 + $0xc8] sm:$0xff]
  %v11875 = vld [vmem:[#allocation3 + $0xd0] sm:$0xff]
  %v11876 = vld [vmem:[#allocation3 + $0xd8] sm:$0xff]
  %v11877 = vld [vmem:[#allocation3 + $0xe0] sm:$0xff]
  %v11878 = vld [vmem:[#allocation3 + $0xe8] sm:$0xff]
  %v11879 = vld [vmem:[#allocation3 + $0xf0] sm:$0xff]
  %v11880 = vld [vmem:[#allocation3 + $0xf8] sm:$0xff]
  %v11881 = vld [vmem:[#allocation3 + $0x100] sm:$0xff]
  %v11882 = vld [vmem:[#allocation3 + $0x108] sm:$0xff]
  %v11883 = vld [vmem:[#allocation3 + $0x110] sm:$0xff]
  %v11884 = vld [vmem:[#allocation3 + $0x118] sm:$0xff]
  %v11885 = vld [vmem:[#allocation3 + $0x120] sm:$0xff]
  %v11886 = vld [vmem:[#allocation3 + $0x128] sm:$0xff]
  %v11887 = vld [vmem:[#allocation3 + $0x130] sm:$0xff]
  %v11888 = vld [vmem:[#allocation3 + $0x138] sm:$0xff]
  %v11889 = vld [vmem:[#allocation3 + $0x140] sm:$0xff]
  %v11890 = vld [vmem:[#allocation3 + $0x148] sm:$0xff]
  %v11891 = vld [vmem:[#allocation3 + $0x150] sm:$0xff]
  %v11892 = vld [vmem:[#allocation3 + $0x158] sm:$0xff]
  %v11893 = vld [vmem:[#allocation3 + $0x160] sm:$0xff]
  %v11894 = vld [vmem:[#allocation3 + $0x168] sm:$0xff]
  %v11895 = vld [vmem:[#allocation3 + $0x170] sm:$0xff]
  %v11896 = vld [vmem:[#allocation3 + $0x178] sm:$0xff]
  %v11897 = vld [vmem:[#allocation3 + $0x180] sm:$0xff]
  %v11898 = vld [vmem:[#allocation3 + $0x188] sm:$0xff]
  %v11899 = vld [vmem:[#allocation3 + $0x190] sm:$0xff]
  %v11900 = vld [vmem:[#allocation3 + $0x198] sm:$0xff]
  %v11901 = vld [vmem:[#allocation3 + $0x1a0] sm:$0xff]
  %v11902 = vld [vmem:[#allocation3 + $0x1a8] sm:$0xff]
  %v11903 = vld [vmem:[#allocation3 + $0x1b0] sm:$0xff]
  %v11904 = vld [vmem:[#allocation3 + $0x1b8] sm:$0xff]
  %v11905 = vld [vmem:[#allocation3 + $0x1c0] sm:$0xff]
  %v11906 = vld [vmem:[#allocation3 + $0x1c8] sm:$0xff]
  %v11907 = vld [vmem:[#allocation3 + $0x1d0] sm:$0xff]
  %v11908 = vld [vmem:[#allocation3 + $0x1d8] sm:$0xff]
  %v11909 = vld [vmem:[#allocation3 + $0x1e0] sm:$0xff]
  %v11910 = vld [vmem:[#allocation3 + $0x1e8] sm:$0xff]
  %v11911 = vld [vmem:[#allocation3 + $0x1f0] sm:$0xff]
  %v11912 = vld [vmem:[#allocation3 + $0x1f8] sm:$0xff]
  %v11913 = vld [vmem:[#allocation3 + $0x200] sm:$0xff]
  %v11914 = vld [vmem:[#allocation3 + $0x208] sm:$0xff]
  %v11915 = vld [vmem:[#allocation3 + $0x210] sm:$0xff]
  %v11916 = vld [vmem:[#allocation3 + $0x218] sm:$0xff]
  %v11917 = vld [vmem:[#allocation3 + $0x220] sm:$0xff]
  %v11918 = vld [vmem:[#allocation3 + $0x228] sm:$0xff]
  %v11919 = vld [vmem:[#allocation3 + $0x230] sm:$0xff]
  %v11920 = vld [vmem:[#allocation3 + $0x238] sm:$0xff]
  %s11921 = scalar_lea.vmem %s2, 192
  %v11922 = vld [vmem:[%s11921] sm:$0xf]
  %v11923 = vld [vmem:[%s11921 + $0x4] sm:$0xf]
  %v11924 = vld [vmem:[%s11921 + $0x8] sm:$0xf]
  %v11925 = vld [vmem:[%s11921 + $0xc] sm:$0xf]
  %v11926 = vld [vmem:[%s11921 + $0x10] sm:$0xf]
  %v11927 = vld [vmem:[%s11921 + $0x14] sm:$0xf]
  %v11928 = vld [vmem:[%s11921 + $0x18] sm:$0xf]
  %v11929 = vld [vmem:[%s11921 + $0x1c] sm:$0xf]
  %v11930 = vld [vmem:[%s11921 + $0x20] sm:$0xf]
  %v11931 = vld [vmem:[%s11921 + $0x24] sm:$0xf]
  %v11932 = vld [vmem:[%s11921 + $0x28] sm:$0xf]
  %v11933 = vld [vmem:[%s11921 + $0x2c] sm:$0xf]
  %v11934 = vld [vmem:[%s11921 + $0x30] sm:$0xf]
  %v11935 = vld [vmem:[%s11921 + $0x34] sm:$0xf]
  %v11936 = vld [vmem:[%s11921 + $0x38] sm:$0xf]
  %v11937 = vld [vmem:[%s11921 + $0x3c] sm:$0xf]
  %v11938 = vld [vmem:[%s11921 + $0x40] sm:$0xf]
  %v11939 = vld [vmem:[%s11921 + $0x44] sm:$0xf]
  %v11940 = vld [vmem:[%s11921 + $0x48] sm:$0xf]
  %v11941 = vld [vmem:[%s11921 + $0x4c] sm:$0xf]
  %v11942 = vld [vmem:[%s11921 + $0x50] sm:$0xf]
  %v11943 = vld [vmem:[%s11921 + $0x54] sm:$0xf]
  %v11944 = vld [vmem:[%s11921 + $0x58] sm:$0xf]
  %v11945 = vld [vmem:[%s11921 + $0x5c] sm:$0xf]
  %v12013 = vunpack.c.l.b16 %v11854
  %v12014 = vunpack.c.h.b16 %v11854
  %v12015 = vunpack.c.l.b16 %v11855
  %v12016 = vunpack.c.h.b16 %v11855
  %v12017 = vunpack.c.l.b16 %v11856
  %v12018 = vunpack.c.h.b16 %v11856
  %v12019 = vunpack.c.l.b16 %v11857
  %v12020 = vunpack.c.h.b16 %v11857
  %v12021 = vunpack.c.l.b16 %v11858
  %v12022 = vunpack.c.h.b16 %v11858
  %v12023 = vunpack.c.l.b16 %v11859
  %v12024 = vunpack.c.h.b16 %v11859
  %v12025 = vunpack.c.l.b16 %v11860
  %v12026 = vunpack.c.h.b16 %v11860
  %v12027 = vunpack.c.l.b16 %v11861
  %v12028 = vunpack.c.h.b16 %v11861
  %v12029 = vunpack.c.l.b16 %v11862
  %v12030 = vunpack.c.h.b16 %v11862
  %v12031 = vunpack.c.l.b16 %v11863
  %v12032 = vunpack.c.h.b16 %v11863
  %v12033 = vunpack.c.l.b16 %v11864
  %v12034 = vunpack.c.h.b16 %v11864
  %v12035 = vunpack.c.l.b16 %v11865
  %v12036 = vunpack.c.h.b16 %v11865
  %v12037 = vunpack.c.l.b16 %v11866
  %v12038 = vunpack.c.h.b16 %v11866
  %v12039 = vunpack.c.l.b16 %v11867
  %v12040 = vunpack.c.h.b16 %v11867
  %v12041 = vunpack.c.l.b16 %v11868
  %v12042 = vunpack.c.h.b16 %v11868
  %v12043 = vunpack.c.l.b16 %v11869
  %v12044 = vunpack.c.h.b16 %v11869
  %v12045 = vunpack.c.l.b16 %v11870
  %v12046 = vunpack.c.h.b16 %v11870
  %v12047 = vunpack.c.l.b16 %v11871
  %v12048 = vunpack.c.h.b16 %v11871
  %v12049 = vunpack.c.l.b16 %v11872
  %v12050 = vunpack.c.h.b16 %v11872
  %v12051 = vunpack.c.l.b16 %v11873
  %v12052 = vunpack.c.h.b16 %v11873
  %v12053 = vunpack.c.l.b16 %v11874
  %v12054 = vunpack.c.h.b16 %v11874
  %v12055 = vunpack.c.l.b16 %v11875
  %v12056 = vunpack.c.h.b16 %v11875
  %v12057 = vunpack.c.l.b16 %v11876
  %v12058 = vunpack.c.h.b16 %v11876
  %v12059 = vunpack.c.l.b16 %v11877
  %v12060 = vunpack.c.h.b16 %v11877
  %v12061 = vunpack.c.l.b16 %v11878
  %v12062 = vunpack.c.h.b16 %v11878
  %v12063 = vunpack.c.l.b16 %v11879
  %v12064 = vunpack.c.h.b16 %v11879
  %v12065 = vunpack.c.l.b16 %v11880
  %v12066 = vunpack.c.h.b16 %v11880
  %v12067 = vunpack.c.l.b16 %v11881
  %v12068 = vunpack.c.h.b16 %v11881
  %v12069 = vunpack.c.l.b16 %v11882
  %v12070 = vunpack.c.h.b16 %v11882
  %v12071 = vunpack.c.l.b16 %v11883
  %v12072 = vunpack.c.h.b16 %v11883
  %v12073 = vunpack.c.l.b16 %v11884
  %v12074 = vunpack.c.h.b16 %v11884
  %v12075 = vunpack.c.l.b16 %v11885
  %v12076 = vunpack.c.h.b16 %v11885
  %v12077 = vunpack.c.l.b16 %v11886
  %v12078 = vunpack.c.h.b16 %v11886
  %v12079 = vunpack.c.l.b16 %v11887
  %v12080 = vunpack.c.h.b16 %v11887
  %v12081 = vunpack.c.l.b16 %v11888
  %v12082 = vunpack.c.h.b16 %v11888
  %v12083 = vunpack.c.l.b16 %v11889
  %v12084 = vunpack.c.h.b16 %v11889
  %v12085 = vunpack.c.l.b16 %v11890
  %v12086 = vunpack.c.h.b16 %v11890
  %v12087 = vunpack.c.l.b16 %v11891
  %v12088 = vunpack.c.h.b16 %v11891
  %v12089 = vunpack.c.l.b16 %v11892
  %v12090 = vunpack.c.h.b16 %v11892
  %v12091 = vunpack.c.l.b16 %v11893
  %v12092 = vunpack.c.h.b16 %v11893
  %v12093 = vunpack.c.l.b16 %v11894
  %v12094 = vunpack.c.h.b16 %v11894
  %v12095 = vunpack.c.l.b16 %v11895
  %v12096 = vunpack.c.h.b16 %v11895
  %v12097 = vunpack.c.l.b16 %v11896
  %v12098 = vunpack.c.h.b16 %v11896
  %v12099 = vunpack.c.l.b16 %v11897
  %v12100 = vunpack.c.h.b16 %v11897
  %v12101 = vunpack.c.l.b16 %v11898
  %v12102 = vunpack.c.h.b16 %v11898
  %v12103 = vunpack.c.l.b16 %v11899
  %v12104 = vunpack.c.h.b16 %v11899
  %v12105 = vunpack.c.l.b16 %v11900
  %v12106 = vunpack.c.h.b16 %v11900
  %v12107 = vunpack.c.l.b16 %v11901
  %v12108 = vunpack.c.h.b16 %v11901
  %v12109 = vunpack.c.l.b16 %v11902
  %v12110 = vunpack.c.h.b16 %v11902
  %v12111 = vunpack.c.l.b16 %v11903
  %v12112 = vunpack.c.h.b16 %v11903
  %v12113 = vunpack.c.l.b16 %v11904
  %v12114 = vunpack.c.h.b16 %v11904
  %v12115 = vunpack.c.l.b16 %v11905
  %v12116 = vunpack.c.h.b16 %v11905
  %v12117 = vunpack.c.l.b16 %v11906
  %v12118 = vunpack.c.h.b16 %v11906
  %v12119 = vunpack.c.l.b16 %v11907
  %v12120 = vunpack.c.h.b16 %v11907
  %v12121 = vunpack.c.l.b16 %v11908
  %v12122 = vunpack.c.h.b16 %v11908
  %v12123 = vunpack.c.l.b16 %v11909
  %v12124 = vunpack.c.h.b16 %v11909
  %v12125 = vunpack.c.l.b16 %v11910
  %v12126 = vunpack.c.h.b16 %v11910
  %v12127 = vunpack.c.l.b16 %v11911
  %v12128 = vunpack.c.h.b16 %v11911
  %v12129 = vunpack.c.l.b16 %v11912
  %v12130 = vunpack.c.h.b16 %v11912
  %v12131 = vunpack.c.l.b16 %v11913
  %v12132 = vunpack.c.h.b16 %v11913
  %v12133 = vunpack.c.l.b16 %v11914
  %v12134 = vunpack.c.h.b16 %v11914
  %v12135 = vunpack.c.l.b16 %v11915
  %v12136 = vunpack.c.h.b16 %v11915
  %v12137 = vunpack.c.l.b16 %v11916
  %v12138 = vunpack.c.h.b16 %v11916
  %v12139 = vunpack.c.l.b16 %v11917
  %v12140 = vunpack.c.h.b16 %v11917
  %v12141 = vunpack.c.l.b16 %v11918
  %v12142 = vunpack.c.h.b16 %v11918
  %v12143 = vunpack.c.l.b16 %v11919
  %v12144 = vunpack.c.h.b16 %v11919
  %v12145 = vunpack.c.l.b16 %v11920
  %v12146 = vunpack.c.h.b16 %v11920
  %v12147 = vpack.c.b16 %v12015, %v12013
  %v12148 = vpack.c.b16 %v12016, %v12014
  %v12149 = vpack.c.b16 %v12019, %v12017
  %v12150 = vpack.c.b16 %v12020, %v12018
  %v12151 = vpack.c.b16 %v12023, %v12021
  %v12152 = vpack.c.b16 %v12024, %v12022
  %v12153 = vpack.c.b16 %v12027, %v12025
  %v12154 = vpack.c.b16 %v12028, %v12026
  %v12155 = vpack.c.b16 %v12031, %v12029
  %v12156 = vpack.c.b16 %v12032, %v12030
  %v12157 = vpack.c.b16 %v12035, %v12033
  %v12158 = vpack.c.b16 %v12036, %v12034
  %v12159 = vpack.c.b16 %v12039, %v12037
  %v12160 = vpack.c.b16 %v12040, %v12038
  %v12161 = vpack.c.b16 %v12043, %v12041
  %v12162 = vpack.c.b16 %v12044, %v12042
  %v12163 = vpack.c.b16 %v12047, %v12045
  %v12164 = vpack.c.b16 %v12048, %v12046
  %v12165 = vpack.c.b16 %v12051, %v12049
  %v12166 = vpack.c.b16 %v12052, %v12050
  %v12167 = vpack.c.b16 %v12055, %v12053
  %v12168 = vpack.c.b16 %v12056, %v12054
  %v12169 = vpack.c.b16 %v12059, %v12057
  %v12170 = vpack.c.b16 %v12060, %v12058
  %v12171 = vpack.c.b16 %v12063, %v12061
  %v12172 = vpack.c.b16 %v12064, %v12062
  %v12173 = vpack.c.b16 %v12067, %v12065
  %v12174 = vpack.c.b16 %v12068, %v12066
  %v12175 = vpack.c.b16 %v12071, %v12069
  %v12176 = vpack.c.b16 %v12072, %v12070
  %v12177 = vpack.c.b16 %v12075, %v12073
  %v12178 = vpack.c.b16 %v12076, %v12074
  %v12179 = vpack.c.b16 %v12079, %v12077
  %v12180 = vpack.c.b16 %v12080, %v12078
  %v12181 = vpack.c.b16 %v12083, %v12081
  %v12182 = vpack.c.b16 %v12084, %v12082
  %v12183 = vpack.c.b16 %v12087, %v12085
  %v12184 = vpack.c.b16 %v12088, %v12086
  %v12185 = vpack.c.b16 %v12091, %v12089
  %v12186 = vpack.c.b16 %v12092, %v12090
  %v12187 = vpack.c.b16 %v12095, %v12093
  %v12188 = vpack.c.b16 %v12096, %v12094
  %v12189 = vpack.c.b16 %v12099, %v12097
  %v12190 = vpack.c.b16 %v12100, %v12098
  %v12191 = vpack.c.b16 %v12103, %v12101
  %v12192 = vpack.c.b16 %v12104, %v12102
  %v12193 = vpack.c.b16 %v12107, %v12105
  %v12194 = vpack.c.b16 %v12108, %v12106
  %v12195 = vpack.c.b16 %v12111, %v12109
  %v12196 = vpack.c.b16 %v12112, %v12110
  %v12197 = vpack.c.b16 %v12115, %v12113
  %v12198 = vpack.c.b16 %v12116, %v12114
  %v12199 = vpack.c.b16 %v12119, %v12117
  %v12200 = vpack.c.b16 %v12120, %v12118
  %v12201 = vpack.c.b16 %v12123, %v12121
  %v12202 = vpack.c.b16 %v12124, %v12122
  %v12203 = vpack.c.b16 %v12127, %v12125
  %v12204 = vpack.c.b16 %v12128, %v12126
  %v12205 = vpack.c.b16 %v12131, %v12129
  %v12206 = vpack.c.b16 %v12132, %v12130
  %v12207 = vpack.c.b16 %v12135, %v12133
  %v12208 = vpack.c.b16 %v12136, %v12134
  %v12209 = vpack.c.b16 %v12139, %v12137
  %v12210 = vpack.c.b16 %v12140, %v12138
  %v12211 = vpack.c.b16 %v12143, %v12141
  %v12212 = vpack.c.b16 %v12144, %v12142
  %v12213 = vpack.c.b16 %v12145, %v12145
  %v12214 = vpack.c.b16 %v12146, %v12146
  %v12216 = vshrl.u32 %v12147, 16
  %v12218 = vrot.slane %v12216, 3
  %v12219 = vshll.u32 %v12147, 16
  %v12221 = vrot.slane %v12219, 4
  %v12222 = vor.u32 %v12218, %v12221
  %v12224 = vshrl.u32 %v12149, 16
  %v12226 = vrot.slane %v12224, 3
  %v12227 = vshll.u32 %v12149, 16
  %v12229 = vrot.slane %v12227, 4
  %v12230 = vor.u32 %v12226, %v12229
  %v12231 = vsel %vm2260, %v12222, %v12230
  %v12233 = vshrl.u32 %v12148, 16
  %v12235 = vrot.slane %v12233, 3
  %v12236 = vshll.u32 %v12148, 16
  %v12238 = vrot.slane %v12236, 4
  %v12239 = vor.u32 %v12235, %v12238
  %v12241 = vshrl.u32 %v12150, 16
  %v12243 = vrot.slane %v12241, 3
  %v12244 = vshll.u32 %v12150, 16
  %v12246 = vrot.slane %v12244, 4
  %v12247 = vor.u32 %v12243, %v12246
  %v12248 = vsel %vm2260, %v12239, %v12247
  %v12250 = vshrl.u32 %v12151, 16
  %v12252 = vrot.slane %v12250, 3
  %v12253 = vshll.u32 %v12151, 16
  %v12255 = vrot.slane %v12253, 4
  %v12256 = vor.u32 %v12252, %v12255
  %v12257 = vsel %vm2260, %v12230, %v12256
  %v12259 = vshrl.u32 %v12152, 16
  %v12261 = vrot.slane %v12259, 3
  %v12262 = vshll.u32 %v12152, 16
  %v12264 = vrot.slane %v12262, 4
  %v12265 = vor.u32 %v12261, %v12264
  %v12266 = vsel %vm2260, %v12247, %v12265
  %v12268 = vshrl.u32 %v12153, 16
  %v12270 = vrot.slane %v12268, 3
  %v12271 = vshll.u32 %v12153, 16
  %v12273 = vrot.slane %v12271, 4
  %v12274 = vor.u32 %v12270, %v12273
  %v12275 = vsel %vm2260, %v12256, %v12274
  %v12277 = vshrl.u32 %v12154, 16
  %v12279 = vrot.slane %v12277, 3
  %v12280 = vshll.u32 %v12154, 16
  %v12282 = vrot.slane %v12280, 4
  %v12283 = vor.u32 %v12279, %v12282
  %v12284 = vsel %vm2260, %v12265, %v12283
  %v12286 = vshrl.u32 %v12155, 16
  %v12288 = vrot.slane %v12286, 3
  %v12289 = vshll.u32 %v12155, 16
  %v12291 = vrot.slane %v12289, 4
  %v12292 = vor.u32 %v12288, %v12291
  %v12293 = vsel %vm2260, %v12274, %v12292
  %v12295 = vshrl.u32 %v12156, 16
  %v12297 = vrot.slane %v12295, 3
  %v12298 = vshll.u32 %v12156, 16
  %v12300 = vrot.slane %v12298, 4
  %v12301 = vor.u32 %v12297, %v12300
  %v12302 = vsel %vm2260, %v12283, %v12301
  %v12304 = vshrl.u32 %v12157, 16
  %v12306 = vrot.slane %v12304, 3
  %v12307 = vshll.u32 %v12157, 16
  %v12309 = vrot.slane %v12307, 4
  %v12310 = vor.u32 %v12306, %v12309
  %v12311 = vsel %vm2260, %v12292, %v12310
  %v12313 = vshrl.u32 %v12158, 16
  %v12315 = vrot.slane %v12313, 3
  %v12316 = vshll.u32 %v12158, 16
  %v12318 = vrot.slane %v12316, 4
  %v12319 = vor.u32 %v12315, %v12318
  %v12320 = vsel %vm2260, %v12301, %v12319
  %v12322 = vshrl.u32 %v12159, 16
  %v12324 = vrot.slane %v12322, 3
  %v12325 = vshll.u32 %v12159, 16
  %v12327 = vrot.slane %v12325, 4
  %v12328 = vor.u32 %v12324, %v12327
  %v12329 = vsel %vm2260, %v12310, %v12328
  %v12331 = vshrl.u32 %v12160, 16
  %v12333 = vrot.slane %v12331, 3
  %v12334 = vshll.u32 %v12160, 16
  %v12336 = vrot.slane %v12334, 4
  %v12337 = vor.u32 %v12333, %v12336
  %v12338 = vsel %vm2260, %v12319, %v12337
  %v12340 = vshrl.u32 %v12161, 16
  %v12342 = vrot.slane %v12340, 3
  %v12343 = vshll.u32 %v12161, 16
  %v12345 = vrot.slane %v12343, 4
  %v12346 = vor.u32 %v12342, %v12345
  %v12347 = vsel %vm2260, %v12328, %v12346
  %v12349 = vshrl.u32 %v12162, 16
  %v12351 = vrot.slane %v12349, 3
  %v12352 = vshll.u32 %v12162, 16
  %v12354 = vrot.slane %v12352, 4
  %v12355 = vor.u32 %v12351, %v12354
  %v12356 = vsel %vm2260, %v12337, %v12355
  %v12358 = vshrl.u32 %v12163, 16
  %v12360 = vrot.slane %v12358, 3
  %v12361 = vshll.u32 %v12163, 16
  %v12363 = vrot.slane %v12361, 4
  %v12364 = vor.u32 %v12360, %v12363
  %v12365 = vsel %vm2260, %v12346, %v12364
  %v12367 = vshrl.u32 %v12164, 16
  %v12369 = vrot.slane %v12367, 3
  %v12370 = vshll.u32 %v12164, 16
  %v12372 = vrot.slane %v12370, 4
  %v12373 = vor.u32 %v12369, %v12372
  %v12374 = vsel %vm2260, %v12355, %v12373
  %v12376 = vshrl.u32 %v12165, 16
  %v12378 = vrot.slane %v12376, 3
  %v12379 = vshll.u32 %v12165, 16
  %v12381 = vrot.slane %v12379, 4
  %v12382 = vor.u32 %v12378, %v12381
  %v12383 = vsel %vm2260, %v12364, %v12382
  %v12385 = vshrl.u32 %v12166, 16
  %v12387 = vrot.slane %v12385, 3
  %v12388 = vshll.u32 %v12166, 16
  %v12390 = vrot.slane %v12388, 4
  %v12391 = vor.u32 %v12387, %v12390
  %v12392 = vsel %vm2260, %v12373, %v12391
  %v12394 = vshrl.u32 %v12167, 16
  %v12396 = vrot.slane %v12394, 3
  %v12397 = vshll.u32 %v12167, 16
  %v12399 = vrot.slane %v12397, 4
  %v12400 = vor.u32 %v12396, %v12399
  %v12401 = vsel %vm2260, %v12382, %v12400
  %v12403 = vshrl.u32 %v12168, 16
  %v12405 = vrot.slane %v12403, 3
  %v12406 = vshll.u32 %v12168, 16
  %v12408 = vrot.slane %v12406, 4
  %v12409 = vor.u32 %v12405, %v12408
  %v12410 = vsel %vm2260, %v12391, %v12409
  %v12412 = vshrl.u32 %v12169, 16
  %v12414 = vrot.slane %v12412, 3
  %v12415 = vshll.u32 %v12169, 16
  %v12417 = vrot.slane %v12415, 4
  %v12418 = vor.u32 %v12414, %v12417
  %v12419 = vsel %vm2260, %v12400, %v12418
  %v12421 = vshrl.u32 %v12170, 16
  %v12423 = vrot.slane %v12421, 3
  %v12424 = vshll.u32 %v12170, 16
  %v12426 = vrot.slane %v12424, 4
  %v12427 = vor.u32 %v12423, %v12426
  %v12428 = vsel %vm2260, %v12409, %v12427
  %v12430 = vshrl.u32 %v12171, 16
  %v12432 = vrot.slane %v12430, 3
  %v12433 = vshll.u32 %v12171, 16
  %v12435 = vrot.slane %v12433, 4
  %v12436 = vor.u32 %v12432, %v12435
  %v12437 = vsel %vm2260, %v12418, %v12436
  %v12439 = vshrl.u32 %v12172, 16
  %v12441 = vrot.slane %v12439, 3
  %v12442 = vshll.u32 %v12172, 16
  %v12444 = vrot.slane %v12442, 4
  %v12445 = vor.u32 %v12441, %v12444
  %v12446 = vsel %vm2260, %v12427, %v12445
  %v12448 = vshrl.u32 %v12173, 16
  %v12450 = vrot.slane %v12448, 3
  %v12451 = vshll.u32 %v12173, 16
  %v12453 = vrot.slane %v12451, 4
  %v12454 = vor.u32 %v12450, %v12453
  %v12455 = vsel %vm2260, %v12436, %v12454
  %v12457 = vshrl.u32 %v12174, 16
  %v12459 = vrot.slane %v12457, 3
  %v12460 = vshll.u32 %v12174, 16
  %v12462 = vrot.slane %v12460, 4
  %v12463 = vor.u32 %v12459, %v12462
  %v12464 = vsel %vm2260, %v12445, %v12463
  %v12466 = vshrl.u32 %v12175, 16
  %v12468 = vrot.slane %v12466, 3
  %v12469 = vshll.u32 %v12175, 16
  %v12471 = vrot.slane %v12469, 4
  %v12472 = vor.u32 %v12468, %v12471
  %v12473 = vsel %vm2260, %v12454, %v12472
  %v12475 = vshrl.u32 %v12176, 16
  %v12477 = vrot.slane %v12475, 3
  %v12478 = vshll.u32 %v12176, 16
  %v12480 = vrot.slane %v12478, 4
  %v12481 = vor.u32 %v12477, %v12480
  %v12482 = vsel %vm2260, %v12463, %v12481
  %v12484 = vshrl.u32 %v12177, 16
  %v12486 = vrot.slane %v12484, 3
  %v12487 = vshll.u32 %v12177, 16
  %v12489 = vrot.slane %v12487, 4
  %v12490 = vor.u32 %v12486, %v12489
  %v12491 = vsel %vm2260, %v12472, %v12490
  %v12493 = vshrl.u32 %v12178, 16
  %v12495 = vrot.slane %v12493, 3
  %v12496 = vshll.u32 %v12178, 16
  %v12498 = vrot.slane %v12496, 4
  %v12499 = vor.u32 %v12495, %v12498
  %v12500 = vsel %vm2260, %v12481, %v12499
  %v12502 = vshrl.u32 %v12179, 16
  %v12504 = vrot.slane %v12502, 3
  %v12505 = vshll.u32 %v12179, 16
  %v12507 = vrot.slane %v12505, 4
  %v12508 = vor.u32 %v12504, %v12507
  %v12509 = vsel %vm2260, %v12490, %v12508
  %v12511 = vshrl.u32 %v12180, 16
  %v12513 = vrot.slane %v12511, 3
  %v12514 = vshll.u32 %v12180, 16
  %v12516 = vrot.slane %v12514, 4
  %v12517 = vor.u32 %v12513, %v12516
  %v12518 = vsel %vm2260, %v12499, %v12517
  %v12520 = vshrl.u32 %v12181, 16
  %v12522 = vrot.slane %v12520, 3
  %v12523 = vshll.u32 %v12181, 16
  %v12525 = vrot.slane %v12523, 4
  %v12526 = vor.u32 %v12522, %v12525
  %v12527 = vsel %vm2260, %v12508, %v12526
  %v12529 = vshrl.u32 %v12182, 16
  %v12531 = vrot.slane %v12529, 3
  %v12532 = vshll.u32 %v12182, 16
  %v12534 = vrot.slane %v12532, 4
  %v12535 = vor.u32 %v12531, %v12534
  %v12536 = vsel %vm2260, %v12517, %v12535
  %v12538 = vshrl.u32 %v12183, 16
  %v12540 = vrot.slane %v12538, 3
  %v12541 = vshll.u32 %v12183, 16
  %v12543 = vrot.slane %v12541, 4
  %v12544 = vor.u32 %v12540, %v12543
  %v12545 = vsel %vm2260, %v12526, %v12544
  %v12547 = vshrl.u32 %v12184, 16
  %v12549 = vrot.slane %v12547, 3
  %v12550 = vshll.u32 %v12184, 16
  %v12552 = vrot.slane %v12550, 4
  %v12553 = vor.u32 %v12549, %v12552
  %v12554 = vsel %vm2260, %v12535, %v12553
  %v12556 = vshrl.u32 %v12185, 16
  %v12558 = vrot.slane %v12556, 3
  %v12559 = vshll.u32 %v12185, 16
  %v12561 = vrot.slane %v12559, 4
  %v12562 = vor.u32 %v12558, %v12561
  %v12563 = vsel %vm2260, %v12544, %v12562
  %v12565 = vshrl.u32 %v12186, 16
  %v12567 = vrot.slane %v12565, 3
  %v12568 = vshll.u32 %v12186, 16
  %v12570 = vrot.slane %v12568, 4
  %v12571 = vor.u32 %v12567, %v12570
  %v12572 = vsel %vm2260, %v12553, %v12571
  %v12574 = vshrl.u32 %v12187, 16
  %v12576 = vrot.slane %v12574, 3
  %v12577 = vshll.u32 %v12187, 16
  %v12579 = vrot.slane %v12577, 4
  %v12580 = vor.u32 %v12576, %v12579
  %v12581 = vsel %vm2260, %v12562, %v12580
  %v12583 = vshrl.u32 %v12188, 16
  %v12585 = vrot.slane %v12583, 3
  %v12586 = vshll.u32 %v12188, 16
  %v12588 = vrot.slane %v12586, 4
  %v12589 = vor.u32 %v12585, %v12588
  %v12590 = vsel %vm2260, %v12571, %v12589
  %v12592 = vshrl.u32 %v12189, 16
  %v12594 = vrot.slane %v12592, 3
  %v12595 = vshll.u32 %v12189, 16
  %v12597 = vrot.slane %v12595, 4
  %v12598 = vor.u32 %v12594, %v12597
  %v12599 = vsel %vm2260, %v12580, %v12598
  %v12601 = vshrl.u32 %v12190, 16
  %v12603 = vrot.slane %v12601, 3
  %v12604 = vshll.u32 %v12190, 16
  %v12606 = vrot.slane %v12604, 4
  %v12607 = vor.u32 %v12603, %v12606
  %v12608 = vsel %vm2260, %v12589, %v12607
  %v12610 = vshrl.u32 %v12191, 16
  %v12612 = vrot.slane %v12610, 3
  %v12613 = vshll.u32 %v12191, 16
  %v12615 = vrot.slane %v12613, 4
  %v12616 = vor.u32 %v12612, %v12615
  %v12617 = vsel %vm2260, %v12598, %v12616
  %v12619 = vshrl.u32 %v12192, 16
  %v12621 = vrot.slane %v12619, 3
  %v12622 = vshll.u32 %v12192, 16
  %v12624 = vrot.slane %v12622, 4
  %v12625 = vor.u32 %v12621, %v12624
  %v12626 = vsel %vm2260, %v12607, %v12625
  %v12628 = vshrl.u32 %v12193, 16
  %v12630 = vrot.slane %v12628, 3
  %v12631 = vshll.u32 %v12193, 16
  %v12633 = vrot.slane %v12631, 4
  %v12634 = vor.u32 %v12630, %v12633
  %v12635 = vsel %vm2260, %v12616, %v12634
  %v12637 = vshrl.u32 %v12194, 16
  %v12639 = vrot.slane %v12637, 3
  %v12640 = vshll.u32 %v12194, 16
  %v12642 = vrot.slane %v12640, 4
  %v12643 = vor.u32 %v12639, %v12642
  %v12644 = vsel %vm2260, %v12625, %v12643
  %v12646 = vshrl.u32 %v12195, 16
  %v12648 = vrot.slane %v12646, 3
  %v12649 = vshll.u32 %v12195, 16
  %v12651 = vrot.slane %v12649, 4
  %v12652 = vor.u32 %v12648, %v12651
  %v12653 = vsel %vm2260, %v12634, %v12652
  %v12655 = vshrl.u32 %v12196, 16
  %v12657 = vrot.slane %v12655, 3
  %v12658 = vshll.u32 %v12196, 16
  %v12660 = vrot.slane %v12658, 4
  %v12661 = vor.u32 %v12657, %v12660
  %v12662 = vsel %vm2260, %v12643, %v12661
  %v12664 = vshrl.u32 %v12197, 16
  %v12666 = vrot.slane %v12664, 3
  %v12667 = vshll.u32 %v12197, 16
  %v12669 = vrot.slane %v12667, 4
  %v12670 = vor.u32 %v12666, %v12669
  %v12671 = vsel %vm2260, %v12652, %v12670
  %v12673 = vshrl.u32 %v12198, 16
  %v12675 = vrot.slane %v12673, 3
  %v12676 = vshll.u32 %v12198, 16
  %v12678 = vrot.slane %v12676, 4
  %v12679 = vor.u32 %v12675, %v12678
  %v12680 = vsel %vm2260, %v12661, %v12679
  %v12682 = vshrl.u32 %v12199, 16
  %v12684 = vrot.slane %v12682, 3
  %v12685 = vshll.u32 %v12199, 16
  %v12687 = vrot.slane %v12685, 4
  %v12688 = vor.u32 %v12684, %v12687
  %v12689 = vsel %vm2260, %v12670, %v12688
  %v12691 = vshrl.u32 %v12200, 16
  %v12693 = vrot.slane %v12691, 3
  %v12694 = vshll.u32 %v12200, 16
  %v12696 = vrot.slane %v12694, 4
  %v12697 = vor.u32 %v12693, %v12696
  %v12698 = vsel %vm2260, %v12679, %v12697
  %v12700 = vshrl.u32 %v12201, 16
  %v12702 = vrot.slane %v12700, 3
  %v12703 = vshll.u32 %v12201, 16
  %v12705 = vrot.slane %v12703, 4
  %v12706 = vor.u32 %v12702, %v12705
  %v12707 = vsel %vm2260, %v12688, %v12706
  %v12709 = vshrl.u32 %v12202, 16
  %v12711 = vrot.slane %v12709, 3
  %v12712 = vshll.u32 %v12202, 16
  %v12714 = vrot.slane %v12712, 4
  %v12715 = vor.u32 %v12711, %v12714
  %v12716 = vsel %vm2260, %v12697, %v12715
  %v12718 = vshrl.u32 %v12203, 16
  %v12720 = vrot.slane %v12718, 3
  %v12721 = vshll.u32 %v12203, 16
  %v12723 = vrot.slane %v12721, 4
  %v12724 = vor.u32 %v12720, %v12723
  %v12725 = vsel %vm2260, %v12706, %v12724
  %v12727 = vshrl.u32 %v12204, 16
  %v12729 = vrot.slane %v12727, 3
  %v12730 = vshll.u32 %v12204, 16
  %v12732 = vrot.slane %v12730, 4
  %v12733 = vor.u32 %v12729, %v12732
  %v12734 = vsel %vm2260, %v12715, %v12733
  %v12736 = vshrl.u32 %v12205, 16
  %v12738 = vrot.slane %v12736, 3
  %v12739 = vshll.u32 %v12205, 16
  %v12741 = vrot.slane %v12739, 4
  %v12742 = vor.u32 %v12738, %v12741
  %v12743 = vsel %vm2260, %v12724, %v12742
  %v12745 = vshrl.u32 %v12206, 16
  %v12747 = vrot.slane %v12745, 3
  %v12748 = vshll.u32 %v12206, 16
  %v12750 = vrot.slane %v12748, 4
  %v12751 = vor.u32 %v12747, %v12750
  %v12752 = vsel %vm2260, %v12733, %v12751
  %v12754 = vshrl.u32 %v12207, 16
  %v12756 = vrot.slane %v12754, 3
  %v12757 = vshll.u32 %v12207, 16
  %v12759 = vrot.slane %v12757, 4
  %v12760 = vor.u32 %v12756, %v12759
  %v12761 = vsel %vm2260, %v12742, %v12760
  %v12763 = vshrl.u32 %v12208, 16
  %v12765 = vrot.slane %v12763, 3
  %v12766 = vshll.u32 %v12208, 16
  %v12768 = vrot.slane %v12766, 4
  %v12769 = vor.u32 %v12765, %v12768
  %v12770 = vsel %vm2260, %v12751, %v12769
  %v12772 = vshrl.u32 %v12209, 16
  %v12774 = vrot.slane %v12772, 3
  %v12775 = vshll.u32 %v12209, 16
  %v12777 = vrot.slane %v12775, 4
  %v12778 = vor.u32 %v12774, %v12777
  %v12779 = vsel %vm2260, %v12760, %v12778
  %v12781 = vshrl.u32 %v12210, 16
  %v12783 = vrot.slane %v12781, 3
  %v12784 = vshll.u32 %v12210, 16
  %v12786 = vrot.slane %v12784, 4
  %v12787 = vor.u32 %v12783, %v12786
  %v12788 = vsel %vm2260, %v12769, %v12787
  %v12790 = vshrl.u32 %v12211, 16
  %v12792 = vrot.slane %v12790, 3
  %v12793 = vshll.u32 %v12211, 16
  %v12795 = vrot.slane %v12793, 4
  %v12796 = vor.u32 %v12792, %v12795
  %v12797 = vsel %vm2260, %v12778, %v12796
  %v12799 = vshrl.u32 %v12212, 16
  %v12801 = vrot.slane %v12799, 3
  %v12802 = vshll.u32 %v12212, 16
  %v12804 = vrot.slane %v12802, 4
  %v12805 = vor.u32 %v12801, %v12804
  %v12806 = vsel %vm2260, %v12787, %v12805
  %v12808 = vshrl.u32 %v12213, 16
  %v12810 = vrot.slane %v12808, 3
  %v12811 = vshll.u32 %v12213, 16
  %v12813 = vrot.slane %v12811, 4
  %v12814 = vor.u32 %v12810, %v12813
  %v12815 = vsel %vm2260, %v12796, %v12814
  %v12817 = vshrl.u32 %v12214, 16
  %v12819 = vrot.slane %v12817, 3
  %v12820 = vshll.u32 %v12214, 16
  %v12822 = vrot.slane %v12820, 4
  %v12823 = vor.u32 %v12819, %v12822
  %v12824 = vsel %vm2260, %v12805, %v12823
  %v12882 = vunpack.c.l.b16 %v11922
  %v12883 = vunpack.c.l.b16 %v11923
  %v12884 = vunpack.c.l.b16 %v11924
  %v12885 = vunpack.c.l.b16 %v11925
  %v12886 = vunpack.c.l.b16 %v11926
  %v12887 = vunpack.c.l.b16 %v11927
  %v12888 = vunpack.c.l.b16 %v11928
  %v12889 = vunpack.c.l.b16 %v11929
  %v12890 = vunpack.c.l.b16 %v11930
  %v12891 = vunpack.c.l.b16 %v11931
  %v12892 = vunpack.c.l.b16 %v11932
  %v12893 = vunpack.c.l.b16 %v11933
  %v12894 = vunpack.c.l.b16 %v11934
  %v12895 = vunpack.c.l.b16 %v11935
  %v12896 = vunpack.c.l.b16 %v11936
  %v12897 = vunpack.c.l.b16 %v11937
  %v12898 = vunpack.c.l.b16 %v11938
  %v12899 = vunpack.c.l.b16 %v11939
  %v12900 = vunpack.c.l.b16 %v11940
  %v12901 = vunpack.c.l.b16 %v11941
  %v12902 = vunpack.c.l.b16 %v11942
  %v12903 = vunpack.c.l.b16 %v11943
  %v12904 = vunpack.c.l.b16 %v11944
  %v12905 = vunpack.c.l.b16 %v11945
  %v12906 = vpack.c.b16 %v12883, %v12882
  %v12907 = vpack.c.b16 %v12885, %v12884
  %v12908 = vpack.c.b16 %v12887, %v12886
  %v12909 = vpack.c.b16 %v12889, %v12888
  %v12910 = vpack.c.b16 %v12891, %v12890
  %v12911 = vpack.c.b16 %v12893, %v12892
  %v12912 = vpack.c.b16 %v12895, %v12894
  %v12913 = vpack.c.b16 %v12897, %v12896
  %v12914 = vpack.c.b16 %v12899, %v12898
  %v12915 = vpack.c.b16 %v12901, %v12900
  %v12916 = vpack.c.b16 %v12903, %v12902
  %v12917 = vpack.c.b16 %v12905, %v12904
  %v12931 = vsel %vm24, %v12248, 0
  %v12934 = vsel %vm24, %v12266, 0
  %v12937 = vsel %vm24, %v12284, 0
  %v12940 = vsel %vm24, %v12302, 0
  %v12943 = vsel %vm24, %v12320, 0
  %v12946 = vsel %vm24, %v12338, 0
  %v12949 = vsel %vm24, %v12356, 0
  %v12952 = vsel %vm24, %v12374, 0
  %v12955 = vsel %vm24, %v12392, 0
  %v12958 = vsel %vm24, %v12410, 0
  %v12961 = vsel %vm24, %v12428, 0
  %v12964 = vsel %vm24, %v12446, 0
  %v12967 = vsel %vm24, %v12464, 0
  %v12970 = vsel %vm24, %v12482, 0
  %v12973 = vsel %vm24, %v12500, 0
  %v12976 = vsel %vm24, %v12518, 0
  %v12979 = vsel %vm24, %v12536, 0
  %v12982 = vsel %vm24, %v12554, 0
  %v12985 = vsel %vm24, %v12572, 0
  %v12988 = vsel %vm24, %v12590, 0
  %v12991 = vsel %vm24, %v12608, 0
  %v12994 = vsel %vm24, %v12626, 0
  %v12997 = vsel %vm24, %v12644, 0
  %v13000 = vsel %vm24, %v12662, 0
  %v13003 = vsel %vm24, %v12680, 0
  %v13006 = vsel %vm24, %v12698, 0
  %v13009 = vsel %vm24, %v12716, 0
  %v13012 = vsel %vm24, %v12734, 0
  %v13015 = vsel %vm24, %v12752, 0
  %v13018 = vsel %vm24, %v12770, 0
  %v13021 = vsel %vm24, %v12788, 0
  %v13024 = vsel %vm24, %v12806, 0
  %v13027 = vsel %vm24, %v12824, 0
  %13029 = vmatprep.subr.bf16.mxu0 0
  %13030 = vmatpush1.bf16.msra.mxu0 %v12913
  %13031 = vmatprep.subr.bf16.mxu0 0
  %13032 = vmatpush1.bf16.msra.mxu0 %v12912
  %13033 = vmatprep.subr.bf16.mxu0 0
  %13034 = vmatpush1.bf16.msra.mxu0 %v12911
  %13035 = vmatprep.subr.bf16.mxu0 0
  %13036 = vmatpush1.bf16.msra.mxu0 %v12910
  %13037 = vmatprep.subr.bf16.mxu0 0
  %13038 = vmatpush1.bf16.msra.mxu0 %v12909
  %13039 = vmatprep.subr.bf16.mxu0 0
  %13040 = vmatpush1.bf16.msra.mxu0 %v12908
  %13041 = vmatprep.subr.bf16.mxu0 0
  %13042 = vmatpush1.bf16.msra.mxu0 %v12907
  %13043 = vmatprep.subr.bf16.mxu0 0
  %13044 = vmatpush1.bf16.msra.mxu0 %v12906
  %13045 = vmatprep.subr.bf16.mxu0 0
  %13046 = vmatpush2.bf16.msra.mxu0 0
  %13047 = vmatprep.subr.bf16.mxu0 0
  %13048 = vmatpush2.bf16.msra.mxu0 0
  %13049 = vmatprep.subr.bf16.mxu0 0
  %13050 = vmatpush2.bf16.msra.mxu0 0
  %13051 = vmatprep.subr.bf16.mxu0 0
  %13052 = vmatpush2.bf16.msra.mxu0 0
  %13053 = vmatprep.subr.bf16.mxu0 0
  %13054 = vmatpush2.bf16.msra.mxu0 %v12917
  %13055 = vmatprep.subr.bf16.mxu0 0
  %13056 = vmatpush2.bf16.msra.mxu0 %v12916
  %13057 = vmatprep.subr.bf16.mxu0 0
  %13058 = vmatpush2.bf16.msra.mxu0 %v12915
  %13059 = vmatprep.subr.bf16.mxu0 0
  %13060 = vmatpush2.bf16.msra.mxu0 %v12914
  %13061 = vmatprep.mubr.bf16.mxu0 %v12931
  %13062 = vmatmul.mubr.bf16.gmra.mxu0 %v12231
  %v13063 = vpop.f32.mrf.mxu0
  %v13064 = vadd.f32 0.0, %v13063
  %v13065 = vpop.f32.mrf.mxu0
  %v13066 = vpop.f32.mrf.mxu0
  %v13067 = vadd.f32 0.0, %v13066
  %v13068 = vpop.f32.mrf.mxu0
  %13069 = vmatprep.mubr.bf16.mxu0 %v12934
  %13070 = vmatmul.mubr.bf16.gmra.mxu0 %v12257
  %v13071 = vpop.f32.mrf.mxu0
  %v13072 = vadd.f32 0.0, %v13071
  %v13073 = vpop.f32.mrf.mxu0
  %v13074 = vpop.f32.mrf.mxu0
  %v13075 = vadd.f32 0.0, %v13074
  %v13076 = vpop.f32.mrf.mxu0
  %13077 = vmatprep.mubr.bf16.mxu0 %v12937
  %13078 = vmatmul.mubr.bf16.gmra.mxu0 %v12275
  %v13079 = vpop.f32.mrf.mxu0
  %v13080 = vadd.f32 0.0, %v13079
  %v13081 = vpop.f32.mrf.mxu0
  %v13082 = vpop.f32.mrf.mxu0
  %v13083 = vadd.f32 0.0, %v13082
  %v13084 = vpop.f32.mrf.mxu0
  %13085 = vmatprep.mubr.bf16.mxu0 %v12940
  %13086 = vmatmul.mubr.bf16.gmra.mxu0 %v12293
  %v13087 = vpop.f32.mrf.mxu0
  %v13088 = vadd.f32 0.0, %v13087
  %v13089 = vpop.f32.mrf.mxu0
  %v13090 = vpop.f32.mrf.mxu0
  %v13091 = vadd.f32 0.0, %v13090
  %v13092 = vpop.f32.mrf.mxu0
  %13093 = vmatprep.mubr.bf16.mxu0 %v12943
  %13094 = vmatmul.mubr.bf16.gmra.mxu0 %v12311
  %v13095 = vpop.f32.mrf.mxu0
  %v13096 = vadd.f32 0.0, %v13095
  %v13097 = vpop.f32.mrf.mxu0
  %v13098 = vpop.f32.mrf.mxu0
  %v13099 = vadd.f32 0.0, %v13098
  %v13100 = vpop.f32.mrf.mxu0
  %13101 = vmatprep.mubr.bf16.mxu0 %v12946
  %13102 = vmatmul.mubr.bf16.gmra.mxu0 %v12329
  %v13103 = vpop.f32.mrf.mxu0
  %v13104 = vadd.f32 0.0, %v13103
  %v13105 = vpop.f32.mrf.mxu0
  %v13106 = vpop.f32.mrf.mxu0
  %v13107 = vadd.f32 0.0, %v13106
  %v13108 = vpop.f32.mrf.mxu0
  %13109 = vmatprep.mubr.bf16.mxu0 %v12949
  %13110 = vmatmul.mubr.bf16.gmra.mxu0 %v12347
  %v13111 = vpop.f32.mrf.mxu0
  %v13112 = vadd.f32 0.0, %v13111
  %v13113 = vpop.f32.mrf.mxu0
  %v13114 = vpop.f32.mrf.mxu0
  %v13115 = vadd.f32 0.0, %v13114
  %v13116 = vpop.f32.mrf.mxu0
  %13117 = vmatprep.mubr.bf16.mxu0 %v12952
  %13118 = vmatmul.mubr.bf16.gmra.mxu0 %v12365
  %v13119 = vpop.f32.mrf.mxu0
  %v13120 = vadd.f32 0.0, %v13119
  %v13121 = vpop.f32.mrf.mxu0
  %v13122 = vpop.f32.mrf.mxu0
  %v13123 = vadd.f32 0.0, %v13122
  %v13124 = vpop.f32.mrf.mxu0
  %13125 = vmatprep.mubr.bf16.mxu0 %v12955
  %13126 = vmatmul.mubr.bf16.gmra.mxu0 %v12383
  %v13127 = vpop.f32.mrf.mxu0
  %v13128 = vadd.f32 0.0, %v13127
  %v13129 = vpop.f32.mrf.mxu0
  %v13130 = vpop.f32.mrf.mxu0
  %v13131 = vadd.f32 0.0, %v13130
  %v13132 = vpop.f32.mrf.mxu0
  %13133 = vmatprep.mubr.bf16.mxu0 %v12958
  %13134 = vmatmul.mubr.bf16.gmra.mxu0 %v12401
  %v13135 = vpop.f32.mrf.mxu0
  %v13136 = vadd.f32 0.0, %v13135
  %v13137 = vpop.f32.mrf.mxu0
  %v13138 = vpop.f32.mrf.mxu0
  %v13139 = vadd.f32 0.0, %v13138
  %v13140 = vpop.f32.mrf.mxu0
  %13141 = vmatprep.mubr.bf16.mxu0 %v12961
  %13142 = vmatmul.mubr.bf16.gmra.mxu0 %v12419
  %v13143 = vpop.f32.mrf.mxu0
  %v13144 = vadd.f32 0.0, %v13143
  %v13145 = vpop.f32.mrf.mxu0
  %v13146 = vpop.f32.mrf.mxu0
  %v13147 = vadd.f32 0.0, %v13146
  %v13148 = vpop.f32.mrf.mxu0
  %13149 = vmatprep.mubr.bf16.mxu0 %v12964
  %13150 = vmatmul.mubr.bf16.gmra.mxu0 %v12437
  %v13151 = vpop.f32.mrf.mxu0
  %v13152 = vadd.f32 0.0, %v13151
  %v13153 = vpop.f32.mrf.mxu0
  %v13154 = vpop.f32.mrf.mxu0
  %v13155 = vadd.f32 0.0, %v13154
  %v13156 = vpop.f32.mrf.mxu0
  %13157 = vmatprep.mubr.bf16.mxu0 %v12967
  %13158 = vmatmul.mubr.bf16.gmra.mxu0 %v12455
  %v13159 = vpop.f32.mrf.mxu0
  %v13160 = vadd.f32 0.0, %v13159
  %v13161 = vpop.f32.mrf.mxu0
  %v13162 = vpop.f32.mrf.mxu0
  %v13163 = vadd.f32 0.0, %v13162
  %v13164 = vpop.f32.mrf.mxu0
  %13165 = vmatprep.mubr.bf16.mxu0 %v12970
  %13166 = vmatmul.mubr.bf16.gmra.mxu0 %v12473
  %v13167 = vpop.f32.mrf.mxu0
  %v13168 = vadd.f32 0.0, %v13167
  %v13169 = vpop.f32.mrf.mxu0
  %v13170 = vpop.f32.mrf.mxu0
  %v13171 = vadd.f32 0.0, %v13170
  %v13172 = vpop.f32.mrf.mxu0
  %13173 = vmatprep.mubr.bf16.mxu0 %v12973
  %13174 = vmatmul.mubr.bf16.gmra.mxu0 %v12491
  %v13175 = vpop.f32.mrf.mxu0
  %v13176 = vadd.f32 0.0, %v13175
  %v13177 = vpop.f32.mrf.mxu0
  %v13178 = vpop.f32.mrf.mxu0
  %v13179 = vadd.f32 0.0, %v13178
  %v13180 = vpop.f32.mrf.mxu0
  %13181 = vmatprep.mubr.bf16.mxu0 %v12976
  %13182 = vmatmul.mubr.bf16.gmra.mxu0 %v12509
  %v13183 = vpop.f32.mrf.mxu0
  %v13184 = vadd.f32 0.0, %v13183
  %v13185 = vpop.f32.mrf.mxu0
  %v13186 = vpop.f32.mrf.mxu0
  %v13187 = vadd.f32 0.0, %v13186
  %v13188 = vpop.f32.mrf.mxu0
  %13189 = vmatprep.mubr.bf16.mxu0 %v12979
  %13190 = vmatmul.mubr.bf16.gmra.mxu0 %v12527
  %v13191 = vpop.f32.mrf.mxu0
  %v13192 = vadd.f32 0.0, %v13191
  %v13193 = vpop.f32.mrf.mxu0
  %v13194 = vpop.f32.mrf.mxu0
  %v13195 = vadd.f32 0.0, %v13194
  %v13196 = vpop.f32.mrf.mxu0
  %13197 = vmatprep.mubr.bf16.mxu0 %v12982
  %13198 = vmatmul.mubr.bf16.gmra.mxu0 %v12545
  %v13199 = vpop.f32.mrf.mxu0
  %v13200 = vadd.f32 0.0, %v13199
  %v13201 = vpop.f32.mrf.mxu0
  %v13202 = vpop.f32.mrf.mxu0
  %v13203 = vadd.f32 0.0, %v13202
  %v13204 = vpop.f32.mrf.mxu0
  %13205 = vmatprep.mubr.bf16.mxu0 %v12985
  %13206 = vmatmul.mubr.bf16.gmra.mxu0 %v12563
  %v13207 = vpop.f32.mrf.mxu0
  %v13208 = vadd.f32 0.0, %v13207
  %v13209 = vpop.f32.mrf.mxu0
  %v13210 = vpop.f32.mrf.mxu0
  %v13211 = vadd.f32 0.0, %v13210
  %v13212 = vpop.f32.mrf.mxu0
  %13213 = vmatprep.mubr.bf16.mxu0 %v12988
  %13214 = vmatmul.mubr.bf16.gmra.mxu0 %v12581
  %v13215 = vpop.f32.mrf.mxu0
  %v13216 = vadd.f32 0.0, %v13215
  %v13217 = vpop.f32.mrf.mxu0
  %v13218 = vpop.f32.mrf.mxu0
  %v13219 = vadd.f32 0.0, %v13218
  %v13220 = vpop.f32.mrf.mxu0
  %13221 = vmatprep.mubr.bf16.mxu0 %v12991
  %13222 = vmatmul.mubr.bf16.gmra.mxu0 %v12599
  %v13223 = vpop.f32.mrf.mxu0
  %v13224 = vadd.f32 0.0, %v13223
  %v13225 = vpop.f32.mrf.mxu0
  %v13226 = vpop.f32.mrf.mxu0
  %v13227 = vadd.f32 0.0, %v13226
  %v13228 = vpop.f32.mrf.mxu0
  %13229 = vmatprep.mubr.bf16.mxu0 %v12994
  %13230 = vmatmul.mubr.bf16.gmra.mxu0 %v12617
  %v13231 = vpop.f32.mrf.mxu0
  %v13232 = vadd.f32 0.0, %v13231
  %v13233 = vpop.f32.mrf.mxu0
  %v13234 = vpop.f32.mrf.mxu0
  %v13235 = vadd.f32 0.0, %v13234
  %v13236 = vpop.f32.mrf.mxu0
  %13237 = vmatprep.mubr.bf16.mxu0 %v12997
  %13238 = vmatmul.mubr.bf16.gmra.mxu0 %v12635
  %v13239 = vpop.f32.mrf.mxu0
  %v13240 = vadd.f32 0.0, %v13239
  %v13241 = vpop.f32.mrf.mxu0
  %v13242 = vpop.f32.mrf.mxu0
  %v13243 = vadd.f32 0.0, %v13242
  %v13244 = vpop.f32.mrf.mxu0
  %13245 = vmatprep.mubr.bf16.mxu0 %v13000
  %13246 = vmatmul.mubr.bf16.gmra.mxu0 %v12653
  %v13247 = vpop.f32.mrf.mxu0
  %v13248 = vadd.f32 0.0, %v13247
  %v13249 = vpop.f32.mrf.mxu0
  %v13250 = vpop.f32.mrf.mxu0
  %v13251 = vadd.f32 0.0, %v13250
  %v13252 = vpop.f32.mrf.mxu0
  %13253 = vmatprep.mubr.bf16.mxu0 %v13003
  %13254 = vmatmul.mubr.bf16.gmra.mxu0 %v12671
  %v13255 = vpop.f32.mrf.mxu0
  %v13256 = vadd.f32 0.0, %v13255
  %v13257 = vpop.f32.mrf.mxu0
  %v13258 = vpop.f32.mrf.mxu0
  %v13259 = vadd.f32 0.0, %v13258
  %v13260 = vpop.f32.mrf.mxu0
  %13261 = vmatprep.mubr.bf16.mxu0 %v13006
  %13262 = vmatmul.mubr.bf16.gmra.mxu0 %v12689
  %v13263 = vpop.f32.mrf.mxu0
  %v13264 = vadd.f32 0.0, %v13263
  %v13265 = vpop.f32.mrf.mxu0
  %v13266 = vpop.f32.mrf.mxu0
  %v13267 = vadd.f32 0.0, %v13266
  %v13268 = vpop.f32.mrf.mxu0
  %13269 = vmatprep.mubr.bf16.mxu0 %v13009
  %13270 = vmatmul.mubr.bf16.gmra.mxu0 %v12707
  %v13271 = vpop.f32.mrf.mxu0
  %v13272 = vadd.f32 0.0, %v13271
  %v13273 = vpop.f32.mrf.mxu0
  %v13274 = vpop.f32.mrf.mxu0
  %v13275 = vadd.f32 0.0, %v13274
  %v13276 = vpop.f32.mrf.mxu0
  %13277 = vmatprep.mubr.bf16.mxu0 %v13012
  %13278 = vmatmul.mubr.bf16.gmra.mxu0 %v12725
  %v13279 = vpop.f32.mrf.mxu0
  %v13280 = vadd.f32 0.0, %v13279
  %v13281 = vpop.f32.mrf.mxu0
  %v13282 = vpop.f32.mrf.mxu0
  %v13283 = vadd.f32 0.0, %v13282
  %v13284 = vpop.f32.mrf.mxu0
  %13285 = vmatprep.mubr.bf16.mxu0 %v13015
  %13286 = vmatmul.mubr.bf16.gmra.mxu0 %v12743
  %v13287 = vpop.f32.mrf.mxu0
  %v13288 = vadd.f32 0.0, %v13287
  %v13289 = vpop.f32.mrf.mxu0
  %v13290 = vpop.f32.mrf.mxu0
  %v13291 = vadd.f32 0.0, %v13290
  %v13292 = vpop.f32.mrf.mxu0
  %13293 = vmatprep.mubr.bf16.mxu0 %v13018
  %13294 = vmatmul.mubr.bf16.gmra.mxu0 %v12761
  %v13295 = vpop.f32.mrf.mxu0
  %v13296 = vadd.f32 0.0, %v13295
  %v13297 = vpop.f32.mrf.mxu0
  %v13298 = vpop.f32.mrf.mxu0
  %v13299 = vadd.f32 0.0, %v13298
  %v13300 = vpop.f32.mrf.mxu0
  %13301 = vmatprep.mubr.bf16.mxu0 %v13021
  %13302 = vmatmul.mubr.bf16.gmra.mxu0 %v12779
  %v13303 = vpop.f32.mrf.mxu0
  %v13304 = vadd.f32 0.0, %v13303
  %v13305 = vpop.f32.mrf.mxu0
  %v13306 = vpop.f32.mrf.mxu0
  %v13307 = vadd.f32 0.0, %v13306
  %v13308 = vpop.f32.mrf.mxu0
  %13309 = vmatprep.mubr.bf16.mxu0 %v13024
  %13310 = vmatmul.mubr.bf16.gmra.mxu0 %v12797
  %v13311 = vpop.f32.mrf.mxu0
  %v13312 = vadd.f32 0.0, %v13311
  %v13313 = vpop.f32.mrf.mxu0
  %v13314 = vpop.f32.mrf.mxu0
  %v13315 = vadd.f32 0.0, %v13314
  %v13316 = vpop.f32.mrf.mxu0
  %13317 = vmatprep.mubr.bf16.mxu0 %v13027
  %13318 = vmatmul.mubr.bf16.gmra.mxu0 %v12815
  %v13319 = vpop.f32.mrf.mxu0
  %v13320 = vadd.f32 0.0, %v13319
  %v13321 = vpop.f32.mrf.mxu0
  %v13322 = vpop.f32.mrf.mxu0
  %v13323 = vadd.f32 0.0, %v13322
  %v13324 = vpop.f32.mrf.mxu0
  %13325 = vdwg.mxu0
  %v13326 = vadd.f32 %v11788, %v13064
  %v13327 = vadd.f32 %v11789, %v13067
  %v13328 = vadd.f32 %v11790, %v13072
  %v13329 = vadd.f32 %v11791, %v13075
  %v13330 = vadd.f32 %v11792, %v13080
  %v13331 = vadd.f32 %v11793, %v13083
  %v13332 = vadd.f32 %v11794, %v13088
  %v13333 = vadd.f32 %v11795, %v13091
  %v13334 = vadd.f32 %v11796, %v13096
  %v13335 = vadd.f32 %v11797, %v13099
  %v13336 = vadd.f32 %v11798, %v13104
  %v13337 = vadd.f32 %v11799, %v13107
  %v13338 = vadd.f32 %v11800, %v13112
  %v13339 = vadd.f32 %v11801, %v13115
  %v13340 = vadd.f32 %v11802, %v13120
  %v13341 = vadd.f32 %v11803, %v13123
  %v13342 = vadd.f32 %v11804, %v13128
  %v13343 = vadd.f32 %v11805, %v13131
  %v13344 = vadd.f32 %v11806, %v13136
  %v13345 = vadd.f32 %v11807, %v13139
  %v13346 = vadd.f32 %v11808, %v13144
  %v13347 = vadd.f32 %v11809, %v13147
  %v13348 = vadd.f32 %v11810, %v13152
  %v13349 = vadd.f32 %v11811, %v13155
  %v13350 = vadd.f32 %v11812, %v13160
  %v13351 = vadd.f32 %v11813, %v13163
  %v13352 = vadd.f32 %v11814, %v13168
  %v13353 = vadd.f32 %v11815, %v13171
  %v13354 = vadd.f32 %v11816, %v13176
  %v13355 = vadd.f32 %v11817, %v13179
  %v13356 = vadd.f32 %v11818, %v13184
  %v13357 = vadd.f32 %v11819, %v13187
  %v13358 = vadd.f32 %v11820, %v13192
  %v13359 = vadd.f32 %v11821, %v13195
  %v13360 = vadd.f32 %v11822, %v13200
  %v13361 = vadd.f32 %v11823, %v13203
  %v13362 = vadd.f32 %v11824, %v13208
  %v13363 = vadd.f32 %v11825, %v13211
  %v13364 = vadd.f32 %v11826, %v13216
  %v13365 = vadd.f32 %v11827, %v13219
  %v13366 = vadd.f32 %v11828, %v13224
  %v13367 = vadd.f32 %v11829, %v13227
  %v13368 = vadd.f32 %v11830, %v13232
  %v13369 = vadd.f32 %v11831, %v13235
  %v13370 = vadd.f32 %v11832, %v13240
  %v13371 = vadd.f32 %v11833, %v13243
  %v13372 = vadd.f32 %v11834, %v13248
  %v13373 = vadd.f32 %v11835, %v13251
  %v13374 = vadd.f32 %v11836, %v13256
  %v13375 = vadd.f32 %v11837, %v13259
  %v13376 = vadd.f32 %v11838, %v13264
  %v13377 = vadd.f32 %v11839, %v13267
  %v13378 = vadd.f32 %v11840, %v13272
  %v13379 = vadd.f32 %v11841, %v13275
  %v13380 = vadd.f32 %v11842, %v13280
  %v13381 = vadd.f32 %v11843, %v13283
  %v13382 = vadd.f32 %v11844, %v13288
  %v13383 = vadd.f32 %v11845, %v13291
  %v13384 = vadd.f32 %v11846, %v13296
  %v13385 = vadd.f32 %v11847, %v13299
  %v13386 = vadd.f32 %v11848, %v13304
  %v13387 = vadd.f32 %v11849, %v13307
  %v13388 = vadd.f32 %v11850, %v13312
  %v13389 = vadd.f32 %v11851, %v13315
  %v13390 = vadd.f32 %v11852, %v13320
  %v13391 = vadd.f32 %v11853, %v13323
  %13392 = vst.msk [vmem:[#allocation2 + $0x20] sm:$0xff] %vm24, %v13326
  %13393 = vst.msk [vmem:[#allocation2 + $0x28] sm:$0xff] %vm24, %v13327
  %13394 = vst.msk [vmem:[#allocation2 + $0x30] sm:$0xff] %vm24, %v13328
  %13395 = vst.msk [vmem:[#allocation2 + $0x38] sm:$0xff] %vm24, %v13329
  %13396 = vst.msk [vmem:[#allocation2 + $0x40] sm:$0xff] %vm24, %v13330
  %13397 = vst.msk [vmem:[#allocation2 + $0x48] sm:$0xff] %vm24, %v13331
  %13398 = vst.msk [vmem:[#allocation2 + $0x50] sm:$0xff] %vm24, %v13332
  %13399 = vst.msk [vmem:[#allocation2 + $0x58] sm:$0xff] %vm24, %v13333
  %13400 = vst.msk [vmem:[#allocation2 + $0x60] sm:$0xff] %vm24, %v13334
  %13401 = vst.msk [vmem:[#allocation2 + $0x68] sm:$0xff] %vm24, %v13335
  %13402 = vst.msk [vmem:[#allocation2 + $0x70] sm:$0xff] %vm24, %v13336
  %13403 = vst.msk [vmem:[#allocation2 + $0x78] sm:$0xff] %vm24, %v13337
  %13404 = vst.msk [vmem:[#allocation2 + $0x80] sm:$0xff] %vm24, %v13338
  %13405 = vst.msk [vmem:[#allocation2 + $0x88] sm:$0xff] %vm24, %v13339
  %13406 = vst.msk [vmem:[#allocation2 + $0x90] sm:$0xff] %vm24, %v13340
  %13407 = vst.msk [vmem:[#allocation2 + $0x98] sm:$0xff] %vm24, %v13341
  %13408 = vst.msk [vmem:[#allocation2 + $0xa0] sm:$0xff] %vm24, %v13342
  %13409 = vst.msk [vmem:[#allocation2 + $0xa8] sm:$0xff] %vm24, %v13343
  %13410 = vst.msk [vmem:[#allocation2 + $0xb0] sm:$0xff] %vm24, %v13344
  %13411 = vst.msk [vmem:[#allocation2 + $0xb8] sm:$0xff] %vm24, %v13345
  %13412 = vst.msk [vmem:[#allocation2 + $0xc0] sm:$0xff] %vm24, %v13346
  %13413 = vst.msk [vmem:[#allocation2 + $0xc8] sm:$0xff] %vm24, %v13347
  %13414 = vst.msk [vmem:[#allocation2 + $0xd0] sm:$0xff] %vm24, %v13348
  %13415 = vst.msk [vmem:[#allocation2 + $0xd8] sm:$0xff] %vm24, %v13349
  %13416 = vst.msk [vmem:[#allocation2 + $0xe0] sm:$0xff] %vm24, %v13350
  %13417 = vst.msk [vmem:[#allocation2 + $0xe8] sm:$0xff] %vm24, %v13351
  %13418 = vst.msk [vmem:[#allocation2 + $0xf0] sm:$0xff] %vm24, %v13352
  %13419 = vst.msk [vmem:[#allocation2 + $0xf8] sm:$0xff] %vm24, %v13353
  %13420 = vst.msk [vmem:[#allocation2 + $0x100] sm:$0xff] %vm24, %v13354
  %13421 = vst.msk [vmem:[#allocation2 + $0x108] sm:$0xff] %vm24, %v13355
  %13422 = vst.msk [vmem:[#allocation2 + $0x110] sm:$0xff] %vm24, %v13356
  %13423 = vst.msk [vmem:[#allocation2 + $0x118] sm:$0xff] %vm24, %v13357
  %13424 = vst.msk [vmem:[#allocation2 + $0x120] sm:$0xff] %vm24, %v13358
  %13425 = vst.msk [vmem:[#allocation2 + $0x128] sm:$0xff] %vm24, %v13359
  %13426 = vst.msk [vmem:[#allocation2 + $0x130] sm:$0xff] %vm24, %v13360
  %13427 = vst.msk [vmem:[#allocation2 + $0x138] sm:$0xff] %vm24, %v13361
  %13428 = vst.msk [vmem:[#allocation2 + $0x140] sm:$0xff] %vm24, %v13362
  %13429 = vst.msk [vmem:[#allocation2 + $0x148] sm:$0xff] %vm24, %v13363
  %13430 = vst.msk [vmem:[#allocation2 + $0x150] sm:$0xff] %vm24, %v13364
  %13431 = vst.msk [vmem:[#allocation2 + $0x158] sm:$0xff] %vm24, %v13365
  %13432 = vst.msk [vmem:[#allocation2 + $0x160] sm:$0xff] %vm24, %v13366
  %13433 = vst.msk [vmem:[#allocation2 + $0x168] sm:$0xff] %vm24, %v13367
  %13434 = vst.msk [vmem:[#allocation2 + $0x170] sm:$0xff] %vm24, %v13368
  %13435 = vst.msk [vmem:[#allocation2 + $0x178] sm:$0xff] %vm24, %v13369
  %13436 = vst.msk [vmem:[#allocation2 + $0x180] sm:$0xff] %vm24, %v13370
  %13437 = vst.msk [vmem:[#allocation2 + $0x188] sm:$0xff] %vm24, %v13371
  %13438 = vst.msk [vmem:[#allocation2 + $0x190] sm:$0xff] %vm24, %v13372
  %13439 = vst.msk [vmem:[#allocation2 + $0x198] sm:$0xff] %vm24, %v13373
  %13440 = vst.msk [vmem:[#allocation2 + $0x1a0] sm:$0xff] %vm24, %v13374
  %13441 = vst.msk [vmem:[#allocation2 + $0x1a8] sm:$0xff] %vm24, %v13375
  %13442 = vst.msk [vmem:[#allocation2 + $0x1b0] sm:$0xff] %vm24, %v13376
  %13443 = vst.msk [vmem:[#allocation2 + $0x1b8] sm:$0xff] %vm24, %v13377
  %13444 = vst.msk [vmem:[#allocation2 + $0x1c0] sm:$0xff] %vm24, %v13378
  %13445 = vst.msk [vmem:[#allocation2 + $0x1c8] sm:$0xff] %vm24, %v13379
  %13446 = vst.msk [vmem:[#allocation2 + $0x1d0] sm:$0xff] %vm24, %v13380
  %13447 = vst.msk [vmem:[#allocation2 + $0x1d8] sm:$0xff] %vm24, %v13381
  %13448 = vst.msk [vmem:[#allocation2 + $0x1e0] sm:$0xff] %vm24, %v13382
  %13449 = vst.msk [vmem:[#allocation2 + $0x1e8] sm:$0xff] %vm24, %v13383
  %13450 = vst.msk [vmem:[#allocation2 + $0x1f0] sm:$0xff] %vm24, %v13384
  %13451 = vst.msk [vmem:[#allocation2 + $0x1f8] sm:$0xff] %vm24, %v13385
  %13452 = vst.msk [vmem:[#allocation2 + $0x200] sm:$0xff] %vm24, %v13386
  %13453 = vst.msk [vmem:[#allocation2 + $0x208] sm:$0xff] %vm24, %v13387
  %13454 = vst.msk [vmem:[#allocation2 + $0x210] sm:$0xff] %vm24, %v13388
  %13455 = vst.msk [vmem:[#allocation2 + $0x218] sm:$0xff] %vm24, %v13389
  %13456 = vst.msk [vmem:[#allocation2 + $0x220] sm:$0xff] %vm24, %v13390
  %13457 = vst.msk [vmem:[#allocation2 + $0x228] sm:$0xff] %vm24, %v13391
  %v13458 = vld [vmem:[#allocation2 + $0x20] sm:$0xff]
  %v13459 = vld [vmem:[#allocation2 + $0x28] sm:$0xff]
  %v13460 = vld [vmem:[#allocation2 + $0x30] sm:$0xff]
  %v13461 = vld [vmem:[#allocation2 + $0x38] sm:$0xff]
  %v13462 = vld [vmem:[#allocation2 + $0x40] sm:$0xff]
  %v13463 = vld [vmem:[#allocation2 + $0x48] sm:$0xff]
  %v13464 = vld [vmem:[#allocation2 + $0x50] sm:$0xff]
  %v13465 = vld [vmem:[#allocation2 + $0x58] sm:$0xff]
  %v13466 = vld [vmem:[#allocation2 + $0x60] sm:$0xff]
  %v13467 = vld [vmem:[#allocation2 + $0x68] sm:$0xff]
  %v13468 = vld [vmem:[#allocation2 + $0x70] sm:$0xff]
  %v13469 = vld [vmem:[#allocation2 + $0x78] sm:$0xff]
  %v13470 = vld [vmem:[#allocation2 + $0x80] sm:$0xff]
  %v13471 = vld [vmem:[#allocation2 + $0x88] sm:$0xff]
  %v13472 = vld [vmem:[#allocation2 + $0x90] sm:$0xff]
  %v13473 = vld [vmem:[#allocation2 + $0x98] sm:$0xff]
  %v13474 = vld [vmem:[#allocation2 + $0xa0] sm:$0xff]
  %v13475 = vld [vmem:[#allocation2 + $0xa8] sm:$0xff]
  %v13476 = vld [vmem:[#allocation2 + $0xb0] sm:$0xff]
  %v13477 = vld [vmem:[#allocation2 + $0xb8] sm:$0xff]
  %v13478 = vld [vmem:[#allocation2 + $0xc0] sm:$0xff]
  %v13479 = vld [vmem:[#allocation2 + $0xc8] sm:$0xff]
  %v13480 = vld [vmem:[#allocation2 + $0xd0] sm:$0xff]
  %v13481 = vld [vmem:[#allocation2 + $0xd8] sm:$0xff]
  %v13482 = vld [vmem:[#allocation2 + $0xe0] sm:$0xff]
  %v13483 = vld [vmem:[#allocation2 + $0xe8] sm:$0xff]
  %v13484 = vld [vmem:[#allocation2 + $0xf0] sm:$0xff]
  %v13485 = vld [vmem:[#allocation2 + $0xf8] sm:$0xff]
  %v13486 = vld [vmem:[#allocation2 + $0x100] sm:$0xff]
  %v13487 = vld [vmem:[#allocation2 + $0x108] sm:$0xff]
  %v13488 = vld [vmem:[#allocation2 + $0x110] sm:$0xff]
  %v13489 = vld [vmem:[#allocation2 + $0x118] sm:$0xff]
  %v13490 = vld [vmem:[%s5] sm:$0xff]
  %v13491 = vld [vmem:[%s5 + $0x8] sm:$0xff]
  %v13492 = vld [vmem:[%s5 + $0x10] sm:$0xff]
  %v13493 = vld [vmem:[%s5 + $0x18] sm:$0xff]
  %v13494 = vld [vmem:[%s5 + $0x20] sm:$0xff]
  %v13495 = vld [vmem:[%s5 + $0x28] sm:$0xff]
  %v13496 = vld [vmem:[%s5 + $0x30] sm:$0xff]
  %v13497 = vld [vmem:[%s5 + $0x38] sm:$0xff]
  %v13498 = vld [vmem:[%s5 + $0x40] sm:$0xff]
  %v13499 = vld [vmem:[%s5 + $0x48] sm:$0xff]
  %v13500 = vld [vmem:[%s5 + $0x50] sm:$0xff]
  %v13501 = vld [vmem:[%s5 + $0x58] sm:$0xff]
  %v13502 = vld [vmem:[%s5 + $0x60] sm:$0xff]
  %v13503 = vld [vmem:[%s5 + $0x68] sm:$0xff]
  %v13504 = vld [vmem:[%s5 + $0x70] sm:$0xff]
  %v13505 = vld [vmem:[%s5 + $0x78] sm:$0xff]
  %v13506 = vld [vmem:[%s5 + $0x80] sm:$0xff]
  %v13507 = vld [vmem:[%s5 + $0x88] sm:$0xff]
  %v13508 = vld [vmem:[%s5 + $0x90] sm:$0xff]
  %v13509 = vld [vmem:[%s5 + $0x98] sm:$0xff]
  %v13510 = vld [vmem:[%s5 + $0xa0] sm:$0xff]
  %v13511 = vld [vmem:[%s5 + $0xa8] sm:$0xff]
  %v13512 = vld [vmem:[%s5 + $0xb0] sm:$0xff]
  %v13513 = vld [vmem:[%s5 + $0xb8] sm:$0xff]
  %v13514 = vld [vmem:[%s5 + $0xc0] sm:$0xff]
  %v13515 = vld [vmem:[%s5 + $0xc8] sm:$0xff]
  %v13516 = vld [vmem:[%s5 + $0xd0] sm:$0xff]
  %v13517 = vld [vmem:[%s5 + $0xd8] sm:$0xff]
  %v13518 = vld [vmem:[%s5 + $0xe0] sm:$0xff]
  %v13519 = vld [vmem:[%s5 + $0xe8] sm:$0xff]
  %v13520 = vld [vmem:[%s5 + $0xf0] sm:$0xff]
  %v13521 = vld [vmem:[%s5 + $0xf8] sm:$0xff]
  %v13522 = vadd.f32 %v13458, %v13490
  %v13523 = vadd.f32 %v13459, %v13491
  %v13524 = vadd.f32 %v13460, %v13492
  %v13525 = vadd.f32 %v13461, %v13493
  %v13526 = vadd.f32 %v13462, %v13494
  %v13527 = vadd.f32 %v13463, %v13495
  %v13528 = vadd.f32 %v13464, %v13496
  %v13529 = vadd.f32 %v13465, %v13497
  %v13530 = vadd.f32 %v13466, %v13498
  %v13531 = vadd.f32 %v13467, %v13499
  %v13532 = vadd.f32 %v13468, %v13500
  %v13533 = vadd.f32 %v13469, %v13501
  %v13534 = vadd.f32 %v13470, %v13502
  %v13535 = vadd.f32 %v13471, %v13503
  %v13536 = vadd.f32 %v13472, %v13504
  %v13537 = vadd.f32 %v13473, %v13505
  %v13538 = vadd.f32 %v13474, %v13506
  %v13539 = vadd.f32 %v13475, %v13507
  %v13540 = vadd.f32 %v13476, %v13508
  %v13541 = vadd.f32 %v13477, %v13509
  %v13542 = vadd.f32 %v13478, %v13510
  %v13543 = vadd.f32 %v13479, %v13511
  %v13544 = vadd.f32 %v13480, %v13512
  %v13545 = vadd.f32 %v13481, %v13513
  %v13546 = vadd.f32 %v13482, %v13514
  %v13547 = vadd.f32 %v13483, %v13515
  %v13548 = vadd.f32 %v13484, %v13516
  %v13549 = vadd.f32 %v13485, %v13517
  %v13550 = vadd.f32 %v13486, %v13518
  %v13551 = vadd.f32 %v13487, %v13519
  %v13552 = vadd.f32 %v13488, %v13520
  %v13553 = vadd.f32 %v13489, %v13521
  %13554 = vst.msk [vmem:[%s6] sm:$0xff] %vm24, %v13522
  %13555 = vst.msk [vmem:[%s6 + $0x8] sm:$0xff] %vm24, %v13523
  %13556 = vst.msk [vmem:[%s6 + $0x10] sm:$0xff] %vm24, %v13524
  %13557 = vst.msk [vmem:[%s6 + $0x18] sm:$0xff] %vm24, %v13525
  %13558 = vst.msk [vmem:[%s6 + $0x20] sm:$0xff] %vm24, %v13526
  %13559 = vst.msk [vmem:[%s6 + $0x28] sm:$0xff] %vm24, %v13527
  %13560 = vst.msk [vmem:[%s6 + $0x30] sm:$0xff] %vm24, %v13528
  %13561 = vst.msk [vmem:[%s6 + $0x38] sm:$0xff] %vm24, %v13529
  %13562 = vst.msk [vmem:[%s6 + $0x40] sm:$0xff] %vm24, %v13530
  %13563 = vst.msk [vmem:[%s6 + $0x48] sm:$0xff] %vm24, %v13531
  %13564 = vst.msk [vmem:[%s6 + $0x50] sm:$0xff] %vm24, %v13532
  %13565 = vst.msk [vmem:[%s6 + $0x58] sm:$0xff] %vm24, %v13533
  %13566 = vst.msk [vmem:[%s6 + $0x60] sm:$0xff] %vm24, %v13534
  %13567 = vst.msk [vmem:[%s6 + $0x68] sm:$0xff] %vm24, %v13535
  %13568 = vst.msk [vmem:[%s6 + $0x70] sm:$0xff] %vm24, %v13536
  %13569 = vst.msk [vmem:[%s6 + $0x78] sm:$0xff] %vm24, %v13537
  %13570 = vst.msk [vmem:[%s6 + $0x80] sm:$0xff] %vm24, %v13538
  %13571 = vst.msk [vmem:[%s6 + $0x88] sm:$0xff] %vm24, %v13539
  %13572 = vst.msk [vmem:[%s6 + $0x90] sm:$0xff] %vm24, %v13540
  %13573 = vst.msk [vmem:[%s6 + $0x98] sm:$0xff] %vm24, %v13541
  %13574 = vst.msk [vmem:[%s6 + $0xa0] sm:$0xff] %vm24, %v13542
  %13575 = vst.msk [vmem:[%s6 + $0xa8] sm:$0xff] %vm24, %v13543
  %13576 = vst.msk [vmem:[%s6 + $0xb0] sm:$0xff] %vm24, %v13544
  %13577 = vst.msk [vmem:[%s6 + $0xb8] sm:$0xff] %vm24, %v13545
  %13578 = vst.msk [vmem:[%s6 + $0xc0] sm:$0xff] %vm24, %v13546
  %13579 = vst.msk [vmem:[%s6 + $0xc8] sm:$0xff] %vm24, %v13547
  %13580 = vst.msk [vmem:[%s6 + $0xd0] sm:$0xff] %vm24, %v13548
  %13581 = vst.msk [vmem:[%s6 + $0xd8] sm:$0xff] %vm24, %v13549
  %13582 = vst.msk [vmem:[%s6 + $0xe0] sm:$0xff] %vm24, %v13550
  %13583 = vst.msk [vmem:[%s6 + $0xe8] sm:$0xff] %vm24, %v13551
  %13584 = vst.msk [vmem:[%s6 + $0xf0] sm:$0xff] %vm24, %v13552
  %13585 = vst.msk [vmem:[%s6 + $0xf8] sm:$0xff] %vm24, %v13553
  %v13586 = vld [vmem:[#allocation2 + $0x130] sm:$0xff]
  %v13587 = vld [vmem:[#allocation2 + $0x138] sm:$0xff]
  %v13588 = vld [vmem:[#allocation2 + $0x140] sm:$0xff]
  %v13589 = vld [vmem:[#allocation2 + $0x148] sm:$0xff]
  %v13590 = vld [vmem:[#allocation2 + $0x150] sm:$0xff]
  %v13591 = vld [vmem:[#allocation2 + $0x158] sm:$0xff]
  %v13592 = vld [vmem:[#allocation2 + $0x160] sm:$0xff]
  %v13593 = vld [vmem:[#allocation2 + $0x168] sm:$0xff]
  %v13594 = vld [vmem:[#allocation2 + $0x170] sm:$0xff]
  %v13595 = vld [vmem:[#allocation2 + $0x178] sm:$0xff]
  %v13596 = vld [vmem:[#allocation2 + $0x180] sm:$0xff]
  %v13597 = vld [vmem:[#allocation2 + $0x188] sm:$0xff]
  %v13598 = vld [vmem:[#allocation2 + $0x190] sm:$0xff]
  %v13599 = vld [vmem:[#allocation2 + $0x198] sm:$0xff]
  %v13600 = vld [vmem:[#allocation2 + $0x1a0] sm:$0xff]
  %v13601 = vld [vmem:[#allocation2 + $0x1a8] sm:$0xff]
  %v13602 = vld [vmem:[#allocation2 + $0x1b0] sm:$0xff]
  %v13603 = vld [vmem:[#allocation2 + $0x1b8] sm:$0xff]
  %v13604 = vld [vmem:[#allocation2 + $0x1c0] sm:$0xff]
  %v13605 = vld [vmem:[#allocation2 + $0x1c8] sm:$0xff]
  %v13606 = vld [vmem:[#allocation2 + $0x1d0] sm:$0xff]
  %v13607 = vld [vmem:[#allocation2 + $0x1d8] sm:$0xff]
  %v13608 = vld [vmem:[#allocation2 + $0x1e0] sm:$0xff]
  %v13609 = vld [vmem:[#allocation2 + $0x1e8] sm:$0xff]
  %v13610 = vld [vmem:[#allocation2 + $0x1f0] sm:$0xff]
  %v13611 = vld [vmem:[#allocation2 + $0x1f8] sm:$0xff]
  %v13612 = vld [vmem:[#allocation2 + $0x200] sm:$0xff]
  %v13613 = vld [vmem:[#allocation2 + $0x208] sm:$0xff]
  %v13614 = vld [vmem:[#allocation2 + $0x210] sm:$0xff]
  %v13615 = vld [vmem:[#allocation2 + $0x218] sm:$0xff]
  %v13616 = vld [vmem:[#allocation2 + $0x220] sm:$0xff]
  %v13617 = vld [vmem:[#allocation2 + $0x228] sm:$0xff]
  %v13618 = vld [vmem:[%s98] sm:$0xff]
  %v13619 = vld [vmem:[%s98 + $0x8] sm:$0xff]
  %v13620 = vld [vmem:[%s98 + $0x10] sm:$0xff]
  %v13621 = vld [vmem:[%s98 + $0x18] sm:$0xff]
  %v13622 = vld [vmem:[%s98 + $0x20] sm:$0xff]
  %v13623 = vld [vmem:[%s98 + $0x28] sm:$0xff]
  %v13624 = vld [vmem:[%s98 + $0x30] sm:$0xff]
  %v13625 = vld [vmem:[%s98 + $0x38] sm:$0xff]
  %v13626 = vld [vmem:[%s98 + $0x40] sm:$0xff]
  %v13627 = vld [vmem:[%s98 + $0x48] sm:$0xff]
  %v13628 = vld [vmem:[%s98 + $0x50] sm:$0xff]
  %v13629 = vld [vmem:[%s98 + $0x58] sm:$0xff]
  %v13630 = vld [vmem:[%s98 + $0x60] sm:$0xff]
  %v13631 = vld [vmem:[%s98 + $0x68] sm:$0xff]
  %v13632 = vld [vmem:[%s98 + $0x70] sm:$0xff]
  %v13633 = vld [vmem:[%s98 + $0x78] sm:$0xff]
  %v13634 = vld [vmem:[%s98 + $0x80] sm:$0xff]
  %v13635 = vld [vmem:[%s98 + $0x88] sm:$0xff]
  %v13636 = vld [vmem:[%s98 + $0x90] sm:$0xff]
  %v13637 = vld [vmem:[%s98 + $0x98] sm:$0xff]
  %v13638 = vld [vmem:[%s98 + $0xa0] sm:$0xff]
  %v13639 = vld [vmem:[%s98 + $0xa8] sm:$0xff]
  %v13640 = vld [vmem:[%s98 + $0xb0] sm:$0xff]
  %v13641 = vld [vmem:[%s98 + $0xb8] sm:$0xff]
  %v13642 = vld [vmem:[%s98 + $0xc0] sm:$0xff]
  %v13643 = vld [vmem:[%s98 + $0xc8] sm:$0xff]
  %v13644 = vld [vmem:[%s98 + $0xd0] sm:$0xff]
  %v13645 = vld [vmem:[%s98 + $0xd8] sm:$0xff]
  %v13646 = vld [vmem:[%s98 + $0xe0] sm:$0xff]
  %v13647 = vld [vmem:[%s98 + $0xe8] sm:$0xff]
  %v13648 = vld [vmem:[%s98 + $0xf0] sm:$0xff]
  %v13649 = vld [vmem:[%s98 + $0xf8] sm:$0xff]
  %v13650 = vadd.f32 %v13586, %v13618
  %v13651 = vadd.f32 %v13587, %v13619
  %v13652 = vadd.f32 %v13588, %v13620
  %v13653 = vadd.f32 %v13589, %v13621
  %v13654 = vadd.f32 %v13590, %v13622
  %v13655 = vadd.f32 %v13591, %v13623
  %v13656 = vadd.f32 %v13592, %v13624
  %v13657 = vadd.f32 %v13593, %v13625
  %v13658 = vadd.f32 %v13594, %v13626
  %v13659 = vadd.f32 %v13595, %v13627
  %v13660 = vadd.f32 %v13596, %v13628
  %v13661 = vadd.f32 %v13597, %v13629
  %v13662 = vadd.f32 %v13598, %v13630
  %v13663 = vadd.f32 %v13599, %v13631
  %v13664 = vadd.f32 %v13600, %v13632
  %v13665 = vadd.f32 %v13601, %v13633
  %v13666 = vadd.f32 %v13602, %v13634
  %v13667 = vadd.f32 %v13603, %v13635
  %v13668 = vadd.f32 %v13604, %v13636
  %v13669 = vadd.f32 %v13605, %v13637
  %v13670 = vadd.f32 %v13606, %v13638
  %v13671 = vadd.f32 %v13607, %v13639
  %v13672 = vadd.f32 %v13608, %v13640
  %v13673 = vadd.f32 %v13609, %v13641
  %v13674 = vadd.f32 %v13610, %v13642
  %v13675 = vadd.f32 %v13611, %v13643
  %v13676 = vadd.f32 %v13612, %v13644
  %v13677 = vadd.f32 %v13613, %v13645
  %v13678 = vadd.f32 %v13614, %v13646
  %v13679 = vadd.f32 %v13615, %v13647
  %v13680 = vadd.f32 %v13616, %v13648
  %v13681 = vadd.f32 %v13617, %v13649
  %s13682 = scalar_lea.vmem %s6, 256
  %13683 = vst.msk [vmem:[%s13682] sm:$0xff] %vm24, %v13650
  %13684 = vst.msk [vmem:[%s13682 + $0x8] sm:$0xff] %vm24, %v13651
  %13685 = vst.msk [vmem:[%s13682 + $0x10] sm:$0xff] %vm24, %v13652
  %13686 = vst.msk [vmem:[%s13682 + $0x18] sm:$0xff] %vm24, %v13653
  %13687 = vst.msk [vmem:[%s13682 + $0x20] sm:$0xff] %vm24, %v13654
  %13688 = vst.msk [vmem:[%s13682 + $0x28] sm:$0xff] %vm24, %v13655
  %13689 = vst.msk [vmem:[%s13682 + $0x30] sm:$0xff] %vm24, %v13656
  %13690 = vst.msk [vmem:[%s13682 + $0x38] sm:$0xff] %vm24, %v13657
  %13691 = vst.msk [vmem:[%s13682 + $0x40] sm:$0xff] %vm24, %v13658
  %13692 = vst.msk [vmem:[%s13682 + $0x48] sm:$0xff] %vm24, %v13659
  %13693 = vst.msk [vmem:[%s13682 + $0x50] sm:$0xff] %vm24, %v13660
  %13694 = vst.msk [vmem:[%s13682 + $0x58] sm:$0xff] %vm24, %v13661
  %13695 = vst.msk [vmem:[%s13682 + $0x60] sm:$0xff] %vm24, %v13662
  %13696 = vst.msk [vmem:[%s13682 + $0x68] sm:$0xff] %vm24, %v13663
  %13697 = vst.msk [vmem:[%s13682 + $0x70] sm:$0xff] %vm24, %v13664
  %13698 = vst.msk [vmem:[%s13682 + $0x78] sm:$0xff] %vm24, %v13665
  %13699 = vst.msk [vmem:[%s13682 + $0x80] sm:$0xff] %vm24, %v13666
  %13700 = vst.msk [vmem:[%s13682 + $0x88] sm:$0xff] %vm24, %v13667
  %13701 = vst.msk [vmem:[%s13682 + $0x90] sm:$0xff] %vm24, %v13668
  %13702 = vst.msk [vmem:[%s13682 + $0x98] sm:$0xff] %vm24, %v13669
  %13703 = vst.msk [vmem:[%s13682 + $0xa0] sm:$0xff] %vm24, %v13670
  %13704 = vst.msk [vmem:[%s13682 + $0xa8] sm:$0xff] %vm24, %v13671
  %13705 = vst.msk [vmem:[%s13682 + $0xb0] sm:$0xff] %vm24, %v13672
  %13706 = vst.msk [vmem:[%s13682 + $0xb8] sm:$0xff] %vm24, %v13673
  %13707 = vst.msk [vmem:[%s13682 + $0xc0] sm:$0xff] %vm24, %v13674
  %13708 = vst.msk [vmem:[%s13682 + $0xc8] sm:$0xff] %vm24, %v13675
  %13709 = vst.msk [vmem:[%s13682 + $0xd0] sm:$0xff] %vm24, %v13676
  %13710 = vst.msk [vmem:[%s13682 + $0xd8] sm:$0xff] %vm24, %v13677
  %13711 = vst.msk [vmem:[%s13682 + $0xe0] sm:$0xff] %vm24, %v13678
  %13712 = vst.msk [vmem:[%s13682 + $0xe8] sm:$0xff] %vm24, %v13679
  %13713 = vst.msk [vmem:[%s13682 + $0xf0] sm:$0xff] %vm24, %v13680
  %13714 = vst.msk [vmem:[%s13682 + $0xf8] sm:$0xff] %vm24, %v13681
  // Predicated region
  $region26: #{tpu_custom_call.1} parent=0 // pred_check
    _
  $region27: #{tpu_custom_call.1} parent=0 // pred_check_branch
    %13716 = sbr.rel (0) target = $region29
  $region28: #{tpu_custom_call.1} parent=0 // pred_region
    _
  $region29: #{tpu_custom_call.1} parent=0 // pred_fallthru
    _
  // Predicated region
  $region30: #{tpu_custom_call.1} parent=0 // pred_check
    _
  $region31: #{tpu_custom_call.1} parent=0 // pred_check_branch
    %13718 = sbr.rel (0) target = $region33
  $region32: #{tpu_custom_call.1} parent=0 // pred_region
    _
  $region33: #{tpu_custom_call.1} parent=0 // pred_fallthru
    _

</llo_original>
